<compile_context>
chip_gen: v6e
topology: v6e:2x2x1
jax: 0.10.0
libtpu: 0.0.40
codegen_flags: <defaults>
</compile_context>

<pallas_src>
import functools

import jax
import jax.numpy as jnp
import numpy as np
from jax.experimental import pallas as pl
from jax.experimental.pallas import tpu as pltpu

_BN_EPS = 1e-5
_LAYER_DIMS = [(10240, 4096), (4096, 1024), (1024, 256),
               (256, 128), (128, 64), (64, 2)]
_VMEM_LIMIT = 48 << 20   # fits v7x (64 MiB physical); plenty on v5e/v6e


# --------------------- fc1: tiled HBM weight-streaming kernel -----------------

def _streaming_layer_kernel(x_ref, w_ref, scale_ref, shift_ref, o_ref, *,
                            apply_relu):
    """Grid step (j, k) of  y = act((x @ W) * scale + shift).

    The output block index is invariant along k, so o_ref stays resident in
    VMEM across the whole reduction and doubles as the f32 accumulator.
    """
    k = pl.program_id(1)

    @pl.when(k == 0)
    def _():
        o_ref[...] = jnp.zeros_like(o_ref)

    o_ref[...] += jnp.dot(x_ref[...], w_ref[...],
                          preferred_element_type=jnp.float32)

    @pl.when(k == pl.num_programs(1) - 1)
    def _():
        y = o_ref[...] * scale_ref[...] + shift_ref[...]
        if apply_relu:
            y = jnp.maximum(y, 0.0)
        o_ref[...] = y


def streaming_fused_linear(x, w, scale, shift, *, apply_relu,
                           tn=2048, tk=2048, vmem_limit_bytes=_VMEM_LIMIT):
    """x: (B, K), w: (K, N), scale/shift: (N,)  ->  (B, N), all f32."""
    B, K = x.shape
    Kw, N = w.shape
    assert K == Kw
    tn = min(tn, N)
    tk = min(tk, K)
    assert N % tn == 0 and K % tk == 0

    scale2 = scale.reshape(1, N)
    shift2 = shift.reshape(1, N)
    grid = (N // tn, K // tk)          # j (parallel) leading, k (reduction) last
    kernel = functools.partial(_streaming_layer_kernel, apply_relu=apply_relu)

    return pl.pallas_call(
        kernel,
        out_shape=jax.ShapeDtypeStruct((B, N), jnp.float32),
        grid_spec=pltpu.PrefetchScalarGridSpec(
            num_scalar_prefetch=0,
            grid=grid,
            in_specs=[
                pl.BlockSpec((B, tk), lambda j, k: (0, k)),    # x tile
                pl.BlockSpec((tk, tn), lambda j, k: (k, j)),   # W tile (16 MiB)
                pl.BlockSpec((1, tn), lambda j, k: (0, j)),    # folded scale
                pl.BlockSpec((1, tn), lambda j, k: (0, j)),    # folded shift
            ],
            out_specs=pl.BlockSpec((B, tn), lambda j, k: (0, j)),
        ),
        compiler_params=pltpu.CompilerParams(
            dimension_semantics=("parallel", "arbitrary"),
            vmem_limit_bytes=vmem_limit_bytes),
    )(x, w, scale2, shift2)


# ------------------ fc2..fc6: single fused VMEM-resident kernel ---------------

def _tail_kernel(*refs, relus):
    """refs = (x, w_1, scale_1, shift_1, ..., w_L, scale_L, shift_L, out)."""
    x_ref, o_ref = refs[0], refs[-1]
    h = x_ref[...]
    for li, relu in enumerate(relus):
        w = refs[1 + 3 * li][...]
        s = refs[2 + 3 * li][...]
        t = refs[3 + 3 * li][...]
        h = jnp.dot(h, w, preferred_element_type=jnp.float32) * s + t
        if relu:
            h = jnp.maximum(h, 0.0)
    o_ref[...] = h.astype(o_ref.dtype)


def fused_mlp_tail(x, layers, *, vmem_limit_bytes=_VMEM_LIMIT):
    """Run a stack of small, fully VMEM-resident fused Linear(+BN+ReLU) layers."""
    B = x.shape[0]
    inputs = [x]
    relus = []
    for p in layers:
        n = p["w"].shape[1]
        inputs += [p["w"], p["scale"].reshape(1, n), p["shift"].reshape(1, n)]
        relus.append(p["relu"])
    out_dim = layers[-1]["w"].shape[1]

    vmem = pl.BlockSpec(memory_space=pltpu.MemorySpace.VMEM)
    kernel = functools.partial(_tail_kernel, relus=tuple(relus))
    return pl.pallas_call(
        kernel,
        out_shape=jax.ShapeDtypeStruct((B, out_dim), jnp.float32),
        in_specs=[vmem] * len(inputs),
        out_specs=vmem,
        compiler_params=pltpu.CompilerParams(
            vmem_limit_bytes=vmem_limit_bytes),
    )(*inputs)


# ----------------------------- parameters -------------------------------------

def init_params(key):
    """Deterministic synthetic parameters matching the PyTorch module shapes."""
    layers = []
    for li, (fin, fout) in enumerate(_LAYER_DIMS):
        k = jax.random.fold_in(key, li)
        kw, kb, kg, kbeta, km, kv = jax.random.split(k, 6)
        bound = 1.0 / np.sqrt(fin)
        # Linear weight stored as (in, out) == PyTorch weight^T.
        w = jax.random.uniform(kw, (fin, fout), jnp.float32, -bound, bound)
        b = jax.random.uniform(kb, (fout,), jnp.float32, -bound, bound)
        if li < 5:   # fc1..fc5 carry BatchNorm1d (eval-mode running stats)
            gamma = 1.0 + 0.05 * jax.random.normal(kg, (fout,), jnp.float32)
            beta = 0.05 * jax.random.normal(kbeta, (fout,), jnp.float32)
            rmean = 0.05 * jax.random.normal(km, (fout,), jnp.float32)
            rvar = 1.0 + 0.1 * jax.random.uniform(kv, (fout,), jnp.float32)
            bn = (gamma, beta, rmean, rvar)
        else:        # fc6: plain Linear
            bn = None
        layers.append(dict(w=w, b=b, bn=bn))
    return layers


def fold_layer(layer):
    """Fold Linear bias + eval-mode BN into one affine: y = (x@W)*scale + shift."""
    w, b, bn = layer["w"], layer["b"], layer["bn"]
    if bn is not None:
        gamma, beta, mean, var = bn
        scale = gamma / jnp.sqrt(var + _BN_EPS)
        shift = beta + (b - mean) * scale
        relu = True
    else:
        scale = jnp.ones_like(b)
        shift = b
        relu = False
    return dict(w=w, scale=scale, shift=shift, relu=relu)


# ------------------------------- forward ---------------------------------------

def mlp_forward(x, layers):
    folded = [fold_layer(l) for l in layers]
    out = x.reshape(x.shape[0], -1).astype(jnp.float32)   # out = x.view(B, -1)
    # fc1: 160 MiB weight -> tiled HBM-streaming kernel.
    p0 = folded[0]
    out = streaming_fused_linear(out, p0["w"], p0["scale"], p0["shift"],
                                 apply_relu=p0["relu"])
    # fc2..fc6: ~17.5 MiB of weights total -> one fused VMEM-resident kernel.
    out = fused_mlp_tail(out, folded[1:])
    return out


def mlp_reference(x, layers):
    """Un-folded reference matching the PyTorch eval-mode forward."""
    out = x.reshape(x.shape[0], -1).astype(jnp.float32)
    for layer in layers:
        out = out @ layer["w"] + layer["b"]
        if layer["bn"] is not None:
            gamma, beta, mean, var = layer["bn"]
            out = (out - mean) / jnp.sqrt(var + _BN_EPS) * gamma + beta
            out = jnp.maximum(out, 0.0)
    return out


if __name__ == "__main__":
    key = jax.random.PRNGKey(0)
    kx, kp = jax.random.split(key)

    # batch=2, in_channel=1; flattens to fc1's 10240 input features.
    x = jax.random.normal(kx, (2, 1, 10240), jnp.float32)
    layers = init_params(kp)

    out = jax.block_until_ready(mlp_forward(x, layers))
    ref = jax.block_until_ready(mlp_reference(x, layers))

    assert out.shape == (2, 2), out.shape
    assert np.allclose(np.asarray(out), np.asarray(ref), rtol=1e-3, atol=1e-3), \
        float(np.max(np.abs(np.asarray(out) - np.asarray(ref))))

    print("KERNEL_OK")
</pallas_src>

<mosaic_0001>
module attributes {stable_mosaic.version = 11 : i64} {
  func.func @_streaming_layer_kernel(%arg0: i32, %arg1: i32, %arg2: memref<2x2048xf32, #tpu.memory_space<vmem>>, %arg3: memref<2048x2048xf32, #tpu.memory_space<vmem>>, %arg4: memref<1x2048xf32, #tpu.memory_space<vmem>>, %arg5: memref<1x2048xf32, #tpu.memory_space<vmem>>, %arg6: memref<2x2048xf32, #tpu.memory_space<vmem>>) attributes {dimension_semantics = [#tpu.dimension_semantics<parallel>, #tpu.dimension_semantics<arbitrary>], iteration_bounds = array<i64: 2, 5>, scalar_prefetch = 0 : i64, scratch_operands = 0 : i64, tpu.core_type = #tpu.core_type<tc>, window_params = [{transform_indices = @transform_0, window_bounds = array<i64: 2, 2048>}, {transform_indices = @transform_1, window_bounds = array<i64: 2048, 2048>}, {transform_indices = @transform_2, window_bounds = array<i64: 1, 2048>}, {transform_indices = @transform_3, window_bounds = array<i64: 1, 2048>}, {transform_indices = @transform_4, window_bounds = array<i64: 2, 2048>}]} {
    %c0_i32 = arith.constant 0 : i32
    %0 = arith.cmpi eq, %arg1, %c0_i32 : i32
    %1 = arith.extui %0 : i1 to i32
    %c0_i32_0 = arith.constant 0 : i32
    %2 = arith.cmpi ne, %1, %c0_i32_0 : i32
    scf.if %2 {
      %cst_9 = arith.constant 0.000000e+00 : f32
      %12 = vector.broadcast %cst_9 : f32 to vector<2x2048xf32>
      %c0_10 = arith.constant 0 : index
      %c0_11 = arith.constant 0 : index
      %13 = vector.load %arg6[%c0_10, %c0_11] : memref<2x2048xf32, #tpu.memory_space<vmem>>, vector<2x2048xf32>
      tpu.vector_store %arg6[%c0_10, %c0_11], %12 {strides = array<i32>} : memref<2x2048xf32, #tpu.memory_space<vmem>>, vector<2x2048xf32>,
    } else {
    }
    %c0 = arith.constant 0 : index
    %c0_1 = arith.constant 0 : index
    %3 = vector.load %arg6[%c0, %c0_1] : memref<2x2048xf32, #tpu.memory_space<vmem>>, vector<2x2048xf32>
    %c0_2 = arith.constant 0 : index
    %c0_3 = arith.constant 0 : index
    %4 = vector.load %arg2[%c0_2, %c0_3] : memref<2x2048xf32, #tpu.memory_space<vmem>>, vector<2x2048xf32>
    %c0_4 = arith.constant 0 : index
    %c0_5 = arith.constant 0 : index
    %5 = vector.load %arg3[%c0_4, %c0_5] : memref<2048x2048xf32, #tpu.memory_space<vmem>>, vector<2048x2048xf32>
    %cst = arith.constant dense<0.000000e+00> : vector<2x2048xf32>
    %6 = tpu.matmul %4, %5, %cst {dimension_numbers = #tpu.dot_dimension_numbers<[1], [0], [0], [1], [0, 0, 1, 1], [], []>} : vector<2x2048xf32>, vector<2048x2048xf32>, vector<2x2048xf32> -> vector<2x2048xf32>
    %7 = arith.addf %3, %6 : vector<2x2048xf32>
    %c0_6 = arith.constant 0 : index
    %c0_7 = arith.constant 0 : index
    %8 = vector.load %arg6[%c0_6, %c0_7] : memref<2x2048xf32, #tpu.memory_space<vmem>>, vector<2x2048xf32>
    tpu.vector_store %arg6[%c0_6, %c0_7], %7 {strides = array<i32>} : memref<2x2048xf32, #tpu.memory_space<vmem>>, vector<2x2048xf32>,
    %c4_i32 = arith.constant 4 : i32
    %9 = arith.cmpi eq, %arg1, %c4_i32 : i32
    %10 = arith.extui %9 : i1 to i32
    %c0_i32_8 = arith.constant 0 : i32
    %11 = arith.cmpi ne, %10, %c0_i32_8 : i32
    scf.if %11 {
      %c0_9 = arith.constant 0 : index
      %c0_10 = arith.constant 0 : index
      %12 = vector.load %arg6[%c0_9, %c0_10] : memref<2x2048xf32, #tpu.memory_space<vmem>>, vector<2x2048xf32>
      %c0_11 = arith.constant 0 : index
      %c0_12 = arith.constant 0 : index
      %13 = vector.load %arg4[%c0_11, %c0_12] : memref<1x2048xf32, #tpu.memory_space<vmem>>, vector<1x2048xf32>
      %14 = vector.broadcast %13 : vector<1x2048xf32> to vector<2x2048xf32>
      %15 = arith.mulf %12, %14 : vector<2x2048xf32>
      %c0_13 = arith.constant 0 : index
      %c0_14 = arith.constant 0 : index
      %16 = vector.load %arg5[%c0_13, %c0_14] : memref<1x2048xf32, #tpu.memory_space<vmem>>, vector<1x2048xf32>
      %17 = vector.broadcast %16 : vector<1x2048xf32> to vector<2x2048xf32>
      %18 = arith.addf %15, %17 : vector<2x2048xf32>
      %cst_15 = arith.constant 0.000000e+00 : f32
      %19 = vector.broadcast %cst_15 : f32 to vector<2x2048xf32>
      %20 = arith.maximumf %18, %19 : vector<2x2048xf32>
      %c0_16 = arith.constant 0 : index
      %c0_17 = arith.constant 0 : index
      %21 = vector.load %arg6[%c0_16, %c0_17] : memref<2x2048xf32, #tpu.memory_space<vmem>>, vector<2x2048xf32>
      tpu.vector_store %arg6[%c0_16, %c0_17], %20 {strides = array<i32>} : memref<2x2048xf32, #tpu.memory_space<vmem>>, vector<2x2048xf32>,
    } else {
    }
    return
  }
  func.func @transform_0(%arg0: i32, %arg1: i32) -> (i32, i32) {
    %c0_i32 = arith.constant 0 : i32
    %c0_i32_0 = arith.constant 0 : i32
    return %c0_i32, %arg1 : i32, i32
  }
  func.func @transform_1(%arg0: i32, %arg1: i32) -> (i32, i32) {
    %c0_i32 = arith.constant 0 : i32
    return %arg1, %arg0 : i32, i32
  }
  func.func @transform_2(%arg0: i32, %arg1: i32) -> (i32, i32) {
    %c0_i32 = arith.constant 0 : i32
    %c0_i32_0 = arith.constant 0 : i32
    return %c0_i32, %arg0 : i32, i32
  }
  func.func @transform_3(%arg0: i32, %arg1: i32) -> (i32, i32) {
    %c0_i32 = arith.constant 0 : i32
    %c0_i32_0 = arith.constant 0 : i32
    return %c0_i32, %arg0 : i32, i32
  }
  func.func @transform_4(%arg0: i32, %arg1: i32) -> (i32, i32) {
    %c0_i32 = arith.constant 0 : i32
    %c0_i32_0 = arith.constant 0 : i32
    return %c0_i32, %arg0 : i32, i32
  }
}

</mosaic_0001>

<llo_original>
// kernel: tpu_custom_call.1
$region0: #{tpu_custom_call.1}
  #allocation0 [shape = 'u32[]', space=smem, size = 0x4, offset = 0x4, fixed_abs, tag = 'smem constant byte address 0x4 - core index']
  #allocation1 [shape = 'u32[144,128]{1,0:T(1,128)}', space=vmem, size = 0x12000, scoped, tag = 'internal scratch']
  %s0 = inlined_call_operand.hbm [shape: f32[2,10240], index: 0, kind: input, shape index: {}]
  %s1 = inlined_call_operand.hbm [shape: f32[10240,4096], index: 1, kind: input, shape index: {}]
  %s2 = inlined_call_operand.hbm [shape: f32[1,4096], index: 2, kind: input, shape index: {}]
  %s3 = inlined_call_operand.hbm [shape: f32[1,4096], index: 3, kind: input, shape index: {}]
  %s4 = inlined_call_operand.hbm [shape: f32[2,4096], index: 4, kind: output, shape index: {}]
  %s5 = sld [smem:[#allocation0]]
  $region73: #{tpu_custom_call.1} parent=0
    _
  %s7 = ssub.s32 1, %s5
  %s8 = scalar_select 0, %s7, %s5
  $region1: #{tpu_custom_call.1} parent=0
    #allocation2 [shape = 'u8[32768]{0}', space=vmem, size = 0x8000, scoped, tag = 'input window, operand 0']
    #allocation3 [shape = 's32[2]{0}', space=sflag, size = 0x8, scoped, tag = 'scoped memory for tpu_custom_call.1']
    #allocation4 [shape = 's32[2]{0}', space=sflag, size = 0x8, scoped, tag = 'scoped memory for tpu_custom_call.1']
    #allocation5 [shape = 'u8[33554432]{0}', space=vmem, size = 0x2000000, scoped, tag = 'input window, operand 1']
    #allocation6 [shape = 's32[2]{0}', space=sflag, size = 0x8, scoped, tag = 'scoped memory for tpu_custom_call.1']
    #allocation7 [shape = 'u8[16384]{0}', space=vmem, size = 0x4000, scoped, tag = 'input window, operand 2']
    #allocation8 [shape = 'u8[16384]{0}', space=vmem, size = 0x4000, scoped, tag = 'input window, operand 3']
    #allocation9 [shape = 's32[2]{0}', space=sflag, size = 0x8, scoped, tag = 'scoped memory for tpu_custom_call.1']
    #allocation10 [shape = 'u8[32768]{0}', space=vmem, size = 0x8000, scoped, tag = 'output window, operand 0']
    %9 = vsyncpa [#allocation3], 0
    %s10 = scalar_lea.sflag [#allocation3], 1
    %11 = vsyncpa %s10, 0
    %12 = vsyncpa [#allocation6], 0
    %s13 = scalar_lea.sflag [#allocation6], 1
    %14 = vsyncpa %s13, 0
    %15 = vsyncpa [#allocation9], 0
    %s16 = scalar_lea.sflag [#allocation9], 1
    %17 = vsyncpa %s16, 0
    %18 = vsyncpa [#allocation4], 0
    %s19 = scalar_lea.sflag [#allocation4], 1
    %20 = vsyncpa %s19, 0
    loop: start=0, step=1, limit=12
    $region2: #{tpu_custom_call.1} parent=1 // loop_pre_header
      _
    $region3: #{tpu_custom_call.1} parent=1 // loop_header
      %s22 = sphi 0, %s26
      %p23 = scmp.ge.s32.totalorder %s22, 12
      %s29 = sphi 0, %s41
      %s30 = sphi 0, %s37
      %s31 = sphi 0, %s29
      %s32 = sphi 0, %s30
      %s33 = sphi 0, %s31
      %s34 = sphi 0, %s32
      %s44 = sphi 0, %s46
      %s47 = sphi 0, %s44
      %s48 = sphi 0, %s47
      %s64 = sphi 0, %s48
      %s72 = sphi 0, %s74
      %s75 = sphi 0, %s72
      %s76 = sphi 0, %s75
      %s92 = sphi 0, %s76
      %s98 = sphi 0, %s100
      %s101 = sphi 0, %s98
      %s102 = sphi 0, %s101
      %s118 = sphi 0, %s102
      %s124 = sphi 0, %s126
      %s127 = sphi 0, %s124
      %s128 = sphi 0, %s127
      %s144 = sphi 0, %s128
      %s150 = sphi 0, %s152
      %s153 = sphi 0, %s150
      %s154 = sphi 0, %s153
      %s170 = sphi 0, %s154
    $region4: #{tpu_custom_call.1} parent=1 // loop_header_branch
      %25 = sbr.rel (%p23) target = $region8
    $region5: #{tpu_custom_call.1} parent=1 // loop_body
      %s27 = ssub.s32 %s22, 1
      %s28 = ssub.s32 %s22, 2
      %s35 = sadd.s32 1, %s30
      %p36 = scmp.ge.s32.totalorder %s35, 5
      %s37 = scalar_select %p36, 0, %s35
      %s38 = sadd.s32 1, %s29
      %s39 = scalar_select %p36, %s38, %s29
      %p40 = scmp.ge.s32.totalorder %s39, 2
      %s41 = scalar_select %p40, 0, %s39
      %s42 = ssub.s32 %s30, %s37
      %p43 = scmp.eq.s32.totalorder %s42, 0
      %s45 = sadd.s32 %s44, 1
      %s46 = scalar_select %p43, %s44, %s45
      %p49 = pneg %p43
      %p50 = scmp.eq.s32.totalorder %s22, 9
      %p51 = por %p49, %p50
      %p52 = scmp.ne.s32.totalorder %s44, %s47
      %p53 = scmp.eq.s32.totalorder %s22, 0
      %p54 = por %p52, %p53
      %p55 = scmp.ne.s32.totalorder %s44, %s47
      %p56 = scmp.eq.s32.totalorder %s27, 9
      %p57 = por %p55, %p56
      %p58 = scmp.ne.s32.totalorder %s47, %s48
      %p59 = scmp.eq.s32.totalorder %s27, 0
      %p60 = por %p58, %p59
      %p61 = scmp.ne.s32.totalorder %s47, %s48
      %p62 = scmp.eq.s32.totalorder %s28, 9
      %p63 = por %p61, %p62
      %p65 = scmp.ne.s32.totalorder %s48, %s64
      %p66 = scmp.eq.s32.totalorder %s28, 0
      %p67 = por %p65, %p66
      %s68 = ssub.s32 %s30, %s37
      %s69 = ssub.s32 %s29, %s41
      %s70 = sor.u32 %s68, %s69
      %p71 = scmp.eq.s32.totalorder %s70, 0
      %s73 = sadd.s32 %s72, 1
      %s74 = scalar_select %p71, %s72, %s73
      %p77 = pneg %p71
      %p78 = scmp.eq.s32.totalorder %s22, 9
      %p79 = por %p77, %p78
      %p80 = scmp.ne.s32.totalorder %s72, %s75
      %p81 = scmp.eq.s32.totalorder %s22, 0
      %p82 = por %p80, %p81
      %p83 = scmp.ne.s32.totalorder %s72, %s75
      %p84 = scmp.eq.s32.totalorder %s27, 9
      %p85 = por %p83, %p84
      %p86 = scmp.ne.s32.totalorder %s75, %s76
      %p87 = scmp.eq.s32.totalorder %s27, 0
      %p88 = por %p86, %p87
      %p89 = scmp.ne.s32.totalorder %s75, %s76
      %p90 = scmp.eq.s32.totalorder %s28, 9
      %p91 = por %p89, %p90
      %p93 = scmp.ne.s32.totalorder %s76, %s92
      %p94 = scmp.eq.s32.totalorder %s28, 0
      %p95 = por %p93, %p94
      %s96 = ssub.s32 %s29, %s41
      %p97 = scmp.eq.s32.totalorder %s96, 0
      %s99 = sadd.s32 %s98, 1
      %s100 = scalar_select %p97, %s98, %s99
      %p103 = pneg %p97
      %p104 = scmp.eq.s32.totalorder %s22, 9
      %p105 = por %p103, %p104
      %p106 = scmp.ne.s32.totalorder %s98, %s101
      %p107 = scmp.eq.s32.totalorder %s22, 0
      %p108 = por %p106, %p107
      %p109 = scmp.ne.s32.totalorder %s98, %s101
      %p110 = scmp.eq.s32.totalorder %s27, 9
      %p111 = por %p109, %p110
      %p112 = scmp.ne.s32.totalorder %s101, %s102
      %p113 = scmp.eq.s32.totalorder %s27, 0
      %p114 = por %p112, %p113
      %p115 = scmp.ne.s32.totalorder %s101, %s102
      %p116 = scmp.eq.s32.totalorder %s28, 9
      %p117 = por %p115, %p116
      %p119 = scmp.ne.s32.totalorder %s102, %s118
      %p120 = scmp.eq.s32.totalorder %s28, 0
      %p121 = por %p119, %p120
      %s122 = ssub.s32 %s29, %s41
      %p123 = scmp.eq.s32.totalorder %s122, 0
      %s125 = sadd.s32 %s124, 1
      %s126 = scalar_select %p123, %s124, %s125
      %p129 = pneg %p123
      %p130 = scmp.eq.s32.totalorder %s22, 9
      %p131 = por %p129, %p130
      %p132 = scmp.ne.s32.totalorder %s124, %s127
      %p133 = scmp.eq.s32.totalorder %s22, 0
      %p134 = por %p132, %p133
      %p135 = scmp.ne.s32.totalorder %s124, %s127
      %p136 = scmp.eq.s32.totalorder %s27, 9
      %p137 = por %p135, %p136
      %p138 = scmp.ne.s32.totalorder %s127, %s128
      %p139 = scmp.eq.s32.totalorder %s27, 0
      %p140 = por %p138, %p139
      %p141 = scmp.ne.s32.totalorder %s127, %s128
      %p142 = scmp.eq.s32.totalorder %s28, 9
      %p143 = por %p141, %p142
      %p145 = scmp.ne.s32.totalorder %s128, %s144
      %p146 = scmp.eq.s32.totalorder %s28, 0
      %p147 = por %p145, %p146
      %s148 = ssub.s32 %s29, %s41
      %p149 = scmp.eq.s32.totalorder %s148, 0
      %s151 = sadd.s32 %s150, 1
      %s152 = scalar_select %p149, %s150, %s151
      %p155 = pneg %p149
      %p156 = scmp.eq.s32.totalorder %s22, 9
      %p157 = por %p155, %p156
      %p158 = scmp.ne.s32.totalorder %s150, %s153
      %p159 = scmp.eq.s32.totalorder %s22, 0
      %p160 = por %p158, %p159
      %p161 = scmp.ne.s32.totalorder %s150, %s153
      %p162 = scmp.eq.s32.totalorder %s27, 9
      %p163 = por %p161, %p162
      %p164 = scmp.ne.s32.totalorder %s153, %s154
      %p165 = scmp.eq.s32.totalorder %s27, 0
      %p166 = por %p164, %p165
      %p167 = scmp.ne.s32.totalorder %s153, %s154
      %p168 = scmp.eq.s32.totalorder %s28, 9
      %p169 = por %p167, %p168
      %p171 = scmp.ne.s32.totalorder %s154, %s170
      %p172 = scmp.eq.s32.totalorder %s28, 0
      %p173 = por %p171, %p172
      %p174 = scmp.le.s32.totalorder 1, %s22
      %p175 = scmp.lt.s32.totalorder %s22, 11
      %p176 = pnand %p174, %p175
      %p177 = pneg %p176
      // Predicated region
      $region9: #{tpu_custom_call.1} parent=5 // pred_check
        _
      $region10: #{tpu_custom_call.1} parent=5 // pred_check_branch
        %179 = sbr.rel (%p176) target = $region12
      $region11: #{tpu_custom_call.1} parent=5 // pred_region
        %s180 = ssub.s32 %s22, 1
      $region12: #{tpu_custom_call.1} parent=5 // pred_fallthru
        _
      %p181 = scmp.lt.s32.totalorder %s22, 10
      // Predicated region
      $region13: #{tpu_custom_call.1} parent=5 // pred_check
        %p182 = pneg %p181
      $region14: #{tpu_custom_call.1} parent=5 // pred_check_branch
        %184 = sbr.rel (%p182) target = $region16
      $region15: #{tpu_custom_call.1} parent=5 // pred_region
        // Predicated region
        $region17: #{tpu_custom_call.1} parent=15 // pred_check
          %p185 = pneg %p54
        $region18: #{tpu_custom_call.1} parent=15 // pred_check_branch
          %187 = sbr.rel (%p185) target = $region20
        $region19: #{tpu_custom_call.1} parent=15 // pred_region
          %s188 = sand.u32 %s44, 1
          %s189 = scalar_lea.sflag [#allocation3], %s188
          %s190 = sand.u32 %s44, 1
          %s191 = smul.addr %s190, 32
          %s192 = scalar_lea.vmem [#allocation2], %s191
          %s193 = smul.u32 16, %s30
          %s195 = ssub.s32 512, 512
          %196 = vsyncadd %s189, %s195
          %s197 = smul.addr %s193, 32
          %s198 = scalar_lea.hbm %s0, %s197
          %s200 = sshll.u32 %s192, 4
          %s201 = int_to_ptr.vmem [resolvable:$true] %s200
          %203 = dma.hbm_to_vmem [thread:$0]  %s198, 512, %s201, %s189
        $region20: #{tpu_custom_call.1} parent=15 // pred_fallthru
          _
        // Predicated region
        $region21: #{tpu_custom_call.1} parent=15 // pred_check
          %p204 = pneg %p82
        $region22: #{tpu_custom_call.1} parent=15 // pred_check_branch
          %206 = sbr.rel (%p204) target = $region24
        $region23: #{tpu_custom_call.1} parent=15 // pred_region
          %s207 = sand.u32 %s22, 1
          %s208 = scalar_lea.sflag [#allocation6], %s207
          %s209 = sand.u32 %s72, 1
          %s210 = smul.addr %s209, 32768
          %s211 = scalar_lea.vmem [#allocation5], %s210
          %s212 = smul.u32 256, %s30
          %s213 = smul.u32 16, %s29
          %s215 = ssub.s32 524288, 524288
          %216 = vsyncadd %s208, %s215
          %s217 = smul.addr %s212, 32
          %s218 = sadd.s32 %s213, %s217
          %s219 = smul.addr %s218, 128
          %s220 = scalar_lea.hbm %s1, %s219
          %s221 = sshll.u32 %s211, 4
          %s222 = int_to_ptr.vmem [resolvable:$true] %s221
          %227 = dma.hbm_to_vmem [thread:$0]  %s220, 524288, %s222, %s208, 4096, 2048, 128
        $region24: #{tpu_custom_call.1} parent=15 // pred_fallthru
          _
        // Predicated region
        $region25: #{tpu_custom_call.1} parent=15 // pred_check
          %p228 = pneg %p108
        $region26: #{tpu_custom_call.1} parent=15 // pred_check_branch
          %230 = sbr.rel (%p228) target = $region28
        $region27: #{tpu_custom_call.1} parent=15 // pred_region
          %s231 = sand.u32 %s22, 1
          %s232 = scalar_lea.sflag [#allocation6], %s231
          %s233 = sand.u32 %s98, 1
          %s234 = smul.addr %s233, 16
          %s235 = scalar_lea.vmem [#allocation7], %s234
          %s236 = smul.u32 16, %s29
          %s238 = ssub.s32 256, 256
          %239 = vsyncadd %s232, %s238
          %s240 = smul.addr %s236, 16
          %s241 = scalar_lea.hbm %s2, %s240
          %s243 = sshll.u32 %s235, 4
          %s244 = int_to_ptr.vmem [resolvable:$true] %s243
          %246 = dma.hbm_to_vmem [thread:$0]  %s241, 256, %s244, %s232
        $region28: #{tpu_custom_call.1} parent=15 // pred_fallthru
          _
        // Predicated region
        $region29: #{tpu_custom_call.1} parent=15 // pred_check
          %p247 = pneg %p134
        $region30: #{tpu_custom_call.1} parent=15 // pred_check_branch
          %249 = sbr.rel (%p247) target = $region32
        $region31: #{tpu_custom_call.1} parent=15 // pred_region
          %s250 = sand.u32 %s124, 1
          %s251 = scalar_lea.sflag [#allocation9], %s250
          %s252 = sand.u32 %s124, 1
          %s253 = smul.addr %s252, 16
          %s254 = scalar_lea.vmem [#allocation8], %s253
          %s255 = smul.u32 16, %s29
          %s257 = ssub.s32 256, 256
          %258 = vsyncadd %s251, %s257
          %s259 = smul.addr %s255, 16
          %s260 = scalar_lea.hbm %s3, %s259
          %s262 = sshll.u32 %s254, 4
          %s263 = int_to_ptr.vmem [resolvable:$true] %s262
          %265 = dma.hbm_to_vmem [thread:$0]  %s260, 256, %s263, %s251
        $region32: #{tpu_custom_call.1} parent=15 // pred_fallthru
          _
      $region16: #{tpu_custom_call.1} parent=5 // pred_fallthru
        _
      %p266 = scmp.le.s32.totalorder 1, %s22
      %p267 = scmp.lt.s32.totalorder %s22, 11
      %p268 = pnand %p266, %p267
      %p269 = pneg %p268
      // Predicated region
      $region33: #{tpu_custom_call.1} parent=5 // pred_check
        _
      $region34: #{tpu_custom_call.1} parent=5 // pred_check_branch
        %271 = sbr.rel (%p268) target = $region36
      $region35: #{tpu_custom_call.1} parent=5 // pred_region
        %s272 = ssub.s32 %s22, 1
        %s273 = sand.u32 %s47, 1
        %s274 = scalar_lea.sflag [#allocation3], %s273
        %s275 = sand.u32 %s47, 1
        %s276 = smul.addr %s275, 32
        %s277 = scalar_lea.vmem [#allocation2], %s276
        // Predicated region
        $region37: #{tpu_custom_call.1} parent=35 // pred_check
          %p278 = pneg %p60
        $region38: #{tpu_custom_call.1} parent=35 // pred_check_branch
          %280 = sbr.rel (%p278) target = $region40
        $region39: #{tpu_custom_call.1} parent=35 // pred_region
          %281 = dma.done %s274, 512
        $region40: #{tpu_custom_call.1} parent=35 // pred_fallthru
          _
        %s282 = sand.u32 %s27, 1
        %s283 = scalar_lea.sflag [#allocation6], %s282
        %s284 = sand.u32 %s75, 1
        %s285 = smul.addr %s284, 32768
        %s286 = scalar_lea.vmem [#allocation5], %s285
        // Predicated region
        $region41: #{tpu_custom_call.1} parent=35 // pred_check
          %p287 = pneg %p88
        $region42: #{tpu_custom_call.1} parent=35 // pred_check_branch
          %289 = sbr.rel (%p287) target = $region44
        $region43: #{tpu_custom_call.1} parent=35 // pred_region
          %290 = dma.done %s283, 524288
        $region44: #{tpu_custom_call.1} parent=35 // pred_fallthru
          _
        %s291 = sand.u32 %s27, 1
        %s292 = scalar_lea.sflag [#allocation6], %s291
        %s293 = sand.u32 %s101, 1
        %s294 = smul.addr %s293, 16
        %s295 = scalar_lea.vmem [#allocation7], %s294
        // Predicated region
        $region45: #{tpu_custom_call.1} parent=35 // pred_check
          %p296 = pneg %p114
        $region46: #{tpu_custom_call.1} parent=35 // pred_check_branch
          %298 = sbr.rel (%p296) target = $region48
        $region47: #{tpu_custom_call.1} parent=35 // pred_region
          %299 = dma.done %s292, 256
        $region48: #{tpu_custom_call.1} parent=35 // pred_fallthru
          _
        %s300 = sand.u32 %s127, 1
        %s301 = scalar_lea.sflag [#allocation9], %s300
        %s302 = sand.u32 %s127, 1
        %s303 = smul.addr %s302, 16
        %s304 = scalar_lea.vmem [#allocation8], %s303
        // Predicated region
        $region49: #{tpu_custom_call.1} parent=35 // pred_check
          %p305 = pneg %p140
        $region50: #{tpu_custom_call.1} parent=35 // pred_check_branch
          %307 = sbr.rel (%p305) target = $region52
        $region51: #{tpu_custom_call.1} parent=35 // pred_region
          %308 = dma.done %s301, 256
        $region52: #{tpu_custom_call.1} parent=35 // pred_fallthru
          _
        %s309 = sand.u32 %s47, 1
        %s310 = scalar_lea.sflag [#allocation3], %s309
        %s311 = sand.u32 %s47, 1
        %s312 = smul.addr %s311, 32
        %s313 = scalar_lea.vmem [#allocation2], %s312
        %p314 = pneg %p60
        %p315 = pneg %p57
        %s316 = sand.u32 %s27, 1
        %s317 = scalar_lea.sflag [#allocation6], %s316
        %s318 = sand.u32 %s75, 1
        %s319 = smul.addr %s318, 32768
        %s320 = scalar_lea.vmem [#allocation5], %s319
        %p321 = pneg %p88
        %p322 = pneg %p85
        %s323 = sand.u32 %s27, 1
        %s324 = scalar_lea.sflag [#allocation6], %s323
        %s325 = sand.u32 %s101, 1
        %s326 = smul.addr %s325, 16
        %s327 = scalar_lea.vmem [#allocation7], %s326
        %p328 = pneg %p114
        %p329 = pneg %p111
        %s330 = sand.u32 %s127, 1
        %s331 = scalar_lea.sflag [#allocation9], %s330
        %s332 = sand.u32 %s127, 1
        %s333 = smul.addr %s332, 16
        %s334 = scalar_lea.vmem [#allocation8], %s333
        %p335 = pneg %p140
        %p336 = pneg %p137
        %p337 = pneg %p166
        %p338 = pneg %p163
        %s339 = sand.u32 %s153, 1
        %s340 = scalar_lea.sflag [#allocation4], %s339
        %s341 = sand.u32 %s153, 1
        %s342 = smul.addr %s341, 32
        %s343 = scalar_lea.vmem [#allocation10], %s342
        %s344 = smul.u32 16, %s32
        %s345 = smul.u32 256, %s32
        %s346 = smul.u32 16, %s31
        %s347 = smul.u32 16, %s31
        %s348 = smul.u32 16, %s31
        %s349 = smul.u32 16, %s31
        %p350 = scmp.eq.s32.totalorder %s32, 0
        // Predicated region
        $region53: #{tpu_custom_call.1} parent=35 // pred_check
          %p351 = pneg %p350
        $region54: #{tpu_custom_call.1} parent=35 // pred_check_branch
          %353 = sbr.rel (%p351) target = $region56
        $region55: #{tpu_custom_call.1} parent=35 // pred_region
          %354 = vst [vmem:[%s343] sm:$0xff] 0.0
          %355 = vst [vmem:[%s343 + $0x8] sm:$0xff] 0.0
          %356 = vst [vmem:[%s343 + $0x10] sm:$0xff] 0.0
          %357 = vst [vmem:[%s343 + $0x18] sm:$0xff] 0.0
        $region56: #{tpu_custom_call.1} parent=35 // pred_fallthru
          _
        %v358 = vld [vmem:[%s343] sm:$0xff]
        %v359 = vld [vmem:[%s343 + $0x8] sm:$0xff]
        %v360 = vld [vmem:[%s343 + $0x10] sm:$0xff]
        %v361 = vld [vmem:[%s343 + $0x18] sm:$0xff]
        %v362 = vld [vmem:[%s277] sm:$0xff]
        %v363 = vld [vmem:[%s277 + $0x8] sm:$0xff]
        %v364 = vld [vmem:[%s277 + $0x10] sm:$0xff]
        %v365 = vld [vmem:[%s277 + $0x18] sm:$0xff]
        %v366 = vld [vmem:[%s286] sm:$0xff]
        %v367 = vld [vmem:[%s286 + $0x8] sm:$0xff]
        %v368 = vld [vmem:[%s286 + $0x10] sm:$0xff]
        %v369 = vld [vmem:[%s286 + $0x18] sm:$0xff]
        %v370 = vld [vmem:[%s286 + $0x20] sm:$0xff]
        %v371 = vld [vmem:[%s286 + $0x28] sm:$0xff]
        %v372 = vld [vmem:[%s286 + $0x30] sm:$0xff]
        %v373 = vld [vmem:[%s286 + $0x38] sm:$0xff]
        %v374 = vld [vmem:[%s286 + $0x40] sm:$0xff]
        %v375 = vld [vmem:[%s286 + $0x48] sm:$0xff]
        %v376 = vld [vmem:[%s286 + $0x50] sm:$0xff]
        %v377 = vld [vmem:[%s286 + $0x58] sm:$0xff]
        %v378 = vld [vmem:[%s286 + $0x60] sm:$0xff]
        %v379 = vld [vmem:[%s286 + $0x68] sm:$0xff]
        %v380 = vld [vmem:[%s286 + $0x70] sm:$0xff]
        %v381 = vld [vmem:[%s286 + $0x78] sm:$0xff]
        %v382 = vld [vmem:[%s286 + $0x80] sm:$0xff]
        %v383 = vld [vmem:[%s286 + $0x88] sm:$0xff]
        %v384 = vld [vmem:[%s286 + $0x90] sm:$0xff]
        %v385 = vld [vmem:[%s286 + $0x98] sm:$0xff]
        %v386 = vld [vmem:[%s286 + $0xa0] sm:$0xff]
        %v387 = vld [vmem:[%s286 + $0xa8] sm:$0xff]
        %v388 = vld [vmem:[%s286 + $0xb0] sm:$0xff]
        %v389 = vld [vmem:[%s286 + $0xb8] sm:$0xff]
        %v390 = vld [vmem:[%s286 + $0xc0] sm:$0xff]
        %v391 = vld [vmem:[%s286 + $0xc8] sm:$0xff]
        %v392 = vld [vmem:[%s286 + $0xd0] sm:$0xff]
        %v393 = vld [vmem:[%s286 + $0xd8] sm:$0xff]
        %v394 = vld [vmem:[%s286 + $0xe0] sm:$0xff]
        %v395 = vld [vmem:[%s286 + $0xe8] sm:$0xff]
        %v396 = vld [vmem:[%s286 + $0xf0] sm:$0xff]
        %v397 = vld [vmem:[%s286 + $0xf8] sm:$0xff]
        %v398 = vld [vmem:[%s286 + $0x100] sm:$0xff]
        %v399 = vld [vmem:[%s286 + $0x108] sm:$0xff]
        %v400 = vld [vmem:[%s286 + $0x110] sm:$0xff]
        %v401 = vld [vmem:[%s286 + $0x118] sm:$0xff]
        %v402 = vld [vmem:[%s286 + $0x120] sm:$0xff]
        %v403 = vld [vmem:[%s286 + $0x128] sm:$0xff]
        %v404 = vld [vmem:[%s286 + $0x130] sm:$0xff]
        %v405 = vld [vmem:[%s286 + $0x138] sm:$0xff]
        %v406 = vld [vmem:[%s286 + $0x140] sm:$0xff]
        %v407 = vld [vmem:[%s286 + $0x148] sm:$0xff]
        %v408 = vld [vmem:[%s286 + $0x150] sm:$0xff]
        %v409 = vld [vmem:[%s286 + $0x158] sm:$0xff]
        %v410 = vld [vmem:[%s286 + $0x160] sm:$0xff]
        %v411 = vld [vmem:[%s286 + $0x168] sm:$0xff]
        %v412 = vld [vmem:[%s286 + $0x170] sm:$0xff]
        %v413 = vld [vmem:[%s286 + $0x178] sm:$0xff]
        %v414 = vld [vmem:[%s286 + $0x180] sm:$0xff]
        %v415 = vld [vmem:[%s286 + $0x188] sm:$0xff]
        %v416 = vld [vmem:[%s286 + $0x190] sm:$0xff]
        %v417 = vld [vmem:[%s286 + $0x198] sm:$0xff]
        %v418 = vld [vmem:[%s286 + $0x1a0] sm:$0xff]
        %v419 = vld [vmem:[%s286 + $0x1a8] sm:$0xff]
        %v420 = vld [vmem:[%s286 + $0x1b0] sm:$0xff]
        %v421 = vld [vmem:[%s286 + $0x1b8] sm:$0xff]
        %v422 = vld [vmem:[%s286 + $0x1c0] sm:$0xff]
        %v423 = vld [vmem:[%s286 + $0x1c8] sm:$0xff]
        %v424 = vld [vmem:[%s286 + $0x1d0] sm:$0xff]
        %v425 = vld [vmem:[%s286 + $0x1d8] sm:$0xff]
        %v426 = vld [vmem:[%s286 + $0x1e0] sm:$0xff]
        %v427 = vld [vmem:[%s286 + $0x1e8] sm:$0xff]
        %v428 = vld [vmem:[%s286 + $0x1f0] sm:$0xff]
        %v429 = vld [vmem:[%s286 + $0x1f8] sm:$0xff]
        %v430 = vld [vmem:[%s286 + $0x200] sm:$0xff]
        %v431 = vld [vmem:[%s286 + $0x208] sm:$0xff]
        %v432 = vld [vmem:[%s286 + $0x210] sm:$0xff]
        %v433 = vld [vmem:[%s286 + $0x218] sm:$0xff]
        %v434 = vld [vmem:[%s286 + $0x220] sm:$0xff]
        %v435 = vld [vmem:[%s286 + $0x228] sm:$0xff]
        %v436 = vld [vmem:[%s286 + $0x230] sm:$0xff]
        %v437 = vld [vmem:[%s286 + $0x238] sm:$0xff]
        %v438 = vld [vmem:[%s286 + $0x240] sm:$0xff]
        %v439 = vld [vmem:[%s286 + $0x248] sm:$0xff]
        %v440 = vld [vmem:[%s286 + $0x250] sm:$0xff]
        %v441 = vld [vmem:[%s286 + $0x258] sm:$0xff]
        %v442 = vld [vmem:[%s286 + $0x260] sm:$0xff]
        %v443 = vld [vmem:[%s286 + $0x268] sm:$0xff]
        %v444 = vld [vmem:[%s286 + $0x270] sm:$0xff]
        %v445 = vld [vmem:[%s286 + $0x278] sm:$0xff]
        %v446 = vld [vmem:[%s286 + $0x280] sm:$0xff]
        %v447 = vld [vmem:[%s286 + $0x288] sm:$0xff]
        %v448 = vld [vmem:[%s286 + $0x290] sm:$0xff]
        %v449 = vld [vmem:[%s286 + $0x298] sm:$0xff]
        %v450 = vld [vmem:[%s286 + $0x2a0] sm:$0xff]
        %v451 = vld [vmem:[%s286 + $0x2a8] sm:$0xff]
        %v452 = vld [vmem:[%s286 + $0x2b0] sm:$0xff]
        %v453 = vld [vmem:[%s286 + $0x2b8] sm:$0xff]
        %v454 = vld [vmem:[%s286 + $0x2c0] sm:$0xff]
        %v455 = vld [vmem:[%s286 + $0x2c8] sm:$0xff]
        %v456 = vld [vmem:[%s286 + $0x2d0] sm:$0xff]
        %v457 = vld [vmem:[%s286 + $0x2d8] sm:$0xff]
        %v458 = vld [vmem:[%s286 + $0x2e0] sm:$0xff]
        %v459 = vld [vmem:[%s286 + $0x2e8] sm:$0xff]
        %v460 = vld [vmem:[%s286 + $0x2f0] sm:$0xff]
        %v461 = vld [vmem:[%s286 + $0x2f8] sm:$0xff]
        %v462 = vld [vmem:[%s286 + $0x300] sm:$0xff]
        %v463 = vld [vmem:[%s286 + $0x308] sm:$0xff]
        %v464 = vld [vmem:[%s286 + $0x310] sm:$0xff]
        %v465 = vld [vmem:[%s286 + $0x318] sm:$0xff]
        %v466 = vld [vmem:[%s286 + $0x320] sm:$0xff]
        %v467 = vld [vmem:[%s286 + $0x328] sm:$0xff]
        %v468 = vld [vmem:[%s286 + $0x330] sm:$0xff]
        %v469 = vld [vmem:[%s286 + $0x338] sm:$0xff]
        %v470 = vld [vmem:[%s286 + $0x340] sm:$0xff]
        %v471 = vld [vmem:[%s286 + $0x348] sm:$0xff]
        %v472 = vld [vmem:[%s286 + $0x350] sm:$0xff]
        %v473 = vld [vmem:[%s286 + $0x358] sm:$0xff]
        %v474 = vld [vmem:[%s286 + $0x360] sm:$0xff]
        %v475 = vld [vmem:[%s286 + $0x368] sm:$0xff]
        %v476 = vld [vmem:[%s286 + $0x370] sm:$0xff]
        %v477 = vld [vmem:[%s286 + $0x378] sm:$0xff]
        %v478 = vld [vmem:[%s286 + $0x380] sm:$0xff]
        %v479 = vld [vmem:[%s286 + $0x388] sm:$0xff]
        %v480 = vld [vmem:[%s286 + $0x390] sm:$0xff]
        %v481 = vld [vmem:[%s286 + $0x398] sm:$0xff]
        %v482 = vld [vmem:[%s286 + $0x3a0] sm:$0xff]
        %v483 = vld [vmem:[%s286 + $0x3a8] sm:$0xff]
        %v484 = vld [vmem:[%s286 + $0x3b0] sm:$0xff]
        %v485 = vld [vmem:[%s286 + $0x3b8] sm:$0xff]
        %v486 = vld [vmem:[%s286 + $0x3c0] sm:$0xff]
        %v487 = vld [vmem:[%s286 + $0x3c8] sm:$0xff]
        %v488 = vld [vmem:[%s286 + $0x3d0] sm:$0xff]
        %v489 = vld [vmem:[%s286 + $0x3d8] sm:$0xff]
        %v490 = vld [vmem:[%s286 + $0x3e0] sm:$0xff]
        %v491 = vld [vmem:[%s286 + $0x3e8] sm:$0xff]
        %v492 = vld [vmem:[%s286 + $0x3f0] sm:$0xff]
        %v493 = vld [vmem:[%s286 + $0x3f8] sm:$0xff]
        %v494 = vld [vmem:[%s286 + $0x400] sm:$0xff]
        %v495 = vld [vmem:[%s286 + $0x408] sm:$0xff]
        %v496 = vld [vmem:[%s286 + $0x410] sm:$0xff]
        %v497 = vld [vmem:[%s286 + $0x418] sm:$0xff]
        %v498 = vld [vmem:[%s286 + $0x420] sm:$0xff]
        %v499 = vld [vmem:[%s286 + $0x428] sm:$0xff]
        %v500 = vld [vmem:[%s286 + $0x430] sm:$0xff]
        %v501 = vld [vmem:[%s286 + $0x438] sm:$0xff]
        %v502 = vld [vmem:[%s286 + $0x440] sm:$0xff]
        %v503 = vld [vmem:[%s286 + $0x448] sm:$0xff]
        %v504 = vld [vmem:[%s286 + $0x450] sm:$0xff]
        %v505 = vld [vmem:[%s286 + $0x458] sm:$0xff]
        %v506 = vld [vmem:[%s286 + $0x460] sm:$0xff]
        %v507 = vld [vmem:[%s286 + $0x468] sm:$0xff]
        %v508 = vld [vmem:[%s286 + $0x470] sm:$0xff]
        %v509 = vld [vmem:[%s286 + $0x478] sm:$0xff]
        %v510 = vld [vmem:[%s286 + $0x480] sm:$0xff]
        %v511 = vld [vmem:[%s286 + $0x488] sm:$0xff]
        %v512 = vld [vmem:[%s286 + $0x490] sm:$0xff]
        %v513 = vld [vmem:[%s286 + $0x498] sm:$0xff]
        %v514 = vld [vmem:[%s286 + $0x4a0] sm:$0xff]
        %v515 = vld [vmem:[%s286 + $0x4a8] sm:$0xff]
        %v516 = vld [vmem:[%s286 + $0x4b0] sm:$0xff]
        %v517 = vld [vmem:[%s286 + $0x4b8] sm:$0xff]
        %v518 = vld [vmem:[%s286 + $0x4c0] sm:$0xff]
        %v519 = vld [vmem:[%s286 + $0x4c8] sm:$0xff]
        %v520 = vld [vmem:[%s286 + $0x4d0] sm:$0xff]
        %v521 = vld [vmem:[%s286 + $0x4d8] sm:$0xff]
        %v522 = vld [vmem:[%s286 + $0x4e0] sm:$0xff]
        %v523 = vld [vmem:[%s286 + $0x4e8] sm:$0xff]
        %v524 = vld [vmem:[%s286 + $0x4f0] sm:$0xff]
        %v525 = vld [vmem:[%s286 + $0x4f8] sm:$0xff]
        %v526 = vld [vmem:[%s286 + $0x500] sm:$0xff]
        %v527 = vld [vmem:[%s286 + $0x508] sm:$0xff]
        %v528 = vld [vmem:[%s286 + $0x510] sm:$0xff]
        %v529 = vld [vmem:[%s286 + $0x518] sm:$0xff]
        %v530 = vld [vmem:[%s286 + $0x520] sm:$0xff]
        %v531 = vld [vmem:[%s286 + $0x528] sm:$0xff]
        %v532 = vld [vmem:[%s286 + $0x530] sm:$0xff]
        %v533 = vld [vmem:[%s286 + $0x538] sm:$0xff]
        %v534 = vld [vmem:[%s286 + $0x540] sm:$0xff]
        %v535 = vld [vmem:[%s286 + $0x548] sm:$0xff]
        %v536 = vld [vmem:[%s286 + $0x550] sm:$0xff]
        %v537 = vld [vmem:[%s286 + $0x558] sm:$0xff]
        %v538 = vld [vmem:[%s286 + $0x560] sm:$0xff]
        %v539 = vld [vmem:[%s286 + $0x568] sm:$0xff]
        %v540 = vld [vmem:[%s286 + $0x570] sm:$0xff]
        %v541 = vld [vmem:[%s286 + $0x578] sm:$0xff]
        %v542 = vld [vmem:[%s286 + $0x580] sm:$0xff]
        %v543 = vld [vmem:[%s286 + $0x588] sm:$0xff]
        %v544 = vld [vmem:[%s286 + $0x590] sm:$0xff]
        %v545 = vld [vmem:[%s286 + $0x598] sm:$0xff]
        %v546 = vld [vmem:[%s286 + $0x5a0] sm:$0xff]
        %v547 = vld [vmem:[%s286 + $0x5a8] sm:$0xff]
        %v548 = vld [vmem:[%s286 + $0x5b0] sm:$0xff]
        %v549 = vld [vmem:[%s286 + $0x5b8] sm:$0xff]
        %v550 = vld [vmem:[%s286 + $0x5c0] sm:$0xff]
        %v551 = vld [vmem:[%s286 + $0x5c8] sm:$0xff]
        %v552 = vld [vmem:[%s286 + $0x5d0] sm:$0xff]
        %v553 = vld [vmem:[%s286 + $0x5d8] sm:$0xff]
        %v554 = vld [vmem:[%s286 + $0x5e0] sm:$0xff]
        %v555 = vld [vmem:[%s286 + $0x5e8] sm:$0xff]
        %v556 = vld [vmem:[%s286 + $0x5f0] sm:$0xff]
        %v557 = vld [vmem:[%s286 + $0x5f8] sm:$0xff]
        %v558 = vld [vmem:[%s286 + $0x600] sm:$0xff]
        %v559 = vld [vmem:[%s286 + $0x608] sm:$0xff]
        %v560 = vld [vmem:[%s286 + $0x610] sm:$0xff]
        %v561 = vld [vmem:[%s286 + $0x618] sm:$0xff]
        %v562 = vld [vmem:[%s286 + $0x620] sm:$0xff]
        %v563 = vld [vmem:[%s286 + $0x628] sm:$0xff]
        %v564 = vld [vmem:[%s286 + $0x630] sm:$0xff]
        %v565 = vld [vmem:[%s286 + $0x638] sm:$0xff]
        %v566 = vld [vmem:[%s286 + $0x640] sm:$0xff]
        %v567 = vld [vmem:[%s286 + $0x648] sm:$0xff]
        %v568 = vld [vmem:[%s286 + $0x650] sm:$0xff]
        %v569 = vld [vmem:[%s286 + $0x658] sm:$0xff]
        %v570 = vld [vmem:[%s286 + $0x660] sm:$0xff]
        %v571 = vld [vmem:[%s286 + $0x668] sm:$0xff]
        %v572 = vld [vmem:[%s286 + $0x670] sm:$0xff]
        %v573 = vld [vmem:[%s286 + $0x678] sm:$0xff]
        %v574 = vld [vmem:[%s286 + $0x680] sm:$0xff]
        %v575 = vld [vmem:[%s286 + $0x688] sm:$0xff]
        %v576 = vld [vmem:[%s286 + $0x690] sm:$0xff]
        %v577 = vld [vmem:[%s286 + $0x698] sm:$0xff]
        %v578 = vld [vmem:[%s286 + $0x6a0] sm:$0xff]
        %v579 = vld [vmem:[%s286 + $0x6a8] sm:$0xff]
        %v580 = vld [vmem:[%s286 + $0x6b0] sm:$0xff]
        %v581 = vld [vmem:[%s286 + $0x6b8] sm:$0xff]
        %v582 = vld [vmem:[%s286 + $0x6c0] sm:$0xff]
        %v583 = vld [vmem:[%s286 + $0x6c8] sm:$0xff]
        %v584 = vld [vmem:[%s286 + $0x6d0] sm:$0xff]
        %v585 = vld [vmem:[%s286 + $0x6d8] sm:$0xff]
        %v586 = vld [vmem:[%s286 + $0x6e0] sm:$0xff]
        %v587 = vld [vmem:[%s286 + $0x6e8] sm:$0xff]
        %v588 = vld [vmem:[%s286 + $0x6f0] sm:$0xff]
        %v589 = vld [vmem:[%s286 + $0x6f8] sm:$0xff]
        %v590 = vld [vmem:[%s286 + $0x700] sm:$0xff]
        %v591 = vld [vmem:[%s286 + $0x708] sm:$0xff]
        %v592 = vld [vmem:[%s286 + $0x710] sm:$0xff]
        %v593 = vld [vmem:[%s286 + $0x718] sm:$0xff]
        %v594 = vld [vmem:[%s286 + $0x720] sm:$0xff]
        %v595 = vld [vmem:[%s286 + $0x728] sm:$0xff]
        %v596 = vld [vmem:[%s286 + $0x730] sm:$0xff]
        %v597 = vld [vmem:[%s286 + $0x738] sm:$0xff]
        %v598 = vld [vmem:[%s286 + $0x740] sm:$0xff]
        %v599 = vld [vmem:[%s286 + $0x748] sm:$0xff]
        %v600 = vld [vmem:[%s286 + $0x750] sm:$0xff]
        %v601 = vld [vmem:[%s286 + $0x758] sm:$0xff]
        %v602 = vld [vmem:[%s286 + $0x760] sm:$0xff]
        %v603 = vld [vmem:[%s286 + $0x768] sm:$0xff]
        %v604 = vld [vmem:[%s286 + $0x770] sm:$0xff]
        %v605 = vld [vmem:[%s286 + $0x778] sm:$0xff]
        %v606 = vld [vmem:[%s286 + $0x780] sm:$0xff]
        %v607 = vld [vmem:[%s286 + $0x788] sm:$0xff]
        %v608 = vld [vmem:[%s286 + $0x790] sm:$0xff]
        %v609 = vld [vmem:[%s286 + $0x798] sm:$0xff]
        %v610 = vld [vmem:[%s286 + $0x7a0] sm:$0xff]
        %v611 = vld [vmem:[%s286 + $0x7a8] sm:$0xff]
        %v612 = vld [vmem:[%s286 + $0x7b0] sm:$0xff]
        %v613 = vld [vmem:[%s286 + $0x7b8] sm:$0xff]
        %v614 = vld [vmem:[%s286 + $0x7c0] sm:$0xff]
        %v615 = vld [vmem:[%s286 + $0x7c8] sm:$0xff]
        %v616 = vld [vmem:[%s286 + $0x7d0] sm:$0xff]
        %v617 = vld [vmem:[%s286 + $0x7d8] sm:$0xff]
        %v618 = vld [vmem:[%s286 + $0x7e0] sm:$0xff]
        %v619 = vld [vmem:[%s286 + $0x7e8] sm:$0xff]
        %v620 = vld [vmem:[%s286 + $0x7f0] sm:$0xff]
        %v621 = vld [vmem:[%s286 + $0x7f8] sm:$0xff]
        %v622 = vld [vmem:[%s286 + $0x800] sm:$0xff]
        %v623 = vld [vmem:[%s286 + $0x808] sm:$0xff]
        %v624 = vld [vmem:[%s286 + $0x810] sm:$0xff]
        %v625 = vld [vmem:[%s286 + $0x818] sm:$0xff]
        %v626 = vld [vmem:[%s286 + $0x820] sm:$0xff]
        %v627 = vld [vmem:[%s286 + $0x828] sm:$0xff]
        %v628 = vld [vmem:[%s286 + $0x830] sm:$0xff]
        %v629 = vld [vmem:[%s286 + $0x838] sm:$0xff]
        %v630 = vld [vmem:[%s286 + $0x840] sm:$0xff]
        %v631 = vld [vmem:[%s286 + $0x848] sm:$0xff]
        %v632 = vld [vmem:[%s286 + $0x850] sm:$0xff]
        %v633 = vld [vmem:[%s286 + $0x858] sm:$0xff]
        %v634 = vld [vmem:[%s286 + $0x860] sm:$0xff]
        %v635 = vld [vmem:[%s286 + $0x868] sm:$0xff]
        %v636 = vld [vmem:[%s286 + $0x870] sm:$0xff]
        %v637 = vld [vmem:[%s286 + $0x878] sm:$0xff]
        %v638 = vld [vmem:[%s286 + $0x880] sm:$0xff]
        %v639 = vld [vmem:[%s286 + $0x888] sm:$0xff]
        %v640 = vld [vmem:[%s286 + $0x890] sm:$0xff]
        %v641 = vld [vmem:[%s286 + $0x898] sm:$0xff]
        %v642 = vld [vmem:[%s286 + $0x8a0] sm:$0xff]
        %v643 = vld [vmem:[%s286 + $0x8a8] sm:$0xff]
        %v644 = vld [vmem:[%s286 + $0x8b0] sm:$0xff]
        %v645 = vld [vmem:[%s286 + $0x8b8] sm:$0xff]
        %v646 = vld [vmem:[%s286 + $0x8c0] sm:$0xff]
        %v647 = vld [vmem:[%s286 + $0x8c8] sm:$0xff]
        %v648 = vld [vmem:[%s286 + $0x8d0] sm:$0xff]
        %v649 = vld [vmem:[%s286 + $0x8d8] sm:$0xff]
        %v650 = vld [vmem:[%s286 + $0x8e0] sm:$0xff]
        %v651 = vld [vmem:[%s286 + $0x8e8] sm:$0xff]
        %v652 = vld [vmem:[%s286 + $0x8f0] sm:$0xff]
        %v653 = vld [vmem:[%s286 + $0x8f8] sm:$0xff]
        %v654 = vld [vmem:[%s286 + $0x900] sm:$0xff]
        %v655 = vld [vmem:[%s286 + $0x908] sm:$0xff]
        %v656 = vld [vmem:[%s286 + $0x910] sm:$0xff]
        %v657 = vld [vmem:[%s286 + $0x918] sm:$0xff]
        %v658 = vld [vmem:[%s286 + $0x920] sm:$0xff]
        %v659 = vld [vmem:[%s286 + $0x928] sm:$0xff]
        %v660 = vld [vmem:[%s286 + $0x930] sm:$0xff]
        %v661 = vld [vmem:[%s286 + $0x938] sm:$0xff]
        %v662 = vld [vmem:[%s286 + $0x940] sm:$0xff]
        %v663 = vld [vmem:[%s286 + $0x948] sm:$0xff]
        %v664 = vld [vmem:[%s286 + $0x950] sm:$0xff]
        %v665 = vld [vmem:[%s286 + $0x958] sm:$0xff]
        %v666 = vld [vmem:[%s286 + $0x960] sm:$0xff]
        %v667 = vld [vmem:[%s286 + $0x968] sm:$0xff]
        %v668 = vld [vmem:[%s286 + $0x970] sm:$0xff]
        %v669 = vld [vmem:[%s286 + $0x978] sm:$0xff]
        %v670 = vld [vmem:[%s286 + $0x980] sm:$0xff]
        %v671 = vld [vmem:[%s286 + $0x988] sm:$0xff]
        %v672 = vld [vmem:[%s286 + $0x990] sm:$0xff]
        %v673 = vld [vmem:[%s286 + $0x998] sm:$0xff]
        %v674 = vld [vmem:[%s286 + $0x9a0] sm:$0xff]
        %v675 = vld [vmem:[%s286 + $0x9a8] sm:$0xff]
        %v676 = vld [vmem:[%s286 + $0x9b0] sm:$0xff]
        %v677 = vld [vmem:[%s286 + $0x9b8] sm:$0xff]
        %v678 = vld [vmem:[%s286 + $0x9c0] sm:$0xff]
        %v679 = vld [vmem:[%s286 + $0x9c8] sm:$0xff]
        %v680 = vld [vmem:[%s286 + $0x9d0] sm:$0xff]
        %v681 = vld [vmem:[%s286 + $0x9d8] sm:$0xff]
        %v682 = vld [vmem:[%s286 + $0x9e0] sm:$0xff]
        %v683 = vld [vmem:[%s286 + $0x9e8] sm:$0xff]
        %v684 = vld [vmem:[%s286 + $0x9f0] sm:$0xff]
        %v685 = vld [vmem:[%s286 + $0x9f8] sm:$0xff]
        %v686 = vld [vmem:[%s286 + $0xa00] sm:$0xff]
        %v687 = vld [vmem:[%s286 + $0xa08] sm:$0xff]
        %v688 = vld [vmem:[%s286 + $0xa10] sm:$0xff]
        %v689 = vld [vmem:[%s286 + $0xa18] sm:$0xff]
        %v690 = vld [vmem:[%s286 + $0xa20] sm:$0xff]
        %v691 = vld [vmem:[%s286 + $0xa28] sm:$0xff]
        %v692 = vld [vmem:[%s286 + $0xa30] sm:$0xff]
        %v693 = vld [vmem:[%s286 + $0xa38] sm:$0xff]
        %v694 = vld [vmem:[%s286 + $0xa40] sm:$0xff]
        %v695 = vld [vmem:[%s286 + $0xa48] sm:$0xff]
        %v696 = vld [vmem:[%s286 + $0xa50] sm:$0xff]
        %v697 = vld [vmem:[%s286 + $0xa58] sm:$0xff]
        %v698 = vld [vmem:[%s286 + $0xa60] sm:$0xff]
        %v699 = vld [vmem:[%s286 + $0xa68] sm:$0xff]
        %v700 = vld [vmem:[%s286 + $0xa70] sm:$0xff]
        %v701 = vld [vmem:[%s286 + $0xa78] sm:$0xff]
        %v702 = vld [vmem:[%s286 + $0xa80] sm:$0xff]
        %v703 = vld [vmem:[%s286 + $0xa88] sm:$0xff]
        %v704 = vld [vmem:[%s286 + $0xa90] sm:$0xff]
        %v705 = vld [vmem:[%s286 + $0xa98] sm:$0xff]
        %v706 = vld [vmem:[%s286 + $0xaa0] sm:$0xff]
        %v707 = vld [vmem:[%s286 + $0xaa8] sm:$0xff]
        %v708 = vld [vmem:[%s286 + $0xab0] sm:$0xff]
        %v709 = vld [vmem:[%s286 + $0xab8] sm:$0xff]
        %v710 = vld [vmem:[%s286 + $0xac0] sm:$0xff]
        %v711 = vld [vmem:[%s286 + $0xac8] sm:$0xff]
        %v712 = vld [vmem:[%s286 + $0xad0] sm:$0xff]
        %v713 = vld [vmem:[%s286 + $0xad8] sm:$0xff]
        %v714 = vld [vmem:[%s286 + $0xae0] sm:$0xff]
        %v715 = vld [vmem:[%s286 + $0xae8] sm:$0xff]
        %v716 = vld [vmem:[%s286 + $0xaf0] sm:$0xff]
        %v717 = vld [vmem:[%s286 + $0xaf8] sm:$0xff]
        %v718 = vld [vmem:[%s286 + $0xb00] sm:$0xff]
        %v719 = vld [vmem:[%s286 + $0xb08] sm:$0xff]
        %v720 = vld [vmem:[%s286 + $0xb10] sm:$0xff]
        %v721 = vld [vmem:[%s286 + $0xb18] sm:$0xff]
        %v722 = vld [vmem:[%s286 + $0xb20] sm:$0xff]
        %v723 = vld [vmem:[%s286 + $0xb28] sm:$0xff]
        %v724 = vld [vmem:[%s286 + $0xb30] sm:$0xff]
        %v725 = vld [vmem:[%s286 + $0xb38] sm:$0xff]
        %v726 = vld [vmem:[%s286 + $0xb40] sm:$0xff]
        %v727 = vld [vmem:[%s286 + $0xb48] sm:$0xff]
        %v728 = vld [vmem:[%s286 + $0xb50] sm:$0xff]
        %v729 = vld [vmem:[%s286 + $0xb58] sm:$0xff]
        %v730 = vld [vmem:[%s286 + $0xb60] sm:$0xff]
        %v731 = vld [vmem:[%s286 + $0xb68] sm:$0xff]
        %v732 = vld [vmem:[%s286 + $0xb70] sm:$0xff]
        %v733 = vld [vmem:[%s286 + $0xb78] sm:$0xff]
        %v734 = vld [vmem:[%s286 + $0xb80] sm:$0xff]
        %v735 = vld [vmem:[%s286 + $0xb88] sm:$0xff]
        %v736 = vld [vmem:[%s286 + $0xb90] sm:$0xff]
        %v737 = vld [vmem:[%s286 + $0xb98] sm:$0xff]
        %v738 = vld [vmem:[%s286 + $0xba0] sm:$0xff]
        %v739 = vld [vmem:[%s286 + $0xba8] sm:$0xff]
        %v740 = vld [vmem:[%s286 + $0xbb0] sm:$0xff]
        %v741 = vld [vmem:[%s286 + $0xbb8] sm:$0xff]
        %v742 = vld [vmem:[%s286 + $0xbc0] sm:$0xff]
        %v743 = vld [vmem:[%s286 + $0xbc8] sm:$0xff]
        %v744 = vld [vmem:[%s286 + $0xbd0] sm:$0xff]
        %v745 = vld [vmem:[%s286 + $0xbd8] sm:$0xff]
        %v746 = vld [vmem:[%s286 + $0xbe0] sm:$0xff]
        %v747 = vld [vmem:[%s286 + $0xbe8] sm:$0xff]
        %v748 = vld [vmem:[%s286 + $0xbf0] sm:$0xff]
        %v749 = vld [vmem:[%s286 + $0xbf8] sm:$0xff]
        %v750 = vld [vmem:[%s286 + $0xc00] sm:$0xff]
        %v751 = vld [vmem:[%s286 + $0xc08] sm:$0xff]
        %v752 = vld [vmem:[%s286 + $0xc10] sm:$0xff]
        %v753 = vld [vmem:[%s286 + $0xc18] sm:$0xff]
        %v754 = vld [vmem:[%s286 + $0xc20] sm:$0xff]
        %v755 = vld [vmem:[%s286 + $0xc28] sm:$0xff]
        %v756 = vld [vmem:[%s286 + $0xc30] sm:$0xff]
        %v757 = vld [vmem:[%s286 + $0xc38] sm:$0xff]
        %v758 = vld [vmem:[%s286 + $0xc40] sm:$0xff]
        %v759 = vld [vmem:[%s286 + $0xc48] sm:$0xff]
        %v760 = vld [vmem:[%s286 + $0xc50] sm:$0xff]
        %v761 = vld [vmem:[%s286 + $0xc58] sm:$0xff]
        %v762 = vld [vmem:[%s286 + $0xc60] sm:$0xff]
        %v763 = vld [vmem:[%s286 + $0xc68] sm:$0xff]
        %v764 = vld [vmem:[%s286 + $0xc70] sm:$0xff]
        %v765 = vld [vmem:[%s286 + $0xc78] sm:$0xff]
        %v766 = vld [vmem:[%s286 + $0xc80] sm:$0xff]
        %v767 = vld [vmem:[%s286 + $0xc88] sm:$0xff]
        %v768 = vld [vmem:[%s286 + $0xc90] sm:$0xff]
        %v769 = vld [vmem:[%s286 + $0xc98] sm:$0xff]
        %v770 = vld [vmem:[%s286 + $0xca0] sm:$0xff]
        %v771 = vld [vmem:[%s286 + $0xca8] sm:$0xff]
        %v772 = vld [vmem:[%s286 + $0xcb0] sm:$0xff]
        %v773 = vld [vmem:[%s286 + $0xcb8] sm:$0xff]
        %v774 = vld [vmem:[%s286 + $0xcc0] sm:$0xff]
        %v775 = vld [vmem:[%s286 + $0xcc8] sm:$0xff]
        %v776 = vld [vmem:[%s286 + $0xcd0] sm:$0xff]
        %v777 = vld [vmem:[%s286 + $0xcd8] sm:$0xff]
        %v778 = vld [vmem:[%s286 + $0xce0] sm:$0xff]
        %v779 = vld [vmem:[%s286 + $0xce8] sm:$0xff]
        %v780 = vld [vmem:[%s286 + $0xcf0] sm:$0xff]
        %v781 = vld [vmem:[%s286 + $0xcf8] sm:$0xff]
        %v782 = vld [vmem:[%s286 + $0xd00] sm:$0xff]
        %v783 = vld [vmem:[%s286 + $0xd08] sm:$0xff]
        %v784 = vld [vmem:[%s286 + $0xd10] sm:$0xff]
        %v785 = vld [vmem:[%s286 + $0xd18] sm:$0xff]
        %v786 = vld [vmem:[%s286 + $0xd20] sm:$0xff]
        %v787 = vld [vmem:[%s286 + $0xd28] sm:$0xff]
        %v788 = vld [vmem:[%s286 + $0xd30] sm:$0xff]
        %v789 = vld [vmem:[%s286 + $0xd38] sm:$0xff]
        %v790 = vld [vmem:[%s286 + $0xd40] sm:$0xff]
        %v791 = vld [vmem:[%s286 + $0xd48] sm:$0xff]
        %v792 = vld [vmem:[%s286 + $0xd50] sm:$0xff]
        %v793 = vld [vmem:[%s286 + $0xd58] sm:$0xff]
        %v794 = vld [vmem:[%s286 + $0xd60] sm:$0xff]
        %v795 = vld [vmem:[%s286 + $0xd68] sm:$0xff]
        %v796 = vld [vmem:[%s286 + $0xd70] sm:$0xff]
        %v797 = vld [vmem:[%s286 + $0xd78] sm:$0xff]
        %v798 = vld [vmem:[%s286 + $0xd80] sm:$0xff]
        %v799 = vld [vmem:[%s286 + $0xd88] sm:$0xff]
        %v800 = vld [vmem:[%s286 + $0xd90] sm:$0xff]
        %v801 = vld [vmem:[%s286 + $0xd98] sm:$0xff]
        %v802 = vld [vmem:[%s286 + $0xda0] sm:$0xff]
        %v803 = vld [vmem:[%s286 + $0xda8] sm:$0xff]
        %v804 = vld [vmem:[%s286 + $0xdb0] sm:$0xff]
        %v805 = vld [vmem:[%s286 + $0xdb8] sm:$0xff]
        %v806 = vld [vmem:[%s286 + $0xdc0] sm:$0xff]
        %v807 = vld [vmem:[%s286 + $0xdc8] sm:$0xff]
        %v808 = vld [vmem:[%s286 + $0xdd0] sm:$0xff]
        %v809 = vld [vmem:[%s286 + $0xdd8] sm:$0xff]
        %v810 = vld [vmem:[%s286 + $0xde0] sm:$0xff]
        %v811 = vld [vmem:[%s286 + $0xde8] sm:$0xff]
        %v812 = vld [vmem:[%s286 + $0xdf0] sm:$0xff]
        %v813 = vld [vmem:[%s286 + $0xdf8] sm:$0xff]
        %v814 = vld [vmem:[%s286 + $0xe00] sm:$0xff]
        %v815 = vld [vmem:[%s286 + $0xe08] sm:$0xff]
        %v816 = vld [vmem:[%s286 + $0xe10] sm:$0xff]
        %v817 = vld [vmem:[%s286 + $0xe18] sm:$0xff]
        %v818 = vld [vmem:[%s286 + $0xe20] sm:$0xff]
        %v819 = vld [vmem:[%s286 + $0xe28] sm:$0xff]
        %v820 = vld [vmem:[%s286 + $0xe30] sm:$0xff]
        %v821 = vld [vmem:[%s286 + $0xe38] sm:$0xff]
        %v822 = vld [vmem:[%s286 + $0xe40] sm:$0xff]
        %v823 = vld [vmem:[%s286 + $0xe48] sm:$0xff]
        %v824 = vld [vmem:[%s286 + $0xe50] sm:$0xff]
        %v825 = vld [vmem:[%s286 + $0xe58] sm:$0xff]
        %v826 = vld [vmem:[%s286 + $0xe60] sm:$0xff]
        %v827 = vld [vmem:[%s286 + $0xe68] sm:$0xff]
        %v828 = vld [vmem:[%s286 + $0xe70] sm:$0xff]
        %v829 = vld [vmem:[%s286 + $0xe78] sm:$0xff]
        %v830 = vld [vmem:[%s286 + $0xe80] sm:$0xff]
        %v831 = vld [vmem:[%s286 + $0xe88] sm:$0xff]
        %v832 = vld [vmem:[%s286 + $0xe90] sm:$0xff]
        %v833 = vld [vmem:[%s286 + $0xe98] sm:$0xff]
        %v834 = vld [vmem:[%s286 + $0xea0] sm:$0xff]
        %v835 = vld [vmem:[%s286 + $0xea8] sm:$0xff]
        %v836 = vld [vmem:[%s286 + $0xeb0] sm:$0xff]
        %v837 = vld [vmem:[%s286 + $0xeb8] sm:$0xff]
        %v838 = vld [vmem:[%s286 + $0xec0] sm:$0xff]
        %v839 = vld [vmem:[%s286 + $0xec8] sm:$0xff]
        %v840 = vld [vmem:[%s286 + $0xed0] sm:$0xff]
        %v841 = vld [vmem:[%s286 + $0xed8] sm:$0xff]
        %v842 = vld [vmem:[%s286 + $0xee0] sm:$0xff]
        %v843 = vld [vmem:[%s286 + $0xee8] sm:$0xff]
        %v844 = vld [vmem:[%s286 + $0xef0] sm:$0xff]
        %v845 = vld [vmem:[%s286 + $0xef8] sm:$0xff]
        %v846 = vld [vmem:[%s286 + $0xf00] sm:$0xff]
        %v847 = vld [vmem:[%s286 + $0xf08] sm:$0xff]
        %v848 = vld [vmem:[%s286 + $0xf10] sm:$0xff]
        %v849 = vld [vmem:[%s286 + $0xf18] sm:$0xff]
        %v850 = vld [vmem:[%s286 + $0xf20] sm:$0xff]
        %v851 = vld [vmem:[%s286 + $0xf28] sm:$0xff]
        %v852 = vld [vmem:[%s286 + $0xf30] sm:$0xff]
        %v853 = vld [vmem:[%s286 + $0xf38] sm:$0xff]
        %v854 = vld [vmem:[%s286 + $0xf40] sm:$0xff]
        %v855 = vld [vmem:[%s286 + $0xf48] sm:$0xff]
        %v856 = vld [vmem:[%s286 + $0xf50] sm:$0xff]
        %v857 = vld [vmem:[%s286 + $0xf58] sm:$0xff]
        %v858 = vld [vmem:[%s286 + $0xf60] sm:$0xff]
        %v859 = vld [vmem:[%s286 + $0xf68] sm:$0xff]
        %v860 = vld [vmem:[%s286 + $0xf70] sm:$0xff]
        %v861 = vld [vmem:[%s286 + $0xf78] sm:$0xff]
        %v862 = vld [vmem:[%s286 + $0xf80] sm:$0xff]
        %v863 = vld [vmem:[%s286 + $0xf88] sm:$0xff]
        %v864 = vld [vmem:[%s286 + $0xf90] sm:$0xff]
        %v865 = vld [vmem:[%s286 + $0xf98] sm:$0xff]
        %v866 = vld [vmem:[%s286 + $0xfa0] sm:$0xff]
        %v867 = vld [vmem:[%s286 + $0xfa8] sm:$0xff]
        %v868 = vld [vmem:[%s286 + $0xfb0] sm:$0xff]
        %v869 = vld [vmem:[%s286 + $0xfb8] sm:$0xff]
        %v870 = vld [vmem:[%s286 + $0xfc0] sm:$0xff]
        %v871 = vld [vmem:[%s286 + $0xfc8] sm:$0xff]
        %v872 = vld [vmem:[%s286 + $0xfd0] sm:$0xff]
        %v873 = vld [vmem:[%s286 + $0xfd8] sm:$0xff]
        %v874 = vld [vmem:[%s286 + $0xfe0] sm:$0xff]
        %v875 = vld [vmem:[%s286 + $0xfe8] sm:$0xff]
        %v876 = vld [vmem:[%s286 + $0xff0] sm:$0xff]
        %v877 = vld [vmem:[%s286 + $0xff8] sm:$0xff]
        %v878 = vld [vmem:[%s286 + $0x1000] sm:$0xff]
        %v879 = vld [vmem:[%s286 + $0x1008] sm:$0xff]
        %v880 = vld [vmem:[%s286 + $0x1010] sm:$0xff]
        %v881 = vld [vmem:[%s286 + $0x1018] sm:$0xff]
        %v882 = vld [vmem:[%s286 + $0x1020] sm:$0xff]
        %v883 = vld [vmem:[%s286 + $0x1028] sm:$0xff]
        %v884 = vld [vmem:[%s286 + $0x1030] sm:$0xff]
        %v885 = vld [vmem:[%s286 + $0x1038] sm:$0xff]
        %v886 = vld [vmem:[%s286 + $0x1040] sm:$0xff]
        %v887 = vld [vmem:[%s286 + $0x1048] sm:$0xff]
        %v888 = vld [vmem:[%s286 + $0x1050] sm:$0xff]
        %v889 = vld [vmem:[%s286 + $0x1058] sm:$0xff]
        %v890 = vld [vmem:[%s286 + $0x1060] sm:$0xff]
        %v891 = vld [vmem:[%s286 + $0x1068] sm:$0xff]
        %v892 = vld [vmem:[%s286 + $0x1070] sm:$0xff]
        %v893 = vld [vmem:[%s286 + $0x1078] sm:$0xff]
        %v894 = vld [vmem:[%s286 + $0x1080] sm:$0xff]
        %v895 = vld [vmem:[%s286 + $0x1088] sm:$0xff]
        %v896 = vld [vmem:[%s286 + $0x1090] sm:$0xff]
        %v897 = vld [vmem:[%s286 + $0x1098] sm:$0xff]
        %v898 = vld [vmem:[%s286 + $0x10a0] sm:$0xff]
        %v899 = vld [vmem:[%s286 + $0x10a8] sm:$0xff]
        %v900 = vld [vmem:[%s286 + $0x10b0] sm:$0xff]
        %v901 = vld [vmem:[%s286 + $0x10b8] sm:$0xff]
        %v902 = vld [vmem:[%s286 + $0x10c0] sm:$0xff]
        %v903 = vld [vmem:[%s286 + $0x10c8] sm:$0xff]
        %v904 = vld [vmem:[%s286 + $0x10d0] sm:$0xff]
        %v905 = vld [vmem:[%s286 + $0x10d8] sm:$0xff]
        %v906 = vld [vmem:[%s286 + $0x10e0] sm:$0xff]
        %v907 = vld [vmem:[%s286 + $0x10e8] sm:$0xff]
        %v908 = vld [vmem:[%s286 + $0x10f0] sm:$0xff]
        %v909 = vld [vmem:[%s286 + $0x10f8] sm:$0xff]
        %v910 = vld [vmem:[%s286 + $0x1100] sm:$0xff]
        %v911 = vld [vmem:[%s286 + $0x1108] sm:$0xff]
        %v912 = vld [vmem:[%s286 + $0x1110] sm:$0xff]
        %v913 = vld [vmem:[%s286 + $0x1118] sm:$0xff]
        %v914 = vld [vmem:[%s286 + $0x1120] sm:$0xff]
        %v915 = vld [vmem:[%s286 + $0x1128] sm:$0xff]
        %v916 = vld [vmem:[%s286 + $0x1130] sm:$0xff]
        %v917 = vld [vmem:[%s286 + $0x1138] sm:$0xff]
        %v918 = vld [vmem:[%s286 + $0x1140] sm:$0xff]
        %v919 = vld [vmem:[%s286 + $0x1148] sm:$0xff]
        %v920 = vld [vmem:[%s286 + $0x1150] sm:$0xff]
        %v921 = vld [vmem:[%s286 + $0x1158] sm:$0xff]
        %v922 = vld [vmem:[%s286 + $0x1160] sm:$0xff]
        %v923 = vld [vmem:[%s286 + $0x1168] sm:$0xff]
        %v924 = vld [vmem:[%s286 + $0x1170] sm:$0xff]
        %v925 = vld [vmem:[%s286 + $0x1178] sm:$0xff]
        %v926 = vld [vmem:[%s286 + $0x1180] sm:$0xff]
        %v927 = vld [vmem:[%s286 + $0x1188] sm:$0xff]
        %v928 = vld [vmem:[%s286 + $0x1190] sm:$0xff]
        %v929 = vld [vmem:[%s286 + $0x1198] sm:$0xff]
        %v930 = vld [vmem:[%s286 + $0x11a0] sm:$0xff]
        %v931 = vld [vmem:[%s286 + $0x11a8] sm:$0xff]
        %v932 = vld [vmem:[%s286 + $0x11b0] sm:$0xff]
        %v933 = vld [vmem:[%s286 + $0x11b8] sm:$0xff]
        %v934 = vld [vmem:[%s286 + $0x11c0] sm:$0xff]
        %v935 = vld [vmem:[%s286 + $0x11c8] sm:$0xff]
        %v936 = vld [vmem:[%s286 + $0x11d0] sm:$0xff]
        %v937 = vld [vmem:[%s286 + $0x11d8] sm:$0xff]
        %v938 = vld [vmem:[%s286 + $0x11e0] sm:$0xff]
        %v939 = vld [vmem:[%s286 + $0x11e8] sm:$0xff]
        %v940 = vld [vmem:[%s286 + $0x11f0] sm:$0xff]
        %v941 = vld [vmem:[%s286 + $0x11f8] sm:$0xff]
        %v942 = vld [vmem:[%s286 + $0x1200] sm:$0xff]
        %v943 = vld [vmem:[%s286 + $0x1208] sm:$0xff]
        %v944 = vld [vmem:[%s286 + $0x1210] sm:$0xff]
        %v945 = vld [vmem:[%s286 + $0x1218] sm:$0xff]
        %v946 = vld [vmem:[%s286 + $0x1220] sm:$0xff]
        %v947 = vld [vmem:[%s286 + $0x1228] sm:$0xff]
        %v948 = vld [vmem:[%s286 + $0x1230] sm:$0xff]
        %v949 = vld [vmem:[%s286 + $0x1238] sm:$0xff]
        %v950 = vld [vmem:[%s286 + $0x1240] sm:$0xff]
        %v951 = vld [vmem:[%s286 + $0x1248] sm:$0xff]
        %v952 = vld [vmem:[%s286 + $0x1250] sm:$0xff]
        %v953 = vld [vmem:[%s286 + $0x1258] sm:$0xff]
        %v954 = vld [vmem:[%s286 + $0x1260] sm:$0xff]
        %v955 = vld [vmem:[%s286 + $0x1268] sm:$0xff]
        %v956 = vld [vmem:[%s286 + $0x1270] sm:$0xff]
        %v957 = vld [vmem:[%s286 + $0x1278] sm:$0xff]
        %v958 = vld [vmem:[%s286 + $0x1280] sm:$0xff]
        %v959 = vld [vmem:[%s286 + $0x1288] sm:$0xff]
        %v960 = vld [vmem:[%s286 + $0x1290] sm:$0xff]
        %v961 = vld [vmem:[%s286 + $0x1298] sm:$0xff]
        %v962 = vld [vmem:[%s286 + $0x12a0] sm:$0xff]
        %v963 = vld [vmem:[%s286 + $0x12a8] sm:$0xff]
        %v964 = vld [vmem:[%s286 + $0x12b0] sm:$0xff]
        %v965 = vld [vmem:[%s286 + $0x12b8] sm:$0xff]
        %v966 = vld [vmem:[%s286 + $0x12c0] sm:$0xff]
        %v967 = vld [vmem:[%s286 + $0x12c8] sm:$0xff]
        %v968 = vld [vmem:[%s286 + $0x12d0] sm:$0xff]
        %v969 = vld [vmem:[%s286 + $0x12d8] sm:$0xff]
        %v970 = vld [vmem:[%s286 + $0x12e0] sm:$0xff]
        %v971 = vld [vmem:[%s286 + $0x12e8] sm:$0xff]
        %v972 = vld [vmem:[%s286 + $0x12f0] sm:$0xff]
        %v973 = vld [vmem:[%s286 + $0x12f8] sm:$0xff]
        %v974 = vld [vmem:[%s286 + $0x1300] sm:$0xff]
        %v975 = vld [vmem:[%s286 + $0x1308] sm:$0xff]
        %v976 = vld [vmem:[%s286 + $0x1310] sm:$0xff]
        %v977 = vld [vmem:[%s286 + $0x1318] sm:$0xff]
        %v978 = vld [vmem:[%s286 + $0x1320] sm:$0xff]
        %v979 = vld [vmem:[%s286 + $0x1328] sm:$0xff]
        %v980 = vld [vmem:[%s286 + $0x1330] sm:$0xff]
        %v981 = vld [vmem:[%s286 + $0x1338] sm:$0xff]
        %v982 = vld [vmem:[%s286 + $0x1340] sm:$0xff]
        %v983 = vld [vmem:[%s286 + $0x1348] sm:$0xff]
        %v984 = vld [vmem:[%s286 + $0x1350] sm:$0xff]
        %v985 = vld [vmem:[%s286 + $0x1358] sm:$0xff]
        %v986 = vld [vmem:[%s286 + $0x1360] sm:$0xff]
        %v987 = vld [vmem:[%s286 + $0x1368] sm:$0xff]
        %v988 = vld [vmem:[%s286 + $0x1370] sm:$0xff]
        %v989 = vld [vmem:[%s286 + $0x1378] sm:$0xff]
        %v990 = vld [vmem:[%s286 + $0x1380] sm:$0xff]
        %v991 = vld [vmem:[%s286 + $0x1388] sm:$0xff]
        %v992 = vld [vmem:[%s286 + $0x1390] sm:$0xff]
        %v993 = vld [vmem:[%s286 + $0x1398] sm:$0xff]
        %v994 = vld [vmem:[%s286 + $0x13a0] sm:$0xff]
        %v995 = vld [vmem:[%s286 + $0x13a8] sm:$0xff]
        %v996 = vld [vmem:[%s286 + $0x13b0] sm:$0xff]
        %v997 = vld [vmem:[%s286 + $0x13b8] sm:$0xff]
        %v998 = vld [vmem:[%s286 + $0x13c0] sm:$0xff]
        %v999 = vld [vmem:[%s286 + $0x13c8] sm:$0xff]
        %v1000 = vld [vmem:[%s286 + $0x13d0] sm:$0xff]
        %v1001 = vld [vmem:[%s286 + $0x13d8] sm:$0xff]
        %v1002 = vld [vmem:[%s286 + $0x13e0] sm:$0xff]
        %v1003 = vld [vmem:[%s286 + $0x13e8] sm:$0xff]
        %v1004 = vld [vmem:[%s286 + $0x13f0] sm:$0xff]
        %v1005 = vld [vmem:[%s286 + $0x13f8] sm:$0xff]
        %v1006 = vld [vmem:[%s286 + $0x1400] sm:$0xff]
        %v1007 = vld [vmem:[%s286 + $0x1408] sm:$0xff]
        %v1008 = vld [vmem:[%s286 + $0x1410] sm:$0xff]
        %v1009 = vld [vmem:[%s286 + $0x1418] sm:$0xff]
        %v1010 = vld [vmem:[%s286 + $0x1420] sm:$0xff]
        %v1011 = vld [vmem:[%s286 + $0x1428] sm:$0xff]
        %v1012 = vld [vmem:[%s286 + $0x1430] sm:$0xff]
        %v1013 = vld [vmem:[%s286 + $0x1438] sm:$0xff]
        %v1014 = vld [vmem:[%s286 + $0x1440] sm:$0xff]
        %v1015 = vld [vmem:[%s286 + $0x1448] sm:$0xff]
        %v1016 = vld [vmem:[%s286 + $0x1450] sm:$0xff]
        %v1017 = vld [vmem:[%s286 + $0x1458] sm:$0xff]
        %v1018 = vld [vmem:[%s286 + $0x1460] sm:$0xff]
        %v1019 = vld [vmem:[%s286 + $0x1468] sm:$0xff]
        %v1020 = vld [vmem:[%s286 + $0x1470] sm:$0xff]
        %v1021 = vld [vmem:[%s286 + $0x1478] sm:$0xff]
        %v1022 = vld [vmem:[%s286 + $0x1480] sm:$0xff]
        %v1023 = vld [vmem:[%s286 + $0x1488] sm:$0xff]
        %v1024 = vld [vmem:[%s286 + $0x1490] sm:$0xff]
        %v1025 = vld [vmem:[%s286 + $0x1498] sm:$0xff]
        %v1026 = vld [vmem:[%s286 + $0x14a0] sm:$0xff]
        %v1027 = vld [vmem:[%s286 + $0x14a8] sm:$0xff]
        %v1028 = vld [vmem:[%s286 + $0x14b0] sm:$0xff]
        %v1029 = vld [vmem:[%s286 + $0x14b8] sm:$0xff]
        %v1030 = vld [vmem:[%s286 + $0x14c0] sm:$0xff]
        %v1031 = vld [vmem:[%s286 + $0x14c8] sm:$0xff]
        %v1032 = vld [vmem:[%s286 + $0x14d0] sm:$0xff]
        %v1033 = vld [vmem:[%s286 + $0x14d8] sm:$0xff]
        %v1034 = vld [vmem:[%s286 + $0x14e0] sm:$0xff]
        %v1035 = vld [vmem:[%s286 + $0x14e8] sm:$0xff]
        %v1036 = vld [vmem:[%s286 + $0x14f0] sm:$0xff]
        %v1037 = vld [vmem:[%s286 + $0x14f8] sm:$0xff]
        %v1038 = vld [vmem:[%s286 + $0x1500] sm:$0xff]
        %v1039 = vld [vmem:[%s286 + $0x1508] sm:$0xff]
        %v1040 = vld [vmem:[%s286 + $0x1510] sm:$0xff]
        %v1041 = vld [vmem:[%s286 + $0x1518] sm:$0xff]
        %v1042 = vld [vmem:[%s286 + $0x1520] sm:$0xff]
        %v1043 = vld [vmem:[%s286 + $0x1528] sm:$0xff]
        %v1044 = vld [vmem:[%s286 + $0x1530] sm:$0xff]
        %v1045 = vld [vmem:[%s286 + $0x1538] sm:$0xff]
        %v1046 = vld [vmem:[%s286 + $0x1540] sm:$0xff]
        %v1047 = vld [vmem:[%s286 + $0x1548] sm:$0xff]
        %v1048 = vld [vmem:[%s286 + $0x1550] sm:$0xff]
        %v1049 = vld [vmem:[%s286 + $0x1558] sm:$0xff]
        %v1050 = vld [vmem:[%s286 + $0x1560] sm:$0xff]
        %v1051 = vld [vmem:[%s286 + $0x1568] sm:$0xff]
        %v1052 = vld [vmem:[%s286 + $0x1570] sm:$0xff]
        %v1053 = vld [vmem:[%s286 + $0x1578] sm:$0xff]
        %v1054 = vld [vmem:[%s286 + $0x1580] sm:$0xff]
        %v1055 = vld [vmem:[%s286 + $0x1588] sm:$0xff]
        %v1056 = vld [vmem:[%s286 + $0x1590] sm:$0xff]
        %v1057 = vld [vmem:[%s286 + $0x1598] sm:$0xff]
        %v1058 = vld [vmem:[%s286 + $0x15a0] sm:$0xff]
        %v1059 = vld [vmem:[%s286 + $0x15a8] sm:$0xff]
        %v1060 = vld [vmem:[%s286 + $0x15b0] sm:$0xff]
        %v1061 = vld [vmem:[%s286 + $0x15b8] sm:$0xff]
        %v1062 = vld [vmem:[%s286 + $0x15c0] sm:$0xff]
        %v1063 = vld [vmem:[%s286 + $0x15c8] sm:$0xff]
        %v1064 = vld [vmem:[%s286 + $0x15d0] sm:$0xff]
        %v1065 = vld [vmem:[%s286 + $0x15d8] sm:$0xff]
        %v1066 = vld [vmem:[%s286 + $0x15e0] sm:$0xff]
        %v1067 = vld [vmem:[%s286 + $0x15e8] sm:$0xff]
        %v1068 = vld [vmem:[%s286 + $0x15f0] sm:$0xff]
        %v1069 = vld [vmem:[%s286 + $0x15f8] sm:$0xff]
        %v1070 = vld [vmem:[%s286 + $0x1600] sm:$0xff]
        %v1071 = vld [vmem:[%s286 + $0x1608] sm:$0xff]
        %v1072 = vld [vmem:[%s286 + $0x1610] sm:$0xff]
        %v1073 = vld [vmem:[%s286 + $0x1618] sm:$0xff]
        %v1074 = vld [vmem:[%s286 + $0x1620] sm:$0xff]
        %v1075 = vld [vmem:[%s286 + $0x1628] sm:$0xff]
        %v1076 = vld [vmem:[%s286 + $0x1630] sm:$0xff]
        %v1077 = vld [vmem:[%s286 + $0x1638] sm:$0xff]
        %v1078 = vld [vmem:[%s286 + $0x1640] sm:$0xff]
        %v1079 = vld [vmem:[%s286 + $0x1648] sm:$0xff]
        %v1080 = vld [vmem:[%s286 + $0x1650] sm:$0xff]
        %v1081 = vld [vmem:[%s286 + $0x1658] sm:$0xff]
        %v1082 = vld [vmem:[%s286 + $0x1660] sm:$0xff]
        %v1083 = vld [vmem:[%s286 + $0x1668] sm:$0xff]
        %v1084 = vld [vmem:[%s286 + $0x1670] sm:$0xff]
        %v1085 = vld [vmem:[%s286 + $0x1678] sm:$0xff]
        %v1086 = vld [vmem:[%s286 + $0x1680] sm:$0xff]
        %v1087 = vld [vmem:[%s286 + $0x1688] sm:$0xff]
        %v1088 = vld [vmem:[%s286 + $0x1690] sm:$0xff]
        %v1089 = vld [vmem:[%s286 + $0x1698] sm:$0xff]
        %v1090 = vld [vmem:[%s286 + $0x16a0] sm:$0xff]
        %v1091 = vld [vmem:[%s286 + $0x16a8] sm:$0xff]
        %v1092 = vld [vmem:[%s286 + $0x16b0] sm:$0xff]
        %v1093 = vld [vmem:[%s286 + $0x16b8] sm:$0xff]
        %v1094 = vld [vmem:[%s286 + $0x16c0] sm:$0xff]
        %v1095 = vld [vmem:[%s286 + $0x16c8] sm:$0xff]
        %v1096 = vld [vmem:[%s286 + $0x16d0] sm:$0xff]
        %v1097 = vld [vmem:[%s286 + $0x16d8] sm:$0xff]
        %v1098 = vld [vmem:[%s286 + $0x16e0] sm:$0xff]
        %v1099 = vld [vmem:[%s286 + $0x16e8] sm:$0xff]
        %v1100 = vld [vmem:[%s286 + $0x16f0] sm:$0xff]
        %v1101 = vld [vmem:[%s286 + $0x16f8] sm:$0xff]
        %v1102 = vld [vmem:[%s286 + $0x1700] sm:$0xff]
        %v1103 = vld [vmem:[%s286 + $0x1708] sm:$0xff]
        %v1104 = vld [vmem:[%s286 + $0x1710] sm:$0xff]
        %v1105 = vld [vmem:[%s286 + $0x1718] sm:$0xff]
        %v1106 = vld [vmem:[%s286 + $0x1720] sm:$0xff]
        %v1107 = vld [vmem:[%s286 + $0x1728] sm:$0xff]
        %v1108 = vld [vmem:[%s286 + $0x1730] sm:$0xff]
        %v1109 = vld [vmem:[%s286 + $0x1738] sm:$0xff]
        %v1110 = vld [vmem:[%s286 + $0x1740] sm:$0xff]
        %v1111 = vld [vmem:[%s286 + $0x1748] sm:$0xff]
        %v1112 = vld [vmem:[%s286 + $0x1750] sm:$0xff]
        %v1113 = vld [vmem:[%s286 + $0x1758] sm:$0xff]
        %v1114 = vld [vmem:[%s286 + $0x1760] sm:$0xff]
        %v1115 = vld [vmem:[%s286 + $0x1768] sm:$0xff]
        %v1116 = vld [vmem:[%s286 + $0x1770] sm:$0xff]
        %v1117 = vld [vmem:[%s286 + $0x1778] sm:$0xff]
        %v1118 = vld [vmem:[%s286 + $0x1780] sm:$0xff]
        %v1119 = vld [vmem:[%s286 + $0x1788] sm:$0xff]
        %v1120 = vld [vmem:[%s286 + $0x1790] sm:$0xff]
        %v1121 = vld [vmem:[%s286 + $0x1798] sm:$0xff]
        %v1122 = vld [vmem:[%s286 + $0x17a0] sm:$0xff]
        %v1123 = vld [vmem:[%s286 + $0x17a8] sm:$0xff]
        %v1124 = vld [vmem:[%s286 + $0x17b0] sm:$0xff]
        %v1125 = vld [vmem:[%s286 + $0x17b8] sm:$0xff]
        %v1126 = vld [vmem:[%s286 + $0x17c0] sm:$0xff]
        %v1127 = vld [vmem:[%s286 + $0x17c8] sm:$0xff]
        %v1128 = vld [vmem:[%s286 + $0x17d0] sm:$0xff]
        %v1129 = vld [vmem:[%s286 + $0x17d8] sm:$0xff]
        %v1130 = vld [vmem:[%s286 + $0x17e0] sm:$0xff]
        %v1131 = vld [vmem:[%s286 + $0x17e8] sm:$0xff]
        %v1132 = vld [vmem:[%s286 + $0x17f0] sm:$0xff]
        %v1133 = vld [vmem:[%s286 + $0x17f8] sm:$0xff]
        %v1134 = vld [vmem:[%s286 + $0x1800] sm:$0xff]
        %v1135 = vld [vmem:[%s286 + $0x1808] sm:$0xff]
        %v1136 = vld [vmem:[%s286 + $0x1810] sm:$0xff]
        %v1137 = vld [vmem:[%s286 + $0x1818] sm:$0xff]
        %v1138 = vld [vmem:[%s286 + $0x1820] sm:$0xff]
        %v1139 = vld [vmem:[%s286 + $0x1828] sm:$0xff]
        %v1140 = vld [vmem:[%s286 + $0x1830] sm:$0xff]
        %v1141 = vld [vmem:[%s286 + $0x1838] sm:$0xff]
        %v1142 = vld [vmem:[%s286 + $0x1840] sm:$0xff]
        %v1143 = vld [vmem:[%s286 + $0x1848] sm:$0xff]
        %v1144 = vld [vmem:[%s286 + $0x1850] sm:$0xff]
        %v1145 = vld [vmem:[%s286 + $0x1858] sm:$0xff]
        %v1146 = vld [vmem:[%s286 + $0x1860] sm:$0xff]
        %v1147 = vld [vmem:[%s286 + $0x1868] sm:$0xff]
        %v1148 = vld [vmem:[%s286 + $0x1870] sm:$0xff]
        %v1149 = vld [vmem:[%s286 + $0x1878] sm:$0xff]
        %v1150 = vld [vmem:[%s286 + $0x1880] sm:$0xff]
        %v1151 = vld [vmem:[%s286 + $0x1888] sm:$0xff]
        %v1152 = vld [vmem:[%s286 + $0x1890] sm:$0xff]
        %v1153 = vld [vmem:[%s286 + $0x1898] sm:$0xff]
        %v1154 = vld [vmem:[%s286 + $0x18a0] sm:$0xff]
        %v1155 = vld [vmem:[%s286 + $0x18a8] sm:$0xff]
        %v1156 = vld [vmem:[%s286 + $0x18b0] sm:$0xff]
        %v1157 = vld [vmem:[%s286 + $0x18b8] sm:$0xff]
        %v1158 = vld [vmem:[%s286 + $0x18c0] sm:$0xff]
        %v1159 = vld [vmem:[%s286 + $0x18c8] sm:$0xff]
        %v1160 = vld [vmem:[%s286 + $0x18d0] sm:$0xff]
        %v1161 = vld [vmem:[%s286 + $0x18d8] sm:$0xff]
        %v1162 = vld [vmem:[%s286 + $0x18e0] sm:$0xff]
        %v1163 = vld [vmem:[%s286 + $0x18e8] sm:$0xff]
        %v1164 = vld [vmem:[%s286 + $0x18f0] sm:$0xff]
        %v1165 = vld [vmem:[%s286 + $0x18f8] sm:$0xff]
        %v1166 = vld [vmem:[%s286 + $0x1900] sm:$0xff]
        %v1167 = vld [vmem:[%s286 + $0x1908] sm:$0xff]
        %v1168 = vld [vmem:[%s286 + $0x1910] sm:$0xff]
        %v1169 = vld [vmem:[%s286 + $0x1918] sm:$0xff]
        %v1170 = vld [vmem:[%s286 + $0x1920] sm:$0xff]
        %v1171 = vld [vmem:[%s286 + $0x1928] sm:$0xff]
        %v1172 = vld [vmem:[%s286 + $0x1930] sm:$0xff]
        %v1173 = vld [vmem:[%s286 + $0x1938] sm:$0xff]
        %v1174 = vld [vmem:[%s286 + $0x1940] sm:$0xff]
        %v1175 = vld [vmem:[%s286 + $0x1948] sm:$0xff]
        %v1176 = vld [vmem:[%s286 + $0x1950] sm:$0xff]
        %v1177 = vld [vmem:[%s286 + $0x1958] sm:$0xff]
        %v1178 = vld [vmem:[%s286 + $0x1960] sm:$0xff]
        %v1179 = vld [vmem:[%s286 + $0x1968] sm:$0xff]
        %v1180 = vld [vmem:[%s286 + $0x1970] sm:$0xff]
        %v1181 = vld [vmem:[%s286 + $0x1978] sm:$0xff]
        %v1182 = vld [vmem:[%s286 + $0x1980] sm:$0xff]
        %v1183 = vld [vmem:[%s286 + $0x1988] sm:$0xff]
        %v1184 = vld [vmem:[%s286 + $0x1990] sm:$0xff]
        %v1185 = vld [vmem:[%s286 + $0x1998] sm:$0xff]
        %v1186 = vld [vmem:[%s286 + $0x19a0] sm:$0xff]
        %v1187 = vld [vmem:[%s286 + $0x19a8] sm:$0xff]
        %v1188 = vld [vmem:[%s286 + $0x19b0] sm:$0xff]
        %v1189 = vld [vmem:[%s286 + $0x19b8] sm:$0xff]
        %v1190 = vld [vmem:[%s286 + $0x19c0] sm:$0xff]
        %v1191 = vld [vmem:[%s286 + $0x19c8] sm:$0xff]
        %v1192 = vld [vmem:[%s286 + $0x19d0] sm:$0xff]
        %v1193 = vld [vmem:[%s286 + $0x19d8] sm:$0xff]
        %v1194 = vld [vmem:[%s286 + $0x19e0] sm:$0xff]
        %v1195 = vld [vmem:[%s286 + $0x19e8] sm:$0xff]
        %v1196 = vld [vmem:[%s286 + $0x19f0] sm:$0xff]
        %v1197 = vld [vmem:[%s286 + $0x19f8] sm:$0xff]
        %v1198 = vld [vmem:[%s286 + $0x1a00] sm:$0xff]
        %v1199 = vld [vmem:[%s286 + $0x1a08] sm:$0xff]
        %v1200 = vld [vmem:[%s286 + $0x1a10] sm:$0xff]
        %v1201 = vld [vmem:[%s286 + $0x1a18] sm:$0xff]
        %v1202 = vld [vmem:[%s286 + $0x1a20] sm:$0xff]
        %v1203 = vld [vmem:[%s286 + $0x1a28] sm:$0xff]
        %v1204 = vld [vmem:[%s286 + $0x1a30] sm:$0xff]
        %v1205 = vld [vmem:[%s286 + $0x1a38] sm:$0xff]
        %v1206 = vld [vmem:[%s286 + $0x1a40] sm:$0xff]
        %v1207 = vld [vmem:[%s286 + $0x1a48] sm:$0xff]
        %v1208 = vld [vmem:[%s286 + $0x1a50] sm:$0xff]
        %v1209 = vld [vmem:[%s286 + $0x1a58] sm:$0xff]
        %v1210 = vld [vmem:[%s286 + $0x1a60] sm:$0xff]
        %v1211 = vld [vmem:[%s286 + $0x1a68] sm:$0xff]
        %v1212 = vld [vmem:[%s286 + $0x1a70] sm:$0xff]
        %v1213 = vld [vmem:[%s286 + $0x1a78] sm:$0xff]
        %v1214 = vld [vmem:[%s286 + $0x1a80] sm:$0xff]
        %v1215 = vld [vmem:[%s286 + $0x1a88] sm:$0xff]
        %v1216 = vld [vmem:[%s286 + $0x1a90] sm:$0xff]
        %v1217 = vld [vmem:[%s286 + $0x1a98] sm:$0xff]
        %v1218 = vld [vmem:[%s286 + $0x1aa0] sm:$0xff]
        %v1219 = vld [vmem:[%s286 + $0x1aa8] sm:$0xff]
        %v1220 = vld [vmem:[%s286 + $0x1ab0] sm:$0xff]
        %v1221 = vld [vmem:[%s286 + $0x1ab8] sm:$0xff]
        %v1222 = vld [vmem:[%s286 + $0x1ac0] sm:$0xff]
        %v1223 = vld [vmem:[%s286 + $0x1ac8] sm:$0xff]
        %v1224 = vld [vmem:[%s286 + $0x1ad0] sm:$0xff]
        %v1225 = vld [vmem:[%s286 + $0x1ad8] sm:$0xff]
        %v1226 = vld [vmem:[%s286 + $0x1ae0] sm:$0xff]
        %v1227 = vld [vmem:[%s286 + $0x1ae8] sm:$0xff]
        %v1228 = vld [vmem:[%s286 + $0x1af0] sm:$0xff]
        %v1229 = vld [vmem:[%s286 + $0x1af8] sm:$0xff]
        %v1230 = vld [vmem:[%s286 + $0x1b00] sm:$0xff]
        %v1231 = vld [vmem:[%s286 + $0x1b08] sm:$0xff]
        %v1232 = vld [vmem:[%s286 + $0x1b10] sm:$0xff]
        %v1233 = vld [vmem:[%s286 + $0x1b18] sm:$0xff]
        %v1234 = vld [vmem:[%s286 + $0x1b20] sm:$0xff]
        %v1235 = vld [vmem:[%s286 + $0x1b28] sm:$0xff]
        %v1236 = vld [vmem:[%s286 + $0x1b30] sm:$0xff]
        %v1237 = vld [vmem:[%s286 + $0x1b38] sm:$0xff]
        %v1238 = vld [vmem:[%s286 + $0x1b40] sm:$0xff]
        %v1239 = vld [vmem:[%s286 + $0x1b48] sm:$0xff]
        %v1240 = vld [vmem:[%s286 + $0x1b50] sm:$0xff]
        %v1241 = vld [vmem:[%s286 + $0x1b58] sm:$0xff]
        %v1242 = vld [vmem:[%s286 + $0x1b60] sm:$0xff]
        %v1243 = vld [vmem:[%s286 + $0x1b68] sm:$0xff]
        %v1244 = vld [vmem:[%s286 + $0x1b70] sm:$0xff]
        %v1245 = vld [vmem:[%s286 + $0x1b78] sm:$0xff]
        %v1246 = vld [vmem:[%s286 + $0x1b80] sm:$0xff]
        %v1247 = vld [vmem:[%s286 + $0x1b88] sm:$0xff]
        %v1248 = vld [vmem:[%s286 + $0x1b90] sm:$0xff]
        %v1249 = vld [vmem:[%s286 + $0x1b98] sm:$0xff]
        %v1250 = vld [vmem:[%s286 + $0x1ba0] sm:$0xff]
        %v1251 = vld [vmem:[%s286 + $0x1ba8] sm:$0xff]
        %v1252 = vld [vmem:[%s286 + $0x1bb0] sm:$0xff]
        %v1253 = vld [vmem:[%s286 + $0x1bb8] sm:$0xff]
        %v1254 = vld [vmem:[%s286 + $0x1bc0] sm:$0xff]
        %v1255 = vld [vmem:[%s286 + $0x1bc8] sm:$0xff]
        %v1256 = vld [vmem:[%s286 + $0x1bd0] sm:$0xff]
        %v1257 = vld [vmem:[%s286 + $0x1bd8] sm:$0xff]
        %v1258 = vld [vmem:[%s286 + $0x1be0] sm:$0xff]
        %v1259 = vld [vmem:[%s286 + $0x1be8] sm:$0xff]
        %v1260 = vld [vmem:[%s286 + $0x1bf0] sm:$0xff]
        %v1261 = vld [vmem:[%s286 + $0x1bf8] sm:$0xff]
        %v1262 = vld [vmem:[%s286 + $0x1c00] sm:$0xff]
        %v1263 = vld [vmem:[%s286 + $0x1c08] sm:$0xff]
        %v1264 = vld [vmem:[%s286 + $0x1c10] sm:$0xff]
        %v1265 = vld [vmem:[%s286 + $0x1c18] sm:$0xff]
        %v1266 = vld [vmem:[%s286 + $0x1c20] sm:$0xff]
        %v1267 = vld [vmem:[%s286 + $0x1c28] sm:$0xff]
        %v1268 = vld [vmem:[%s286 + $0x1c30] sm:$0xff]
        %v1269 = vld [vmem:[%s286 + $0x1c38] sm:$0xff]
        %v1270 = vld [vmem:[%s286 + $0x1c40] sm:$0xff]
        %v1271 = vld [vmem:[%s286 + $0x1c48] sm:$0xff]
        %v1272 = vld [vmem:[%s286 + $0x1c50] sm:$0xff]
        %v1273 = vld [vmem:[%s286 + $0x1c58] sm:$0xff]
        %v1274 = vld [vmem:[%s286 + $0x1c60] sm:$0xff]
        %v1275 = vld [vmem:[%s286 + $0x1c68] sm:$0xff]
        %v1276 = vld [vmem:[%s286 + $0x1c70] sm:$0xff]
        %v1277 = vld [vmem:[%s286 + $0x1c78] sm:$0xff]
        %v1278 = vld [vmem:[%s286 + $0x1c80] sm:$0xff]
        %v1279 = vld [vmem:[%s286 + $0x1c88] sm:$0xff]
        %v1280 = vld [vmem:[%s286 + $0x1c90] sm:$0xff]
        %v1281 = vld [vmem:[%s286 + $0x1c98] sm:$0xff]
        %v1282 = vld [vmem:[%s286 + $0x1ca0] sm:$0xff]
        %v1283 = vld [vmem:[%s286 + $0x1ca8] sm:$0xff]
        %v1284 = vld [vmem:[%s286 + $0x1cb0] sm:$0xff]
        %v1285 = vld [vmem:[%s286 + $0x1cb8] sm:$0xff]
        %v1286 = vld [vmem:[%s286 + $0x1cc0] sm:$0xff]
        %v1287 = vld [vmem:[%s286 + $0x1cc8] sm:$0xff]
        %v1288 = vld [vmem:[%s286 + $0x1cd0] sm:$0xff]
        %v1289 = vld [vmem:[%s286 + $0x1cd8] sm:$0xff]
        %v1290 = vld [vmem:[%s286 + $0x1ce0] sm:$0xff]
        %v1291 = vld [vmem:[%s286 + $0x1ce8] sm:$0xff]
        %v1292 = vld [vmem:[%s286 + $0x1cf0] sm:$0xff]
        %v1293 = vld [vmem:[%s286 + $0x1cf8] sm:$0xff]
        %v1294 = vld [vmem:[%s286 + $0x1d00] sm:$0xff]
        %v1295 = vld [vmem:[%s286 + $0x1d08] sm:$0xff]
        %v1296 = vld [vmem:[%s286 + $0x1d10] sm:$0xff]
        %v1297 = vld [vmem:[%s286 + $0x1d18] sm:$0xff]
        %v1298 = vld [vmem:[%s286 + $0x1d20] sm:$0xff]
        %v1299 = vld [vmem:[%s286 + $0x1d28] sm:$0xff]
        %v1300 = vld [vmem:[%s286 + $0x1d30] sm:$0xff]
        %v1301 = vld [vmem:[%s286 + $0x1d38] sm:$0xff]
        %v1302 = vld [vmem:[%s286 + $0x1d40] sm:$0xff]
        %v1303 = vld [vmem:[%s286 + $0x1d48] sm:$0xff]
        %v1304 = vld [vmem:[%s286 + $0x1d50] sm:$0xff]
        %v1305 = vld [vmem:[%s286 + $0x1d58] sm:$0xff]
        %v1306 = vld [vmem:[%s286 + $0x1d60] sm:$0xff]
        %v1307 = vld [vmem:[%s286 + $0x1d68] sm:$0xff]
        %v1308 = vld [vmem:[%s286 + $0x1d70] sm:$0xff]
        %v1309 = vld [vmem:[%s286 + $0x1d78] sm:$0xff]
        %v1310 = vld [vmem:[%s286 + $0x1d80] sm:$0xff]
        %v1311 = vld [vmem:[%s286 + $0x1d88] sm:$0xff]
        %v1312 = vld [vmem:[%s286 + $0x1d90] sm:$0xff]
        %v1313 = vld [vmem:[%s286 + $0x1d98] sm:$0xff]
        %v1314 = vld [vmem:[%s286 + $0x1da0] sm:$0xff]
        %v1315 = vld [vmem:[%s286 + $0x1da8] sm:$0xff]
        %v1316 = vld [vmem:[%s286 + $0x1db0] sm:$0xff]
        %v1317 = vld [vmem:[%s286 + $0x1db8] sm:$0xff]
        %v1318 = vld [vmem:[%s286 + $0x1dc0] sm:$0xff]
        %v1319 = vld [vmem:[%s286 + $0x1dc8] sm:$0xff]
        %v1320 = vld [vmem:[%s286 + $0x1dd0] sm:$0xff]
        %v1321 = vld [vmem:[%s286 + $0x1dd8] sm:$0xff]
        %v1322 = vld [vmem:[%s286 + $0x1de0] sm:$0xff]
        %v1323 = vld [vmem:[%s286 + $0x1de8] sm:$0xff]
        %v1324 = vld [vmem:[%s286 + $0x1df0] sm:$0xff]
        %v1325 = vld [vmem:[%s286 + $0x1df8] sm:$0xff]
        %v1326 = vld [vmem:[%s286 + $0x1e00] sm:$0xff]
        %v1327 = vld [vmem:[%s286 + $0x1e08] sm:$0xff]
        %v1328 = vld [vmem:[%s286 + $0x1e10] sm:$0xff]
        %v1329 = vld [vmem:[%s286 + $0x1e18] sm:$0xff]
        %v1330 = vld [vmem:[%s286 + $0x1e20] sm:$0xff]
        %v1331 = vld [vmem:[%s286 + $0x1e28] sm:$0xff]
        %v1332 = vld [vmem:[%s286 + $0x1e30] sm:$0xff]
        %v1333 = vld [vmem:[%s286 + $0x1e38] sm:$0xff]
        %v1334 = vld [vmem:[%s286 + $0x1e40] sm:$0xff]
        %v1335 = vld [vmem:[%s286 + $0x1e48] sm:$0xff]
        %v1336 = vld [vmem:[%s286 + $0x1e50] sm:$0xff]
        %v1337 = vld [vmem:[%s286 + $0x1e58] sm:$0xff]
        %v1338 = vld [vmem:[%s286 + $0x1e60] sm:$0xff]
        %v1339 = vld [vmem:[%s286 + $0x1e68] sm:$0xff]
        %v1340 = vld [vmem:[%s286 + $0x1e70] sm:$0xff]
        %v1341 = vld [vmem:[%s286 + $0x1e78] sm:$0xff]
        %v1342 = vld [vmem:[%s286 + $0x1e80] sm:$0xff]
        %v1343 = vld [vmem:[%s286 + $0x1e88] sm:$0xff]
        %v1344 = vld [vmem:[%s286 + $0x1e90] sm:$0xff]
        %v1345 = vld [vmem:[%s286 + $0x1e98] sm:$0xff]
        %v1346 = vld [vmem:[%s286 + $0x1ea0] sm:$0xff]
        %v1347 = vld [vmem:[%s286 + $0x1ea8] sm:$0xff]
        %v1348 = vld [vmem:[%s286 + $0x1eb0] sm:$0xff]
        %v1349 = vld [vmem:[%s286 + $0x1eb8] sm:$0xff]
        %v1350 = vld [vmem:[%s286 + $0x1ec0] sm:$0xff]
        %v1351 = vld [vmem:[%s286 + $0x1ec8] sm:$0xff]
        %v1352 = vld [vmem:[%s286 + $0x1ed0] sm:$0xff]
        %v1353 = vld [vmem:[%s286 + $0x1ed8] sm:$0xff]
        %v1354 = vld [vmem:[%s286 + $0x1ee0] sm:$0xff]
        %v1355 = vld [vmem:[%s286 + $0x1ee8] sm:$0xff]
        %v1356 = vld [vmem:[%s286 + $0x1ef0] sm:$0xff]
        %v1357 = vld [vmem:[%s286 + $0x1ef8] sm:$0xff]
        %v1358 = vld [vmem:[%s286 + $0x1f00] sm:$0xff]
        %v1359 = vld [vmem:[%s286 + $0x1f08] sm:$0xff]
        %v1360 = vld [vmem:[%s286 + $0x1f10] sm:$0xff]
        %v1361 = vld [vmem:[%s286 + $0x1f18] sm:$0xff]
        %v1362 = vld [vmem:[%s286 + $0x1f20] sm:$0xff]
        %v1363 = vld [vmem:[%s286 + $0x1f28] sm:$0xff]
        %v1364 = vld [vmem:[%s286 + $0x1f30] sm:$0xff]
        %v1365 = vld [vmem:[%s286 + $0x1f38] sm:$0xff]
        %v1366 = vld [vmem:[%s286 + $0x1f40] sm:$0xff]
        %v1367 = vld [vmem:[%s286 + $0x1f48] sm:$0xff]
        %v1368 = vld [vmem:[%s286 + $0x1f50] sm:$0xff]
        %v1369 = vld [vmem:[%s286 + $0x1f58] sm:$0xff]
        %v1370 = vld [vmem:[%s286 + $0x1f60] sm:$0xff]
        %v1371 = vld [vmem:[%s286 + $0x1f68] sm:$0xff]
        %v1372 = vld [vmem:[%s286 + $0x1f70] sm:$0xff]
        %v1373 = vld [vmem:[%s286 + $0x1f78] sm:$0xff]
        %v1374 = vld [vmem:[%s286 + $0x1f80] sm:$0xff]
        %v1375 = vld [vmem:[%s286 + $0x1f88] sm:$0xff]
        %v1376 = vld [vmem:[%s286 + $0x1f90] sm:$0xff]
        %v1377 = vld [vmem:[%s286 + $0x1f98] sm:$0xff]
        %v1378 = vld [vmem:[%s286 + $0x1fa0] sm:$0xff]
        %v1379 = vld [vmem:[%s286 + $0x1fa8] sm:$0xff]
        %v1380 = vld [vmem:[%s286 + $0x1fb0] sm:$0xff]
        %v1381 = vld [vmem:[%s286 + $0x1fb8] sm:$0xff]
        %v1382 = vld [vmem:[%s286 + $0x1fc0] sm:$0xff]
        %v1383 = vld [vmem:[%s286 + $0x1fc8] sm:$0xff]
        %v1384 = vld [vmem:[%s286 + $0x1fd0] sm:$0xff]
        %v1385 = vld [vmem:[%s286 + $0x1fd8] sm:$0xff]
        %v1386 = vld [vmem:[%s286 + $0x1fe0] sm:$0xff]
        %v1387 = vld [vmem:[%s286 + $0x1fe8] sm:$0xff]
        %v1388 = vld [vmem:[%s286 + $0x1ff0] sm:$0xff]
        %v1389 = vld [vmem:[%s286 + $0x1ff8] sm:$0xff]
        %v1390 = vld [vmem:[%s286 + $0x2000] sm:$0xff]
        %v1391 = vld [vmem:[%s286 + $0x2008] sm:$0xff]
        %v1392 = vld [vmem:[%s286 + $0x2010] sm:$0xff]
        %v1393 = vld [vmem:[%s286 + $0x2018] sm:$0xff]
        %v1394 = vld [vmem:[%s286 + $0x2020] sm:$0xff]
        %v1395 = vld [vmem:[%s286 + $0x2028] sm:$0xff]
        %v1396 = vld [vmem:[%s286 + $0x2030] sm:$0xff]
        %v1397 = vld [vmem:[%s286 + $0x2038] sm:$0xff]
        %v1398 = vld [vmem:[%s286 + $0x2040] sm:$0xff]
        %v1399 = vld [vmem:[%s286 + $0x2048] sm:$0xff]
        %v1400 = vld [vmem:[%s286 + $0x2050] sm:$0xff]
        %v1401 = vld [vmem:[%s286 + $0x2058] sm:$0xff]
        %v1402 = vld [vmem:[%s286 + $0x2060] sm:$0xff]
        %v1403 = vld [vmem:[%s286 + $0x2068] sm:$0xff]
        %v1404 = vld [vmem:[%s286 + $0x2070] sm:$0xff]
        %v1405 = vld [vmem:[%s286 + $0x2078] sm:$0xff]
        %v1406 = vld [vmem:[%s286 + $0x2080] sm:$0xff]
        %v1407 = vld [vmem:[%s286 + $0x2088] sm:$0xff]
        %v1408 = vld [vmem:[%s286 + $0x2090] sm:$0xff]
        %v1409 = vld [vmem:[%s286 + $0x2098] sm:$0xff]
        %v1410 = vld [vmem:[%s286 + $0x20a0] sm:$0xff]
        %v1411 = vld [vmem:[%s286 + $0x20a8] sm:$0xff]
        %v1412 = vld [vmem:[%s286 + $0x20b0] sm:$0xff]
        %v1413 = vld [vmem:[%s286 + $0x20b8] sm:$0xff]
        %v1414 = vld [vmem:[%s286 + $0x20c0] sm:$0xff]
        %v1415 = vld [vmem:[%s286 + $0x20c8] sm:$0xff]
        %v1416 = vld [vmem:[%s286 + $0x20d0] sm:$0xff]
        %v1417 = vld [vmem:[%s286 + $0x20d8] sm:$0xff]
        %v1418 = vld [vmem:[%s286 + $0x20e0] sm:$0xff]
        %v1419 = vld [vmem:[%s286 + $0x20e8] sm:$0xff]
        %v1420 = vld [vmem:[%s286 + $0x20f0] sm:$0xff]
        %v1421 = vld [vmem:[%s286 + $0x20f8] sm:$0xff]
        %v1422 = vld [vmem:[%s286 + $0x2100] sm:$0xff]
        %v1423 = vld [vmem:[%s286 + $0x2108] sm:$0xff]
        %v1424 = vld [vmem:[%s286 + $0x2110] sm:$0xff]
        %v1425 = vld [vmem:[%s286 + $0x2118] sm:$0xff]
        %v1426 = vld [vmem:[%s286 + $0x2120] sm:$0xff]
        %v1427 = vld [vmem:[%s286 + $0x2128] sm:$0xff]
        %v1428 = vld [vmem:[%s286 + $0x2130] sm:$0xff]
        %v1429 = vld [vmem:[%s286 + $0x2138] sm:$0xff]
        %v1430 = vld [vmem:[%s286 + $0x2140] sm:$0xff]
        %v1431 = vld [vmem:[%s286 + $0x2148] sm:$0xff]
        %v1432 = vld [vmem:[%s286 + $0x2150] sm:$0xff]
        %v1433 = vld [vmem:[%s286 + $0x2158] sm:$0xff]
        %v1434 = vld [vmem:[%s286 + $0x2160] sm:$0xff]
        %v1435 = vld [vmem:[%s286 + $0x2168] sm:$0xff]
        %v1436 = vld [vmem:[%s286 + $0x2170] sm:$0xff]
        %v1437 = vld [vmem:[%s286 + $0x2178] sm:$0xff]
        %v1438 = vld [vmem:[%s286 + $0x2180] sm:$0xff]
        %v1439 = vld [vmem:[%s286 + $0x2188] sm:$0xff]
        %v1440 = vld [vmem:[%s286 + $0x2190] sm:$0xff]
        %v1441 = vld [vmem:[%s286 + $0x2198] sm:$0xff]
        %v1442 = vld [vmem:[%s286 + $0x21a0] sm:$0xff]
        %v1443 = vld [vmem:[%s286 + $0x21a8] sm:$0xff]
        %v1444 = vld [vmem:[%s286 + $0x21b0] sm:$0xff]
        %v1445 = vld [vmem:[%s286 + $0x21b8] sm:$0xff]
        %v1446 = vld [vmem:[%s286 + $0x21c0] sm:$0xff]
        %v1447 = vld [vmem:[%s286 + $0x21c8] sm:$0xff]
        %v1448 = vld [vmem:[%s286 + $0x21d0] sm:$0xff]
        %v1449 = vld [vmem:[%s286 + $0x21d8] sm:$0xff]
        %v1450 = vld [vmem:[%s286 + $0x21e0] sm:$0xff]
        %v1451 = vld [vmem:[%s286 + $0x21e8] sm:$0xff]
        %v1452 = vld [vmem:[%s286 + $0x21f0] sm:$0xff]
        %v1453 = vld [vmem:[%s286 + $0x21f8] sm:$0xff]
        %v1454 = vld [vmem:[%s286 + $0x2200] sm:$0xff]
        %v1455 = vld [vmem:[%s286 + $0x2208] sm:$0xff]
        %v1456 = vld [vmem:[%s286 + $0x2210] sm:$0xff]
        %v1457 = vld [vmem:[%s286 + $0x2218] sm:$0xff]
        %v1458 = vld [vmem:[%s286 + $0x2220] sm:$0xff]
        %v1459 = vld [vmem:[%s286 + $0x2228] sm:$0xff]
        %v1460 = vld [vmem:[%s286 + $0x2230] sm:$0xff]
        %v1461 = vld [vmem:[%s286 + $0x2238] sm:$0xff]
        %v1462 = vld [vmem:[%s286 + $0x2240] sm:$0xff]
        %v1463 = vld [vmem:[%s286 + $0x2248] sm:$0xff]
        %v1464 = vld [vmem:[%s286 + $0x2250] sm:$0xff]
        %v1465 = vld [vmem:[%s286 + $0x2258] sm:$0xff]
        %v1466 = vld [vmem:[%s286 + $0x2260] sm:$0xff]
        %v1467 = vld [vmem:[%s286 + $0x2268] sm:$0xff]
        %v1468 = vld [vmem:[%s286 + $0x2270] sm:$0xff]
        %v1469 = vld [vmem:[%s286 + $0x2278] sm:$0xff]
        %v1470 = vld [vmem:[%s286 + $0x2280] sm:$0xff]
        %v1471 = vld [vmem:[%s286 + $0x2288] sm:$0xff]
        %v1472 = vld [vmem:[%s286 + $0x2290] sm:$0xff]
        %v1473 = vld [vmem:[%s286 + $0x2298] sm:$0xff]
        %v1474 = vld [vmem:[%s286 + $0x22a0] sm:$0xff]
        %v1475 = vld [vmem:[%s286 + $0x22a8] sm:$0xff]
        %v1476 = vld [vmem:[%s286 + $0x22b0] sm:$0xff]
        %v1477 = vld [vmem:[%s286 + $0x22b8] sm:$0xff]
        %v1478 = vld [vmem:[%s286 + $0x22c0] sm:$0xff]
        %v1479 = vld [vmem:[%s286 + $0x22c8] sm:$0xff]
        %v1480 = vld [vmem:[%s286 + $0x22d0] sm:$0xff]
        %v1481 = vld [vmem:[%s286 + $0x22d8] sm:$0xff]
        %v1482 = vld [vmem:[%s286 + $0x22e0] sm:$0xff]
        %v1483 = vld [vmem:[%s286 + $0x22e8] sm:$0xff]
        %v1484 = vld [vmem:[%s286 + $0x22f0] sm:$0xff]
        %v1485 = vld [vmem:[%s286 + $0x22f8] sm:$0xff]
        %v1486 = vld [vmem:[%s286 + $0x2300] sm:$0xff]
        %v1487 = vld [vmem:[%s286 + $0x2308] sm:$0xff]
        %v1488 = vld [vmem:[%s286 + $0x2310] sm:$0xff]
        %v1489 = vld [vmem:[%s286 + $0x2318] sm:$0xff]
        %v1490 = vld [vmem:[%s286 + $0x2320] sm:$0xff]
        %v1491 = vld [vmem:[%s286 + $0x2328] sm:$0xff]
        %v1492 = vld [vmem:[%s286 + $0x2330] sm:$0xff]
        %v1493 = vld [vmem:[%s286 + $0x2338] sm:$0xff]
        %v1494 = vld [vmem:[%s286 + $0x2340] sm:$0xff]
        %v1495 = vld [vmem:[%s286 + $0x2348] sm:$0xff]
        %v1496 = vld [vmem:[%s286 + $0x2350] sm:$0xff]
        %v1497 = vld [vmem:[%s286 + $0x2358] sm:$0xff]
        %v1498 = vld [vmem:[%s286 + $0x2360] sm:$0xff]
        %v1499 = vld [vmem:[%s286 + $0x2368] sm:$0xff]
        %v1500 = vld [vmem:[%s286 + $0x2370] sm:$0xff]
        %v1501 = vld [vmem:[%s286 + $0x2378] sm:$0xff]
        %v1502 = vld [vmem:[%s286 + $0x2380] sm:$0xff]
        %v1503 = vld [vmem:[%s286 + $0x2388] sm:$0xff]
        %v1504 = vld [vmem:[%s286 + $0x2390] sm:$0xff]
        %v1505 = vld [vmem:[%s286 + $0x2398] sm:$0xff]
        %v1506 = vld [vmem:[%s286 + $0x23a0] sm:$0xff]
        %v1507 = vld [vmem:[%s286 + $0x23a8] sm:$0xff]
        %v1508 = vld [vmem:[%s286 + $0x23b0] sm:$0xff]
        %v1509 = vld [vmem:[%s286 + $0x23b8] sm:$0xff]
        %v1510 = vld [vmem:[%s286 + $0x23c0] sm:$0xff]
        %v1511 = vld [vmem:[%s286 + $0x23c8] sm:$0xff]
        %v1512 = vld [vmem:[%s286 + $0x23d0] sm:$0xff]
        %v1513 = vld [vmem:[%s286 + $0x23d8] sm:$0xff]
        %v1514 = vld [vmem:[%s286 + $0x23e0] sm:$0xff]
        %v1515 = vld [vmem:[%s286 + $0x23e8] sm:$0xff]
        %v1516 = vld [vmem:[%s286 + $0x23f0] sm:$0xff]
        %v1517 = vld [vmem:[%s286 + $0x23f8] sm:$0xff]
        %v1518 = vld [vmem:[%s286 + $0x2400] sm:$0xff]
        %v1519 = vld [vmem:[%s286 + $0x2408] sm:$0xff]
        %v1520 = vld [vmem:[%s286 + $0x2410] sm:$0xff]
        %v1521 = vld [vmem:[%s286 + $0x2418] sm:$0xff]
        %v1522 = vld [vmem:[%s286 + $0x2420] sm:$0xff]
        %v1523 = vld [vmem:[%s286 + $0x2428] sm:$0xff]
        %v1524 = vld [vmem:[%s286 + $0x2430] sm:$0xff]
        %v1525 = vld [vmem:[%s286 + $0x2438] sm:$0xff]
        %v1526 = vld [vmem:[%s286 + $0x2440] sm:$0xff]
        %v1527 = vld [vmem:[%s286 + $0x2448] sm:$0xff]
        %v1528 = vld [vmem:[%s286 + $0x2450] sm:$0xff]
        %v1529 = vld [vmem:[%s286 + $0x2458] sm:$0xff]
        %v1530 = vld [vmem:[%s286 + $0x2460] sm:$0xff]
        %v1531 = vld [vmem:[%s286 + $0x2468] sm:$0xff]
        %v1532 = vld [vmem:[%s286 + $0x2470] sm:$0xff]
        %v1533 = vld [vmem:[%s286 + $0x2478] sm:$0xff]
        %v1534 = vld [vmem:[%s286 + $0x2480] sm:$0xff]
        %v1535 = vld [vmem:[%s286 + $0x2488] sm:$0xff]
        %v1536 = vld [vmem:[%s286 + $0x2490] sm:$0xff]
        %v1537 = vld [vmem:[%s286 + $0x2498] sm:$0xff]
        %v1538 = vld [vmem:[%s286 + $0x24a0] sm:$0xff]
        %v1539 = vld [vmem:[%s286 + $0x24a8] sm:$0xff]
        %v1540 = vld [vmem:[%s286 + $0x24b0] sm:$0xff]
        %v1541 = vld [vmem:[%s286 + $0x24b8] sm:$0xff]
        %v1542 = vld [vmem:[%s286 + $0x24c0] sm:$0xff]
        %v1543 = vld [vmem:[%s286 + $0x24c8] sm:$0xff]
        %v1544 = vld [vmem:[%s286 + $0x24d0] sm:$0xff]
        %v1545 = vld [vmem:[%s286 + $0x24d8] sm:$0xff]
        %v1546 = vld [vmem:[%s286 + $0x24e0] sm:$0xff]
        %v1547 = vld [vmem:[%s286 + $0x24e8] sm:$0xff]
        %v1548 = vld [vmem:[%s286 + $0x24f0] sm:$0xff]
        %v1549 = vld [vmem:[%s286 + $0x24f8] sm:$0xff]
        %v1550 = vld [vmem:[%s286 + $0x2500] sm:$0xff]
        %v1551 = vld [vmem:[%s286 + $0x2508] sm:$0xff]
        %v1552 = vld [vmem:[%s286 + $0x2510] sm:$0xff]
        %v1553 = vld [vmem:[%s286 + $0x2518] sm:$0xff]
        %v1554 = vld [vmem:[%s286 + $0x2520] sm:$0xff]
        %v1555 = vld [vmem:[%s286 + $0x2528] sm:$0xff]
        %v1556 = vld [vmem:[%s286 + $0x2530] sm:$0xff]
        %v1557 = vld [vmem:[%s286 + $0x2538] sm:$0xff]
        %v1558 = vld [vmem:[%s286 + $0x2540] sm:$0xff]
        %v1559 = vld [vmem:[%s286 + $0x2548] sm:$0xff]
        %v1560 = vld [vmem:[%s286 + $0x2550] sm:$0xff]
        %v1561 = vld [vmem:[%s286 + $0x2558] sm:$0xff]
        %v1562 = vld [vmem:[%s286 + $0x2560] sm:$0xff]
        %v1563 = vld [vmem:[%s286 + $0x2568] sm:$0xff]
        %v1564 = vld [vmem:[%s286 + $0x2570] sm:$0xff]
        %v1565 = vld [vmem:[%s286 + $0x2578] sm:$0xff]
        %v1566 = vld [vmem:[%s286 + $0x2580] sm:$0xff]
        %v1567 = vld [vmem:[%s286 + $0x2588] sm:$0xff]
        %v1568 = vld [vmem:[%s286 + $0x2590] sm:$0xff]
        %v1569 = vld [vmem:[%s286 + $0x2598] sm:$0xff]
        %v1570 = vld [vmem:[%s286 + $0x25a0] sm:$0xff]
        %v1571 = vld [vmem:[%s286 + $0x25a8] sm:$0xff]
        %v1572 = vld [vmem:[%s286 + $0x25b0] sm:$0xff]
        %v1573 = vld [vmem:[%s286 + $0x25b8] sm:$0xff]
        %v1574 = vld [vmem:[%s286 + $0x25c0] sm:$0xff]
        %v1575 = vld [vmem:[%s286 + $0x25c8] sm:$0xff]
        %v1576 = vld [vmem:[%s286 + $0x25d0] sm:$0xff]
        %v1577 = vld [vmem:[%s286 + $0x25d8] sm:$0xff]
        %v1578 = vld [vmem:[%s286 + $0x25e0] sm:$0xff]
        %v1579 = vld [vmem:[%s286 + $0x25e8] sm:$0xff]
        %v1580 = vld [vmem:[%s286 + $0x25f0] sm:$0xff]
        %v1581 = vld [vmem:[%s286 + $0x25f8] sm:$0xff]
        %v1582 = vld [vmem:[%s286 + $0x2600] sm:$0xff]
        %v1583 = vld [vmem:[%s286 + $0x2608] sm:$0xff]
        %v1584 = vld [vmem:[%s286 + $0x2610] sm:$0xff]
        %v1585 = vld [vmem:[%s286 + $0x2618] sm:$0xff]
        %v1586 = vld [vmem:[%s286 + $0x2620] sm:$0xff]
        %v1587 = vld [vmem:[%s286 + $0x2628] sm:$0xff]
        %v1588 = vld [vmem:[%s286 + $0x2630] sm:$0xff]
        %v1589 = vld [vmem:[%s286 + $0x2638] sm:$0xff]
        %v1590 = vld [vmem:[%s286 + $0x2640] sm:$0xff]
        %v1591 = vld [vmem:[%s286 + $0x2648] sm:$0xff]
        %v1592 = vld [vmem:[%s286 + $0x2650] sm:$0xff]
        %v1593 = vld [vmem:[%s286 + $0x2658] sm:$0xff]
        %v1594 = vld [vmem:[%s286 + $0x2660] sm:$0xff]
        %v1595 = vld [vmem:[%s286 + $0x2668] sm:$0xff]
        %v1596 = vld [vmem:[%s286 + $0x2670] sm:$0xff]
        %v1597 = vld [vmem:[%s286 + $0x2678] sm:$0xff]
        %v1598 = vld [vmem:[%s286 + $0x2680] sm:$0xff]
        %v1599 = vld [vmem:[%s286 + $0x2688] sm:$0xff]
        %v1600 = vld [vmem:[%s286 + $0x2690] sm:$0xff]
        %v1601 = vld [vmem:[%s286 + $0x2698] sm:$0xff]
        %v1602 = vld [vmem:[%s286 + $0x26a0] sm:$0xff]
        %v1603 = vld [vmem:[%s286 + $0x26a8] sm:$0xff]
        %v1604 = vld [vmem:[%s286 + $0x26b0] sm:$0xff]
        %v1605 = vld [vmem:[%s286 + $0x26b8] sm:$0xff]
        %v1606 = vld [vmem:[%s286 + $0x26c0] sm:$0xff]
        %v1607 = vld [vmem:[%s286 + $0x26c8] sm:$0xff]
        %v1608 = vld [vmem:[%s286 + $0x26d0] sm:$0xff]
        %v1609 = vld [vmem:[%s286 + $0x26d8] sm:$0xff]
        %v1610 = vld [vmem:[%s286 + $0x26e0] sm:$0xff]
        %v1611 = vld [vmem:[%s286 + $0x26e8] sm:$0xff]
        %v1612 = vld [vmem:[%s286 + $0x26f0] sm:$0xff]
        %v1613 = vld [vmem:[%s286 + $0x26f8] sm:$0xff]
        %v1614 = vld [vmem:[%s286 + $0x2700] sm:$0xff]
        %v1615 = vld [vmem:[%s286 + $0x2708] sm:$0xff]
        %v1616 = vld [vmem:[%s286 + $0x2710] sm:$0xff]
        %v1617 = vld [vmem:[%s286 + $0x2718] sm:$0xff]
        %v1618 = vld [vmem:[%s286 + $0x2720] sm:$0xff]
        %v1619 = vld [vmem:[%s286 + $0x2728] sm:$0xff]
        %v1620 = vld [vmem:[%s286 + $0x2730] sm:$0xff]
        %v1621 = vld [vmem:[%s286 + $0x2738] sm:$0xff]
        %v1622 = vld [vmem:[%s286 + $0x2740] sm:$0xff]
        %v1623 = vld [vmem:[%s286 + $0x2748] sm:$0xff]
        %v1624 = vld [vmem:[%s286 + $0x2750] sm:$0xff]
        %v1625 = vld [vmem:[%s286 + $0x2758] sm:$0xff]
        %v1626 = vld [vmem:[%s286 + $0x2760] sm:$0xff]
        %v1627 = vld [vmem:[%s286 + $0x2768] sm:$0xff]
        %v1628 = vld [vmem:[%s286 + $0x2770] sm:$0xff]
        %v1629 = vld [vmem:[%s286 + $0x2778] sm:$0xff]
        %v1630 = vld [vmem:[%s286 + $0x2780] sm:$0xff]
        %v1631 = vld [vmem:[%s286 + $0x2788] sm:$0xff]
        %v1632 = vld [vmem:[%s286 + $0x2790] sm:$0xff]
        %v1633 = vld [vmem:[%s286 + $0x2798] sm:$0xff]
        %v1634 = vld [vmem:[%s286 + $0x27a0] sm:$0xff]
        %v1635 = vld [vmem:[%s286 + $0x27a8] sm:$0xff]
        %v1636 = vld [vmem:[%s286 + $0x27b0] sm:$0xff]
        %v1637 = vld [vmem:[%s286 + $0x27b8] sm:$0xff]
        %v1638 = vld [vmem:[%s286 + $0x27c0] sm:$0xff]
        %v1639 = vld [vmem:[%s286 + $0x27c8] sm:$0xff]
        %v1640 = vld [vmem:[%s286 + $0x27d0] sm:$0xff]
        %v1641 = vld [vmem:[%s286 + $0x27d8] sm:$0xff]
        %v1642 = vld [vmem:[%s286 + $0x27e0] sm:$0xff]
        %v1643 = vld [vmem:[%s286 + $0x27e8] sm:$0xff]
        %v1644 = vld [vmem:[%s286 + $0x27f0] sm:$0xff]
        %v1645 = vld [vmem:[%s286 + $0x27f8] sm:$0xff]
        %v1646 = vld [vmem:[%s286 + $0x2800] sm:$0xff]
        %v1647 = vld [vmem:[%s286 + $0x2808] sm:$0xff]
        %v1648 = vld [vmem:[%s286 + $0x2810] sm:$0xff]
        %v1649 = vld [vmem:[%s286 + $0x2818] sm:$0xff]
        %v1650 = vld [vmem:[%s286 + $0x2820] sm:$0xff]
        %v1651 = vld [vmem:[%s286 + $0x2828] sm:$0xff]
        %v1652 = vld [vmem:[%s286 + $0x2830] sm:$0xff]
        %v1653 = vld [vmem:[%s286 + $0x2838] sm:$0xff]
        %v1654 = vld [vmem:[%s286 + $0x2840] sm:$0xff]
        %v1655 = vld [vmem:[%s286 + $0x2848] sm:$0xff]
        %v1656 = vld [vmem:[%s286 + $0x2850] sm:$0xff]
        %v1657 = vld [vmem:[%s286 + $0x2858] sm:$0xff]
        %v1658 = vld [vmem:[%s286 + $0x2860] sm:$0xff]
        %v1659 = vld [vmem:[%s286 + $0x2868] sm:$0xff]
        %v1660 = vld [vmem:[%s286 + $0x2870] sm:$0xff]
        %v1661 = vld [vmem:[%s286 + $0x2878] sm:$0xff]
        %v1662 = vld [vmem:[%s286 + $0x2880] sm:$0xff]
        %v1663 = vld [vmem:[%s286 + $0x2888] sm:$0xff]
        %v1664 = vld [vmem:[%s286 + $0x2890] sm:$0xff]
        %v1665 = vld [vmem:[%s286 + $0x2898] sm:$0xff]
        %v1666 = vld [vmem:[%s286 + $0x28a0] sm:$0xff]
        %v1667 = vld [vmem:[%s286 + $0x28a8] sm:$0xff]
        %v1668 = vld [vmem:[%s286 + $0x28b0] sm:$0xff]
        %v1669 = vld [vmem:[%s286 + $0x28b8] sm:$0xff]
        %v1670 = vld [vmem:[%s286 + $0x28c0] sm:$0xff]
        %v1671 = vld [vmem:[%s286 + $0x28c8] sm:$0xff]
        %v1672 = vld [vmem:[%s286 + $0x28d0] sm:$0xff]
        %v1673 = vld [vmem:[%s286 + $0x28d8] sm:$0xff]
        %v1674 = vld [vmem:[%s286 + $0x28e0] sm:$0xff]
        %v1675 = vld [vmem:[%s286 + $0x28e8] sm:$0xff]
        %v1676 = vld [vmem:[%s286 + $0x28f0] sm:$0xff]
        %v1677 = vld [vmem:[%s286 + $0x28f8] sm:$0xff]
        %v1678 = vld [vmem:[%s286 + $0x2900] sm:$0xff]
        %v1679 = vld [vmem:[%s286 + $0x2908] sm:$0xff]
        %v1680 = vld [vmem:[%s286 + $0x2910] sm:$0xff]
        %v1681 = vld [vmem:[%s286 + $0x2918] sm:$0xff]
        %v1682 = vld [vmem:[%s286 + $0x2920] sm:$0xff]
        %v1683 = vld [vmem:[%s286 + $0x2928] sm:$0xff]
        %v1684 = vld [vmem:[%s286 + $0x2930] sm:$0xff]
        %v1685 = vld [vmem:[%s286 + $0x2938] sm:$0xff]
        %v1686 = vld [vmem:[%s286 + $0x2940] sm:$0xff]
        %v1687 = vld [vmem:[%s286 + $0x2948] sm:$0xff]
        %v1688 = vld [vmem:[%s286 + $0x2950] sm:$0xff]
        %v1689 = vld [vmem:[%s286 + $0x2958] sm:$0xff]
        %v1690 = vld [vmem:[%s286 + $0x2960] sm:$0xff]
        %v1691 = vld [vmem:[%s286 + $0x2968] sm:$0xff]
        %v1692 = vld [vmem:[%s286 + $0x2970] sm:$0xff]
        %v1693 = vld [vmem:[%s286 + $0x2978] sm:$0xff]
        %v1694 = vld [vmem:[%s286 + $0x2980] sm:$0xff]
        %v1695 = vld [vmem:[%s286 + $0x2988] sm:$0xff]
        %v1696 = vld [vmem:[%s286 + $0x2990] sm:$0xff]
        %v1697 = vld [vmem:[%s286 + $0x2998] sm:$0xff]
        %v1698 = vld [vmem:[%s286 + $0x29a0] sm:$0xff]
        %v1699 = vld [vmem:[%s286 + $0x29a8] sm:$0xff]
        %v1700 = vld [vmem:[%s286 + $0x29b0] sm:$0xff]
        %v1701 = vld [vmem:[%s286 + $0x29b8] sm:$0xff]
        %v1702 = vld [vmem:[%s286 + $0x29c0] sm:$0xff]
        %v1703 = vld [vmem:[%s286 + $0x29c8] sm:$0xff]
        %v1704 = vld [vmem:[%s286 + $0x29d0] sm:$0xff]
        %v1705 = vld [vmem:[%s286 + $0x29d8] sm:$0xff]
        %v1706 = vld [vmem:[%s286 + $0x29e0] sm:$0xff]
        %v1707 = vld [vmem:[%s286 + $0x29e8] sm:$0xff]
        %v1708 = vld [vmem:[%s286 + $0x29f0] sm:$0xff]
        %v1709 = vld [vmem:[%s286 + $0x29f8] sm:$0xff]
        %v1710 = vld [vmem:[%s286 + $0x2a00] sm:$0xff]
        %v1711 = vld [vmem:[%s286 + $0x2a08] sm:$0xff]
        %v1712 = vld [vmem:[%s286 + $0x2a10] sm:$0xff]
        %v1713 = vld [vmem:[%s286 + $0x2a18] sm:$0xff]
        %v1714 = vld [vmem:[%s286 + $0x2a20] sm:$0xff]
        %v1715 = vld [vmem:[%s286 + $0x2a28] sm:$0xff]
        %v1716 = vld [vmem:[%s286 + $0x2a30] sm:$0xff]
        %v1717 = vld [vmem:[%s286 + $0x2a38] sm:$0xff]
        %v1718 = vld [vmem:[%s286 + $0x2a40] sm:$0xff]
        %v1719 = vld [vmem:[%s286 + $0x2a48] sm:$0xff]
        %v1720 = vld [vmem:[%s286 + $0x2a50] sm:$0xff]
        %v1721 = vld [vmem:[%s286 + $0x2a58] sm:$0xff]
        %v1722 = vld [vmem:[%s286 + $0x2a60] sm:$0xff]
        %v1723 = vld [vmem:[%s286 + $0x2a68] sm:$0xff]
        %v1724 = vld [vmem:[%s286 + $0x2a70] sm:$0xff]
        %v1725 = vld [vmem:[%s286 + $0x2a78] sm:$0xff]
        %v1726 = vld [vmem:[%s286 + $0x2a80] sm:$0xff]
        %v1727 = vld [vmem:[%s286 + $0x2a88] sm:$0xff]
        %v1728 = vld [vmem:[%s286 + $0x2a90] sm:$0xff]
        %v1729 = vld [vmem:[%s286 + $0x2a98] sm:$0xff]
        %v1730 = vld [vmem:[%s286 + $0x2aa0] sm:$0xff]
        %v1731 = vld [vmem:[%s286 + $0x2aa8] sm:$0xff]
        %v1732 = vld [vmem:[%s286 + $0x2ab0] sm:$0xff]
        %v1733 = vld [vmem:[%s286 + $0x2ab8] sm:$0xff]
        %v1734 = vld [vmem:[%s286 + $0x2ac0] sm:$0xff]
        %v1735 = vld [vmem:[%s286 + $0x2ac8] sm:$0xff]
        %v1736 = vld [vmem:[%s286 + $0x2ad0] sm:$0xff]
        %v1737 = vld [vmem:[%s286 + $0x2ad8] sm:$0xff]
        %v1738 = vld [vmem:[%s286 + $0x2ae0] sm:$0xff]
        %v1739 = vld [vmem:[%s286 + $0x2ae8] sm:$0xff]
        %v1740 = vld [vmem:[%s286 + $0x2af0] sm:$0xff]
        %v1741 = vld [vmem:[%s286 + $0x2af8] sm:$0xff]
        %v1742 = vld [vmem:[%s286 + $0x2b00] sm:$0xff]
        %v1743 = vld [vmem:[%s286 + $0x2b08] sm:$0xff]
        %v1744 = vld [vmem:[%s286 + $0x2b10] sm:$0xff]
        %v1745 = vld [vmem:[%s286 + $0x2b18] sm:$0xff]
        %v1746 = vld [vmem:[%s286 + $0x2b20] sm:$0xff]
        %v1747 = vld [vmem:[%s286 + $0x2b28] sm:$0xff]
        %v1748 = vld [vmem:[%s286 + $0x2b30] sm:$0xff]
        %v1749 = vld [vmem:[%s286 + $0x2b38] sm:$0xff]
        %v1750 = vld [vmem:[%s286 + $0x2b40] sm:$0xff]
        %v1751 = vld [vmem:[%s286 + $0x2b48] sm:$0xff]
        %v1752 = vld [vmem:[%s286 + $0x2b50] sm:$0xff]
        %v1753 = vld [vmem:[%s286 + $0x2b58] sm:$0xff]
        %v1754 = vld [vmem:[%s286 + $0x2b60] sm:$0xff]
        %v1755 = vld [vmem:[%s286 + $0x2b68] sm:$0xff]
        %v1756 = vld [vmem:[%s286 + $0x2b70] sm:$0xff]
        %v1757 = vld [vmem:[%s286 + $0x2b78] sm:$0xff]
        %v1758 = vld [vmem:[%s286 + $0x2b80] sm:$0xff]
        %v1759 = vld [vmem:[%s286 + $0x2b88] sm:$0xff]
        %v1760 = vld [vmem:[%s286 + $0x2b90] sm:$0xff]
        %v1761 = vld [vmem:[%s286 + $0x2b98] sm:$0xff]
        %v1762 = vld [vmem:[%s286 + $0x2ba0] sm:$0xff]
        %v1763 = vld [vmem:[%s286 + $0x2ba8] sm:$0xff]
        %v1764 = vld [vmem:[%s286 + $0x2bb0] sm:$0xff]
        %v1765 = vld [vmem:[%s286 + $0x2bb8] sm:$0xff]
        %v1766 = vld [vmem:[%s286 + $0x2bc0] sm:$0xff]
        %v1767 = vld [vmem:[%s286 + $0x2bc8] sm:$0xff]
        %v1768 = vld [vmem:[%s286 + $0x2bd0] sm:$0xff]
        %v1769 = vld [vmem:[%s286 + $0x2bd8] sm:$0xff]
        %v1770 = vld [vmem:[%s286 + $0x2be0] sm:$0xff]
        %v1771 = vld [vmem:[%s286 + $0x2be8] sm:$0xff]
        %v1772 = vld [vmem:[%s286 + $0x2bf0] sm:$0xff]
        %v1773 = vld [vmem:[%s286 + $0x2bf8] sm:$0xff]
        %v1774 = vld [vmem:[%s286 + $0x2c00] sm:$0xff]
        %v1775 = vld [vmem:[%s286 + $0x2c08] sm:$0xff]
        %v1776 = vld [vmem:[%s286 + $0x2c10] sm:$0xff]
        %v1777 = vld [vmem:[%s286 + $0x2c18] sm:$0xff]
        %v1778 = vld [vmem:[%s286 + $0x2c20] sm:$0xff]
        %v1779 = vld [vmem:[%s286 + $0x2c28] sm:$0xff]
        %v1780 = vld [vmem:[%s286 + $0x2c30] sm:$0xff]
        %v1781 = vld [vmem:[%s286 + $0x2c38] sm:$0xff]
        %v1782 = vld [vmem:[%s286 + $0x2c40] sm:$0xff]
        %v1783 = vld [vmem:[%s286 + $0x2c48] sm:$0xff]
        %v1784 = vld [vmem:[%s286 + $0x2c50] sm:$0xff]
        %v1785 = vld [vmem:[%s286 + $0x2c58] sm:$0xff]
        %v1786 = vld [vmem:[%s286 + $0x2c60] sm:$0xff]
        %v1787 = vld [vmem:[%s286 + $0x2c68] sm:$0xff]
        %v1788 = vld [vmem:[%s286 + $0x2c70] sm:$0xff]
        %v1789 = vld [vmem:[%s286 + $0x2c78] sm:$0xff]
        %v1790 = vld [vmem:[%s286 + $0x2c80] sm:$0xff]
        %v1791 = vld [vmem:[%s286 + $0x2c88] sm:$0xff]
        %v1792 = vld [vmem:[%s286 + $0x2c90] sm:$0xff]
        %v1793 = vld [vmem:[%s286 + $0x2c98] sm:$0xff]
        %v1794 = vld [vmem:[%s286 + $0x2ca0] sm:$0xff]
        %v1795 = vld [vmem:[%s286 + $0x2ca8] sm:$0xff]
        %v1796 = vld [vmem:[%s286 + $0x2cb0] sm:$0xff]
        %v1797 = vld [vmem:[%s286 + $0x2cb8] sm:$0xff]
        %v1798 = vld [vmem:[%s286 + $0x2cc0] sm:$0xff]
        %v1799 = vld [vmem:[%s286 + $0x2cc8] sm:$0xff]
        %v1800 = vld [vmem:[%s286 + $0x2cd0] sm:$0xff]
        %v1801 = vld [vmem:[%s286 + $0x2cd8] sm:$0xff]
        %v1802 = vld [vmem:[%s286 + $0x2ce0] sm:$0xff]
        %v1803 = vld [vmem:[%s286 + $0x2ce8] sm:$0xff]
        %v1804 = vld [vmem:[%s286 + $0x2cf0] sm:$0xff]
        %v1805 = vld [vmem:[%s286 + $0x2cf8] sm:$0xff]
        %v1806 = vld [vmem:[%s286 + $0x2d00] sm:$0xff]
        %v1807 = vld [vmem:[%s286 + $0x2d08] sm:$0xff]
        %v1808 = vld [vmem:[%s286 + $0x2d10] sm:$0xff]
        %v1809 = vld [vmem:[%s286 + $0x2d18] sm:$0xff]
        %v1810 = vld [vmem:[%s286 + $0x2d20] sm:$0xff]
        %v1811 = vld [vmem:[%s286 + $0x2d28] sm:$0xff]
        %v1812 = vld [vmem:[%s286 + $0x2d30] sm:$0xff]
        %v1813 = vld [vmem:[%s286 + $0x2d38] sm:$0xff]
        %v1814 = vld [vmem:[%s286 + $0x2d40] sm:$0xff]
        %v1815 = vld [vmem:[%s286 + $0x2d48] sm:$0xff]
        %v1816 = vld [vmem:[%s286 + $0x2d50] sm:$0xff]
        %v1817 = vld [vmem:[%s286 + $0x2d58] sm:$0xff]
        %v1818 = vld [vmem:[%s286 + $0x2d60] sm:$0xff]
        %v1819 = vld [vmem:[%s286 + $0x2d68] sm:$0xff]
        %v1820 = vld [vmem:[%s286 + $0x2d70] sm:$0xff]
        %v1821 = vld [vmem:[%s286 + $0x2d78] sm:$0xff]
        %v1822 = vld [vmem:[%s286 + $0x2d80] sm:$0xff]
        %v1823 = vld [vmem:[%s286 + $0x2d88] sm:$0xff]
        %v1824 = vld [vmem:[%s286 + $0x2d90] sm:$0xff]
        %v1825 = vld [vmem:[%s286 + $0x2d98] sm:$0xff]
        %v1826 = vld [vmem:[%s286 + $0x2da0] sm:$0xff]
        %v1827 = vld [vmem:[%s286 + $0x2da8] sm:$0xff]
        %v1828 = vld [vmem:[%s286 + $0x2db0] sm:$0xff]
        %v1829 = vld [vmem:[%s286 + $0x2db8] sm:$0xff]
        %v1830 = vld [vmem:[%s286 + $0x2dc0] sm:$0xff]
        %v1831 = vld [vmem:[%s286 + $0x2dc8] sm:$0xff]
        %v1832 = vld [vmem:[%s286 + $0x2dd0] sm:$0xff]
        %v1833 = vld [vmem:[%s286 + $0x2dd8] sm:$0xff]
        %v1834 = vld [vmem:[%s286 + $0x2de0] sm:$0xff]
        %v1835 = vld [vmem:[%s286 + $0x2de8] sm:$0xff]
        %v1836 = vld [vmem:[%s286 + $0x2df0] sm:$0xff]
        %v1837 = vld [vmem:[%s286 + $0x2df8] sm:$0xff]
        %v1838 = vld [vmem:[%s286 + $0x2e00] sm:$0xff]
        %v1839 = vld [vmem:[%s286 + $0x2e08] sm:$0xff]
        %v1840 = vld [vmem:[%s286 + $0x2e10] sm:$0xff]
        %v1841 = vld [vmem:[%s286 + $0x2e18] sm:$0xff]
        %v1842 = vld [vmem:[%s286 + $0x2e20] sm:$0xff]
        %v1843 = vld [vmem:[%s286 + $0x2e28] sm:$0xff]
        %v1844 = vld [vmem:[%s286 + $0x2e30] sm:$0xff]
        %v1845 = vld [vmem:[%s286 + $0x2e38] sm:$0xff]
        %v1846 = vld [vmem:[%s286 + $0x2e40] sm:$0xff]
        %v1847 = vld [vmem:[%s286 + $0x2e48] sm:$0xff]
        %v1848 = vld [vmem:[%s286 + $0x2e50] sm:$0xff]
        %v1849 = vld [vmem:[%s286 + $0x2e58] sm:$0xff]
        %v1850 = vld [vmem:[%s286 + $0x2e60] sm:$0xff]
        %v1851 = vld [vmem:[%s286 + $0x2e68] sm:$0xff]
        %v1852 = vld [vmem:[%s286 + $0x2e70] sm:$0xff]
        %v1853 = vld [vmem:[%s286 + $0x2e78] sm:$0xff]
        %v1854 = vld [vmem:[%s286 + $0x2e80] sm:$0xff]
        %v1855 = vld [vmem:[%s286 + $0x2e88] sm:$0xff]
        %v1856 = vld [vmem:[%s286 + $0x2e90] sm:$0xff]
        %v1857 = vld [vmem:[%s286 + $0x2e98] sm:$0xff]
        %v1858 = vld [vmem:[%s286 + $0x2ea0] sm:$0xff]
        %v1859 = vld [vmem:[%s286 + $0x2ea8] sm:$0xff]
        %v1860 = vld [vmem:[%s286 + $0x2eb0] sm:$0xff]
        %v1861 = vld [vmem:[%s286 + $0x2eb8] sm:$0xff]
        %v1862 = vld [vmem:[%s286 + $0x2ec0] sm:$0xff]
        %v1863 = vld [vmem:[%s286 + $0x2ec8] sm:$0xff]
        %v1864 = vld [vmem:[%s286 + $0x2ed0] sm:$0xff]
        %v1865 = vld [vmem:[%s286 + $0x2ed8] sm:$0xff]
        %v1866 = vld [vmem:[%s286 + $0x2ee0] sm:$0xff]
        %v1867 = vld [vmem:[%s286 + $0x2ee8] sm:$0xff]
        %v1868 = vld [vmem:[%s286 + $0x2ef0] sm:$0xff]
        %v1869 = vld [vmem:[%s286 + $0x2ef8] sm:$0xff]
        %v1870 = vld [vmem:[%s286 + $0x2f00] sm:$0xff]
        %v1871 = vld [vmem:[%s286 + $0x2f08] sm:$0xff]
        %v1872 = vld [vmem:[%s286 + $0x2f10] sm:$0xff]
        %v1873 = vld [vmem:[%s286 + $0x2f18] sm:$0xff]
        %v1874 = vld [vmem:[%s286 + $0x2f20] sm:$0xff]
        %v1875 = vld [vmem:[%s286 + $0x2f28] sm:$0xff]
        %v1876 = vld [vmem:[%s286 + $0x2f30] sm:$0xff]
        %v1877 = vld [vmem:[%s286 + $0x2f38] sm:$0xff]
        %v1878 = vld [vmem:[%s286 + $0x2f40] sm:$0xff]
        %v1879 = vld [vmem:[%s286 + $0x2f48] sm:$0xff]
        %v1880 = vld [vmem:[%s286 + $0x2f50] sm:$0xff]
        %v1881 = vld [vmem:[%s286 + $0x2f58] sm:$0xff]
        %v1882 = vld [vmem:[%s286 + $0x2f60] sm:$0xff]
        %v1883 = vld [vmem:[%s286 + $0x2f68] sm:$0xff]
        %v1884 = vld [vmem:[%s286 + $0x2f70] sm:$0xff]
        %v1885 = vld [vmem:[%s286 + $0x2f78] sm:$0xff]
        %v1886 = vld [vmem:[%s286 + $0x2f80] sm:$0xff]
        %v1887 = vld [vmem:[%s286 + $0x2f88] sm:$0xff]
        %v1888 = vld [vmem:[%s286 + $0x2f90] sm:$0xff]
        %v1889 = vld [vmem:[%s286 + $0x2f98] sm:$0xff]
        %v1890 = vld [vmem:[%s286 + $0x2fa0] sm:$0xff]
        %v1891 = vld [vmem:[%s286 + $0x2fa8] sm:$0xff]
        %v1892 = vld [vmem:[%s286 + $0x2fb0] sm:$0xff]
        %v1893 = vld [vmem:[%s286 + $0x2fb8] sm:$0xff]
        %v1894 = vld [vmem:[%s286 + $0x2fc0] sm:$0xff]
        %v1895 = vld [vmem:[%s286 + $0x2fc8] sm:$0xff]
        %v1896 = vld [vmem:[%s286 + $0x2fd0] sm:$0xff]
        %v1897 = vld [vmem:[%s286 + $0x2fd8] sm:$0xff]
        %v1898 = vld [vmem:[%s286 + $0x2fe0] sm:$0xff]
        %v1899 = vld [vmem:[%s286 + $0x2fe8] sm:$0xff]
        %v1900 = vld [vmem:[%s286 + $0x2ff0] sm:$0xff]
        %v1901 = vld [vmem:[%s286 + $0x2ff8] sm:$0xff]
        %v1902 = vld [vmem:[%s286 + $0x3000] sm:$0xff]
        %v1903 = vld [vmem:[%s286 + $0x3008] sm:$0xff]
        %v1904 = vld [vmem:[%s286 + $0x3010] sm:$0xff]
        %v1905 = vld [vmem:[%s286 + $0x3018] sm:$0xff]
        %v1906 = vld [vmem:[%s286 + $0x3020] sm:$0xff]
        %v1907 = vld [vmem:[%s286 + $0x3028] sm:$0xff]
        %v1908 = vld [vmem:[%s286 + $0x3030] sm:$0xff]
        %v1909 = vld [vmem:[%s286 + $0x3038] sm:$0xff]
        %v1910 = vld [vmem:[%s286 + $0x3040] sm:$0xff]
        %v1911 = vld [vmem:[%s286 + $0x3048] sm:$0xff]
        %v1912 = vld [vmem:[%s286 + $0x3050] sm:$0xff]
        %v1913 = vld [vmem:[%s286 + $0x3058] sm:$0xff]
        %v1914 = vld [vmem:[%s286 + $0x3060] sm:$0xff]
        %v1915 = vld [vmem:[%s286 + $0x3068] sm:$0xff]
        %v1916 = vld [vmem:[%s286 + $0x3070] sm:$0xff]
        %v1917 = vld [vmem:[%s286 + $0x3078] sm:$0xff]
        %v1918 = vld [vmem:[%s286 + $0x3080] sm:$0xff]
        %v1919 = vld [vmem:[%s286 + $0x3088] sm:$0xff]
        %v1920 = vld [vmem:[%s286 + $0x3090] sm:$0xff]
        %v1921 = vld [vmem:[%s286 + $0x3098] sm:$0xff]
        %v1922 = vld [vmem:[%s286 + $0x30a0] sm:$0xff]
        %v1923 = vld [vmem:[%s286 + $0x30a8] sm:$0xff]
        %v1924 = vld [vmem:[%s286 + $0x30b0] sm:$0xff]
        %v1925 = vld [vmem:[%s286 + $0x30b8] sm:$0xff]
        %v1926 = vld [vmem:[%s286 + $0x30c0] sm:$0xff]
        %v1927 = vld [vmem:[%s286 + $0x30c8] sm:$0xff]
        %v1928 = vld [vmem:[%s286 + $0x30d0] sm:$0xff]
        %v1929 = vld [vmem:[%s286 + $0x30d8] sm:$0xff]
        %v1930 = vld [vmem:[%s286 + $0x30e0] sm:$0xff]
        %v1931 = vld [vmem:[%s286 + $0x30e8] sm:$0xff]
        %v1932 = vld [vmem:[%s286 + $0x30f0] sm:$0xff]
        %v1933 = vld [vmem:[%s286 + $0x30f8] sm:$0xff]
        %v1934 = vld [vmem:[%s286 + $0x3100] sm:$0xff]
        %v1935 = vld [vmem:[%s286 + $0x3108] sm:$0xff]
        %v1936 = vld [vmem:[%s286 + $0x3110] sm:$0xff]
        %v1937 = vld [vmem:[%s286 + $0x3118] sm:$0xff]
        %v1938 = vld [vmem:[%s286 + $0x3120] sm:$0xff]
        %v1939 = vld [vmem:[%s286 + $0x3128] sm:$0xff]
        %v1940 = vld [vmem:[%s286 + $0x3130] sm:$0xff]
        %v1941 = vld [vmem:[%s286 + $0x3138] sm:$0xff]
        %v1942 = vld [vmem:[%s286 + $0x3140] sm:$0xff]
        %v1943 = vld [vmem:[%s286 + $0x3148] sm:$0xff]
        %v1944 = vld [vmem:[%s286 + $0x3150] sm:$0xff]
        %v1945 = vld [vmem:[%s286 + $0x3158] sm:$0xff]
        %v1946 = vld [vmem:[%s286 + $0x3160] sm:$0xff]
        %v1947 = vld [vmem:[%s286 + $0x3168] sm:$0xff]
        %v1948 = vld [vmem:[%s286 + $0x3170] sm:$0xff]
        %v1949 = vld [vmem:[%s286 + $0x3178] sm:$0xff]
        %v1950 = vld [vmem:[%s286 + $0x3180] sm:$0xff]
        %v1951 = vld [vmem:[%s286 + $0x3188] sm:$0xff]
        %v1952 = vld [vmem:[%s286 + $0x3190] sm:$0xff]
        %v1953 = vld [vmem:[%s286 + $0x3198] sm:$0xff]
        %v1954 = vld [vmem:[%s286 + $0x31a0] sm:$0xff]
        %v1955 = vld [vmem:[%s286 + $0x31a8] sm:$0xff]
        %v1956 = vld [vmem:[%s286 + $0x31b0] sm:$0xff]
        %v1957 = vld [vmem:[%s286 + $0x31b8] sm:$0xff]
        %v1958 = vld [vmem:[%s286 + $0x31c0] sm:$0xff]
        %v1959 = vld [vmem:[%s286 + $0x31c8] sm:$0xff]
        %v1960 = vld [vmem:[%s286 + $0x31d0] sm:$0xff]
        %v1961 = vld [vmem:[%s286 + $0x31d8] sm:$0xff]
        %v1962 = vld [vmem:[%s286 + $0x31e0] sm:$0xff]
        %v1963 = vld [vmem:[%s286 + $0x31e8] sm:$0xff]
        %v1964 = vld [vmem:[%s286 + $0x31f0] sm:$0xff]
        %v1965 = vld [vmem:[%s286 + $0x31f8] sm:$0xff]
        %v1966 = vld [vmem:[%s286 + $0x3200] sm:$0xff]
        %v1967 = vld [vmem:[%s286 + $0x3208] sm:$0xff]
        %v1968 = vld [vmem:[%s286 + $0x3210] sm:$0xff]
        %v1969 = vld [vmem:[%s286 + $0x3218] sm:$0xff]
        %v1970 = vld [vmem:[%s286 + $0x3220] sm:$0xff]
        %v1971 = vld [vmem:[%s286 + $0x3228] sm:$0xff]
        %v1972 = vld [vmem:[%s286 + $0x3230] sm:$0xff]
        %v1973 = vld [vmem:[%s286 + $0x3238] sm:$0xff]
        %v1974 = vld [vmem:[%s286 + $0x3240] sm:$0xff]
        %v1975 = vld [vmem:[%s286 + $0x3248] sm:$0xff]
        %v1976 = vld [vmem:[%s286 + $0x3250] sm:$0xff]
        %v1977 = vld [vmem:[%s286 + $0x3258] sm:$0xff]
        %v1978 = vld [vmem:[%s286 + $0x3260] sm:$0xff]
        %v1979 = vld [vmem:[%s286 + $0x3268] sm:$0xff]
        %v1980 = vld [vmem:[%s286 + $0x3270] sm:$0xff]
        %v1981 = vld [vmem:[%s286 + $0x3278] sm:$0xff]
        %v1982 = vld [vmem:[%s286 + $0x3280] sm:$0xff]
        %v1983 = vld [vmem:[%s286 + $0x3288] sm:$0xff]
        %v1984 = vld [vmem:[%s286 + $0x3290] sm:$0xff]
        %v1985 = vld [vmem:[%s286 + $0x3298] sm:$0xff]
        %v1986 = vld [vmem:[%s286 + $0x32a0] sm:$0xff]
        %v1987 = vld [vmem:[%s286 + $0x32a8] sm:$0xff]
        %v1988 = vld [vmem:[%s286 + $0x32b0] sm:$0xff]
        %v1989 = vld [vmem:[%s286 + $0x32b8] sm:$0xff]
        %v1990 = vld [vmem:[%s286 + $0x32c0] sm:$0xff]
        %v1991 = vld [vmem:[%s286 + $0x32c8] sm:$0xff]
        %v1992 = vld [vmem:[%s286 + $0x32d0] sm:$0xff]
        %v1993 = vld [vmem:[%s286 + $0x32d8] sm:$0xff]
        %v1994 = vld [vmem:[%s286 + $0x32e0] sm:$0xff]
        %v1995 = vld [vmem:[%s286 + $0x32e8] sm:$0xff]
        %v1996 = vld [vmem:[%s286 + $0x32f0] sm:$0xff]
        %v1997 = vld [vmem:[%s286 + $0x32f8] sm:$0xff]
        %v1998 = vld [vmem:[%s286 + $0x3300] sm:$0xff]
        %v1999 = vld [vmem:[%s286 + $0x3308] sm:$0xff]
        %v2000 = vld [vmem:[%s286 + $0x3310] sm:$0xff]
        %v2001 = vld [vmem:[%s286 + $0x3318] sm:$0xff]
        %v2002 = vld [vmem:[%s286 + $0x3320] sm:$0xff]
        %v2003 = vld [vmem:[%s286 + $0x3328] sm:$0xff]
        %v2004 = vld [vmem:[%s286 + $0x3330] sm:$0xff]
        %v2005 = vld [vmem:[%s286 + $0x3338] sm:$0xff]
        %v2006 = vld [vmem:[%s286 + $0x3340] sm:$0xff]
        %v2007 = vld [vmem:[%s286 + $0x3348] sm:$0xff]
        %v2008 = vld [vmem:[%s286 + $0x3350] sm:$0xff]
        %v2009 = vld [vmem:[%s286 + $0x3358] sm:$0xff]
        %v2010 = vld [vmem:[%s286 + $0x3360] sm:$0xff]
        %v2011 = vld [vmem:[%s286 + $0x3368] sm:$0xff]
        %v2012 = vld [vmem:[%s286 + $0x3370] sm:$0xff]
        %v2013 = vld [vmem:[%s286 + $0x3378] sm:$0xff]
        %v2014 = vld [vmem:[%s286 + $0x3380] sm:$0xff]
        %v2015 = vld [vmem:[%s286 + $0x3388] sm:$0xff]
        %v2016 = vld [vmem:[%s286 + $0x3390] sm:$0xff]
        %v2017 = vld [vmem:[%s286 + $0x3398] sm:$0xff]
        %v2018 = vld [vmem:[%s286 + $0x33a0] sm:$0xff]
        %v2019 = vld [vmem:[%s286 + $0x33a8] sm:$0xff]
        %v2020 = vld [vmem:[%s286 + $0x33b0] sm:$0xff]
        %v2021 = vld [vmem:[%s286 + $0x33b8] sm:$0xff]
        %v2022 = vld [vmem:[%s286 + $0x33c0] sm:$0xff]
        %v2023 = vld [vmem:[%s286 + $0x33c8] sm:$0xff]
        %v2024 = vld [vmem:[%s286 + $0x33d0] sm:$0xff]
        %v2025 = vld [vmem:[%s286 + $0x33d8] sm:$0xff]
        %v2026 = vld [vmem:[%s286 + $0x33e0] sm:$0xff]
        %v2027 = vld [vmem:[%s286 + $0x33e8] sm:$0xff]
        %v2028 = vld [vmem:[%s286 + $0x33f0] sm:$0xff]
        %v2029 = vld [vmem:[%s286 + $0x33f8] sm:$0xff]
        %v2030 = vld [vmem:[%s286 + $0x3400] sm:$0xff]
        %v2031 = vld [vmem:[%s286 + $0x3408] sm:$0xff]
        %v2032 = vld [vmem:[%s286 + $0x3410] sm:$0xff]
        %v2033 = vld [vmem:[%s286 + $0x3418] sm:$0xff]
        %v2034 = vld [vmem:[%s286 + $0x3420] sm:$0xff]
        %v2035 = vld [vmem:[%s286 + $0x3428] sm:$0xff]
        %v2036 = vld [vmem:[%s286 + $0x3430] sm:$0xff]
        %v2037 = vld [vmem:[%s286 + $0x3438] sm:$0xff]
        %v2038 = vld [vmem:[%s286 + $0x3440] sm:$0xff]
        %v2039 = vld [vmem:[%s286 + $0x3448] sm:$0xff]
        %v2040 = vld [vmem:[%s286 + $0x3450] sm:$0xff]
        %v2041 = vld [vmem:[%s286 + $0x3458] sm:$0xff]
        %v2042 = vld [vmem:[%s286 + $0x3460] sm:$0xff]
        %v2043 = vld [vmem:[%s286 + $0x3468] sm:$0xff]
        %v2044 = vld [vmem:[%s286 + $0x3470] sm:$0xff]
        %v2045 = vld [vmem:[%s286 + $0x3478] sm:$0xff]
        %v2046 = vld [vmem:[%s286 + $0x3480] sm:$0xff]
        %v2047 = vld [vmem:[%s286 + $0x3488] sm:$0xff]
        %v2048 = vld [vmem:[%s286 + $0x3490] sm:$0xff]
        %v2049 = vld [vmem:[%s286 + $0x3498] sm:$0xff]
        %v2050 = vld [vmem:[%s286 + $0x34a0] sm:$0xff]
        %v2051 = vld [vmem:[%s286 + $0x34a8] sm:$0xff]
        %v2052 = vld [vmem:[%s286 + $0x34b0] sm:$0xff]
        %v2053 = vld [vmem:[%s286 + $0x34b8] sm:$0xff]
        %v2054 = vld [vmem:[%s286 + $0x34c0] sm:$0xff]
        %v2055 = vld [vmem:[%s286 + $0x34c8] sm:$0xff]
        %v2056 = vld [vmem:[%s286 + $0x34d0] sm:$0xff]
        %v2057 = vld [vmem:[%s286 + $0x34d8] sm:$0xff]
        %v2058 = vld [vmem:[%s286 + $0x34e0] sm:$0xff]
        %v2059 = vld [vmem:[%s286 + $0x34e8] sm:$0xff]
        %v2060 = vld [vmem:[%s286 + $0x34f0] sm:$0xff]
        %v2061 = vld [vmem:[%s286 + $0x34f8] sm:$0xff]
        %v2062 = vld [vmem:[%s286 + $0x3500] sm:$0xff]
        %v2063 = vld [vmem:[%s286 + $0x3508] sm:$0xff]
        %v2064 = vld [vmem:[%s286 + $0x3510] sm:$0xff]
        %v2065 = vld [vmem:[%s286 + $0x3518] sm:$0xff]
        %v2066 = vld [vmem:[%s286 + $0x3520] sm:$0xff]
        %v2067 = vld [vmem:[%s286 + $0x3528] sm:$0xff]
        %v2068 = vld [vmem:[%s286 + $0x3530] sm:$0xff]
        %v2069 = vld [vmem:[%s286 + $0x3538] sm:$0xff]
        %v2070 = vld [vmem:[%s286 + $0x3540] sm:$0xff]
        %v2071 = vld [vmem:[%s286 + $0x3548] sm:$0xff]
        %v2072 = vld [vmem:[%s286 + $0x3550] sm:$0xff]
        %v2073 = vld [vmem:[%s286 + $0x3558] sm:$0xff]
        %v2074 = vld [vmem:[%s286 + $0x3560] sm:$0xff]
        %v2075 = vld [vmem:[%s286 + $0x3568] sm:$0xff]
        %v2076 = vld [vmem:[%s286 + $0x3570] sm:$0xff]
        %v2077 = vld [vmem:[%s286 + $0x3578] sm:$0xff]
        %v2078 = vld [vmem:[%s286 + $0x3580] sm:$0xff]
        %v2079 = vld [vmem:[%s286 + $0x3588] sm:$0xff]
        %v2080 = vld [vmem:[%s286 + $0x3590] sm:$0xff]
        %v2081 = vld [vmem:[%s286 + $0x3598] sm:$0xff]
        %v2082 = vld [vmem:[%s286 + $0x35a0] sm:$0xff]
        %v2083 = vld [vmem:[%s286 + $0x35a8] sm:$0xff]
        %v2084 = vld [vmem:[%s286 + $0x35b0] sm:$0xff]
        %v2085 = vld [vmem:[%s286 + $0x35b8] sm:$0xff]
        %v2086 = vld [vmem:[%s286 + $0x35c0] sm:$0xff]
        %v2087 = vld [vmem:[%s286 + $0x35c8] sm:$0xff]
        %v2088 = vld [vmem:[%s286 + $0x35d0] sm:$0xff]
        %v2089 = vld [vmem:[%s286 + $0x35d8] sm:$0xff]
        %v2090 = vld [vmem:[%s286 + $0x35e0] sm:$0xff]
        %v2091 = vld [vmem:[%s286 + $0x35e8] sm:$0xff]
        %v2092 = vld [vmem:[%s286 + $0x35f0] sm:$0xff]
        %v2093 = vld [vmem:[%s286 + $0x35f8] sm:$0xff]
        %v2094 = vld [vmem:[%s286 + $0x3600] sm:$0xff]
        %v2095 = vld [vmem:[%s286 + $0x3608] sm:$0xff]
        %v2096 = vld [vmem:[%s286 + $0x3610] sm:$0xff]
        %v2097 = vld [vmem:[%s286 + $0x3618] sm:$0xff]
        %v2098 = vld [vmem:[%s286 + $0x3620] sm:$0xff]
        %v2099 = vld [vmem:[%s286 + $0x3628] sm:$0xff]
        %v2100 = vld [vmem:[%s286 + $0x3630] sm:$0xff]
        %v2101 = vld [vmem:[%s286 + $0x3638] sm:$0xff]
        %v2102 = vld [vmem:[%s286 + $0x3640] sm:$0xff]
        %v2103 = vld [vmem:[%s286 + $0x3648] sm:$0xff]
        %v2104 = vld [vmem:[%s286 + $0x3650] sm:$0xff]
        %v2105 = vld [vmem:[%s286 + $0x3658] sm:$0xff]
        %v2106 = vld [vmem:[%s286 + $0x3660] sm:$0xff]
        %v2107 = vld [vmem:[%s286 + $0x3668] sm:$0xff]
        %v2108 = vld [vmem:[%s286 + $0x3670] sm:$0xff]
        %v2109 = vld [vmem:[%s286 + $0x3678] sm:$0xff]
        %v2110 = vld [vmem:[%s286 + $0x3680] sm:$0xff]
        %v2111 = vld [vmem:[%s286 + $0x3688] sm:$0xff]
        %v2112 = vld [vmem:[%s286 + $0x3690] sm:$0xff]
        %v2113 = vld [vmem:[%s286 + $0x3698] sm:$0xff]
        %v2114 = vld [vmem:[%s286 + $0x36a0] sm:$0xff]
        %v2115 = vld [vmem:[%s286 + $0x36a8] sm:$0xff]
        %v2116 = vld [vmem:[%s286 + $0x36b0] sm:$0xff]
        %v2117 = vld [vmem:[%s286 + $0x36b8] sm:$0xff]
        %v2118 = vld [vmem:[%s286 + $0x36c0] sm:$0xff]
        %v2119 = vld [vmem:[%s286 + $0x36c8] sm:$0xff]
        %v2120 = vld [vmem:[%s286 + $0x36d0] sm:$0xff]
        %v2121 = vld [vmem:[%s286 + $0x36d8] sm:$0xff]
        %v2122 = vld [vmem:[%s286 + $0x36e0] sm:$0xff]
        %v2123 = vld [vmem:[%s286 + $0x36e8] sm:$0xff]
        %v2124 = vld [vmem:[%s286 + $0x36f0] sm:$0xff]
        %v2125 = vld [vmem:[%s286 + $0x36f8] sm:$0xff]
        %v2126 = vld [vmem:[%s286 + $0x3700] sm:$0xff]
        %v2127 = vld [vmem:[%s286 + $0x3708] sm:$0xff]
        %v2128 = vld [vmem:[%s286 + $0x3710] sm:$0xff]
        %v2129 = vld [vmem:[%s286 + $0x3718] sm:$0xff]
        %v2130 = vld [vmem:[%s286 + $0x3720] sm:$0xff]
        %v2131 = vld [vmem:[%s286 + $0x3728] sm:$0xff]
        %v2132 = vld [vmem:[%s286 + $0x3730] sm:$0xff]
        %v2133 = vld [vmem:[%s286 + $0x3738] sm:$0xff]
        %v2134 = vld [vmem:[%s286 + $0x3740] sm:$0xff]
        %v2135 = vld [vmem:[%s286 + $0x3748] sm:$0xff]
        %v2136 = vld [vmem:[%s286 + $0x3750] sm:$0xff]
        %v2137 = vld [vmem:[%s286 + $0x3758] sm:$0xff]
        %v2138 = vld [vmem:[%s286 + $0x3760] sm:$0xff]
        %v2139 = vld [vmem:[%s286 + $0x3768] sm:$0xff]
        %v2140 = vld [vmem:[%s286 + $0x3770] sm:$0xff]
        %v2141 = vld [vmem:[%s286 + $0x3778] sm:$0xff]
        %v2142 = vld [vmem:[%s286 + $0x3780] sm:$0xff]
        %v2143 = vld [vmem:[%s286 + $0x3788] sm:$0xff]
        %v2144 = vld [vmem:[%s286 + $0x3790] sm:$0xff]
        %v2145 = vld [vmem:[%s286 + $0x3798] sm:$0xff]
        %v2146 = vld [vmem:[%s286 + $0x37a0] sm:$0xff]
        %v2147 = vld [vmem:[%s286 + $0x37a8] sm:$0xff]
        %v2148 = vld [vmem:[%s286 + $0x37b0] sm:$0xff]
        %v2149 = vld [vmem:[%s286 + $0x37b8] sm:$0xff]
        %v2150 = vld [vmem:[%s286 + $0x37c0] sm:$0xff]
        %v2151 = vld [vmem:[%s286 + $0x37c8] sm:$0xff]
        %v2152 = vld [vmem:[%s286 + $0x37d0] sm:$0xff]
        %v2153 = vld [vmem:[%s286 + $0x37d8] sm:$0xff]
        %v2154 = vld [vmem:[%s286 + $0x37e0] sm:$0xff]
        %v2155 = vld [vmem:[%s286 + $0x37e8] sm:$0xff]
        %v2156 = vld [vmem:[%s286 + $0x37f0] sm:$0xff]
        %v2157 = vld [vmem:[%s286 + $0x37f8] sm:$0xff]
        %v2158 = vld [vmem:[%s286 + $0x3800] sm:$0xff]
        %v2159 = vld [vmem:[%s286 + $0x3808] sm:$0xff]
        %v2160 = vld [vmem:[%s286 + $0x3810] sm:$0xff]
        %v2161 = vld [vmem:[%s286 + $0x3818] sm:$0xff]
        %v2162 = vld [vmem:[%s286 + $0x3820] sm:$0xff]
        %v2163 = vld [vmem:[%s286 + $0x3828] sm:$0xff]
        %v2164 = vld [vmem:[%s286 + $0x3830] sm:$0xff]
        %v2165 = vld [vmem:[%s286 + $0x3838] sm:$0xff]
        %v2166 = vld [vmem:[%s286 + $0x3840] sm:$0xff]
        %v2167 = vld [vmem:[%s286 + $0x3848] sm:$0xff]
        %v2168 = vld [vmem:[%s286 + $0x3850] sm:$0xff]
        %v2169 = vld [vmem:[%s286 + $0x3858] sm:$0xff]
        %v2170 = vld [vmem:[%s286 + $0x3860] sm:$0xff]
        %v2171 = vld [vmem:[%s286 + $0x3868] sm:$0xff]
        %v2172 = vld [vmem:[%s286 + $0x3870] sm:$0xff]
        %v2173 = vld [vmem:[%s286 + $0x3878] sm:$0xff]
        %v2174 = vld [vmem:[%s286 + $0x3880] sm:$0xff]
        %v2175 = vld [vmem:[%s286 + $0x3888] sm:$0xff]
        %v2176 = vld [vmem:[%s286 + $0x3890] sm:$0xff]
        %v2177 = vld [vmem:[%s286 + $0x3898] sm:$0xff]
        %v2178 = vld [vmem:[%s286 + $0x38a0] sm:$0xff]
        %v2179 = vld [vmem:[%s286 + $0x38a8] sm:$0xff]
        %v2180 = vld [vmem:[%s286 + $0x38b0] sm:$0xff]
        %v2181 = vld [vmem:[%s286 + $0x38b8] sm:$0xff]
        %v2182 = vld [vmem:[%s286 + $0x38c0] sm:$0xff]
        %v2183 = vld [vmem:[%s286 + $0x38c8] sm:$0xff]
        %v2184 = vld [vmem:[%s286 + $0x38d0] sm:$0xff]
        %v2185 = vld [vmem:[%s286 + $0x38d8] sm:$0xff]
        %v2186 = vld [vmem:[%s286 + $0x38e0] sm:$0xff]
        %v2187 = vld [vmem:[%s286 + $0x38e8] sm:$0xff]
        %v2188 = vld [vmem:[%s286 + $0x38f0] sm:$0xff]
        %v2189 = vld [vmem:[%s286 + $0x38f8] sm:$0xff]
        %v2190 = vld [vmem:[%s286 + $0x3900] sm:$0xff]
        %v2191 = vld [vmem:[%s286 + $0x3908] sm:$0xff]
        %v2192 = vld [vmem:[%s286 + $0x3910] sm:$0xff]
        %v2193 = vld [vmem:[%s286 + $0x3918] sm:$0xff]
        %v2194 = vld [vmem:[%s286 + $0x3920] sm:$0xff]
        %v2195 = vld [vmem:[%s286 + $0x3928] sm:$0xff]
        %v2196 = vld [vmem:[%s286 + $0x3930] sm:$0xff]
        %v2197 = vld [vmem:[%s286 + $0x3938] sm:$0xff]
        %v2198 = vld [vmem:[%s286 + $0x3940] sm:$0xff]
        %v2199 = vld [vmem:[%s286 + $0x3948] sm:$0xff]
        %v2200 = vld [vmem:[%s286 + $0x3950] sm:$0xff]
        %v2201 = vld [vmem:[%s286 + $0x3958] sm:$0xff]
        %v2202 = vld [vmem:[%s286 + $0x3960] sm:$0xff]
        %v2203 = vld [vmem:[%s286 + $0x3968] sm:$0xff]
        %v2204 = vld [vmem:[%s286 + $0x3970] sm:$0xff]
        %v2205 = vld [vmem:[%s286 + $0x3978] sm:$0xff]
        %v2206 = vld [vmem:[%s286 + $0x3980] sm:$0xff]
        %v2207 = vld [vmem:[%s286 + $0x3988] sm:$0xff]
        %v2208 = vld [vmem:[%s286 + $0x3990] sm:$0xff]
        %v2209 = vld [vmem:[%s286 + $0x3998] sm:$0xff]
        %v2210 = vld [vmem:[%s286 + $0x39a0] sm:$0xff]
        %v2211 = vld [vmem:[%s286 + $0x39a8] sm:$0xff]
        %v2212 = vld [vmem:[%s286 + $0x39b0] sm:$0xff]
        %v2213 = vld [vmem:[%s286 + $0x39b8] sm:$0xff]
        %v2214 = vld [vmem:[%s286 + $0x39c0] sm:$0xff]
        %v2215 = vld [vmem:[%s286 + $0x39c8] sm:$0xff]
        %v2216 = vld [vmem:[%s286 + $0x39d0] sm:$0xff]
        %v2217 = vld [vmem:[%s286 + $0x39d8] sm:$0xff]
        %v2218 = vld [vmem:[%s286 + $0x39e0] sm:$0xff]
        %v2219 = vld [vmem:[%s286 + $0x39e8] sm:$0xff]
        %v2220 = vld [vmem:[%s286 + $0x39f0] sm:$0xff]
        %v2221 = vld [vmem:[%s286 + $0x39f8] sm:$0xff]
        %v2222 = vld [vmem:[%s286 + $0x3a00] sm:$0xff]
        %v2223 = vld [vmem:[%s286 + $0x3a08] sm:$0xff]
        %v2224 = vld [vmem:[%s286 + $0x3a10] sm:$0xff]
        %v2225 = vld [vmem:[%s286 + $0x3a18] sm:$0xff]
        %v2226 = vld [vmem:[%s286 + $0x3a20] sm:$0xff]
        %v2227 = vld [vmem:[%s286 + $0x3a28] sm:$0xff]
        %v2228 = vld [vmem:[%s286 + $0x3a30] sm:$0xff]
        %v2229 = vld [vmem:[%s286 + $0x3a38] sm:$0xff]
        %v2230 = vld [vmem:[%s286 + $0x3a40] sm:$0xff]
        %v2231 = vld [vmem:[%s286 + $0x3a48] sm:$0xff]
        %v2232 = vld [vmem:[%s286 + $0x3a50] sm:$0xff]
        %v2233 = vld [vmem:[%s286 + $0x3a58] sm:$0xff]
        %v2234 = vld [vmem:[%s286 + $0x3a60] sm:$0xff]
        %v2235 = vld [vmem:[%s286 + $0x3a68] sm:$0xff]
        %v2236 = vld [vmem:[%s286 + $0x3a70] sm:$0xff]
        %v2237 = vld [vmem:[%s286 + $0x3a78] sm:$0xff]
        %v2238 = vld [vmem:[%s286 + $0x3a80] sm:$0xff]
        %v2239 = vld [vmem:[%s286 + $0x3a88] sm:$0xff]
        %v2240 = vld [vmem:[%s286 + $0x3a90] sm:$0xff]
        %v2241 = vld [vmem:[%s286 + $0x3a98] sm:$0xff]
        %v2242 = vld [vmem:[%s286 + $0x3aa0] sm:$0xff]
        %v2243 = vld [vmem:[%s286 + $0x3aa8] sm:$0xff]
        %v2244 = vld [vmem:[%s286 + $0x3ab0] sm:$0xff]
        %v2245 = vld [vmem:[%s286 + $0x3ab8] sm:$0xff]
        %v2246 = vld [vmem:[%s286 + $0x3ac0] sm:$0xff]
        %v2247 = vld [vmem:[%s286 + $0x3ac8] sm:$0xff]
        %v2248 = vld [vmem:[%s286 + $0x3ad0] sm:$0xff]
        %v2249 = vld [vmem:[%s286 + $0x3ad8] sm:$0xff]
        %v2250 = vld [vmem:[%s286 + $0x3ae0] sm:$0xff]
        %v2251 = vld [vmem:[%s286 + $0x3ae8] sm:$0xff]
        %v2252 = vld [vmem:[%s286 + $0x3af0] sm:$0xff]
        %v2253 = vld [vmem:[%s286 + $0x3af8] sm:$0xff]
        %v2254 = vld [vmem:[%s286 + $0x3b00] sm:$0xff]
        %v2255 = vld [vmem:[%s286 + $0x3b08] sm:$0xff]
        %v2256 = vld [vmem:[%s286 + $0x3b10] sm:$0xff]
        %v2257 = vld [vmem:[%s286 + $0x3b18] sm:$0xff]
        %v2258 = vld [vmem:[%s286 + $0x3b20] sm:$0xff]
        %v2259 = vld [vmem:[%s286 + $0x3b28] sm:$0xff]
        %v2260 = vld [vmem:[%s286 + $0x3b30] sm:$0xff]
        %v2261 = vld [vmem:[%s286 + $0x3b38] sm:$0xff]
        %v2262 = vld [vmem:[%s286 + $0x3b40] sm:$0xff]
        %v2263 = vld [vmem:[%s286 + $0x3b48] sm:$0xff]
        %v2264 = vld [vmem:[%s286 + $0x3b50] sm:$0xff]
        %v2265 = vld [vmem:[%s286 + $0x3b58] sm:$0xff]
        %v2266 = vld [vmem:[%s286 + $0x3b60] sm:$0xff]
        %v2267 = vld [vmem:[%s286 + $0x3b68] sm:$0xff]
        %v2268 = vld [vmem:[%s286 + $0x3b70] sm:$0xff]
        %v2269 = vld [vmem:[%s286 + $0x3b78] sm:$0xff]
        %v2270 = vld [vmem:[%s286 + $0x3b80] sm:$0xff]
        %v2271 = vld [vmem:[%s286 + $0x3b88] sm:$0xff]
        %v2272 = vld [vmem:[%s286 + $0x3b90] sm:$0xff]
        %v2273 = vld [vmem:[%s286 + $0x3b98] sm:$0xff]
        %v2274 = vld [vmem:[%s286 + $0x3ba0] sm:$0xff]
        %v2275 = vld [vmem:[%s286 + $0x3ba8] sm:$0xff]
        %v2276 = vld [vmem:[%s286 + $0x3bb0] sm:$0xff]
        %v2277 = vld [vmem:[%s286 + $0x3bb8] sm:$0xff]
        %v2278 = vld [vmem:[%s286 + $0x3bc0] sm:$0xff]
        %v2279 = vld [vmem:[%s286 + $0x3bc8] sm:$0xff]
        %v2280 = vld [vmem:[%s286 + $0x3bd0] sm:$0xff]
        %v2281 = vld [vmem:[%s286 + $0x3bd8] sm:$0xff]
        %v2282 = vld [vmem:[%s286 + $0x3be0] sm:$0xff]
        %v2283 = vld [vmem:[%s286 + $0x3be8] sm:$0xff]
        %v2284 = vld [vmem:[%s286 + $0x3bf0] sm:$0xff]
        %v2285 = vld [vmem:[%s286 + $0x3bf8] sm:$0xff]
        %v2286 = vld [vmem:[%s286 + $0x3c00] sm:$0xff]
        %v2287 = vld [vmem:[%s286 + $0x3c08] sm:$0xff]
        %v2288 = vld [vmem:[%s286 + $0x3c10] sm:$0xff]
        %v2289 = vld [vmem:[%s286 + $0x3c18] sm:$0xff]
        %v2290 = vld [vmem:[%s286 + $0x3c20] sm:$0xff]
        %v2291 = vld [vmem:[%s286 + $0x3c28] sm:$0xff]
        %v2292 = vld [vmem:[%s286 + $0x3c30] sm:$0xff]
        %v2293 = vld [vmem:[%s286 + $0x3c38] sm:$0xff]
        %v2294 = vld [vmem:[%s286 + $0x3c40] sm:$0xff]
        %v2295 = vld [vmem:[%s286 + $0x3c48] sm:$0xff]
        %v2296 = vld [vmem:[%s286 + $0x3c50] sm:$0xff]
        %v2297 = vld [vmem:[%s286 + $0x3c58] sm:$0xff]
        %v2298 = vld [vmem:[%s286 + $0x3c60] sm:$0xff]
        %v2299 = vld [vmem:[%s286 + $0x3c68] sm:$0xff]
        %v2300 = vld [vmem:[%s286 + $0x3c70] sm:$0xff]
        %v2301 = vld [vmem:[%s286 + $0x3c78] sm:$0xff]
        %v2302 = vld [vmem:[%s286 + $0x3c80] sm:$0xff]
        %v2303 = vld [vmem:[%s286 + $0x3c88] sm:$0xff]
        %v2304 = vld [vmem:[%s286 + $0x3c90] sm:$0xff]
        %v2305 = vld [vmem:[%s286 + $0x3c98] sm:$0xff]
        %v2306 = vld [vmem:[%s286 + $0x3ca0] sm:$0xff]
        %v2307 = vld [vmem:[%s286 + $0x3ca8] sm:$0xff]
        %v2308 = vld [vmem:[%s286 + $0x3cb0] sm:$0xff]
        %v2309 = vld [vmem:[%s286 + $0x3cb8] sm:$0xff]
        %v2310 = vld [vmem:[%s286 + $0x3cc0] sm:$0xff]
        %v2311 = vld [vmem:[%s286 + $0x3cc8] sm:$0xff]
        %v2312 = vld [vmem:[%s286 + $0x3cd0] sm:$0xff]
        %v2313 = vld [vmem:[%s286 + $0x3cd8] sm:$0xff]
        %v2314 = vld [vmem:[%s286 + $0x3ce0] sm:$0xff]
        %v2315 = vld [vmem:[%s286 + $0x3ce8] sm:$0xff]
        %v2316 = vld [vmem:[%s286 + $0x3cf0] sm:$0xff]
        %v2317 = vld [vmem:[%s286 + $0x3cf8] sm:$0xff]
        %v2318 = vld [vmem:[%s286 + $0x3d00] sm:$0xff]
        %v2319 = vld [vmem:[%s286 + $0x3d08] sm:$0xff]
        %v2320 = vld [vmem:[%s286 + $0x3d10] sm:$0xff]
        %v2321 = vld [vmem:[%s286 + $0x3d18] sm:$0xff]
        %v2322 = vld [vmem:[%s286 + $0x3d20] sm:$0xff]
        %v2323 = vld [vmem:[%s286 + $0x3d28] sm:$0xff]
        %v2324 = vld [vmem:[%s286 + $0x3d30] sm:$0xff]
        %v2325 = vld [vmem:[%s286 + $0x3d38] sm:$0xff]
        %v2326 = vld [vmem:[%s286 + $0x3d40] sm:$0xff]
        %v2327 = vld [vmem:[%s286 + $0x3d48] sm:$0xff]
        %v2328 = vld [vmem:[%s286 + $0x3d50] sm:$0xff]
        %v2329 = vld [vmem:[%s286 + $0x3d58] sm:$0xff]
        %v2330 = vld [vmem:[%s286 + $0x3d60] sm:$0xff]
        %v2331 = vld [vmem:[%s286 + $0x3d68] sm:$0xff]
        %v2332 = vld [vmem:[%s286 + $0x3d70] sm:$0xff]
        %v2333 = vld [vmem:[%s286 + $0x3d78] sm:$0xff]
        %v2334 = vld [vmem:[%s286 + $0x3d80] sm:$0xff]
        %v2335 = vld [vmem:[%s286 + $0x3d88] sm:$0xff]
        %v2336 = vld [vmem:[%s286 + $0x3d90] sm:$0xff]
        %v2337 = vld [vmem:[%s286 + $0x3d98] sm:$0xff]
        %v2338 = vld [vmem:[%s286 + $0x3da0] sm:$0xff]
        %v2339 = vld [vmem:[%s286 + $0x3da8] sm:$0xff]
        %v2340 = vld [vmem:[%s286 + $0x3db0] sm:$0xff]
        %v2341 = vld [vmem:[%s286 + $0x3db8] sm:$0xff]
        %v2342 = vld [vmem:[%s286 + $0x3dc0] sm:$0xff]
        %v2343 = vld [vmem:[%s286 + $0x3dc8] sm:$0xff]
        %v2344 = vld [vmem:[%s286 + $0x3dd0] sm:$0xff]
        %v2345 = vld [vmem:[%s286 + $0x3dd8] sm:$0xff]
        %v2346 = vld [vmem:[%s286 + $0x3de0] sm:$0xff]
        %v2347 = vld [vmem:[%s286 + $0x3de8] sm:$0xff]
        %v2348 = vld [vmem:[%s286 + $0x3df0] sm:$0xff]
        %v2349 = vld [vmem:[%s286 + $0x3df8] sm:$0xff]
        %v2350 = vld [vmem:[%s286 + $0x3e00] sm:$0xff]
        %v2351 = vld [vmem:[%s286 + $0x3e08] sm:$0xff]
        %v2352 = vld [vmem:[%s286 + $0x3e10] sm:$0xff]
        %v2353 = vld [vmem:[%s286 + $0x3e18] sm:$0xff]
        %v2354 = vld [vmem:[%s286 + $0x3e20] sm:$0xff]
        %v2355 = vld [vmem:[%s286 + $0x3e28] sm:$0xff]
        %v2356 = vld [vmem:[%s286 + $0x3e30] sm:$0xff]
        %v2357 = vld [vmem:[%s286 + $0x3e38] sm:$0xff]
        %v2358 = vld [vmem:[%s286 + $0x3e40] sm:$0xff]
        %v2359 = vld [vmem:[%s286 + $0x3e48] sm:$0xff]
        %v2360 = vld [vmem:[%s286 + $0x3e50] sm:$0xff]
        %v2361 = vld [vmem:[%s286 + $0x3e58] sm:$0xff]
        %v2362 = vld [vmem:[%s286 + $0x3e60] sm:$0xff]
        %v2363 = vld [vmem:[%s286 + $0x3e68] sm:$0xff]
        %v2364 = vld [vmem:[%s286 + $0x3e70] sm:$0xff]
        %v2365 = vld [vmem:[%s286 + $0x3e78] sm:$0xff]
        %v2366 = vld [vmem:[%s286 + $0x3e80] sm:$0xff]
        %v2367 = vld [vmem:[%s286 + $0x3e88] sm:$0xff]
        %v2368 = vld [vmem:[%s286 + $0x3e90] sm:$0xff]
        %v2369 = vld [vmem:[%s286 + $0x3e98] sm:$0xff]
        %v2370 = vld [vmem:[%s286 + $0x3ea0] sm:$0xff]
        %v2371 = vld [vmem:[%s286 + $0x3ea8] sm:$0xff]
        %v2372 = vld [vmem:[%s286 + $0x3eb0] sm:$0xff]
        %v2373 = vld [vmem:[%s286 + $0x3eb8] sm:$0xff]
        %v2374 = vld [vmem:[%s286 + $0x3ec0] sm:$0xff]
        %v2375 = vld [vmem:[%s286 + $0x3ec8] sm:$0xff]
        %v2376 = vld [vmem:[%s286 + $0x3ed0] sm:$0xff]
        %v2377 = vld [vmem:[%s286 + $0x3ed8] sm:$0xff]
        %v2378 = vld [vmem:[%s286 + $0x3ee0] sm:$0xff]
        %v2379 = vld [vmem:[%s286 + $0x3ee8] sm:$0xff]
        %v2380 = vld [vmem:[%s286 + $0x3ef0] sm:$0xff]
        %v2381 = vld [vmem:[%s286 + $0x3ef8] sm:$0xff]
        %v2382 = vld [vmem:[%s286 + $0x3f00] sm:$0xff]
        %v2383 = vld [vmem:[%s286 + $0x3f08] sm:$0xff]
        %v2384 = vld [vmem:[%s286 + $0x3f10] sm:$0xff]
        %v2385 = vld [vmem:[%s286 + $0x3f18] sm:$0xff]
        %v2386 = vld [vmem:[%s286 + $0x3f20] sm:$0xff]
        %v2387 = vld [vmem:[%s286 + $0x3f28] sm:$0xff]
        %v2388 = vld [vmem:[%s286 + $0x3f30] sm:$0xff]
        %v2389 = vld [vmem:[%s286 + $0x3f38] sm:$0xff]
        %v2390 = vld [vmem:[%s286 + $0x3f40] sm:$0xff]
        %v2391 = vld [vmem:[%s286 + $0x3f48] sm:$0xff]
        %v2392 = vld [vmem:[%s286 + $0x3f50] sm:$0xff]
        %v2393 = vld [vmem:[%s286 + $0x3f58] sm:$0xff]
        %v2394 = vld [vmem:[%s286 + $0x3f60] sm:$0xff]
        %v2395 = vld [vmem:[%s286 + $0x3f68] sm:$0xff]
        %v2396 = vld [vmem:[%s286 + $0x3f70] sm:$0xff]
        %v2397 = vld [vmem:[%s286 + $0x3f78] sm:$0xff]
        %v2398 = vld [vmem:[%s286 + $0x3f80] sm:$0xff]
        %v2399 = vld [vmem:[%s286 + $0x3f88] sm:$0xff]
        %v2400 = vld [vmem:[%s286 + $0x3f90] sm:$0xff]
        %v2401 = vld [vmem:[%s286 + $0x3f98] sm:$0xff]
        %v2402 = vld [vmem:[%s286 + $0x3fa0] sm:$0xff]
        %v2403 = vld [vmem:[%s286 + $0x3fa8] sm:$0xff]
        %v2404 = vld [vmem:[%s286 + $0x3fb0] sm:$0xff]
        %v2405 = vld [vmem:[%s286 + $0x3fb8] sm:$0xff]
        %v2406 = vld [vmem:[%s286 + $0x3fc0] sm:$0xff]
        %v2407 = vld [vmem:[%s286 + $0x3fc8] sm:$0xff]
        %v2408 = vld [vmem:[%s286 + $0x3fd0] sm:$0xff]
        %v2409 = vld [vmem:[%s286 + $0x3fd8] sm:$0xff]
        %v2410 = vld [vmem:[%s286 + $0x3fe0] sm:$0xff]
        %v2411 = vld [vmem:[%s286 + $0x3fe8] sm:$0xff]
        %v2412 = vld [vmem:[%s286 + $0x3ff0] sm:$0xff]
        %v2413 = vld [vmem:[%s286 + $0x3ff8] sm:$0xff]
        %v2414 = vld [vmem:[%s286 + $0x4000] sm:$0xff]
        %v2415 = vld [vmem:[%s286 + $0x4008] sm:$0xff]
        %v2416 = vld [vmem:[%s286 + $0x4010] sm:$0xff]
        %v2417 = vld [vmem:[%s286 + $0x4018] sm:$0xff]
        %v2418 = vld [vmem:[%s286 + $0x4020] sm:$0xff]
        %v2419 = vld [vmem:[%s286 + $0x4028] sm:$0xff]
        %v2420 = vld [vmem:[%s286 + $0x4030] sm:$0xff]
        %v2421 = vld [vmem:[%s286 + $0x4038] sm:$0xff]
        %v2422 = vld [vmem:[%s286 + $0x4040] sm:$0xff]
        %v2423 = vld [vmem:[%s286 + $0x4048] sm:$0xff]
        %v2424 = vld [vmem:[%s286 + $0x4050] sm:$0xff]
        %v2425 = vld [vmem:[%s286 + $0x4058] sm:$0xff]
        %v2426 = vld [vmem:[%s286 + $0x4060] sm:$0xff]
        %v2427 = vld [vmem:[%s286 + $0x4068] sm:$0xff]
        %v2428 = vld [vmem:[%s286 + $0x4070] sm:$0xff]
        %v2429 = vld [vmem:[%s286 + $0x4078] sm:$0xff]
        %v2430 = vld [vmem:[%s286 + $0x4080] sm:$0xff]
        %v2431 = vld [vmem:[%s286 + $0x4088] sm:$0xff]
        %v2432 = vld [vmem:[%s286 + $0x4090] sm:$0xff]
        %v2433 = vld [vmem:[%s286 + $0x4098] sm:$0xff]
        %v2434 = vld [vmem:[%s286 + $0x40a0] sm:$0xff]
        %v2435 = vld [vmem:[%s286 + $0x40a8] sm:$0xff]
        %v2436 = vld [vmem:[%s286 + $0x40b0] sm:$0xff]
        %v2437 = vld [vmem:[%s286 + $0x40b8] sm:$0xff]
        %v2438 = vld [vmem:[%s286 + $0x40c0] sm:$0xff]
        %v2439 = vld [vmem:[%s286 + $0x40c8] sm:$0xff]
        %v2440 = vld [vmem:[%s286 + $0x40d0] sm:$0xff]
        %v2441 = vld [vmem:[%s286 + $0x40d8] sm:$0xff]
        %v2442 = vld [vmem:[%s286 + $0x40e0] sm:$0xff]
        %v2443 = vld [vmem:[%s286 + $0x40e8] sm:$0xff]
        %v2444 = vld [vmem:[%s286 + $0x40f0] sm:$0xff]
        %v2445 = vld [vmem:[%s286 + $0x40f8] sm:$0xff]
        %v2446 = vld [vmem:[%s286 + $0x4100] sm:$0xff]
        %v2447 = vld [vmem:[%s286 + $0x4108] sm:$0xff]
        %v2448 = vld [vmem:[%s286 + $0x4110] sm:$0xff]
        %v2449 = vld [vmem:[%s286 + $0x4118] sm:$0xff]
        %v2450 = vld [vmem:[%s286 + $0x4120] sm:$0xff]
        %v2451 = vld [vmem:[%s286 + $0x4128] sm:$0xff]
        %v2452 = vld [vmem:[%s286 + $0x4130] sm:$0xff]
        %v2453 = vld [vmem:[%s286 + $0x4138] sm:$0xff]
        %v2454 = vld [vmem:[%s286 + $0x4140] sm:$0xff]
        %v2455 = vld [vmem:[%s286 + $0x4148] sm:$0xff]
        %v2456 = vld [vmem:[%s286 + $0x4150] sm:$0xff]
        %v2457 = vld [vmem:[%s286 + $0x4158] sm:$0xff]
        %v2458 = vld [vmem:[%s286 + $0x4160] sm:$0xff]
        %v2459 = vld [vmem:[%s286 + $0x4168] sm:$0xff]
        %v2460 = vld [vmem:[%s286 + $0x4170] sm:$0xff]
        %v2461 = vld [vmem:[%s286 + $0x4178] sm:$0xff]
        %v2462 = vld [vmem:[%s286 + $0x4180] sm:$0xff]
        %v2463 = vld [vmem:[%s286 + $0x4188] sm:$0xff]
        %v2464 = vld [vmem:[%s286 + $0x4190] sm:$0xff]
        %v2465 = vld [vmem:[%s286 + $0x4198] sm:$0xff]
        %v2466 = vld [vmem:[%s286 + $0x41a0] sm:$0xff]
        %v2467 = vld [vmem:[%s286 + $0x41a8] sm:$0xff]
        %v2468 = vld [vmem:[%s286 + $0x41b0] sm:$0xff]
        %v2469 = vld [vmem:[%s286 + $0x41b8] sm:$0xff]
        %v2470 = vld [vmem:[%s286 + $0x41c0] sm:$0xff]
        %v2471 = vld [vmem:[%s286 + $0x41c8] sm:$0xff]
        %v2472 = vld [vmem:[%s286 + $0x41d0] sm:$0xff]
        %v2473 = vld [vmem:[%s286 + $0x41d8] sm:$0xff]
        %v2474 = vld [vmem:[%s286 + $0x41e0] sm:$0xff]
        %v2475 = vld [vmem:[%s286 + $0x41e8] sm:$0xff]
        %v2476 = vld [vmem:[%s286 + $0x41f0] sm:$0xff]
        %v2477 = vld [vmem:[%s286 + $0x41f8] sm:$0xff]
        %v2478 = vld [vmem:[%s286 + $0x4200] sm:$0xff]
        %v2479 = vld [vmem:[%s286 + $0x4208] sm:$0xff]
        %v2480 = vld [vmem:[%s286 + $0x4210] sm:$0xff]
        %v2481 = vld [vmem:[%s286 + $0x4218] sm:$0xff]
        %v2482 = vld [vmem:[%s286 + $0x4220] sm:$0xff]
        %v2483 = vld [vmem:[%s286 + $0x4228] sm:$0xff]
        %v2484 = vld [vmem:[%s286 + $0x4230] sm:$0xff]
        %v2485 = vld [vmem:[%s286 + $0x4238] sm:$0xff]
        %v2486 = vld [vmem:[%s286 + $0x4240] sm:$0xff]
        %v2487 = vld [vmem:[%s286 + $0x4248] sm:$0xff]
        %v2488 = vld [vmem:[%s286 + $0x4250] sm:$0xff]
        %v2489 = vld [vmem:[%s286 + $0x4258] sm:$0xff]
        %v2490 = vld [vmem:[%s286 + $0x4260] sm:$0xff]
        %v2491 = vld [vmem:[%s286 + $0x4268] sm:$0xff]
        %v2492 = vld [vmem:[%s286 + $0x4270] sm:$0xff]
        %v2493 = vld [vmem:[%s286 + $0x4278] sm:$0xff]
        %v2494 = vld [vmem:[%s286 + $0x4280] sm:$0xff]
        %v2495 = vld [vmem:[%s286 + $0x4288] sm:$0xff]
        %v2496 = vld [vmem:[%s286 + $0x4290] sm:$0xff]
        %v2497 = vld [vmem:[%s286 + $0x4298] sm:$0xff]
        %v2498 = vld [vmem:[%s286 + $0x42a0] sm:$0xff]
        %v2499 = vld [vmem:[%s286 + $0x42a8] sm:$0xff]
        %v2500 = vld [vmem:[%s286 + $0x42b0] sm:$0xff]
        %v2501 = vld [vmem:[%s286 + $0x42b8] sm:$0xff]
        %v2502 = vld [vmem:[%s286 + $0x42c0] sm:$0xff]
        %v2503 = vld [vmem:[%s286 + $0x42c8] sm:$0xff]
        %v2504 = vld [vmem:[%s286 + $0x42d0] sm:$0xff]
        %v2505 = vld [vmem:[%s286 + $0x42d8] sm:$0xff]
        %v2506 = vld [vmem:[%s286 + $0x42e0] sm:$0xff]
        %v2507 = vld [vmem:[%s286 + $0x42e8] sm:$0xff]
        %v2508 = vld [vmem:[%s286 + $0x42f0] sm:$0xff]
        %v2509 = vld [vmem:[%s286 + $0x42f8] sm:$0xff]
        %v2510 = vld [vmem:[%s286 + $0x4300] sm:$0xff]
        %v2511 = vld [vmem:[%s286 + $0x4308] sm:$0xff]
        %v2512 = vld [vmem:[%s286 + $0x4310] sm:$0xff]
        %v2513 = vld [vmem:[%s286 + $0x4318] sm:$0xff]
        %v2514 = vld [vmem:[%s286 + $0x4320] sm:$0xff]
        %v2515 = vld [vmem:[%s286 + $0x4328] sm:$0xff]
        %v2516 = vld [vmem:[%s286 + $0x4330] sm:$0xff]
        %v2517 = vld [vmem:[%s286 + $0x4338] sm:$0xff]
        %v2518 = vld [vmem:[%s286 + $0x4340] sm:$0xff]
        %v2519 = vld [vmem:[%s286 + $0x4348] sm:$0xff]
        %v2520 = vld [vmem:[%s286 + $0x4350] sm:$0xff]
        %v2521 = vld [vmem:[%s286 + $0x4358] sm:$0xff]
        %v2522 = vld [vmem:[%s286 + $0x4360] sm:$0xff]
        %v2523 = vld [vmem:[%s286 + $0x4368] sm:$0xff]
        %v2524 = vld [vmem:[%s286 + $0x4370] sm:$0xff]
        %v2525 = vld [vmem:[%s286 + $0x4378] sm:$0xff]
        %v2526 = vld [vmem:[%s286 + $0x4380] sm:$0xff]
        %v2527 = vld [vmem:[%s286 + $0x4388] sm:$0xff]
        %v2528 = vld [vmem:[%s286 + $0x4390] sm:$0xff]
        %v2529 = vld [vmem:[%s286 + $0x4398] sm:$0xff]
        %v2530 = vld [vmem:[%s286 + $0x43a0] sm:$0xff]
        %v2531 = vld [vmem:[%s286 + $0x43a8] sm:$0xff]
        %v2532 = vld [vmem:[%s286 + $0x43b0] sm:$0xff]
        %v2533 = vld [vmem:[%s286 + $0x43b8] sm:$0xff]
        %v2534 = vld [vmem:[%s286 + $0x43c0] sm:$0xff]
        %v2535 = vld [vmem:[%s286 + $0x43c8] sm:$0xff]
        %v2536 = vld [vmem:[%s286 + $0x43d0] sm:$0xff]
        %v2537 = vld [vmem:[%s286 + $0x43d8] sm:$0xff]
        %v2538 = vld [vmem:[%s286 + $0x43e0] sm:$0xff]
        %v2539 = vld [vmem:[%s286 + $0x43e8] sm:$0xff]
        %v2540 = vld [vmem:[%s286 + $0x43f0] sm:$0xff]
        %v2541 = vld [vmem:[%s286 + $0x43f8] sm:$0xff]
        %v2542 = vld [vmem:[%s286 + $0x4400] sm:$0xff]
        %v2543 = vld [vmem:[%s286 + $0x4408] sm:$0xff]
        %v2544 = vld [vmem:[%s286 + $0x4410] sm:$0xff]
        %v2545 = vld [vmem:[%s286 + $0x4418] sm:$0xff]
        %v2546 = vld [vmem:[%s286 + $0x4420] sm:$0xff]
        %v2547 = vld [vmem:[%s286 + $0x4428] sm:$0xff]
        %v2548 = vld [vmem:[%s286 + $0x4430] sm:$0xff]
        %v2549 = vld [vmem:[%s286 + $0x4438] sm:$0xff]
        %v2550 = vld [vmem:[%s286 + $0x4440] sm:$0xff]
        %v2551 = vld [vmem:[%s286 + $0x4448] sm:$0xff]
        %v2552 = vld [vmem:[%s286 + $0x4450] sm:$0xff]
        %v2553 = vld [vmem:[%s286 + $0x4458] sm:$0xff]
        %v2554 = vld [vmem:[%s286 + $0x4460] sm:$0xff]
        %v2555 = vld [vmem:[%s286 + $0x4468] sm:$0xff]
        %v2556 = vld [vmem:[%s286 + $0x4470] sm:$0xff]
        %v2557 = vld [vmem:[%s286 + $0x4478] sm:$0xff]
        %v2558 = vld [vmem:[%s286 + $0x4480] sm:$0xff]
        %v2559 = vld [vmem:[%s286 + $0x4488] sm:$0xff]
        %v2560 = vld [vmem:[%s286 + $0x4490] sm:$0xff]
        %v2561 = vld [vmem:[%s286 + $0x4498] sm:$0xff]
        %v2562 = vld [vmem:[%s286 + $0x44a0] sm:$0xff]
        %v2563 = vld [vmem:[%s286 + $0x44a8] sm:$0xff]
        %v2564 = vld [vmem:[%s286 + $0x44b0] sm:$0xff]
        %v2565 = vld [vmem:[%s286 + $0x44b8] sm:$0xff]
        %v2566 = vld [vmem:[%s286 + $0x44c0] sm:$0xff]
        %v2567 = vld [vmem:[%s286 + $0x44c8] sm:$0xff]
        %v2568 = vld [vmem:[%s286 + $0x44d0] sm:$0xff]
        %v2569 = vld [vmem:[%s286 + $0x44d8] sm:$0xff]
        %v2570 = vld [vmem:[%s286 + $0x44e0] sm:$0xff]
        %v2571 = vld [vmem:[%s286 + $0x44e8] sm:$0xff]
        %v2572 = vld [vmem:[%s286 + $0x44f0] sm:$0xff]
        %v2573 = vld [vmem:[%s286 + $0x44f8] sm:$0xff]
        %v2574 = vld [vmem:[%s286 + $0x4500] sm:$0xff]
        %v2575 = vld [vmem:[%s286 + $0x4508] sm:$0xff]
        %v2576 = vld [vmem:[%s286 + $0x4510] sm:$0xff]
        %v2577 = vld [vmem:[%s286 + $0x4518] sm:$0xff]
        %v2578 = vld [vmem:[%s286 + $0x4520] sm:$0xff]
        %v2579 = vld [vmem:[%s286 + $0x4528] sm:$0xff]
        %v2580 = vld [vmem:[%s286 + $0x4530] sm:$0xff]
        %v2581 = vld [vmem:[%s286 + $0x4538] sm:$0xff]
        %v2582 = vld [vmem:[%s286 + $0x4540] sm:$0xff]
        %v2583 = vld [vmem:[%s286 + $0x4548] sm:$0xff]
        %v2584 = vld [vmem:[%s286 + $0x4550] sm:$0xff]
        %v2585 = vld [vmem:[%s286 + $0x4558] sm:$0xff]
        %v2586 = vld [vmem:[%s286 + $0x4560] sm:$0xff]
        %v2587 = vld [vmem:[%s286 + $0x4568] sm:$0xff]
        %v2588 = vld [vmem:[%s286 + $0x4570] sm:$0xff]
        %v2589 = vld [vmem:[%s286 + $0x4578] sm:$0xff]
        %v2590 = vld [vmem:[%s286 + $0x4580] sm:$0xff]
        %v2591 = vld [vmem:[%s286 + $0x4588] sm:$0xff]
        %v2592 = vld [vmem:[%s286 + $0x4590] sm:$0xff]
        %v2593 = vld [vmem:[%s286 + $0x4598] sm:$0xff]
        %v2594 = vld [vmem:[%s286 + $0x45a0] sm:$0xff]
        %v2595 = vld [vmem:[%s286 + $0x45a8] sm:$0xff]
        %v2596 = vld [vmem:[%s286 + $0x45b0] sm:$0xff]
        %v2597 = vld [vmem:[%s286 + $0x45b8] sm:$0xff]
        %v2598 = vld [vmem:[%s286 + $0x45c0] sm:$0xff]
        %v2599 = vld [vmem:[%s286 + $0x45c8] sm:$0xff]
        %v2600 = vld [vmem:[%s286 + $0x45d0] sm:$0xff]
        %v2601 = vld [vmem:[%s286 + $0x45d8] sm:$0xff]
        %v2602 = vld [vmem:[%s286 + $0x45e0] sm:$0xff]
        %v2603 = vld [vmem:[%s286 + $0x45e8] sm:$0xff]
        %v2604 = vld [vmem:[%s286 + $0x45f0] sm:$0xff]
        %v2605 = vld [vmem:[%s286 + $0x45f8] sm:$0xff]
        %v2606 = vld [vmem:[%s286 + $0x4600] sm:$0xff]
        %v2607 = vld [vmem:[%s286 + $0x4608] sm:$0xff]
        %v2608 = vld [vmem:[%s286 + $0x4610] sm:$0xff]
        %v2609 = vld [vmem:[%s286 + $0x4618] sm:$0xff]
        %v2610 = vld [vmem:[%s286 + $0x4620] sm:$0xff]
        %v2611 = vld [vmem:[%s286 + $0x4628] sm:$0xff]
        %v2612 = vld [vmem:[%s286 + $0x4630] sm:$0xff]
        %v2613 = vld [vmem:[%s286 + $0x4638] sm:$0xff]
        %v2614 = vld [vmem:[%s286 + $0x4640] sm:$0xff]
        %v2615 = vld [vmem:[%s286 + $0x4648] sm:$0xff]
        %v2616 = vld [vmem:[%s286 + $0x4650] sm:$0xff]
        %v2617 = vld [vmem:[%s286 + $0x4658] sm:$0xff]
        %v2618 = vld [vmem:[%s286 + $0x4660] sm:$0xff]
        %v2619 = vld [vmem:[%s286 + $0x4668] sm:$0xff]
        %v2620 = vld [vmem:[%s286 + $0x4670] sm:$0xff]
        %v2621 = vld [vmem:[%s286 + $0x4678] sm:$0xff]
        %v2622 = vld [vmem:[%s286 + $0x4680] sm:$0xff]
        %v2623 = vld [vmem:[%s286 + $0x4688] sm:$0xff]
        %v2624 = vld [vmem:[%s286 + $0x4690] sm:$0xff]
        %v2625 = vld [vmem:[%s286 + $0x4698] sm:$0xff]
        %v2626 = vld [vmem:[%s286 + $0x46a0] sm:$0xff]
        %v2627 = vld [vmem:[%s286 + $0x46a8] sm:$0xff]
        %v2628 = vld [vmem:[%s286 + $0x46b0] sm:$0xff]
        %v2629 = vld [vmem:[%s286 + $0x46b8] sm:$0xff]
        %v2630 = vld [vmem:[%s286 + $0x46c0] sm:$0xff]
        %v2631 = vld [vmem:[%s286 + $0x46c8] sm:$0xff]
        %v2632 = vld [vmem:[%s286 + $0x46d0] sm:$0xff]
        %v2633 = vld [vmem:[%s286 + $0x46d8] sm:$0xff]
        %v2634 = vld [vmem:[%s286 + $0x46e0] sm:$0xff]
        %v2635 = vld [vmem:[%s286 + $0x46e8] sm:$0xff]
        %v2636 = vld [vmem:[%s286 + $0x46f0] sm:$0xff]
        %v2637 = vld [vmem:[%s286 + $0x46f8] sm:$0xff]
        %v2638 = vld [vmem:[%s286 + $0x4700] sm:$0xff]
        %v2639 = vld [vmem:[%s286 + $0x4708] sm:$0xff]
        %v2640 = vld [vmem:[%s286 + $0x4710] sm:$0xff]
        %v2641 = vld [vmem:[%s286 + $0x4718] sm:$0xff]
        %v2642 = vld [vmem:[%s286 + $0x4720] sm:$0xff]
        %v2643 = vld [vmem:[%s286 + $0x4728] sm:$0xff]
        %v2644 = vld [vmem:[%s286 + $0x4730] sm:$0xff]
        %v2645 = vld [vmem:[%s286 + $0x4738] sm:$0xff]
        %v2646 = vld [vmem:[%s286 + $0x4740] sm:$0xff]
        %v2647 = vld [vmem:[%s286 + $0x4748] sm:$0xff]
        %v2648 = vld [vmem:[%s286 + $0x4750] sm:$0xff]
        %v2649 = vld [vmem:[%s286 + $0x4758] sm:$0xff]
        %v2650 = vld [vmem:[%s286 + $0x4760] sm:$0xff]
        %v2651 = vld [vmem:[%s286 + $0x4768] sm:$0xff]
        %v2652 = vld [vmem:[%s286 + $0x4770] sm:$0xff]
        %v2653 = vld [vmem:[%s286 + $0x4778] sm:$0xff]
        %v2654 = vld [vmem:[%s286 + $0x4780] sm:$0xff]
        %v2655 = vld [vmem:[%s286 + $0x4788] sm:$0xff]
        %v2656 = vld [vmem:[%s286 + $0x4790] sm:$0xff]
        %v2657 = vld [vmem:[%s286 + $0x4798] sm:$0xff]
        %v2658 = vld [vmem:[%s286 + $0x47a0] sm:$0xff]
        %v2659 = vld [vmem:[%s286 + $0x47a8] sm:$0xff]
        %v2660 = vld [vmem:[%s286 + $0x47b0] sm:$0xff]
        %v2661 = vld [vmem:[%s286 + $0x47b8] sm:$0xff]
        %v2662 = vld [vmem:[%s286 + $0x47c0] sm:$0xff]
        %v2663 = vld [vmem:[%s286 + $0x47c8] sm:$0xff]
        %v2664 = vld [vmem:[%s286 + $0x47d0] sm:$0xff]
        %v2665 = vld [vmem:[%s286 + $0x47d8] sm:$0xff]
        %v2666 = vld [vmem:[%s286 + $0x47e0] sm:$0xff]
        %v2667 = vld [vmem:[%s286 + $0x47e8] sm:$0xff]
        %v2668 = vld [vmem:[%s286 + $0x47f0] sm:$0xff]
        %v2669 = vld [vmem:[%s286 + $0x47f8] sm:$0xff]
        %v2670 = vld [vmem:[%s286 + $0x4800] sm:$0xff]
        %v2671 = vld [vmem:[%s286 + $0x4808] sm:$0xff]
        %v2672 = vld [vmem:[%s286 + $0x4810] sm:$0xff]
        %v2673 = vld [vmem:[%s286 + $0x4818] sm:$0xff]
        %v2674 = vld [vmem:[%s286 + $0x4820] sm:$0xff]
        %v2675 = vld [vmem:[%s286 + $0x4828] sm:$0xff]
        %v2676 = vld [vmem:[%s286 + $0x4830] sm:$0xff]
        %v2677 = vld [vmem:[%s286 + $0x4838] sm:$0xff]
        %v2678 = vld [vmem:[%s286 + $0x4840] sm:$0xff]
        %v2679 = vld [vmem:[%s286 + $0x4848] sm:$0xff]
        %v2680 = vld [vmem:[%s286 + $0x4850] sm:$0xff]
        %v2681 = vld [vmem:[%s286 + $0x4858] sm:$0xff]
        %v2682 = vld [vmem:[%s286 + $0x4860] sm:$0xff]
        %v2683 = vld [vmem:[%s286 + $0x4868] sm:$0xff]
        %v2684 = vld [vmem:[%s286 + $0x4870] sm:$0xff]
        %v2685 = vld [vmem:[%s286 + $0x4878] sm:$0xff]
        %v2686 = vld [vmem:[%s286 + $0x4880] sm:$0xff]
        %v2687 = vld [vmem:[%s286 + $0x4888] sm:$0xff]
        %v2688 = vld [vmem:[%s286 + $0x4890] sm:$0xff]
        %v2689 = vld [vmem:[%s286 + $0x4898] sm:$0xff]
        %v2690 = vld [vmem:[%s286 + $0x48a0] sm:$0xff]
        %v2691 = vld [vmem:[%s286 + $0x48a8] sm:$0xff]
        %v2692 = vld [vmem:[%s286 + $0x48b0] sm:$0xff]
        %v2693 = vld [vmem:[%s286 + $0x48b8] sm:$0xff]
        %v2694 = vld [vmem:[%s286 + $0x48c0] sm:$0xff]
        %v2695 = vld [vmem:[%s286 + $0x48c8] sm:$0xff]
        %v2696 = vld [vmem:[%s286 + $0x48d0] sm:$0xff]
        %v2697 = vld [vmem:[%s286 + $0x48d8] sm:$0xff]
        %v2698 = vld [vmem:[%s286 + $0x48e0] sm:$0xff]
        %v2699 = vld [vmem:[%s286 + $0x48e8] sm:$0xff]
        %v2700 = vld [vmem:[%s286 + $0x48f0] sm:$0xff]
        %v2701 = vld [vmem:[%s286 + $0x48f8] sm:$0xff]
        %v2702 = vld [vmem:[%s286 + $0x4900] sm:$0xff]
        %v2703 = vld [vmem:[%s286 + $0x4908] sm:$0xff]
        %v2704 = vld [vmem:[%s286 + $0x4910] sm:$0xff]
        %v2705 = vld [vmem:[%s286 + $0x4918] sm:$0xff]
        %v2706 = vld [vmem:[%s286 + $0x4920] sm:$0xff]
        %v2707 = vld [vmem:[%s286 + $0x4928] sm:$0xff]
        %v2708 = vld [vmem:[%s286 + $0x4930] sm:$0xff]
        %v2709 = vld [vmem:[%s286 + $0x4938] sm:$0xff]
        %v2710 = vld [vmem:[%s286 + $0x4940] sm:$0xff]
        %v2711 = vld [vmem:[%s286 + $0x4948] sm:$0xff]
        %v2712 = vld [vmem:[%s286 + $0x4950] sm:$0xff]
        %v2713 = vld [vmem:[%s286 + $0x4958] sm:$0xff]
        %v2714 = vld [vmem:[%s286 + $0x4960] sm:$0xff]
        %v2715 = vld [vmem:[%s286 + $0x4968] sm:$0xff]
        %v2716 = vld [vmem:[%s286 + $0x4970] sm:$0xff]
        %v2717 = vld [vmem:[%s286 + $0x4978] sm:$0xff]
        %v2718 = vld [vmem:[%s286 + $0x4980] sm:$0xff]
        %v2719 = vld [vmem:[%s286 + $0x4988] sm:$0xff]
        %v2720 = vld [vmem:[%s286 + $0x4990] sm:$0xff]
        %v2721 = vld [vmem:[%s286 + $0x4998] sm:$0xff]
        %v2722 = vld [vmem:[%s286 + $0x49a0] sm:$0xff]
        %v2723 = vld [vmem:[%s286 + $0x49a8] sm:$0xff]
        %v2724 = vld [vmem:[%s286 + $0x49b0] sm:$0xff]
        %v2725 = vld [vmem:[%s286 + $0x49b8] sm:$0xff]
        %v2726 = vld [vmem:[%s286 + $0x49c0] sm:$0xff]
        %v2727 = vld [vmem:[%s286 + $0x49c8] sm:$0xff]
        %v2728 = vld [vmem:[%s286 + $0x49d0] sm:$0xff]
        %v2729 = vld [vmem:[%s286 + $0x49d8] sm:$0xff]
        %v2730 = vld [vmem:[%s286 + $0x49e0] sm:$0xff]
        %v2731 = vld [vmem:[%s286 + $0x49e8] sm:$0xff]
        %v2732 = vld [vmem:[%s286 + $0x49f0] sm:$0xff]
        %v2733 = vld [vmem:[%s286 + $0x49f8] sm:$0xff]
        %v2734 = vld [vmem:[%s286 + $0x4a00] sm:$0xff]
        %v2735 = vld [vmem:[%s286 + $0x4a08] sm:$0xff]
        %v2736 = vld [vmem:[%s286 + $0x4a10] sm:$0xff]
        %v2737 = vld [vmem:[%s286 + $0x4a18] sm:$0xff]
        %v2738 = vld [vmem:[%s286 + $0x4a20] sm:$0xff]
        %v2739 = vld [vmem:[%s286 + $0x4a28] sm:$0xff]
        %v2740 = vld [vmem:[%s286 + $0x4a30] sm:$0xff]
        %v2741 = vld [vmem:[%s286 + $0x4a38] sm:$0xff]
        %v2742 = vld [vmem:[%s286 + $0x4a40] sm:$0xff]
        %v2743 = vld [vmem:[%s286 + $0x4a48] sm:$0xff]
        %v2744 = vld [vmem:[%s286 + $0x4a50] sm:$0xff]
        %v2745 = vld [vmem:[%s286 + $0x4a58] sm:$0xff]
        %v2746 = vld [vmem:[%s286 + $0x4a60] sm:$0xff]
        %v2747 = vld [vmem:[%s286 + $0x4a68] sm:$0xff]
        %v2748 = vld [vmem:[%s286 + $0x4a70] sm:$0xff]
        %v2749 = vld [vmem:[%s286 + $0x4a78] sm:$0xff]
        %v2750 = vld [vmem:[%s286 + $0x4a80] sm:$0xff]
        %v2751 = vld [vmem:[%s286 + $0x4a88] sm:$0xff]
        %v2752 = vld [vmem:[%s286 + $0x4a90] sm:$0xff]
        %v2753 = vld [vmem:[%s286 + $0x4a98] sm:$0xff]
        %v2754 = vld [vmem:[%s286 + $0x4aa0] sm:$0xff]
        %v2755 = vld [vmem:[%s286 + $0x4aa8] sm:$0xff]
        %v2756 = vld [vmem:[%s286 + $0x4ab0] sm:$0xff]
        %v2757 = vld [vmem:[%s286 + $0x4ab8] sm:$0xff]
        %v2758 = vld [vmem:[%s286 + $0x4ac0] sm:$0xff]
        %v2759 = vld [vmem:[%s286 + $0x4ac8] sm:$0xff]
        %v2760 = vld [vmem:[%s286 + $0x4ad0] sm:$0xff]
        %v2761 = vld [vmem:[%s286 + $0x4ad8] sm:$0xff]
        %v2762 = vld [vmem:[%s286 + $0x4ae0] sm:$0xff]
        %v2763 = vld [vmem:[%s286 + $0x4ae8] sm:$0xff]
        %v2764 = vld [vmem:[%s286 + $0x4af0] sm:$0xff]
        %v2765 = vld [vmem:[%s286 + $0x4af8] sm:$0xff]
        %v2766 = vld [vmem:[%s286 + $0x4b00] sm:$0xff]
        %v2767 = vld [vmem:[%s286 + $0x4b08] sm:$0xff]
        %v2768 = vld [vmem:[%s286 + $0x4b10] sm:$0xff]
        %v2769 = vld [vmem:[%s286 + $0x4b18] sm:$0xff]
        %v2770 = vld [vmem:[%s286 + $0x4b20] sm:$0xff]
        %v2771 = vld [vmem:[%s286 + $0x4b28] sm:$0xff]
        %v2772 = vld [vmem:[%s286 + $0x4b30] sm:$0xff]
        %v2773 = vld [vmem:[%s286 + $0x4b38] sm:$0xff]
        %v2774 = vld [vmem:[%s286 + $0x4b40] sm:$0xff]
        %v2775 = vld [vmem:[%s286 + $0x4b48] sm:$0xff]
        %v2776 = vld [vmem:[%s286 + $0x4b50] sm:$0xff]
        %v2777 = vld [vmem:[%s286 + $0x4b58] sm:$0xff]
        %v2778 = vld [vmem:[%s286 + $0x4b60] sm:$0xff]
        %v2779 = vld [vmem:[%s286 + $0x4b68] sm:$0xff]
        %v2780 = vld [vmem:[%s286 + $0x4b70] sm:$0xff]
        %v2781 = vld [vmem:[%s286 + $0x4b78] sm:$0xff]
        %v2782 = vld [vmem:[%s286 + $0x4b80] sm:$0xff]
        %v2783 = vld [vmem:[%s286 + $0x4b88] sm:$0xff]
        %v2784 = vld [vmem:[%s286 + $0x4b90] sm:$0xff]
        %v2785 = vld [vmem:[%s286 + $0x4b98] sm:$0xff]
        %v2786 = vld [vmem:[%s286 + $0x4ba0] sm:$0xff]
        %v2787 = vld [vmem:[%s286 + $0x4ba8] sm:$0xff]
        %v2788 = vld [vmem:[%s286 + $0x4bb0] sm:$0xff]
        %v2789 = vld [vmem:[%s286 + $0x4bb8] sm:$0xff]
        %v2790 = vld [vmem:[%s286 + $0x4bc0] sm:$0xff]
        %v2791 = vld [vmem:[%s286 + $0x4bc8] sm:$0xff]
        %v2792 = vld [vmem:[%s286 + $0x4bd0] sm:$0xff]
        %v2793 = vld [vmem:[%s286 + $0x4bd8] sm:$0xff]
        %v2794 = vld [vmem:[%s286 + $0x4be0] sm:$0xff]
        %v2795 = vld [vmem:[%s286 + $0x4be8] sm:$0xff]
        %v2796 = vld [vmem:[%s286 + $0x4bf0] sm:$0xff]
        %v2797 = vld [vmem:[%s286 + $0x4bf8] sm:$0xff]
        %v2798 = vld [vmem:[%s286 + $0x4c00] sm:$0xff]
        %v2799 = vld [vmem:[%s286 + $0x4c08] sm:$0xff]
        %v2800 = vld [vmem:[%s286 + $0x4c10] sm:$0xff]
        %v2801 = vld [vmem:[%s286 + $0x4c18] sm:$0xff]
        %v2802 = vld [vmem:[%s286 + $0x4c20] sm:$0xff]
        %v2803 = vld [vmem:[%s286 + $0x4c28] sm:$0xff]
        %v2804 = vld [vmem:[%s286 + $0x4c30] sm:$0xff]
        %v2805 = vld [vmem:[%s286 + $0x4c38] sm:$0xff]
        %v2806 = vld [vmem:[%s286 + $0x4c40] sm:$0xff]
        %v2807 = vld [vmem:[%s286 + $0x4c48] sm:$0xff]
        %v2808 = vld [vmem:[%s286 + $0x4c50] sm:$0xff]
        %v2809 = vld [vmem:[%s286 + $0x4c58] sm:$0xff]
        %v2810 = vld [vmem:[%s286 + $0x4c60] sm:$0xff]
        %v2811 = vld [vmem:[%s286 + $0x4c68] sm:$0xff]
        %v2812 = vld [vmem:[%s286 + $0x4c70] sm:$0xff]
        %v2813 = vld [vmem:[%s286 + $0x4c78] sm:$0xff]
        %v2814 = vld [vmem:[%s286 + $0x4c80] sm:$0xff]
        %v2815 = vld [vmem:[%s286 + $0x4c88] sm:$0xff]
        %v2816 = vld [vmem:[%s286 + $0x4c90] sm:$0xff]
        %v2817 = vld [vmem:[%s286 + $0x4c98] sm:$0xff]
        %v2818 = vld [vmem:[%s286 + $0x4ca0] sm:$0xff]
        %v2819 = vld [vmem:[%s286 + $0x4ca8] sm:$0xff]
        %v2820 = vld [vmem:[%s286 + $0x4cb0] sm:$0xff]
        %v2821 = vld [vmem:[%s286 + $0x4cb8] sm:$0xff]
        %v2822 = vld [vmem:[%s286 + $0x4cc0] sm:$0xff]
        %v2823 = vld [vmem:[%s286 + $0x4cc8] sm:$0xff]
        %v2824 = vld [vmem:[%s286 + $0x4cd0] sm:$0xff]
        %v2825 = vld [vmem:[%s286 + $0x4cd8] sm:$0xff]
        %v2826 = vld [vmem:[%s286 + $0x4ce0] sm:$0xff]
        %v2827 = vld [vmem:[%s286 + $0x4ce8] sm:$0xff]
        %v2828 = vld [vmem:[%s286 + $0x4cf0] sm:$0xff]
        %v2829 = vld [vmem:[%s286 + $0x4cf8] sm:$0xff]
        %v2830 = vld [vmem:[%s286 + $0x4d00] sm:$0xff]
        %v2831 = vld [vmem:[%s286 + $0x4d08] sm:$0xff]
        %v2832 = vld [vmem:[%s286 + $0x4d10] sm:$0xff]
        %v2833 = vld [vmem:[%s286 + $0x4d18] sm:$0xff]
        %v2834 = vld [vmem:[%s286 + $0x4d20] sm:$0xff]
        %v2835 = vld [vmem:[%s286 + $0x4d28] sm:$0xff]
        %v2836 = vld [vmem:[%s286 + $0x4d30] sm:$0xff]
        %v2837 = vld [vmem:[%s286 + $0x4d38] sm:$0xff]
        %v2838 = vld [vmem:[%s286 + $0x4d40] sm:$0xff]
        %v2839 = vld [vmem:[%s286 + $0x4d48] sm:$0xff]
        %v2840 = vld [vmem:[%s286 + $0x4d50] sm:$0xff]
        %v2841 = vld [vmem:[%s286 + $0x4d58] sm:$0xff]
        %v2842 = vld [vmem:[%s286 + $0x4d60] sm:$0xff]
        %v2843 = vld [vmem:[%s286 + $0x4d68] sm:$0xff]
        %v2844 = vld [vmem:[%s286 + $0x4d70] sm:$0xff]
        %v2845 = vld [vmem:[%s286 + $0x4d78] sm:$0xff]
        %v2846 = vld [vmem:[%s286 + $0x4d80] sm:$0xff]
        %v2847 = vld [vmem:[%s286 + $0x4d88] sm:$0xff]
        %v2848 = vld [vmem:[%s286 + $0x4d90] sm:$0xff]
        %v2849 = vld [vmem:[%s286 + $0x4d98] sm:$0xff]
        %v2850 = vld [vmem:[%s286 + $0x4da0] sm:$0xff]
        %v2851 = vld [vmem:[%s286 + $0x4da8] sm:$0xff]
        %v2852 = vld [vmem:[%s286 + $0x4db0] sm:$0xff]
        %v2853 = vld [vmem:[%s286 + $0x4db8] sm:$0xff]
        %v2854 = vld [vmem:[%s286 + $0x4dc0] sm:$0xff]
        %v2855 = vld [vmem:[%s286 + $0x4dc8] sm:$0xff]
        %v2856 = vld [vmem:[%s286 + $0x4dd0] sm:$0xff]
        %v2857 = vld [vmem:[%s286 + $0x4dd8] sm:$0xff]
        %v2858 = vld [vmem:[%s286 + $0x4de0] sm:$0xff]
        %v2859 = vld [vmem:[%s286 + $0x4de8] sm:$0xff]
        %v2860 = vld [vmem:[%s286 + $0x4df0] sm:$0xff]
        %v2861 = vld [vmem:[%s286 + $0x4df8] sm:$0xff]
        %v2862 = vld [vmem:[%s286 + $0x4e00] sm:$0xff]
        %v2863 = vld [vmem:[%s286 + $0x4e08] sm:$0xff]
        %v2864 = vld [vmem:[%s286 + $0x4e10] sm:$0xff]
        %v2865 = vld [vmem:[%s286 + $0x4e18] sm:$0xff]
        %v2866 = vld [vmem:[%s286 + $0x4e20] sm:$0xff]
        %v2867 = vld [vmem:[%s286 + $0x4e28] sm:$0xff]
        %v2868 = vld [vmem:[%s286 + $0x4e30] sm:$0xff]
        %v2869 = vld [vmem:[%s286 + $0x4e38] sm:$0xff]
        %v2870 = vld [vmem:[%s286 + $0x4e40] sm:$0xff]
        %v2871 = vld [vmem:[%s286 + $0x4e48] sm:$0xff]
        %v2872 = vld [vmem:[%s286 + $0x4e50] sm:$0xff]
        %v2873 = vld [vmem:[%s286 + $0x4e58] sm:$0xff]
        %v2874 = vld [vmem:[%s286 + $0x4e60] sm:$0xff]
        %v2875 = vld [vmem:[%s286 + $0x4e68] sm:$0xff]
        %v2876 = vld [vmem:[%s286 + $0x4e70] sm:$0xff]
        %v2877 = vld [vmem:[%s286 + $0x4e78] sm:$0xff]
        %v2878 = vld [vmem:[%s286 + $0x4e80] sm:$0xff]
        %v2879 = vld [vmem:[%s286 + $0x4e88] sm:$0xff]
        %v2880 = vld [vmem:[%s286 + $0x4e90] sm:$0xff]
        %v2881 = vld [vmem:[%s286 + $0x4e98] sm:$0xff]
        %v2882 = vld [vmem:[%s286 + $0x4ea0] sm:$0xff]
        %v2883 = vld [vmem:[%s286 + $0x4ea8] sm:$0xff]
        %v2884 = vld [vmem:[%s286 + $0x4eb0] sm:$0xff]
        %v2885 = vld [vmem:[%s286 + $0x4eb8] sm:$0xff]
        %v2886 = vld [vmem:[%s286 + $0x4ec0] sm:$0xff]
        %v2887 = vld [vmem:[%s286 + $0x4ec8] sm:$0xff]
        %v2888 = vld [vmem:[%s286 + $0x4ed0] sm:$0xff]
        %v2889 = vld [vmem:[%s286 + $0x4ed8] sm:$0xff]
        %v2890 = vld [vmem:[%s286 + $0x4ee0] sm:$0xff]
        %v2891 = vld [vmem:[%s286 + $0x4ee8] sm:$0xff]
        %v2892 = vld [vmem:[%s286 + $0x4ef0] sm:$0xff]
        %v2893 = vld [vmem:[%s286 + $0x4ef8] sm:$0xff]
        %v2894 = vld [vmem:[%s286 + $0x4f00] sm:$0xff]
        %v2895 = vld [vmem:[%s286 + $0x4f08] sm:$0xff]
        %v2896 = vld [vmem:[%s286 + $0x4f10] sm:$0xff]
        %v2897 = vld [vmem:[%s286 + $0x4f18] sm:$0xff]
        %v2898 = vld [vmem:[%s286 + $0x4f20] sm:$0xff]
        %v2899 = vld [vmem:[%s286 + $0x4f28] sm:$0xff]
        %v2900 = vld [vmem:[%s286 + $0x4f30] sm:$0xff]
        %v2901 = vld [vmem:[%s286 + $0x4f38] sm:$0xff]
        %v2902 = vld [vmem:[%s286 + $0x4f40] sm:$0xff]
        %v2903 = vld [vmem:[%s286 + $0x4f48] sm:$0xff]
        %v2904 = vld [vmem:[%s286 + $0x4f50] sm:$0xff]
        %v2905 = vld [vmem:[%s286 + $0x4f58] sm:$0xff]
        %v2906 = vld [vmem:[%s286 + $0x4f60] sm:$0xff]
        %v2907 = vld [vmem:[%s286 + $0x4f68] sm:$0xff]
        %v2908 = vld [vmem:[%s286 + $0x4f70] sm:$0xff]
        %v2909 = vld [vmem:[%s286 + $0x4f78] sm:$0xff]
        %v2910 = vld [vmem:[%s286 + $0x4f80] sm:$0xff]
        %v2911 = vld [vmem:[%s286 + $0x4f88] sm:$0xff]
        %v2912 = vld [vmem:[%s286 + $0x4f90] sm:$0xff]
        %v2913 = vld [vmem:[%s286 + $0x4f98] sm:$0xff]
        %v2914 = vld [vmem:[%s286 + $0x4fa0] sm:$0xff]
        %v2915 = vld [vmem:[%s286 + $0x4fa8] sm:$0xff]
        %v2916 = vld [vmem:[%s286 + $0x4fb0] sm:$0xff]
        %v2917 = vld [vmem:[%s286 + $0x4fb8] sm:$0xff]
        %v2918 = vld [vmem:[%s286 + $0x4fc0] sm:$0xff]
        %v2919 = vld [vmem:[%s286 + $0x4fc8] sm:$0xff]
        %v2920 = vld [vmem:[%s286 + $0x4fd0] sm:$0xff]
        %v2921 = vld [vmem:[%s286 + $0x4fd8] sm:$0xff]
        %v2922 = vld [vmem:[%s286 + $0x4fe0] sm:$0xff]
        %v2923 = vld [vmem:[%s286 + $0x4fe8] sm:$0xff]
        %v2924 = vld [vmem:[%s286 + $0x4ff0] sm:$0xff]
        %v2925 = vld [vmem:[%s286 + $0x4ff8] sm:$0xff]
        %v2926 = vld [vmem:[%s286 + $0x5000] sm:$0xff]
        %v2927 = vld [vmem:[%s286 + $0x5008] sm:$0xff]
        %v2928 = vld [vmem:[%s286 + $0x5010] sm:$0xff]
        %v2929 = vld [vmem:[%s286 + $0x5018] sm:$0xff]
        %v2930 = vld [vmem:[%s286 + $0x5020] sm:$0xff]
        %v2931 = vld [vmem:[%s286 + $0x5028] sm:$0xff]
        %v2932 = vld [vmem:[%s286 + $0x5030] sm:$0xff]
        %v2933 = vld [vmem:[%s286 + $0x5038] sm:$0xff]
        %v2934 = vld [vmem:[%s286 + $0x5040] sm:$0xff]
        %v2935 = vld [vmem:[%s286 + $0x5048] sm:$0xff]
        %v2936 = vld [vmem:[%s286 + $0x5050] sm:$0xff]
        %v2937 = vld [vmem:[%s286 + $0x5058] sm:$0xff]
        %v2938 = vld [vmem:[%s286 + $0x5060] sm:$0xff]
        %v2939 = vld [vmem:[%s286 + $0x5068] sm:$0xff]
        %v2940 = vld [vmem:[%s286 + $0x5070] sm:$0xff]
        %v2941 = vld [vmem:[%s286 + $0x5078] sm:$0xff]
        %v2942 = vld [vmem:[%s286 + $0x5080] sm:$0xff]
        %v2943 = vld [vmem:[%s286 + $0x5088] sm:$0xff]
        %v2944 = vld [vmem:[%s286 + $0x5090] sm:$0xff]
        %v2945 = vld [vmem:[%s286 + $0x5098] sm:$0xff]
        %v2946 = vld [vmem:[%s286 + $0x50a0] sm:$0xff]
        %v2947 = vld [vmem:[%s286 + $0x50a8] sm:$0xff]
        %v2948 = vld [vmem:[%s286 + $0x50b0] sm:$0xff]
        %v2949 = vld [vmem:[%s286 + $0x50b8] sm:$0xff]
        %v2950 = vld [vmem:[%s286 + $0x50c0] sm:$0xff]
        %v2951 = vld [vmem:[%s286 + $0x50c8] sm:$0xff]
        %v2952 = vld [vmem:[%s286 + $0x50d0] sm:$0xff]
        %v2953 = vld [vmem:[%s286 + $0x50d8] sm:$0xff]
        %v2954 = vld [vmem:[%s286 + $0x50e0] sm:$0xff]
        %v2955 = vld [vmem:[%s286 + $0x50e8] sm:$0xff]
        %v2956 = vld [vmem:[%s286 + $0x50f0] sm:$0xff]
        %v2957 = vld [vmem:[%s286 + $0x50f8] sm:$0xff]
        %v2958 = vld [vmem:[%s286 + $0x5100] sm:$0xff]
        %v2959 = vld [vmem:[%s286 + $0x5108] sm:$0xff]
        %v2960 = vld [vmem:[%s286 + $0x5110] sm:$0xff]
        %v2961 = vld [vmem:[%s286 + $0x5118] sm:$0xff]
        %v2962 = vld [vmem:[%s286 + $0x5120] sm:$0xff]
        %v2963 = vld [vmem:[%s286 + $0x5128] sm:$0xff]
        %v2964 = vld [vmem:[%s286 + $0x5130] sm:$0xff]
        %v2965 = vld [vmem:[%s286 + $0x5138] sm:$0xff]
        %v2966 = vld [vmem:[%s286 + $0x5140] sm:$0xff]
        %v2967 = vld [vmem:[%s286 + $0x5148] sm:$0xff]
        %v2968 = vld [vmem:[%s286 + $0x5150] sm:$0xff]
        %v2969 = vld [vmem:[%s286 + $0x5158] sm:$0xff]
        %v2970 = vld [vmem:[%s286 + $0x5160] sm:$0xff]
        %v2971 = vld [vmem:[%s286 + $0x5168] sm:$0xff]
        %v2972 = vld [vmem:[%s286 + $0x5170] sm:$0xff]
        %v2973 = vld [vmem:[%s286 + $0x5178] sm:$0xff]
        %v2974 = vld [vmem:[%s286 + $0x5180] sm:$0xff]
        %v2975 = vld [vmem:[%s286 + $0x5188] sm:$0xff]
        %v2976 = vld [vmem:[%s286 + $0x5190] sm:$0xff]
        %v2977 = vld [vmem:[%s286 + $0x5198] sm:$0xff]
        %v2978 = vld [vmem:[%s286 + $0x51a0] sm:$0xff]
        %v2979 = vld [vmem:[%s286 + $0x51a8] sm:$0xff]
        %v2980 = vld [vmem:[%s286 + $0x51b0] sm:$0xff]
        %v2981 = vld [vmem:[%s286 + $0x51b8] sm:$0xff]
        %v2982 = vld [vmem:[%s286 + $0x51c0] sm:$0xff]
        %v2983 = vld [vmem:[%s286 + $0x51c8] sm:$0xff]
        %v2984 = vld [vmem:[%s286 + $0x51d0] sm:$0xff]
        %v2985 = vld [vmem:[%s286 + $0x51d8] sm:$0xff]
        %v2986 = vld [vmem:[%s286 + $0x51e0] sm:$0xff]
        %v2987 = vld [vmem:[%s286 + $0x51e8] sm:$0xff]
        %v2988 = vld [vmem:[%s286 + $0x51f0] sm:$0xff]
        %v2989 = vld [vmem:[%s286 + $0x51f8] sm:$0xff]
        %v2990 = vld [vmem:[%s286 + $0x5200] sm:$0xff]
        %v2991 = vld [vmem:[%s286 + $0x5208] sm:$0xff]
        %v2992 = vld [vmem:[%s286 + $0x5210] sm:$0xff]
        %v2993 = vld [vmem:[%s286 + $0x5218] sm:$0xff]
        %v2994 = vld [vmem:[%s286 + $0x5220] sm:$0xff]
        %v2995 = vld [vmem:[%s286 + $0x5228] sm:$0xff]
        %v2996 = vld [vmem:[%s286 + $0x5230] sm:$0xff]
        %v2997 = vld [vmem:[%s286 + $0x5238] sm:$0xff]
        %v2998 = vld [vmem:[%s286 + $0x5240] sm:$0xff]
        %v2999 = vld [vmem:[%s286 + $0x5248] sm:$0xff]
        %v3000 = vld [vmem:[%s286 + $0x5250] sm:$0xff]
        %v3001 = vld [vmem:[%s286 + $0x5258] sm:$0xff]
        %v3002 = vld [vmem:[%s286 + $0x5260] sm:$0xff]
        %v3003 = vld [vmem:[%s286 + $0x5268] sm:$0xff]
        %v3004 = vld [vmem:[%s286 + $0x5270] sm:$0xff]
        %v3005 = vld [vmem:[%s286 + $0x5278] sm:$0xff]
        %v3006 = vld [vmem:[%s286 + $0x5280] sm:$0xff]
        %v3007 = vld [vmem:[%s286 + $0x5288] sm:$0xff]
        %v3008 = vld [vmem:[%s286 + $0x5290] sm:$0xff]
        %v3009 = vld [vmem:[%s286 + $0x5298] sm:$0xff]
        %v3010 = vld [vmem:[%s286 + $0x52a0] sm:$0xff]
        %v3011 = vld [vmem:[%s286 + $0x52a8] sm:$0xff]
        %v3012 = vld [vmem:[%s286 + $0x52b0] sm:$0xff]
        %v3013 = vld [vmem:[%s286 + $0x52b8] sm:$0xff]
        %v3014 = vld [vmem:[%s286 + $0x52c0] sm:$0xff]
        %v3015 = vld [vmem:[%s286 + $0x52c8] sm:$0xff]
        %v3016 = vld [vmem:[%s286 + $0x52d0] sm:$0xff]
        %v3017 = vld [vmem:[%s286 + $0x52d8] sm:$0xff]
        %v3018 = vld [vmem:[%s286 + $0x52e0] sm:$0xff]
        %v3019 = vld [vmem:[%s286 + $0x52e8] sm:$0xff]
        %v3020 = vld [vmem:[%s286 + $0x52f0] sm:$0xff]
        %v3021 = vld [vmem:[%s286 + $0x52f8] sm:$0xff]
        %v3022 = vld [vmem:[%s286 + $0x5300] sm:$0xff]
        %v3023 = vld [vmem:[%s286 + $0x5308] sm:$0xff]
        %v3024 = vld [vmem:[%s286 + $0x5310] sm:$0xff]
        %v3025 = vld [vmem:[%s286 + $0x5318] sm:$0xff]
        %v3026 = vld [vmem:[%s286 + $0x5320] sm:$0xff]
        %v3027 = vld [vmem:[%s286 + $0x5328] sm:$0xff]
        %v3028 = vld [vmem:[%s286 + $0x5330] sm:$0xff]
        %v3029 = vld [vmem:[%s286 + $0x5338] sm:$0xff]
        %v3030 = vld [vmem:[%s286 + $0x5340] sm:$0xff]
        %v3031 = vld [vmem:[%s286 + $0x5348] sm:$0xff]
        %v3032 = vld [vmem:[%s286 + $0x5350] sm:$0xff]
        %v3033 = vld [vmem:[%s286 + $0x5358] sm:$0xff]
        %v3034 = vld [vmem:[%s286 + $0x5360] sm:$0xff]
        %v3035 = vld [vmem:[%s286 + $0x5368] sm:$0xff]
        %v3036 = vld [vmem:[%s286 + $0x5370] sm:$0xff]
        %v3037 = vld [vmem:[%s286 + $0x5378] sm:$0xff]
        %v3038 = vld [vmem:[%s286 + $0x5380] sm:$0xff]
        %v3039 = vld [vmem:[%s286 + $0x5388] sm:$0xff]
        %v3040 = vld [vmem:[%s286 + $0x5390] sm:$0xff]
        %v3041 = vld [vmem:[%s286 + $0x5398] sm:$0xff]
        %v3042 = vld [vmem:[%s286 + $0x53a0] sm:$0xff]
        %v3043 = vld [vmem:[%s286 + $0x53a8] sm:$0xff]
        %v3044 = vld [vmem:[%s286 + $0x53b0] sm:$0xff]
        %v3045 = vld [vmem:[%s286 + $0x53b8] sm:$0xff]
        %v3046 = vld [vmem:[%s286 + $0x53c0] sm:$0xff]
        %v3047 = vld [vmem:[%s286 + $0x53c8] sm:$0xff]
        %v3048 = vld [vmem:[%s286 + $0x53d0] sm:$0xff]
        %v3049 = vld [vmem:[%s286 + $0x53d8] sm:$0xff]
        %v3050 = vld [vmem:[%s286 + $0x53e0] sm:$0xff]
        %v3051 = vld [vmem:[%s286 + $0x53e8] sm:$0xff]
        %v3052 = vld [vmem:[%s286 + $0x53f0] sm:$0xff]
        %v3053 = vld [vmem:[%s286 + $0x53f8] sm:$0xff]
        %v3054 = vld [vmem:[%s286 + $0x5400] sm:$0xff]
        %v3055 = vld [vmem:[%s286 + $0x5408] sm:$0xff]
        %v3056 = vld [vmem:[%s286 + $0x5410] sm:$0xff]
        %v3057 = vld [vmem:[%s286 + $0x5418] sm:$0xff]
        %v3058 = vld [vmem:[%s286 + $0x5420] sm:$0xff]
        %v3059 = vld [vmem:[%s286 + $0x5428] sm:$0xff]
        %v3060 = vld [vmem:[%s286 + $0x5430] sm:$0xff]
        %v3061 = vld [vmem:[%s286 + $0x5438] sm:$0xff]
        %v3062 = vld [vmem:[%s286 + $0x5440] sm:$0xff]
        %v3063 = vld [vmem:[%s286 + $0x5448] sm:$0xff]
        %v3064 = vld [vmem:[%s286 + $0x5450] sm:$0xff]
        %v3065 = vld [vmem:[%s286 + $0x5458] sm:$0xff]
        %v3066 = vld [vmem:[%s286 + $0x5460] sm:$0xff]
        %v3067 = vld [vmem:[%s286 + $0x5468] sm:$0xff]
        %v3068 = vld [vmem:[%s286 + $0x5470] sm:$0xff]
        %v3069 = vld [vmem:[%s286 + $0x5478] sm:$0xff]
        %v3070 = vld [vmem:[%s286 + $0x5480] sm:$0xff]
        %v3071 = vld [vmem:[%s286 + $0x5488] sm:$0xff]
        %v3072 = vld [vmem:[%s286 + $0x5490] sm:$0xff]
        %v3073 = vld [vmem:[%s286 + $0x5498] sm:$0xff]
        %v3074 = vld [vmem:[%s286 + $0x54a0] sm:$0xff]
        %v3075 = vld [vmem:[%s286 + $0x54a8] sm:$0xff]
        %v3076 = vld [vmem:[%s286 + $0x54b0] sm:$0xff]
        %v3077 = vld [vmem:[%s286 + $0x54b8] sm:$0xff]
        %v3078 = vld [vmem:[%s286 + $0x54c0] sm:$0xff]
        %v3079 = vld [vmem:[%s286 + $0x54c8] sm:$0xff]
        %v3080 = vld [vmem:[%s286 + $0x54d0] sm:$0xff]
        %v3081 = vld [vmem:[%s286 + $0x54d8] sm:$0xff]
        %v3082 = vld [vmem:[%s286 + $0x54e0] sm:$0xff]
        %v3083 = vld [vmem:[%s286 + $0x54e8] sm:$0xff]
        %v3084 = vld [vmem:[%s286 + $0x54f0] sm:$0xff]
        %v3085 = vld [vmem:[%s286 + $0x54f8] sm:$0xff]
        %v3086 = vld [vmem:[%s286 + $0x5500] sm:$0xff]
        %v3087 = vld [vmem:[%s286 + $0x5508] sm:$0xff]
        %v3088 = vld [vmem:[%s286 + $0x5510] sm:$0xff]
        %v3089 = vld [vmem:[%s286 + $0x5518] sm:$0xff]
        %v3090 = vld [vmem:[%s286 + $0x5520] sm:$0xff]
        %v3091 = vld [vmem:[%s286 + $0x5528] sm:$0xff]
        %v3092 = vld [vmem:[%s286 + $0x5530] sm:$0xff]
        %v3093 = vld [vmem:[%s286 + $0x5538] sm:$0xff]
        %v3094 = vld [vmem:[%s286 + $0x5540] sm:$0xff]
        %v3095 = vld [vmem:[%s286 + $0x5548] sm:$0xff]
        %v3096 = vld [vmem:[%s286 + $0x5550] sm:$0xff]
        %v3097 = vld [vmem:[%s286 + $0x5558] sm:$0xff]
        %v3098 = vld [vmem:[%s286 + $0x5560] sm:$0xff]
        %v3099 = vld [vmem:[%s286 + $0x5568] sm:$0xff]
        %v3100 = vld [vmem:[%s286 + $0x5570] sm:$0xff]
        %v3101 = vld [vmem:[%s286 + $0x5578] sm:$0xff]
        %v3102 = vld [vmem:[%s286 + $0x5580] sm:$0xff]
        %v3103 = vld [vmem:[%s286 + $0x5588] sm:$0xff]
        %v3104 = vld [vmem:[%s286 + $0x5590] sm:$0xff]
        %v3105 = vld [vmem:[%s286 + $0x5598] sm:$0xff]
        %v3106 = vld [vmem:[%s286 + $0x55a0] sm:$0xff]
        %v3107 = vld [vmem:[%s286 + $0x55a8] sm:$0xff]
        %v3108 = vld [vmem:[%s286 + $0x55b0] sm:$0xff]
        %v3109 = vld [vmem:[%s286 + $0x55b8] sm:$0xff]
        %v3110 = vld [vmem:[%s286 + $0x55c0] sm:$0xff]
        %v3111 = vld [vmem:[%s286 + $0x55c8] sm:$0xff]
        %v3112 = vld [vmem:[%s286 + $0x55d0] sm:$0xff]
        %v3113 = vld [vmem:[%s286 + $0x55d8] sm:$0xff]
        %v3114 = vld [vmem:[%s286 + $0x55e0] sm:$0xff]
        %v3115 = vld [vmem:[%s286 + $0x55e8] sm:$0xff]
        %v3116 = vld [vmem:[%s286 + $0x55f0] sm:$0xff]
        %v3117 = vld [vmem:[%s286 + $0x55f8] sm:$0xff]
        %v3118 = vld [vmem:[%s286 + $0x5600] sm:$0xff]
        %v3119 = vld [vmem:[%s286 + $0x5608] sm:$0xff]
        %v3120 = vld [vmem:[%s286 + $0x5610] sm:$0xff]
        %v3121 = vld [vmem:[%s286 + $0x5618] sm:$0xff]
        %v3122 = vld [vmem:[%s286 + $0x5620] sm:$0xff]
        %v3123 = vld [vmem:[%s286 + $0x5628] sm:$0xff]
        %v3124 = vld [vmem:[%s286 + $0x5630] sm:$0xff]
        %v3125 = vld [vmem:[%s286 + $0x5638] sm:$0xff]
        %v3126 = vld [vmem:[%s286 + $0x5640] sm:$0xff]
        %v3127 = vld [vmem:[%s286 + $0x5648] sm:$0xff]
        %v3128 = vld [vmem:[%s286 + $0x5650] sm:$0xff]
        %v3129 = vld [vmem:[%s286 + $0x5658] sm:$0xff]
        %v3130 = vld [vmem:[%s286 + $0x5660] sm:$0xff]
        %v3131 = vld [vmem:[%s286 + $0x5668] sm:$0xff]
        %v3132 = vld [vmem:[%s286 + $0x5670] sm:$0xff]
        %v3133 = vld [vmem:[%s286 + $0x5678] sm:$0xff]
        %v3134 = vld [vmem:[%s286 + $0x5680] sm:$0xff]
        %v3135 = vld [vmem:[%s286 + $0x5688] sm:$0xff]
        %v3136 = vld [vmem:[%s286 + $0x5690] sm:$0xff]
        %v3137 = vld [vmem:[%s286 + $0x5698] sm:$0xff]
        %v3138 = vld [vmem:[%s286 + $0x56a0] sm:$0xff]
        %v3139 = vld [vmem:[%s286 + $0x56a8] sm:$0xff]
        %v3140 = vld [vmem:[%s286 + $0x56b0] sm:$0xff]
        %v3141 = vld [vmem:[%s286 + $0x56b8] sm:$0xff]
        %v3142 = vld [vmem:[%s286 + $0x56c0] sm:$0xff]
        %v3143 = vld [vmem:[%s286 + $0x56c8] sm:$0xff]
        %v3144 = vld [vmem:[%s286 + $0x56d0] sm:$0xff]
        %v3145 = vld [vmem:[%s286 + $0x56d8] sm:$0xff]
        %v3146 = vld [vmem:[%s286 + $0x56e0] sm:$0xff]
        %v3147 = vld [vmem:[%s286 + $0x56e8] sm:$0xff]
        %v3148 = vld [vmem:[%s286 + $0x56f0] sm:$0xff]
        %v3149 = vld [vmem:[%s286 + $0x56f8] sm:$0xff]
        %v3150 = vld [vmem:[%s286 + $0x5700] sm:$0xff]
        %v3151 = vld [vmem:[%s286 + $0x5708] sm:$0xff]
        %v3152 = vld [vmem:[%s286 + $0x5710] sm:$0xff]
        %v3153 = vld [vmem:[%s286 + $0x5718] sm:$0xff]
        %v3154 = vld [vmem:[%s286 + $0x5720] sm:$0xff]
        %v3155 = vld [vmem:[%s286 + $0x5728] sm:$0xff]
        %v3156 = vld [vmem:[%s286 + $0x5730] sm:$0xff]
        %v3157 = vld [vmem:[%s286 + $0x5738] sm:$0xff]
        %v3158 = vld [vmem:[%s286 + $0x5740] sm:$0xff]
        %v3159 = vld [vmem:[%s286 + $0x5748] sm:$0xff]
        %v3160 = vld [vmem:[%s286 + $0x5750] sm:$0xff]
        %v3161 = vld [vmem:[%s286 + $0x5758] sm:$0xff]
        %v3162 = vld [vmem:[%s286 + $0x5760] sm:$0xff]
        %v3163 = vld [vmem:[%s286 + $0x5768] sm:$0xff]
        %v3164 = vld [vmem:[%s286 + $0x5770] sm:$0xff]
        %v3165 = vld [vmem:[%s286 + $0x5778] sm:$0xff]
        %v3166 = vld [vmem:[%s286 + $0x5780] sm:$0xff]
        %v3167 = vld [vmem:[%s286 + $0x5788] sm:$0xff]
        %v3168 = vld [vmem:[%s286 + $0x5790] sm:$0xff]
        %v3169 = vld [vmem:[%s286 + $0x5798] sm:$0xff]
        %v3170 = vld [vmem:[%s286 + $0x57a0] sm:$0xff]
        %v3171 = vld [vmem:[%s286 + $0x57a8] sm:$0xff]
        %v3172 = vld [vmem:[%s286 + $0x57b0] sm:$0xff]
        %v3173 = vld [vmem:[%s286 + $0x57b8] sm:$0xff]
        %v3174 = vld [vmem:[%s286 + $0x57c0] sm:$0xff]
        %v3175 = vld [vmem:[%s286 + $0x57c8] sm:$0xff]
        %v3176 = vld [vmem:[%s286 + $0x57d0] sm:$0xff]
        %v3177 = vld [vmem:[%s286 + $0x57d8] sm:$0xff]
        %v3178 = vld [vmem:[%s286 + $0x57e0] sm:$0xff]
        %v3179 = vld [vmem:[%s286 + $0x57e8] sm:$0xff]
        %v3180 = vld [vmem:[%s286 + $0x57f0] sm:$0xff]
        %v3181 = vld [vmem:[%s286 + $0x57f8] sm:$0xff]
        %v3182 = vld [vmem:[%s286 + $0x5800] sm:$0xff]
        %v3183 = vld [vmem:[%s286 + $0x5808] sm:$0xff]
        %v3184 = vld [vmem:[%s286 + $0x5810] sm:$0xff]
        %v3185 = vld [vmem:[%s286 + $0x5818] sm:$0xff]
        %v3186 = vld [vmem:[%s286 + $0x5820] sm:$0xff]
        %v3187 = vld [vmem:[%s286 + $0x5828] sm:$0xff]
        %v3188 = vld [vmem:[%s286 + $0x5830] sm:$0xff]
        %v3189 = vld [vmem:[%s286 + $0x5838] sm:$0xff]
        %v3190 = vld [vmem:[%s286 + $0x5840] sm:$0xff]
        %v3191 = vld [vmem:[%s286 + $0x5848] sm:$0xff]
        %v3192 = vld [vmem:[%s286 + $0x5850] sm:$0xff]
        %v3193 = vld [vmem:[%s286 + $0x5858] sm:$0xff]
        %v3194 = vld [vmem:[%s286 + $0x5860] sm:$0xff]
        %v3195 = vld [vmem:[%s286 + $0x5868] sm:$0xff]
        %v3196 = vld [vmem:[%s286 + $0x5870] sm:$0xff]
        %v3197 = vld [vmem:[%s286 + $0x5878] sm:$0xff]
        %v3198 = vld [vmem:[%s286 + $0x5880] sm:$0xff]
        %v3199 = vld [vmem:[%s286 + $0x5888] sm:$0xff]
        %v3200 = vld [vmem:[%s286 + $0x5890] sm:$0xff]
        %v3201 = vld [vmem:[%s286 + $0x5898] sm:$0xff]
        %v3202 = vld [vmem:[%s286 + $0x58a0] sm:$0xff]
        %v3203 = vld [vmem:[%s286 + $0x58a8] sm:$0xff]
        %v3204 = vld [vmem:[%s286 + $0x58b0] sm:$0xff]
        %v3205 = vld [vmem:[%s286 + $0x58b8] sm:$0xff]
        %v3206 = vld [vmem:[%s286 + $0x58c0] sm:$0xff]
        %v3207 = vld [vmem:[%s286 + $0x58c8] sm:$0xff]
        %v3208 = vld [vmem:[%s286 + $0x58d0] sm:$0xff]
        %v3209 = vld [vmem:[%s286 + $0x58d8] sm:$0xff]
        %v3210 = vld [vmem:[%s286 + $0x58e0] sm:$0xff]
        %v3211 = vld [vmem:[%s286 + $0x58e8] sm:$0xff]
        %v3212 = vld [vmem:[%s286 + $0x58f0] sm:$0xff]
        %v3213 = vld [vmem:[%s286 + $0x58f8] sm:$0xff]
        %v3214 = vld [vmem:[%s286 + $0x5900] sm:$0xff]
        %v3215 = vld [vmem:[%s286 + $0x5908] sm:$0xff]
        %v3216 = vld [vmem:[%s286 + $0x5910] sm:$0xff]
        %v3217 = vld [vmem:[%s286 + $0x5918] sm:$0xff]
        %v3218 = vld [vmem:[%s286 + $0x5920] sm:$0xff]
        %v3219 = vld [vmem:[%s286 + $0x5928] sm:$0xff]
        %v3220 = vld [vmem:[%s286 + $0x5930] sm:$0xff]
        %v3221 = vld [vmem:[%s286 + $0x5938] sm:$0xff]
        %v3222 = vld [vmem:[%s286 + $0x5940] sm:$0xff]
        %v3223 = vld [vmem:[%s286 + $0x5948] sm:$0xff]
        %v3224 = vld [vmem:[%s286 + $0x5950] sm:$0xff]
        %v3225 = vld [vmem:[%s286 + $0x5958] sm:$0xff]
        %v3226 = vld [vmem:[%s286 + $0x5960] sm:$0xff]
        %v3227 = vld [vmem:[%s286 + $0x5968] sm:$0xff]
        %v3228 = vld [vmem:[%s286 + $0x5970] sm:$0xff]
        %v3229 = vld [vmem:[%s286 + $0x5978] sm:$0xff]
        %v3230 = vld [vmem:[%s286 + $0x5980] sm:$0xff]
        %v3231 = vld [vmem:[%s286 + $0x5988] sm:$0xff]
        %v3232 = vld [vmem:[%s286 + $0x5990] sm:$0xff]
        %v3233 = vld [vmem:[%s286 + $0x5998] sm:$0xff]
        %v3234 = vld [vmem:[%s286 + $0x59a0] sm:$0xff]
        %v3235 = vld [vmem:[%s286 + $0x59a8] sm:$0xff]
        %v3236 = vld [vmem:[%s286 + $0x59b0] sm:$0xff]
        %v3237 = vld [vmem:[%s286 + $0x59b8] sm:$0xff]
        %v3238 = vld [vmem:[%s286 + $0x59c0] sm:$0xff]
        %v3239 = vld [vmem:[%s286 + $0x59c8] sm:$0xff]
        %v3240 = vld [vmem:[%s286 + $0x59d0] sm:$0xff]
        %v3241 = vld [vmem:[%s286 + $0x59d8] sm:$0xff]
        %v3242 = vld [vmem:[%s286 + $0x59e0] sm:$0xff]
        %v3243 = vld [vmem:[%s286 + $0x59e8] sm:$0xff]
        %v3244 = vld [vmem:[%s286 + $0x59f0] sm:$0xff]
        %v3245 = vld [vmem:[%s286 + $0x59f8] sm:$0xff]
        %v3246 = vld [vmem:[%s286 + $0x5a00] sm:$0xff]
        %v3247 = vld [vmem:[%s286 + $0x5a08] sm:$0xff]
        %v3248 = vld [vmem:[%s286 + $0x5a10] sm:$0xff]
        %v3249 = vld [vmem:[%s286 + $0x5a18] sm:$0xff]
        %v3250 = vld [vmem:[%s286 + $0x5a20] sm:$0xff]
        %v3251 = vld [vmem:[%s286 + $0x5a28] sm:$0xff]
        %v3252 = vld [vmem:[%s286 + $0x5a30] sm:$0xff]
        %v3253 = vld [vmem:[%s286 + $0x5a38] sm:$0xff]
        %v3254 = vld [vmem:[%s286 + $0x5a40] sm:$0xff]
        %v3255 = vld [vmem:[%s286 + $0x5a48] sm:$0xff]
        %v3256 = vld [vmem:[%s286 + $0x5a50] sm:$0xff]
        %v3257 = vld [vmem:[%s286 + $0x5a58] sm:$0xff]
        %v3258 = vld [vmem:[%s286 + $0x5a60] sm:$0xff]
        %v3259 = vld [vmem:[%s286 + $0x5a68] sm:$0xff]
        %v3260 = vld [vmem:[%s286 + $0x5a70] sm:$0xff]
        %v3261 = vld [vmem:[%s286 + $0x5a78] sm:$0xff]
        %v3262 = vld [vmem:[%s286 + $0x5a80] sm:$0xff]
        %v3263 = vld [vmem:[%s286 + $0x5a88] sm:$0xff]
        %v3264 = vld [vmem:[%s286 + $0x5a90] sm:$0xff]
        %v3265 = vld [vmem:[%s286 + $0x5a98] sm:$0xff]
        %v3266 = vld [vmem:[%s286 + $0x5aa0] sm:$0xff]
        %v3267 = vld [vmem:[%s286 + $0x5aa8] sm:$0xff]
        %v3268 = vld [vmem:[%s286 + $0x5ab0] sm:$0xff]
        %v3269 = vld [vmem:[%s286 + $0x5ab8] sm:$0xff]
        %v3270 = vld [vmem:[%s286 + $0x5ac0] sm:$0xff]
        %v3271 = vld [vmem:[%s286 + $0x5ac8] sm:$0xff]
        %v3272 = vld [vmem:[%s286 + $0x5ad0] sm:$0xff]
        %v3273 = vld [vmem:[%s286 + $0x5ad8] sm:$0xff]
        %v3274 = vld [vmem:[%s286 + $0x5ae0] sm:$0xff]
        %v3275 = vld [vmem:[%s286 + $0x5ae8] sm:$0xff]
        %v3276 = vld [vmem:[%s286 + $0x5af0] sm:$0xff]
        %v3277 = vld [vmem:[%s286 + $0x5af8] sm:$0xff]
        %v3278 = vld [vmem:[%s286 + $0x5b00] sm:$0xff]
        %v3279 = vld [vmem:[%s286 + $0x5b08] sm:$0xff]
        %v3280 = vld [vmem:[%s286 + $0x5b10] sm:$0xff]
        %v3281 = vld [vmem:[%s286 + $0x5b18] sm:$0xff]
        %v3282 = vld [vmem:[%s286 + $0x5b20] sm:$0xff]
        %v3283 = vld [vmem:[%s286 + $0x5b28] sm:$0xff]
        %v3284 = vld [vmem:[%s286 + $0x5b30] sm:$0xff]
        %v3285 = vld [vmem:[%s286 + $0x5b38] sm:$0xff]
        %v3286 = vld [vmem:[%s286 + $0x5b40] sm:$0xff]
        %v3287 = vld [vmem:[%s286 + $0x5b48] sm:$0xff]
        %v3288 = vld [vmem:[%s286 + $0x5b50] sm:$0xff]
        %v3289 = vld [vmem:[%s286 + $0x5b58] sm:$0xff]
        %v3290 = vld [vmem:[%s286 + $0x5b60] sm:$0xff]
        %v3291 = vld [vmem:[%s286 + $0x5b68] sm:$0xff]
        %v3292 = vld [vmem:[%s286 + $0x5b70] sm:$0xff]
        %v3293 = vld [vmem:[%s286 + $0x5b78] sm:$0xff]
        %v3294 = vld [vmem:[%s286 + $0x5b80] sm:$0xff]
        %v3295 = vld [vmem:[%s286 + $0x5b88] sm:$0xff]
        %v3296 = vld [vmem:[%s286 + $0x5b90] sm:$0xff]
        %v3297 = vld [vmem:[%s286 + $0x5b98] sm:$0xff]
        %v3298 = vld [vmem:[%s286 + $0x5ba0] sm:$0xff]
        %v3299 = vld [vmem:[%s286 + $0x5ba8] sm:$0xff]
        %v3300 = vld [vmem:[%s286 + $0x5bb0] sm:$0xff]
        %v3301 = vld [vmem:[%s286 + $0x5bb8] sm:$0xff]
        %v3302 = vld [vmem:[%s286 + $0x5bc0] sm:$0xff]
        %v3303 = vld [vmem:[%s286 + $0x5bc8] sm:$0xff]
        %v3304 = vld [vmem:[%s286 + $0x5bd0] sm:$0xff]
        %v3305 = vld [vmem:[%s286 + $0x5bd8] sm:$0xff]
        %v3306 = vld [vmem:[%s286 + $0x5be0] sm:$0xff]
        %v3307 = vld [vmem:[%s286 + $0x5be8] sm:$0xff]
        %v3308 = vld [vmem:[%s286 + $0x5bf0] sm:$0xff]
        %v3309 = vld [vmem:[%s286 + $0x5bf8] sm:$0xff]
        %v3310 = vld [vmem:[%s286 + $0x5c00] sm:$0xff]
        %v3311 = vld [vmem:[%s286 + $0x5c08] sm:$0xff]
        %v3312 = vld [vmem:[%s286 + $0x5c10] sm:$0xff]
        %v3313 = vld [vmem:[%s286 + $0x5c18] sm:$0xff]
        %v3314 = vld [vmem:[%s286 + $0x5c20] sm:$0xff]
        %v3315 = vld [vmem:[%s286 + $0x5c28] sm:$0xff]
        %v3316 = vld [vmem:[%s286 + $0x5c30] sm:$0xff]
        %v3317 = vld [vmem:[%s286 + $0x5c38] sm:$0xff]
        %v3318 = vld [vmem:[%s286 + $0x5c40] sm:$0xff]
        %v3319 = vld [vmem:[%s286 + $0x5c48] sm:$0xff]
        %v3320 = vld [vmem:[%s286 + $0x5c50] sm:$0xff]
        %v3321 = vld [vmem:[%s286 + $0x5c58] sm:$0xff]
        %v3322 = vld [vmem:[%s286 + $0x5c60] sm:$0xff]
        %v3323 = vld [vmem:[%s286 + $0x5c68] sm:$0xff]
        %v3324 = vld [vmem:[%s286 + $0x5c70] sm:$0xff]
        %v3325 = vld [vmem:[%s286 + $0x5c78] sm:$0xff]
        %v3326 = vld [vmem:[%s286 + $0x5c80] sm:$0xff]
        %v3327 = vld [vmem:[%s286 + $0x5c88] sm:$0xff]
        %v3328 = vld [vmem:[%s286 + $0x5c90] sm:$0xff]
        %v3329 = vld [vmem:[%s286 + $0x5c98] sm:$0xff]
        %v3330 = vld [vmem:[%s286 + $0x5ca0] sm:$0xff]
        %v3331 = vld [vmem:[%s286 + $0x5ca8] sm:$0xff]
        %v3332 = vld [vmem:[%s286 + $0x5cb0] sm:$0xff]
        %v3333 = vld [vmem:[%s286 + $0x5cb8] sm:$0xff]
        %v3334 = vld [vmem:[%s286 + $0x5cc0] sm:$0xff]
        %v3335 = vld [vmem:[%s286 + $0x5cc8] sm:$0xff]
        %v3336 = vld [vmem:[%s286 + $0x5cd0] sm:$0xff]
        %v3337 = vld [vmem:[%s286 + $0x5cd8] sm:$0xff]
        %v3338 = vld [vmem:[%s286 + $0x5ce0] sm:$0xff]
        %v3339 = vld [vmem:[%s286 + $0x5ce8] sm:$0xff]
        %v3340 = vld [vmem:[%s286 + $0x5cf0] sm:$0xff]
        %v3341 = vld [vmem:[%s286 + $0x5cf8] sm:$0xff]
        %v3342 = vld [vmem:[%s286 + $0x5d00] sm:$0xff]
        %v3343 = vld [vmem:[%s286 + $0x5d08] sm:$0xff]
        %v3344 = vld [vmem:[%s286 + $0x5d10] sm:$0xff]
        %v3345 = vld [vmem:[%s286 + $0x5d18] sm:$0xff]
        %v3346 = vld [vmem:[%s286 + $0x5d20] sm:$0xff]
        %v3347 = vld [vmem:[%s286 + $0x5d28] sm:$0xff]
        %v3348 = vld [vmem:[%s286 + $0x5d30] sm:$0xff]
        %v3349 = vld [vmem:[%s286 + $0x5d38] sm:$0xff]
        %v3350 = vld [vmem:[%s286 + $0x5d40] sm:$0xff]
        %v3351 = vld [vmem:[%s286 + $0x5d48] sm:$0xff]
        %v3352 = vld [vmem:[%s286 + $0x5d50] sm:$0xff]
        %v3353 = vld [vmem:[%s286 + $0x5d58] sm:$0xff]
        %v3354 = vld [vmem:[%s286 + $0x5d60] sm:$0xff]
        %v3355 = vld [vmem:[%s286 + $0x5d68] sm:$0xff]
        %v3356 = vld [vmem:[%s286 + $0x5d70] sm:$0xff]
        %v3357 = vld [vmem:[%s286 + $0x5d78] sm:$0xff]
        %v3358 = vld [vmem:[%s286 + $0x5d80] sm:$0xff]
        %v3359 = vld [vmem:[%s286 + $0x5d88] sm:$0xff]
        %v3360 = vld [vmem:[%s286 + $0x5d90] sm:$0xff]
        %v3361 = vld [vmem:[%s286 + $0x5d98] sm:$0xff]
        %v3362 = vld [vmem:[%s286 + $0x5da0] sm:$0xff]
        %v3363 = vld [vmem:[%s286 + $0x5da8] sm:$0xff]
        %v3364 = vld [vmem:[%s286 + $0x5db0] sm:$0xff]
        %v3365 = vld [vmem:[%s286 + $0x5db8] sm:$0xff]
        %v3366 = vld [vmem:[%s286 + $0x5dc0] sm:$0xff]
        %v3367 = vld [vmem:[%s286 + $0x5dc8] sm:$0xff]
        %v3368 = vld [vmem:[%s286 + $0x5dd0] sm:$0xff]
        %v3369 = vld [vmem:[%s286 + $0x5dd8] sm:$0xff]
        %v3370 = vld [vmem:[%s286 + $0x5de0] sm:$0xff]
        %v3371 = vld [vmem:[%s286 + $0x5de8] sm:$0xff]
        %v3372 = vld [vmem:[%s286 + $0x5df0] sm:$0xff]
        %v3373 = vld [vmem:[%s286 + $0x5df8] sm:$0xff]
        %v3374 = vld [vmem:[%s286 + $0x5e00] sm:$0xff]
        %v3375 = vld [vmem:[%s286 + $0x5e08] sm:$0xff]
        %v3376 = vld [vmem:[%s286 + $0x5e10] sm:$0xff]
        %v3377 = vld [vmem:[%s286 + $0x5e18] sm:$0xff]
        %v3378 = vld [vmem:[%s286 + $0x5e20] sm:$0xff]
        %v3379 = vld [vmem:[%s286 + $0x5e28] sm:$0xff]
        %v3380 = vld [vmem:[%s286 + $0x5e30] sm:$0xff]
        %v3381 = vld [vmem:[%s286 + $0x5e38] sm:$0xff]
        %v3382 = vld [vmem:[%s286 + $0x5e40] sm:$0xff]
        %v3383 = vld [vmem:[%s286 + $0x5e48] sm:$0xff]
        %v3384 = vld [vmem:[%s286 + $0x5e50] sm:$0xff]
        %v3385 = vld [vmem:[%s286 + $0x5e58] sm:$0xff]
        %v3386 = vld [vmem:[%s286 + $0x5e60] sm:$0xff]
        %v3387 = vld [vmem:[%s286 + $0x5e68] sm:$0xff]
        %v3388 = vld [vmem:[%s286 + $0x5e70] sm:$0xff]
        %v3389 = vld [vmem:[%s286 + $0x5e78] sm:$0xff]
        %v3390 = vld [vmem:[%s286 + $0x5e80] sm:$0xff]
        %v3391 = vld [vmem:[%s286 + $0x5e88] sm:$0xff]
        %v3392 = vld [vmem:[%s286 + $0x5e90] sm:$0xff]
        %v3393 = vld [vmem:[%s286 + $0x5e98] sm:$0xff]
        %v3394 = vld [vmem:[%s286 + $0x5ea0] sm:$0xff]
        %v3395 = vld [vmem:[%s286 + $0x5ea8] sm:$0xff]
        %v3396 = vld [vmem:[%s286 + $0x5eb0] sm:$0xff]
        %v3397 = vld [vmem:[%s286 + $0x5eb8] sm:$0xff]
        %v3398 = vld [vmem:[%s286 + $0x5ec0] sm:$0xff]
        %v3399 = vld [vmem:[%s286 + $0x5ec8] sm:$0xff]
        %v3400 = vld [vmem:[%s286 + $0x5ed0] sm:$0xff]
        %v3401 = vld [vmem:[%s286 + $0x5ed8] sm:$0xff]
        %v3402 = vld [vmem:[%s286 + $0x5ee0] sm:$0xff]
        %v3403 = vld [vmem:[%s286 + $0x5ee8] sm:$0xff]
        %v3404 = vld [vmem:[%s286 + $0x5ef0] sm:$0xff]
        %v3405 = vld [vmem:[%s286 + $0x5ef8] sm:$0xff]
        %v3406 = vld [vmem:[%s286 + $0x5f00] sm:$0xff]
        %v3407 = vld [vmem:[%s286 + $0x5f08] sm:$0xff]
        %v3408 = vld [vmem:[%s286 + $0x5f10] sm:$0xff]
        %v3409 = vld [vmem:[%s286 + $0x5f18] sm:$0xff]
        %v3410 = vld [vmem:[%s286 + $0x5f20] sm:$0xff]
        %v3411 = vld [vmem:[%s286 + $0x5f28] sm:$0xff]
        %v3412 = vld [vmem:[%s286 + $0x5f30] sm:$0xff]
        %v3413 = vld [vmem:[%s286 + $0x5f38] sm:$0xff]
        %v3414 = vld [vmem:[%s286 + $0x5f40] sm:$0xff]
        %v3415 = vld [vmem:[%s286 + $0x5f48] sm:$0xff]
        %v3416 = vld [vmem:[%s286 + $0x5f50] sm:$0xff]
        %v3417 = vld [vmem:[%s286 + $0x5f58] sm:$0xff]
        %v3418 = vld [vmem:[%s286 + $0x5f60] sm:$0xff]
        %v3419 = vld [vmem:[%s286 + $0x5f68] sm:$0xff]
        %v3420 = vld [vmem:[%s286 + $0x5f70] sm:$0xff]
        %v3421 = vld [vmem:[%s286 + $0x5f78] sm:$0xff]
        %v3422 = vld [vmem:[%s286 + $0x5f80] sm:$0xff]
        %v3423 = vld [vmem:[%s286 + $0x5f88] sm:$0xff]
        %v3424 = vld [vmem:[%s286 + $0x5f90] sm:$0xff]
        %v3425 = vld [vmem:[%s286 + $0x5f98] sm:$0xff]
        %v3426 = vld [vmem:[%s286 + $0x5fa0] sm:$0xff]
        %v3427 = vld [vmem:[%s286 + $0x5fa8] sm:$0xff]
        %v3428 = vld [vmem:[%s286 + $0x5fb0] sm:$0xff]
        %v3429 = vld [vmem:[%s286 + $0x5fb8] sm:$0xff]
        %v3430 = vld [vmem:[%s286 + $0x5fc0] sm:$0xff]
        %v3431 = vld [vmem:[%s286 + $0x5fc8] sm:$0xff]
        %v3432 = vld [vmem:[%s286 + $0x5fd0] sm:$0xff]
        %v3433 = vld [vmem:[%s286 + $0x5fd8] sm:$0xff]
        %v3434 = vld [vmem:[%s286 + $0x5fe0] sm:$0xff]
        %v3435 = vld [vmem:[%s286 + $0x5fe8] sm:$0xff]
        %v3436 = vld [vmem:[%s286 + $0x5ff0] sm:$0xff]
        %v3437 = vld [vmem:[%s286 + $0x5ff8] sm:$0xff]
        %v3438 = vld [vmem:[%s286 + $0x6000] sm:$0xff]
        %v3439 = vld [vmem:[%s286 + $0x6008] sm:$0xff]
        %v3440 = vld [vmem:[%s286 + $0x6010] sm:$0xff]
        %v3441 = vld [vmem:[%s286 + $0x6018] sm:$0xff]
        %v3442 = vld [vmem:[%s286 + $0x6020] sm:$0xff]
        %v3443 = vld [vmem:[%s286 + $0x6028] sm:$0xff]
        %v3444 = vld [vmem:[%s286 + $0x6030] sm:$0xff]
        %v3445 = vld [vmem:[%s286 + $0x6038] sm:$0xff]
        %v3446 = vld [vmem:[%s286 + $0x6040] sm:$0xff]
        %v3447 = vld [vmem:[%s286 + $0x6048] sm:$0xff]
        %v3448 = vld [vmem:[%s286 + $0x6050] sm:$0xff]
        %v3449 = vld [vmem:[%s286 + $0x6058] sm:$0xff]
        %v3450 = vld [vmem:[%s286 + $0x6060] sm:$0xff]
        %v3451 = vld [vmem:[%s286 + $0x6068] sm:$0xff]
        %v3452 = vld [vmem:[%s286 + $0x6070] sm:$0xff]
        %v3453 = vld [vmem:[%s286 + $0x6078] sm:$0xff]
        %v3454 = vld [vmem:[%s286 + $0x6080] sm:$0xff]
        %v3455 = vld [vmem:[%s286 + $0x6088] sm:$0xff]
        %v3456 = vld [vmem:[%s286 + $0x6090] sm:$0xff]
        %v3457 = vld [vmem:[%s286 + $0x6098] sm:$0xff]
        %v3458 = vld [vmem:[%s286 + $0x60a0] sm:$0xff]
        %v3459 = vld [vmem:[%s286 + $0x60a8] sm:$0xff]
        %v3460 = vld [vmem:[%s286 + $0x60b0] sm:$0xff]
        %v3461 = vld [vmem:[%s286 + $0x60b8] sm:$0xff]
        %v3462 = vld [vmem:[%s286 + $0x60c0] sm:$0xff]
        %v3463 = vld [vmem:[%s286 + $0x60c8] sm:$0xff]
        %v3464 = vld [vmem:[%s286 + $0x60d0] sm:$0xff]
        %v3465 = vld [vmem:[%s286 + $0x60d8] sm:$0xff]
        %v3466 = vld [vmem:[%s286 + $0x60e0] sm:$0xff]
        %v3467 = vld [vmem:[%s286 + $0x60e8] sm:$0xff]
        %v3468 = vld [vmem:[%s286 + $0x60f0] sm:$0xff]
        %v3469 = vld [vmem:[%s286 + $0x60f8] sm:$0xff]
        %v3470 = vld [vmem:[%s286 + $0x6100] sm:$0xff]
        %v3471 = vld [vmem:[%s286 + $0x6108] sm:$0xff]
        %v3472 = vld [vmem:[%s286 + $0x6110] sm:$0xff]
        %v3473 = vld [vmem:[%s286 + $0x6118] sm:$0xff]
        %v3474 = vld [vmem:[%s286 + $0x6120] sm:$0xff]
        %v3475 = vld [vmem:[%s286 + $0x6128] sm:$0xff]
        %v3476 = vld [vmem:[%s286 + $0x6130] sm:$0xff]
        %v3477 = vld [vmem:[%s286 + $0x6138] sm:$0xff]
        %v3478 = vld [vmem:[%s286 + $0x6140] sm:$0xff]
        %v3479 = vld [vmem:[%s286 + $0x6148] sm:$0xff]
        %v3480 = vld [vmem:[%s286 + $0x6150] sm:$0xff]
        %v3481 = vld [vmem:[%s286 + $0x6158] sm:$0xff]
        %v3482 = vld [vmem:[%s286 + $0x6160] sm:$0xff]
        %v3483 = vld [vmem:[%s286 + $0x6168] sm:$0xff]
        %v3484 = vld [vmem:[%s286 + $0x6170] sm:$0xff]
        %v3485 = vld [vmem:[%s286 + $0x6178] sm:$0xff]
        %v3486 = vld [vmem:[%s286 + $0x6180] sm:$0xff]
        %v3487 = vld [vmem:[%s286 + $0x6188] sm:$0xff]
        %v3488 = vld [vmem:[%s286 + $0x6190] sm:$0xff]
        %v3489 = vld [vmem:[%s286 + $0x6198] sm:$0xff]
        %v3490 = vld [vmem:[%s286 + $0x61a0] sm:$0xff]
        %v3491 = vld [vmem:[%s286 + $0x61a8] sm:$0xff]
        %v3492 = vld [vmem:[%s286 + $0x61b0] sm:$0xff]
        %v3493 = vld [vmem:[%s286 + $0x61b8] sm:$0xff]
        %v3494 = vld [vmem:[%s286 + $0x61c0] sm:$0xff]
        %v3495 = vld [vmem:[%s286 + $0x61c8] sm:$0xff]
        %v3496 = vld [vmem:[%s286 + $0x61d0] sm:$0xff]
        %v3497 = vld [vmem:[%s286 + $0x61d8] sm:$0xff]
        %v3498 = vld [vmem:[%s286 + $0x61e0] sm:$0xff]
        %v3499 = vld [vmem:[%s286 + $0x61e8] sm:$0xff]
        %v3500 = vld [vmem:[%s286 + $0x61f0] sm:$0xff]
        %v3501 = vld [vmem:[%s286 + $0x61f8] sm:$0xff]
        %v3502 = vld [vmem:[%s286 + $0x6200] sm:$0xff]
        %v3503 = vld [vmem:[%s286 + $0x6208] sm:$0xff]
        %v3504 = vld [vmem:[%s286 + $0x6210] sm:$0xff]
        %v3505 = vld [vmem:[%s286 + $0x6218] sm:$0xff]
        %v3506 = vld [vmem:[%s286 + $0x6220] sm:$0xff]
        %v3507 = vld [vmem:[%s286 + $0x6228] sm:$0xff]
        %v3508 = vld [vmem:[%s286 + $0x6230] sm:$0xff]
        %v3509 = vld [vmem:[%s286 + $0x6238] sm:$0xff]
        %v3510 = vld [vmem:[%s286 + $0x6240] sm:$0xff]
        %v3511 = vld [vmem:[%s286 + $0x6248] sm:$0xff]
        %v3512 = vld [vmem:[%s286 + $0x6250] sm:$0xff]
        %v3513 = vld [vmem:[%s286 + $0x6258] sm:$0xff]
        %v3514 = vld [vmem:[%s286 + $0x6260] sm:$0xff]
        %v3515 = vld [vmem:[%s286 + $0x6268] sm:$0xff]
        %v3516 = vld [vmem:[%s286 + $0x6270] sm:$0xff]
        %v3517 = vld [vmem:[%s286 + $0x6278] sm:$0xff]
        %v3518 = vld [vmem:[%s286 + $0x6280] sm:$0xff]
        %v3519 = vld [vmem:[%s286 + $0x6288] sm:$0xff]
        %v3520 = vld [vmem:[%s286 + $0x6290] sm:$0xff]
        %v3521 = vld [vmem:[%s286 + $0x6298] sm:$0xff]
        %v3522 = vld [vmem:[%s286 + $0x62a0] sm:$0xff]
        %v3523 = vld [vmem:[%s286 + $0x62a8] sm:$0xff]
        %v3524 = vld [vmem:[%s286 + $0x62b0] sm:$0xff]
        %v3525 = vld [vmem:[%s286 + $0x62b8] sm:$0xff]
        %v3526 = vld [vmem:[%s286 + $0x62c0] sm:$0xff]
        %v3527 = vld [vmem:[%s286 + $0x62c8] sm:$0xff]
        %v3528 = vld [vmem:[%s286 + $0x62d0] sm:$0xff]
        %v3529 = vld [vmem:[%s286 + $0x62d8] sm:$0xff]
        %v3530 = vld [vmem:[%s286 + $0x62e0] sm:$0xff]
        %v3531 = vld [vmem:[%s286 + $0x62e8] sm:$0xff]
        %v3532 = vld [vmem:[%s286 + $0x62f0] sm:$0xff]
        %v3533 = vld [vmem:[%s286 + $0x62f8] sm:$0xff]
        %v3534 = vld [vmem:[%s286 + $0x6300] sm:$0xff]
        %v3535 = vld [vmem:[%s286 + $0x6308] sm:$0xff]
        %v3536 = vld [vmem:[%s286 + $0x6310] sm:$0xff]
        %v3537 = vld [vmem:[%s286 + $0x6318] sm:$0xff]
        %v3538 = vld [vmem:[%s286 + $0x6320] sm:$0xff]
        %v3539 = vld [vmem:[%s286 + $0x6328] sm:$0xff]
        %v3540 = vld [vmem:[%s286 + $0x6330] sm:$0xff]
        %v3541 = vld [vmem:[%s286 + $0x6338] sm:$0xff]
        %v3542 = vld [vmem:[%s286 + $0x6340] sm:$0xff]
        %v3543 = vld [vmem:[%s286 + $0x6348] sm:$0xff]
        %v3544 = vld [vmem:[%s286 + $0x6350] sm:$0xff]
        %v3545 = vld [vmem:[%s286 + $0x6358] sm:$0xff]
        %v3546 = vld [vmem:[%s286 + $0x6360] sm:$0xff]
        %v3547 = vld [vmem:[%s286 + $0x6368] sm:$0xff]
        %v3548 = vld [vmem:[%s286 + $0x6370] sm:$0xff]
        %v3549 = vld [vmem:[%s286 + $0x6378] sm:$0xff]
        %v3550 = vld [vmem:[%s286 + $0x6380] sm:$0xff]
        %v3551 = vld [vmem:[%s286 + $0x6388] sm:$0xff]
        %v3552 = vld [vmem:[%s286 + $0x6390] sm:$0xff]
        %v3553 = vld [vmem:[%s286 + $0x6398] sm:$0xff]
        %v3554 = vld [vmem:[%s286 + $0x63a0] sm:$0xff]
        %v3555 = vld [vmem:[%s286 + $0x63a8] sm:$0xff]
        %v3556 = vld [vmem:[%s286 + $0x63b0] sm:$0xff]
        %v3557 = vld [vmem:[%s286 + $0x63b8] sm:$0xff]
        %v3558 = vld [vmem:[%s286 + $0x63c0] sm:$0xff]
        %v3559 = vld [vmem:[%s286 + $0x63c8] sm:$0xff]
        %v3560 = vld [vmem:[%s286 + $0x63d0] sm:$0xff]
        %v3561 = vld [vmem:[%s286 + $0x63d8] sm:$0xff]
        %v3562 = vld [vmem:[%s286 + $0x63e0] sm:$0xff]
        %v3563 = vld [vmem:[%s286 + $0x63e8] sm:$0xff]
        %v3564 = vld [vmem:[%s286 + $0x63f0] sm:$0xff]
        %v3565 = vld [vmem:[%s286 + $0x63f8] sm:$0xff]
        %v3566 = vld [vmem:[%s286 + $0x6400] sm:$0xff]
        %v3567 = vld [vmem:[%s286 + $0x6408] sm:$0xff]
        %v3568 = vld [vmem:[%s286 + $0x6410] sm:$0xff]
        %v3569 = vld [vmem:[%s286 + $0x6418] sm:$0xff]
        %v3570 = vld [vmem:[%s286 + $0x6420] sm:$0xff]
        %v3571 = vld [vmem:[%s286 + $0x6428] sm:$0xff]
        %v3572 = vld [vmem:[%s286 + $0x6430] sm:$0xff]
        %v3573 = vld [vmem:[%s286 + $0x6438] sm:$0xff]
        %v3574 = vld [vmem:[%s286 + $0x6440] sm:$0xff]
        %v3575 = vld [vmem:[%s286 + $0x6448] sm:$0xff]
        %v3576 = vld [vmem:[%s286 + $0x6450] sm:$0xff]
        %v3577 = vld [vmem:[%s286 + $0x6458] sm:$0xff]
        %v3578 = vld [vmem:[%s286 + $0x6460] sm:$0xff]
        %v3579 = vld [vmem:[%s286 + $0x6468] sm:$0xff]
        %v3580 = vld [vmem:[%s286 + $0x6470] sm:$0xff]
        %v3581 = vld [vmem:[%s286 + $0x6478] sm:$0xff]
        %v3582 = vld [vmem:[%s286 + $0x6480] sm:$0xff]
        %v3583 = vld [vmem:[%s286 + $0x6488] sm:$0xff]
        %v3584 = vld [vmem:[%s286 + $0x6490] sm:$0xff]
        %v3585 = vld [vmem:[%s286 + $0x6498] sm:$0xff]
        %v3586 = vld [vmem:[%s286 + $0x64a0] sm:$0xff]
        %v3587 = vld [vmem:[%s286 + $0x64a8] sm:$0xff]
        %v3588 = vld [vmem:[%s286 + $0x64b0] sm:$0xff]
        %v3589 = vld [vmem:[%s286 + $0x64b8] sm:$0xff]
        %v3590 = vld [vmem:[%s286 + $0x64c0] sm:$0xff]
        %v3591 = vld [vmem:[%s286 + $0x64c8] sm:$0xff]
        %v3592 = vld [vmem:[%s286 + $0x64d0] sm:$0xff]
        %v3593 = vld [vmem:[%s286 + $0x64d8] sm:$0xff]
        %v3594 = vld [vmem:[%s286 + $0x64e0] sm:$0xff]
        %v3595 = vld [vmem:[%s286 + $0x64e8] sm:$0xff]
        %v3596 = vld [vmem:[%s286 + $0x64f0] sm:$0xff]
        %v3597 = vld [vmem:[%s286 + $0x64f8] sm:$0xff]
        %v3598 = vld [vmem:[%s286 + $0x6500] sm:$0xff]
        %v3599 = vld [vmem:[%s286 + $0x6508] sm:$0xff]
        %v3600 = vld [vmem:[%s286 + $0x6510] sm:$0xff]
        %v3601 = vld [vmem:[%s286 + $0x6518] sm:$0xff]
        %v3602 = vld [vmem:[%s286 + $0x6520] sm:$0xff]
        %v3603 = vld [vmem:[%s286 + $0x6528] sm:$0xff]
        %v3604 = vld [vmem:[%s286 + $0x6530] sm:$0xff]
        %v3605 = vld [vmem:[%s286 + $0x6538] sm:$0xff]
        %v3606 = vld [vmem:[%s286 + $0x6540] sm:$0xff]
        %v3607 = vld [vmem:[%s286 + $0x6548] sm:$0xff]
        %v3608 = vld [vmem:[%s286 + $0x6550] sm:$0xff]
        %v3609 = vld [vmem:[%s286 + $0x6558] sm:$0xff]
        %v3610 = vld [vmem:[%s286 + $0x6560] sm:$0xff]
        %v3611 = vld [vmem:[%s286 + $0x6568] sm:$0xff]
        %v3612 = vld [vmem:[%s286 + $0x6570] sm:$0xff]
        %v3613 = vld [vmem:[%s286 + $0x6578] sm:$0xff]
        %v3614 = vld [vmem:[%s286 + $0x6580] sm:$0xff]
        %v3615 = vld [vmem:[%s286 + $0x6588] sm:$0xff]
        %v3616 = vld [vmem:[%s286 + $0x6590] sm:$0xff]
        %v3617 = vld [vmem:[%s286 + $0x6598] sm:$0xff]
        %v3618 = vld [vmem:[%s286 + $0x65a0] sm:$0xff]
        %v3619 = vld [vmem:[%s286 + $0x65a8] sm:$0xff]
        %v3620 = vld [vmem:[%s286 + $0x65b0] sm:$0xff]
        %v3621 = vld [vmem:[%s286 + $0x65b8] sm:$0xff]
        %v3622 = vld [vmem:[%s286 + $0x65c0] sm:$0xff]
        %v3623 = vld [vmem:[%s286 + $0x65c8] sm:$0xff]
        %v3624 = vld [vmem:[%s286 + $0x65d0] sm:$0xff]
        %v3625 = vld [vmem:[%s286 + $0x65d8] sm:$0xff]
        %v3626 = vld [vmem:[%s286 + $0x65e0] sm:$0xff]
        %v3627 = vld [vmem:[%s286 + $0x65e8] sm:$0xff]
        %v3628 = vld [vmem:[%s286 + $0x65f0] sm:$0xff]
        %v3629 = vld [vmem:[%s286 + $0x65f8] sm:$0xff]
        %v3630 = vld [vmem:[%s286 + $0x6600] sm:$0xff]
        %v3631 = vld [vmem:[%s286 + $0x6608] sm:$0xff]
        %v3632 = vld [vmem:[%s286 + $0x6610] sm:$0xff]
        %v3633 = vld [vmem:[%s286 + $0x6618] sm:$0xff]
        %v3634 = vld [vmem:[%s286 + $0x6620] sm:$0xff]
        %v3635 = vld [vmem:[%s286 + $0x6628] sm:$0xff]
        %v3636 = vld [vmem:[%s286 + $0x6630] sm:$0xff]
        %v3637 = vld [vmem:[%s286 + $0x6638] sm:$0xff]
        %v3638 = vld [vmem:[%s286 + $0x6640] sm:$0xff]
        %v3639 = vld [vmem:[%s286 + $0x6648] sm:$0xff]
        %v3640 = vld [vmem:[%s286 + $0x6650] sm:$0xff]
        %v3641 = vld [vmem:[%s286 + $0x6658] sm:$0xff]
        %v3642 = vld [vmem:[%s286 + $0x6660] sm:$0xff]
        %v3643 = vld [vmem:[%s286 + $0x6668] sm:$0xff]
        %v3644 = vld [vmem:[%s286 + $0x6670] sm:$0xff]
        %v3645 = vld [vmem:[%s286 + $0x6678] sm:$0xff]
        %v3646 = vld [vmem:[%s286 + $0x6680] sm:$0xff]
        %v3647 = vld [vmem:[%s286 + $0x6688] sm:$0xff]
        %v3648 = vld [vmem:[%s286 + $0x6690] sm:$0xff]
        %v3649 = vld [vmem:[%s286 + $0x6698] sm:$0xff]
        %v3650 = vld [vmem:[%s286 + $0x66a0] sm:$0xff]
        %v3651 = vld [vmem:[%s286 + $0x66a8] sm:$0xff]
        %v3652 = vld [vmem:[%s286 + $0x66b0] sm:$0xff]
        %v3653 = vld [vmem:[%s286 + $0x66b8] sm:$0xff]
        %v3654 = vld [vmem:[%s286 + $0x66c0] sm:$0xff]
        %v3655 = vld [vmem:[%s286 + $0x66c8] sm:$0xff]
        %v3656 = vld [vmem:[%s286 + $0x66d0] sm:$0xff]
        %v3657 = vld [vmem:[%s286 + $0x66d8] sm:$0xff]
        %v3658 = vld [vmem:[%s286 + $0x66e0] sm:$0xff]
        %v3659 = vld [vmem:[%s286 + $0x66e8] sm:$0xff]
        %v3660 = vld [vmem:[%s286 + $0x66f0] sm:$0xff]
        %v3661 = vld [vmem:[%s286 + $0x66f8] sm:$0xff]
        %v3662 = vld [vmem:[%s286 + $0x6700] sm:$0xff]
        %v3663 = vld [vmem:[%s286 + $0x6708] sm:$0xff]
        %v3664 = vld [vmem:[%s286 + $0x6710] sm:$0xff]
        %v3665 = vld [vmem:[%s286 + $0x6718] sm:$0xff]
        %v3666 = vld [vmem:[%s286 + $0x6720] sm:$0xff]
        %v3667 = vld [vmem:[%s286 + $0x6728] sm:$0xff]
        %v3668 = vld [vmem:[%s286 + $0x6730] sm:$0xff]
        %v3669 = vld [vmem:[%s286 + $0x6738] sm:$0xff]
        %v3670 = vld [vmem:[%s286 + $0x6740] sm:$0xff]
        %v3671 = vld [vmem:[%s286 + $0x6748] sm:$0xff]
        %v3672 = vld [vmem:[%s286 + $0x6750] sm:$0xff]
        %v3673 = vld [vmem:[%s286 + $0x6758] sm:$0xff]
        %v3674 = vld [vmem:[%s286 + $0x6760] sm:$0xff]
        %v3675 = vld [vmem:[%s286 + $0x6768] sm:$0xff]
        %v3676 = vld [vmem:[%s286 + $0x6770] sm:$0xff]
        %v3677 = vld [vmem:[%s286 + $0x6778] sm:$0xff]
        %v3678 = vld [vmem:[%s286 + $0x6780] sm:$0xff]
        %v3679 = vld [vmem:[%s286 + $0x6788] sm:$0xff]
        %v3680 = vld [vmem:[%s286 + $0x6790] sm:$0xff]
        %v3681 = vld [vmem:[%s286 + $0x6798] sm:$0xff]
        %v3682 = vld [vmem:[%s286 + $0x67a0] sm:$0xff]
        %v3683 = vld [vmem:[%s286 + $0x67a8] sm:$0xff]
        %v3684 = vld [vmem:[%s286 + $0x67b0] sm:$0xff]
        %v3685 = vld [vmem:[%s286 + $0x67b8] sm:$0xff]
        %v3686 = vld [vmem:[%s286 + $0x67c0] sm:$0xff]
        %v3687 = vld [vmem:[%s286 + $0x67c8] sm:$0xff]
        %v3688 = vld [vmem:[%s286 + $0x67d0] sm:$0xff]
        %v3689 = vld [vmem:[%s286 + $0x67d8] sm:$0xff]
        %v3690 = vld [vmem:[%s286 + $0x67e0] sm:$0xff]
        %v3691 = vld [vmem:[%s286 + $0x67e8] sm:$0xff]
        %v3692 = vld [vmem:[%s286 + $0x67f0] sm:$0xff]
        %v3693 = vld [vmem:[%s286 + $0x67f8] sm:$0xff]
        %v3694 = vld [vmem:[%s286 + $0x6800] sm:$0xff]
        %v3695 = vld [vmem:[%s286 + $0x6808] sm:$0xff]
        %v3696 = vld [vmem:[%s286 + $0x6810] sm:$0xff]
        %v3697 = vld [vmem:[%s286 + $0x6818] sm:$0xff]
        %v3698 = vld [vmem:[%s286 + $0x6820] sm:$0xff]
        %v3699 = vld [vmem:[%s286 + $0x6828] sm:$0xff]
        %v3700 = vld [vmem:[%s286 + $0x6830] sm:$0xff]
        %v3701 = vld [vmem:[%s286 + $0x6838] sm:$0xff]
        %v3702 = vld [vmem:[%s286 + $0x6840] sm:$0xff]
        %v3703 = vld [vmem:[%s286 + $0x6848] sm:$0xff]
        %v3704 = vld [vmem:[%s286 + $0x6850] sm:$0xff]
        %v3705 = vld [vmem:[%s286 + $0x6858] sm:$0xff]
        %v3706 = vld [vmem:[%s286 + $0x6860] sm:$0xff]
        %v3707 = vld [vmem:[%s286 + $0x6868] sm:$0xff]
        %v3708 = vld [vmem:[%s286 + $0x6870] sm:$0xff]
        %v3709 = vld [vmem:[%s286 + $0x6878] sm:$0xff]
        %v3710 = vld [vmem:[%s286 + $0x6880] sm:$0xff]
        %v3711 = vld [vmem:[%s286 + $0x6888] sm:$0xff]
        %v3712 = vld [vmem:[%s286 + $0x6890] sm:$0xff]
        %v3713 = vld [vmem:[%s286 + $0x6898] sm:$0xff]
        %v3714 = vld [vmem:[%s286 + $0x68a0] sm:$0xff]
        %v3715 = vld [vmem:[%s286 + $0x68a8] sm:$0xff]
        %v3716 = vld [vmem:[%s286 + $0x68b0] sm:$0xff]
        %v3717 = vld [vmem:[%s286 + $0x68b8] sm:$0xff]
        %v3718 = vld [vmem:[%s286 + $0x68c0] sm:$0xff]
        %v3719 = vld [vmem:[%s286 + $0x68c8] sm:$0xff]
        %v3720 = vld [vmem:[%s286 + $0x68d0] sm:$0xff]
        %v3721 = vld [vmem:[%s286 + $0x68d8] sm:$0xff]
        %v3722 = vld [vmem:[%s286 + $0x68e0] sm:$0xff]
        %v3723 = vld [vmem:[%s286 + $0x68e8] sm:$0xff]
        %v3724 = vld [vmem:[%s286 + $0x68f0] sm:$0xff]
        %v3725 = vld [vmem:[%s286 + $0x68f8] sm:$0xff]
        %v3726 = vld [vmem:[%s286 + $0x6900] sm:$0xff]
        %v3727 = vld [vmem:[%s286 + $0x6908] sm:$0xff]
        %v3728 = vld [vmem:[%s286 + $0x6910] sm:$0xff]
        %v3729 = vld [vmem:[%s286 + $0x6918] sm:$0xff]
        %v3730 = vld [vmem:[%s286 + $0x6920] sm:$0xff]
        %v3731 = vld [vmem:[%s286 + $0x6928] sm:$0xff]
        %v3732 = vld [vmem:[%s286 + $0x6930] sm:$0xff]
        %v3733 = vld [vmem:[%s286 + $0x6938] sm:$0xff]
        %v3734 = vld [vmem:[%s286 + $0x6940] sm:$0xff]
        %v3735 = vld [vmem:[%s286 + $0x6948] sm:$0xff]
        %v3736 = vld [vmem:[%s286 + $0x6950] sm:$0xff]
        %v3737 = vld [vmem:[%s286 + $0x6958] sm:$0xff]
        %v3738 = vld [vmem:[%s286 + $0x6960] sm:$0xff]
        %v3739 = vld [vmem:[%s286 + $0x6968] sm:$0xff]
        %v3740 = vld [vmem:[%s286 + $0x6970] sm:$0xff]
        %v3741 = vld [vmem:[%s286 + $0x6978] sm:$0xff]
        %v3742 = vld [vmem:[%s286 + $0x6980] sm:$0xff]
        %v3743 = vld [vmem:[%s286 + $0x6988] sm:$0xff]
        %v3744 = vld [vmem:[%s286 + $0x6990] sm:$0xff]
        %v3745 = vld [vmem:[%s286 + $0x6998] sm:$0xff]
        %v3746 = vld [vmem:[%s286 + $0x69a0] sm:$0xff]
        %v3747 = vld [vmem:[%s286 + $0x69a8] sm:$0xff]
        %v3748 = vld [vmem:[%s286 + $0x69b0] sm:$0xff]
        %v3749 = vld [vmem:[%s286 + $0x69b8] sm:$0xff]
        %v3750 = vld [vmem:[%s286 + $0x69c0] sm:$0xff]
        %v3751 = vld [vmem:[%s286 + $0x69c8] sm:$0xff]
        %v3752 = vld [vmem:[%s286 + $0x69d0] sm:$0xff]
        %v3753 = vld [vmem:[%s286 + $0x69d8] sm:$0xff]
        %v3754 = vld [vmem:[%s286 + $0x69e0] sm:$0xff]
        %v3755 = vld [vmem:[%s286 + $0x69e8] sm:$0xff]
        %v3756 = vld [vmem:[%s286 + $0x69f0] sm:$0xff]
        %v3757 = vld [vmem:[%s286 + $0x69f8] sm:$0xff]
        %v3758 = vld [vmem:[%s286 + $0x6a00] sm:$0xff]
        %v3759 = vld [vmem:[%s286 + $0x6a08] sm:$0xff]
        %v3760 = vld [vmem:[%s286 + $0x6a10] sm:$0xff]
        %v3761 = vld [vmem:[%s286 + $0x6a18] sm:$0xff]
        %v3762 = vld [vmem:[%s286 + $0x6a20] sm:$0xff]
        %v3763 = vld [vmem:[%s286 + $0x6a28] sm:$0xff]
        %v3764 = vld [vmem:[%s286 + $0x6a30] sm:$0xff]
        %v3765 = vld [vmem:[%s286 + $0x6a38] sm:$0xff]
        %v3766 = vld [vmem:[%s286 + $0x6a40] sm:$0xff]
        %v3767 = vld [vmem:[%s286 + $0x6a48] sm:$0xff]
        %v3768 = vld [vmem:[%s286 + $0x6a50] sm:$0xff]
        %v3769 = vld [vmem:[%s286 + $0x6a58] sm:$0xff]
        %v3770 = vld [vmem:[%s286 + $0x6a60] sm:$0xff]
        %v3771 = vld [vmem:[%s286 + $0x6a68] sm:$0xff]
        %v3772 = vld [vmem:[%s286 + $0x6a70] sm:$0xff]
        %v3773 = vld [vmem:[%s286 + $0x6a78] sm:$0xff]
        %v3774 = vld [vmem:[%s286 + $0x6a80] sm:$0xff]
        %v3775 = vld [vmem:[%s286 + $0x6a88] sm:$0xff]
        %v3776 = vld [vmem:[%s286 + $0x6a90] sm:$0xff]
        %v3777 = vld [vmem:[%s286 + $0x6a98] sm:$0xff]
        %v3778 = vld [vmem:[%s286 + $0x6aa0] sm:$0xff]
        %v3779 = vld [vmem:[%s286 + $0x6aa8] sm:$0xff]
        %v3780 = vld [vmem:[%s286 + $0x6ab0] sm:$0xff]
        %v3781 = vld [vmem:[%s286 + $0x6ab8] sm:$0xff]
        %v3782 = vld [vmem:[%s286 + $0x6ac0] sm:$0xff]
        %v3783 = vld [vmem:[%s286 + $0x6ac8] sm:$0xff]
        %v3784 = vld [vmem:[%s286 + $0x6ad0] sm:$0xff]
        %v3785 = vld [vmem:[%s286 + $0x6ad8] sm:$0xff]
        %v3786 = vld [vmem:[%s286 + $0x6ae0] sm:$0xff]
        %v3787 = vld [vmem:[%s286 + $0x6ae8] sm:$0xff]
        %v3788 = vld [vmem:[%s286 + $0x6af0] sm:$0xff]
        %v3789 = vld [vmem:[%s286 + $0x6af8] sm:$0xff]
        %v3790 = vld [vmem:[%s286 + $0x6b00] sm:$0xff]
        %v3791 = vld [vmem:[%s286 + $0x6b08] sm:$0xff]
        %v3792 = vld [vmem:[%s286 + $0x6b10] sm:$0xff]
        %v3793 = vld [vmem:[%s286 + $0x6b18] sm:$0xff]
        %v3794 = vld [vmem:[%s286 + $0x6b20] sm:$0xff]
        %v3795 = vld [vmem:[%s286 + $0x6b28] sm:$0xff]
        %v3796 = vld [vmem:[%s286 + $0x6b30] sm:$0xff]
        %v3797 = vld [vmem:[%s286 + $0x6b38] sm:$0xff]
        %v3798 = vld [vmem:[%s286 + $0x6b40] sm:$0xff]
        %v3799 = vld [vmem:[%s286 + $0x6b48] sm:$0xff]
        %v3800 = vld [vmem:[%s286 + $0x6b50] sm:$0xff]
        %v3801 = vld [vmem:[%s286 + $0x6b58] sm:$0xff]
        %v3802 = vld [vmem:[%s286 + $0x6b60] sm:$0xff]
        %v3803 = vld [vmem:[%s286 + $0x6b68] sm:$0xff]
        %v3804 = vld [vmem:[%s286 + $0x6b70] sm:$0xff]
        %v3805 = vld [vmem:[%s286 + $0x6b78] sm:$0xff]
        %v3806 = vld [vmem:[%s286 + $0x6b80] sm:$0xff]
        %v3807 = vld [vmem:[%s286 + $0x6b88] sm:$0xff]
        %v3808 = vld [vmem:[%s286 + $0x6b90] sm:$0xff]
        %v3809 = vld [vmem:[%s286 + $0x6b98] sm:$0xff]
        %v3810 = vld [vmem:[%s286 + $0x6ba0] sm:$0xff]
        %v3811 = vld [vmem:[%s286 + $0x6ba8] sm:$0xff]
        %v3812 = vld [vmem:[%s286 + $0x6bb0] sm:$0xff]
        %v3813 = vld [vmem:[%s286 + $0x6bb8] sm:$0xff]
        %v3814 = vld [vmem:[%s286 + $0x6bc0] sm:$0xff]
        %v3815 = vld [vmem:[%s286 + $0x6bc8] sm:$0xff]
        %v3816 = vld [vmem:[%s286 + $0x6bd0] sm:$0xff]
        %v3817 = vld [vmem:[%s286 + $0x6bd8] sm:$0xff]
        %v3818 = vld [vmem:[%s286 + $0x6be0] sm:$0xff]
        %v3819 = vld [vmem:[%s286 + $0x6be8] sm:$0xff]
        %v3820 = vld [vmem:[%s286 + $0x6bf0] sm:$0xff]
        %v3821 = vld [vmem:[%s286 + $0x6bf8] sm:$0xff]
        %v3822 = vld [vmem:[%s286 + $0x6c00] sm:$0xff]
        %v3823 = vld [vmem:[%s286 + $0x6c08] sm:$0xff]
        %v3824 = vld [vmem:[%s286 + $0x6c10] sm:$0xff]
        %v3825 = vld [vmem:[%s286 + $0x6c18] sm:$0xff]
        %v3826 = vld [vmem:[%s286 + $0x6c20] sm:$0xff]
        %v3827 = vld [vmem:[%s286 + $0x6c28] sm:$0xff]
        %v3828 = vld [vmem:[%s286 + $0x6c30] sm:$0xff]
        %v3829 = vld [vmem:[%s286 + $0x6c38] sm:$0xff]
        %v3830 = vld [vmem:[%s286 + $0x6c40] sm:$0xff]
        %v3831 = vld [vmem:[%s286 + $0x6c48] sm:$0xff]
        %v3832 = vld [vmem:[%s286 + $0x6c50] sm:$0xff]
        %v3833 = vld [vmem:[%s286 + $0x6c58] sm:$0xff]
        %v3834 = vld [vmem:[%s286 + $0x6c60] sm:$0xff]
        %v3835 = vld [vmem:[%s286 + $0x6c68] sm:$0xff]
        %v3836 = vld [vmem:[%s286 + $0x6c70] sm:$0xff]
        %v3837 = vld [vmem:[%s286 + $0x6c78] sm:$0xff]
        %v3838 = vld [vmem:[%s286 + $0x6c80] sm:$0xff]
        %v3839 = vld [vmem:[%s286 + $0x6c88] sm:$0xff]
        %v3840 = vld [vmem:[%s286 + $0x6c90] sm:$0xff]
        %v3841 = vld [vmem:[%s286 + $0x6c98] sm:$0xff]
        %v3842 = vld [vmem:[%s286 + $0x6ca0] sm:$0xff]
        %v3843 = vld [vmem:[%s286 + $0x6ca8] sm:$0xff]
        %v3844 = vld [vmem:[%s286 + $0x6cb0] sm:$0xff]
        %v3845 = vld [vmem:[%s286 + $0x6cb8] sm:$0xff]
        %v3846 = vld [vmem:[%s286 + $0x6cc0] sm:$0xff]
        %v3847 = vld [vmem:[%s286 + $0x6cc8] sm:$0xff]
        %v3848 = vld [vmem:[%s286 + $0x6cd0] sm:$0xff]
        %v3849 = vld [vmem:[%s286 + $0x6cd8] sm:$0xff]
        %v3850 = vld [vmem:[%s286 + $0x6ce0] sm:$0xff]
        %v3851 = vld [vmem:[%s286 + $0x6ce8] sm:$0xff]
        %v3852 = vld [vmem:[%s286 + $0x6cf0] sm:$0xff]
        %v3853 = vld [vmem:[%s286 + $0x6cf8] sm:$0xff]
        %v3854 = vld [vmem:[%s286 + $0x6d00] sm:$0xff]
        %v3855 = vld [vmem:[%s286 + $0x6d08] sm:$0xff]
        %v3856 = vld [vmem:[%s286 + $0x6d10] sm:$0xff]
        %v3857 = vld [vmem:[%s286 + $0x6d18] sm:$0xff]
        %v3858 = vld [vmem:[%s286 + $0x6d20] sm:$0xff]
        %v3859 = vld [vmem:[%s286 + $0x6d28] sm:$0xff]
        %v3860 = vld [vmem:[%s286 + $0x6d30] sm:$0xff]
        %v3861 = vld [vmem:[%s286 + $0x6d38] sm:$0xff]
        %v3862 = vld [vmem:[%s286 + $0x6d40] sm:$0xff]
        %v3863 = vld [vmem:[%s286 + $0x6d48] sm:$0xff]
        %v3864 = vld [vmem:[%s286 + $0x6d50] sm:$0xff]
        %v3865 = vld [vmem:[%s286 + $0x6d58] sm:$0xff]
        %v3866 = vld [vmem:[%s286 + $0x6d60] sm:$0xff]
        %v3867 = vld [vmem:[%s286 + $0x6d68] sm:$0xff]
        %v3868 = vld [vmem:[%s286 + $0x6d70] sm:$0xff]
        %v3869 = vld [vmem:[%s286 + $0x6d78] sm:$0xff]
        %v3870 = vld [vmem:[%s286 + $0x6d80] sm:$0xff]
        %v3871 = vld [vmem:[%s286 + $0x6d88] sm:$0xff]
        %v3872 = vld [vmem:[%s286 + $0x6d90] sm:$0xff]
        %v3873 = vld [vmem:[%s286 + $0x6d98] sm:$0xff]
        %v3874 = vld [vmem:[%s286 + $0x6da0] sm:$0xff]
        %v3875 = vld [vmem:[%s286 + $0x6da8] sm:$0xff]
        %v3876 = vld [vmem:[%s286 + $0x6db0] sm:$0xff]
        %v3877 = vld [vmem:[%s286 + $0x6db8] sm:$0xff]
        %v3878 = vld [vmem:[%s286 + $0x6dc0] sm:$0xff]
        %v3879 = vld [vmem:[%s286 + $0x6dc8] sm:$0xff]
        %v3880 = vld [vmem:[%s286 + $0x6dd0] sm:$0xff]
        %v3881 = vld [vmem:[%s286 + $0x6dd8] sm:$0xff]
        %v3882 = vld [vmem:[%s286 + $0x6de0] sm:$0xff]
        %v3883 = vld [vmem:[%s286 + $0x6de8] sm:$0xff]
        %v3884 = vld [vmem:[%s286 + $0x6df0] sm:$0xff]
        %v3885 = vld [vmem:[%s286 + $0x6df8] sm:$0xff]
        %v3886 = vld [vmem:[%s286 + $0x6e00] sm:$0xff]
        %v3887 = vld [vmem:[%s286 + $0x6e08] sm:$0xff]
        %v3888 = vld [vmem:[%s286 + $0x6e10] sm:$0xff]
        %v3889 = vld [vmem:[%s286 + $0x6e18] sm:$0xff]
        %v3890 = vld [vmem:[%s286 + $0x6e20] sm:$0xff]
        %v3891 = vld [vmem:[%s286 + $0x6e28] sm:$0xff]
        %v3892 = vld [vmem:[%s286 + $0x6e30] sm:$0xff]
        %v3893 = vld [vmem:[%s286 + $0x6e38] sm:$0xff]
        %v3894 = vld [vmem:[%s286 + $0x6e40] sm:$0xff]
        %v3895 = vld [vmem:[%s286 + $0x6e48] sm:$0xff]
        %v3896 = vld [vmem:[%s286 + $0x6e50] sm:$0xff]
        %v3897 = vld [vmem:[%s286 + $0x6e58] sm:$0xff]
        %v3898 = vld [vmem:[%s286 + $0x6e60] sm:$0xff]
        %v3899 = vld [vmem:[%s286 + $0x6e68] sm:$0xff]
        %v3900 = vld [vmem:[%s286 + $0x6e70] sm:$0xff]
        %v3901 = vld [vmem:[%s286 + $0x6e78] sm:$0xff]
        %v3902 = vld [vmem:[%s286 + $0x6e80] sm:$0xff]
        %v3903 = vld [vmem:[%s286 + $0x6e88] sm:$0xff]
        %v3904 = vld [vmem:[%s286 + $0x6e90] sm:$0xff]
        %v3905 = vld [vmem:[%s286 + $0x6e98] sm:$0xff]
        %v3906 = vld [vmem:[%s286 + $0x6ea0] sm:$0xff]
        %v3907 = vld [vmem:[%s286 + $0x6ea8] sm:$0xff]
        %v3908 = vld [vmem:[%s286 + $0x6eb0] sm:$0xff]
        %v3909 = vld [vmem:[%s286 + $0x6eb8] sm:$0xff]
        %v3910 = vld [vmem:[%s286 + $0x6ec0] sm:$0xff]
        %v3911 = vld [vmem:[%s286 + $0x6ec8] sm:$0xff]
        %v3912 = vld [vmem:[%s286 + $0x6ed0] sm:$0xff]
        %v3913 = vld [vmem:[%s286 + $0x6ed8] sm:$0xff]
        %v3914 = vld [vmem:[%s286 + $0x6ee0] sm:$0xff]
        %v3915 = vld [vmem:[%s286 + $0x6ee8] sm:$0xff]
        %v3916 = vld [vmem:[%s286 + $0x6ef0] sm:$0xff]
        %v3917 = vld [vmem:[%s286 + $0x6ef8] sm:$0xff]
        %v3918 = vld [vmem:[%s286 + $0x6f00] sm:$0xff]
        %v3919 = vld [vmem:[%s286 + $0x6f08] sm:$0xff]
        %v3920 = vld [vmem:[%s286 + $0x6f10] sm:$0xff]
        %v3921 = vld [vmem:[%s286 + $0x6f18] sm:$0xff]
        %v3922 = vld [vmem:[%s286 + $0x6f20] sm:$0xff]
        %v3923 = vld [vmem:[%s286 + $0x6f28] sm:$0xff]
        %v3924 = vld [vmem:[%s286 + $0x6f30] sm:$0xff]
        %v3925 = vld [vmem:[%s286 + $0x6f38] sm:$0xff]
        %v3926 = vld [vmem:[%s286 + $0x6f40] sm:$0xff]
        %v3927 = vld [vmem:[%s286 + $0x6f48] sm:$0xff]
        %v3928 = vld [vmem:[%s286 + $0x6f50] sm:$0xff]
        %v3929 = vld [vmem:[%s286 + $0x6f58] sm:$0xff]
        %v3930 = vld [vmem:[%s286 + $0x6f60] sm:$0xff]
        %v3931 = vld [vmem:[%s286 + $0x6f68] sm:$0xff]
        %v3932 = vld [vmem:[%s286 + $0x6f70] sm:$0xff]
        %v3933 = vld [vmem:[%s286 + $0x6f78] sm:$0xff]
        %v3934 = vld [vmem:[%s286 + $0x6f80] sm:$0xff]
        %v3935 = vld [vmem:[%s286 + $0x6f88] sm:$0xff]
        %v3936 = vld [vmem:[%s286 + $0x6f90] sm:$0xff]
        %v3937 = vld [vmem:[%s286 + $0x6f98] sm:$0xff]
        %v3938 = vld [vmem:[%s286 + $0x6fa0] sm:$0xff]
        %v3939 = vld [vmem:[%s286 + $0x6fa8] sm:$0xff]
        %v3940 = vld [vmem:[%s286 + $0x6fb0] sm:$0xff]
        %v3941 = vld [vmem:[%s286 + $0x6fb8] sm:$0xff]
        %v3942 = vld [vmem:[%s286 + $0x6fc0] sm:$0xff]
        %v3943 = vld [vmem:[%s286 + $0x6fc8] sm:$0xff]
        %v3944 = vld [vmem:[%s286 + $0x6fd0] sm:$0xff]
        %v3945 = vld [vmem:[%s286 + $0x6fd8] sm:$0xff]
        %v3946 = vld [vmem:[%s286 + $0x6fe0] sm:$0xff]
        %v3947 = vld [vmem:[%s286 + $0x6fe8] sm:$0xff]
        %v3948 = vld [vmem:[%s286 + $0x6ff0] sm:$0xff]
        %v3949 = vld [vmem:[%s286 + $0x6ff8] sm:$0xff]
        %v3950 = vld [vmem:[%s286 + $0x7000] sm:$0xff]
        %v3951 = vld [vmem:[%s286 + $0x7008] sm:$0xff]
        %v3952 = vld [vmem:[%s286 + $0x7010] sm:$0xff]
        %v3953 = vld [vmem:[%s286 + $0x7018] sm:$0xff]
        %v3954 = vld [vmem:[%s286 + $0x7020] sm:$0xff]
        %v3955 = vld [vmem:[%s286 + $0x7028] sm:$0xff]
        %v3956 = vld [vmem:[%s286 + $0x7030] sm:$0xff]
        %v3957 = vld [vmem:[%s286 + $0x7038] sm:$0xff]
        %v3958 = vld [vmem:[%s286 + $0x7040] sm:$0xff]
        %v3959 = vld [vmem:[%s286 + $0x7048] sm:$0xff]
        %v3960 = vld [vmem:[%s286 + $0x7050] sm:$0xff]
        %v3961 = vld [vmem:[%s286 + $0x7058] sm:$0xff]
        %v3962 = vld [vmem:[%s286 + $0x7060] sm:$0xff]
        %v3963 = vld [vmem:[%s286 + $0x7068] sm:$0xff]
        %v3964 = vld [vmem:[%s286 + $0x7070] sm:$0xff]
        %v3965 = vld [vmem:[%s286 + $0x7078] sm:$0xff]
        %v3966 = vld [vmem:[%s286 + $0x7080] sm:$0xff]
        %v3967 = vld [vmem:[%s286 + $0x7088] sm:$0xff]
        %v3968 = vld [vmem:[%s286 + $0x7090] sm:$0xff]
        %v3969 = vld [vmem:[%s286 + $0x7098] sm:$0xff]
        %v3970 = vld [vmem:[%s286 + $0x70a0] sm:$0xff]
        %v3971 = vld [vmem:[%s286 + $0x70a8] sm:$0xff]
        %v3972 = vld [vmem:[%s286 + $0x70b0] sm:$0xff]
        %v3973 = vld [vmem:[%s286 + $0x70b8] sm:$0xff]
        %v3974 = vld [vmem:[%s286 + $0x70c0] sm:$0xff]
        %v3975 = vld [vmem:[%s286 + $0x70c8] sm:$0xff]
        %v3976 = vld [vmem:[%s286 + $0x70d0] sm:$0xff]
        %v3977 = vld [vmem:[%s286 + $0x70d8] sm:$0xff]
        %v3978 = vld [vmem:[%s286 + $0x70e0] sm:$0xff]
        %v3979 = vld [vmem:[%s286 + $0x70e8] sm:$0xff]
        %v3980 = vld [vmem:[%s286 + $0x70f0] sm:$0xff]
        %v3981 = vld [vmem:[%s286 + $0x70f8] sm:$0xff]
        %v3982 = vld [vmem:[%s286 + $0x7100] sm:$0xff]
        %v3983 = vld [vmem:[%s286 + $0x7108] sm:$0xff]
        %v3984 = vld [vmem:[%s286 + $0x7110] sm:$0xff]
        %v3985 = vld [vmem:[%s286 + $0x7118] sm:$0xff]
        %v3986 = vld [vmem:[%s286 + $0x7120] sm:$0xff]
        %v3987 = vld [vmem:[%s286 + $0x7128] sm:$0xff]
        %v3988 = vld [vmem:[%s286 + $0x7130] sm:$0xff]
        %v3989 = vld [vmem:[%s286 + $0x7138] sm:$0xff]
        %v3990 = vld [vmem:[%s286 + $0x7140] sm:$0xff]
        %v3991 = vld [vmem:[%s286 + $0x7148] sm:$0xff]
        %v3992 = vld [vmem:[%s286 + $0x7150] sm:$0xff]
        %v3993 = vld [vmem:[%s286 + $0x7158] sm:$0xff]
        %v3994 = vld [vmem:[%s286 + $0x7160] sm:$0xff]
        %v3995 = vld [vmem:[%s286 + $0x7168] sm:$0xff]
        %v3996 = vld [vmem:[%s286 + $0x7170] sm:$0xff]
        %v3997 = vld [vmem:[%s286 + $0x7178] sm:$0xff]
        %v3998 = vld [vmem:[%s286 + $0x7180] sm:$0xff]
        %v3999 = vld [vmem:[%s286 + $0x7188] sm:$0xff]
        %v4000 = vld [vmem:[%s286 + $0x7190] sm:$0xff]
        %v4001 = vld [vmem:[%s286 + $0x7198] sm:$0xff]
        %v4002 = vld [vmem:[%s286 + $0x71a0] sm:$0xff]
        %v4003 = vld [vmem:[%s286 + $0x71a8] sm:$0xff]
        %v4004 = vld [vmem:[%s286 + $0x71b0] sm:$0xff]
        %v4005 = vld [vmem:[%s286 + $0x71b8] sm:$0xff]
        %v4006 = vld [vmem:[%s286 + $0x71c0] sm:$0xff]
        %v4007 = vld [vmem:[%s286 + $0x71c8] sm:$0xff]
        %v4008 = vld [vmem:[%s286 + $0x71d0] sm:$0xff]
        %v4009 = vld [vmem:[%s286 + $0x71d8] sm:$0xff]
        %v4010 = vld [vmem:[%s286 + $0x71e0] sm:$0xff]
        %v4011 = vld [vmem:[%s286 + $0x71e8] sm:$0xff]
        %v4012 = vld [vmem:[%s286 + $0x71f0] sm:$0xff]
        %v4013 = vld [vmem:[%s286 + $0x71f8] sm:$0xff]
        %v4014 = vld [vmem:[%s286 + $0x7200] sm:$0xff]
        %v4015 = vld [vmem:[%s286 + $0x7208] sm:$0xff]
        %v4016 = vld [vmem:[%s286 + $0x7210] sm:$0xff]
        %v4017 = vld [vmem:[%s286 + $0x7218] sm:$0xff]
        %v4018 = vld [vmem:[%s286 + $0x7220] sm:$0xff]
        %v4019 = vld [vmem:[%s286 + $0x7228] sm:$0xff]
        %v4020 = vld [vmem:[%s286 + $0x7230] sm:$0xff]
        %v4021 = vld [vmem:[%s286 + $0x7238] sm:$0xff]
        %v4022 = vld [vmem:[%s286 + $0x7240] sm:$0xff]
        %v4023 = vld [vmem:[%s286 + $0x7248] sm:$0xff]
        %v4024 = vld [vmem:[%s286 + $0x7250] sm:$0xff]
        %v4025 = vld [vmem:[%s286 + $0x7258] sm:$0xff]
        %v4026 = vld [vmem:[%s286 + $0x7260] sm:$0xff]
        %v4027 = vld [vmem:[%s286 + $0x7268] sm:$0xff]
        %v4028 = vld [vmem:[%s286 + $0x7270] sm:$0xff]
        %v4029 = vld [vmem:[%s286 + $0x7278] sm:$0xff]
        %v4030 = vld [vmem:[%s286 + $0x7280] sm:$0xff]
        %v4031 = vld [vmem:[%s286 + $0x7288] sm:$0xff]
        %v4032 = vld [vmem:[%s286 + $0x7290] sm:$0xff]
        %v4033 = vld [vmem:[%s286 + $0x7298] sm:$0xff]
        %v4034 = vld [vmem:[%s286 + $0x72a0] sm:$0xff]
        %v4035 = vld [vmem:[%s286 + $0x72a8] sm:$0xff]
        %v4036 = vld [vmem:[%s286 + $0x72b0] sm:$0xff]
        %v4037 = vld [vmem:[%s286 + $0x72b8] sm:$0xff]
        %v4038 = vld [vmem:[%s286 + $0x72c0] sm:$0xff]
        %v4039 = vld [vmem:[%s286 + $0x72c8] sm:$0xff]
        %v4040 = vld [vmem:[%s286 + $0x72d0] sm:$0xff]
        %v4041 = vld [vmem:[%s286 + $0x72d8] sm:$0xff]
        %v4042 = vld [vmem:[%s286 + $0x72e0] sm:$0xff]
        %v4043 = vld [vmem:[%s286 + $0x72e8] sm:$0xff]
        %v4044 = vld [vmem:[%s286 + $0x72f0] sm:$0xff]
        %v4045 = vld [vmem:[%s286 + $0x72f8] sm:$0xff]
        %v4046 = vld [vmem:[%s286 + $0x7300] sm:$0xff]
        %v4047 = vld [vmem:[%s286 + $0x7308] sm:$0xff]
        %v4048 = vld [vmem:[%s286 + $0x7310] sm:$0xff]
        %v4049 = vld [vmem:[%s286 + $0x7318] sm:$0xff]
        %v4050 = vld [vmem:[%s286 + $0x7320] sm:$0xff]
        %v4051 = vld [vmem:[%s286 + $0x7328] sm:$0xff]
        %v4052 = vld [vmem:[%s286 + $0x7330] sm:$0xff]
        %v4053 = vld [vmem:[%s286 + $0x7338] sm:$0xff]
        %v4054 = vld [vmem:[%s286 + $0x7340] sm:$0xff]
        %v4055 = vld [vmem:[%s286 + $0x7348] sm:$0xff]
        %v4056 = vld [vmem:[%s286 + $0x7350] sm:$0xff]
        %v4057 = vld [vmem:[%s286 + $0x7358] sm:$0xff]
        %v4058 = vld [vmem:[%s286 + $0x7360] sm:$0xff]
        %v4059 = vld [vmem:[%s286 + $0x7368] sm:$0xff]
        %v4060 = vld [vmem:[%s286 + $0x7370] sm:$0xff]
        %v4061 = vld [vmem:[%s286 + $0x7378] sm:$0xff]
        %v4062 = vld [vmem:[%s286 + $0x7380] sm:$0xff]
        %v4063 = vld [vmem:[%s286 + $0x7388] sm:$0xff]
        %v4064 = vld [vmem:[%s286 + $0x7390] sm:$0xff]
        %v4065 = vld [vmem:[%s286 + $0x7398] sm:$0xff]
        %v4066 = vld [vmem:[%s286 + $0x73a0] sm:$0xff]
        %v4067 = vld [vmem:[%s286 + $0x73a8] sm:$0xff]
        %v4068 = vld [vmem:[%s286 + $0x73b0] sm:$0xff]
        %v4069 = vld [vmem:[%s286 + $0x73b8] sm:$0xff]
        %v4070 = vld [vmem:[%s286 + $0x73c0] sm:$0xff]
        %v4071 = vld [vmem:[%s286 + $0x73c8] sm:$0xff]
        %v4072 = vld [vmem:[%s286 + $0x73d0] sm:$0xff]
        %v4073 = vld [vmem:[%s286 + $0x73d8] sm:$0xff]
        %v4074 = vld [vmem:[%s286 + $0x73e0] sm:$0xff]
        %v4075 = vld [vmem:[%s286 + $0x73e8] sm:$0xff]
        %v4076 = vld [vmem:[%s286 + $0x73f0] sm:$0xff]
        %v4077 = vld [vmem:[%s286 + $0x73f8] sm:$0xff]
        %v4078 = vld [vmem:[%s286 + $0x7400] sm:$0xff]
        %v4079 = vld [vmem:[%s286 + $0x7408] sm:$0xff]
        %v4080 = vld [vmem:[%s286 + $0x7410] sm:$0xff]
        %v4081 = vld [vmem:[%s286 + $0x7418] sm:$0xff]
        %v4082 = vld [vmem:[%s286 + $0x7420] sm:$0xff]
        %v4083 = vld [vmem:[%s286 + $0x7428] sm:$0xff]
        %v4084 = vld [vmem:[%s286 + $0x7430] sm:$0xff]
        %v4085 = vld [vmem:[%s286 + $0x7438] sm:$0xff]
        %v4086 = vld [vmem:[%s286 + $0x7440] sm:$0xff]
        %v4087 = vld [vmem:[%s286 + $0x7448] sm:$0xff]
        %v4088 = vld [vmem:[%s286 + $0x7450] sm:$0xff]
        %v4089 = vld [vmem:[%s286 + $0x7458] sm:$0xff]
        %v4090 = vld [vmem:[%s286 + $0x7460] sm:$0xff]
        %v4091 = vld [vmem:[%s286 + $0x7468] sm:$0xff]
        %v4092 = vld [vmem:[%s286 + $0x7470] sm:$0xff]
        %v4093 = vld [vmem:[%s286 + $0x7478] sm:$0xff]
        %v4094 = vld [vmem:[%s286 + $0x7480] sm:$0xff]
        %v4095 = vld [vmem:[%s286 + $0x7488] sm:$0xff]
        %v4096 = vld [vmem:[%s286 + $0x7490] sm:$0xff]
        %v4097 = vld [vmem:[%s286 + $0x7498] sm:$0xff]
        %v4098 = vld [vmem:[%s286 + $0x74a0] sm:$0xff]
        %v4099 = vld [vmem:[%s286 + $0x74a8] sm:$0xff]
        %v4100 = vld [vmem:[%s286 + $0x74b0] sm:$0xff]
        %v4101 = vld [vmem:[%s286 + $0x74b8] sm:$0xff]
        %v4102 = vld [vmem:[%s286 + $0x74c0] sm:$0xff]
        %v4103 = vld [vmem:[%s286 + $0x74c8] sm:$0xff]
        %v4104 = vld [vmem:[%s286 + $0x74d0] sm:$0xff]
        %v4105 = vld [vmem:[%s286 + $0x74d8] sm:$0xff]
        %v4106 = vld [vmem:[%s286 + $0x74e0] sm:$0xff]
        %v4107 = vld [vmem:[%s286 + $0x74e8] sm:$0xff]
        %v4108 = vld [vmem:[%s286 + $0x74f0] sm:$0xff]
        %v4109 = vld [vmem:[%s286 + $0x74f8] sm:$0xff]
        %v4110 = vld [vmem:[%s286 + $0x7500] sm:$0xff]
        %v4111 = vld [vmem:[%s286 + $0x7508] sm:$0xff]
        %v4112 = vld [vmem:[%s286 + $0x7510] sm:$0xff]
        %v4113 = vld [vmem:[%s286 + $0x7518] sm:$0xff]
        %v4114 = vld [vmem:[%s286 + $0x7520] sm:$0xff]
        %v4115 = vld [vmem:[%s286 + $0x7528] sm:$0xff]
        %v4116 = vld [vmem:[%s286 + $0x7530] sm:$0xff]
        %v4117 = vld [vmem:[%s286 + $0x7538] sm:$0xff]
        %v4118 = vld [vmem:[%s286 + $0x7540] sm:$0xff]
        %v4119 = vld [vmem:[%s286 + $0x7548] sm:$0xff]
        %v4120 = vld [vmem:[%s286 + $0x7550] sm:$0xff]
        %v4121 = vld [vmem:[%s286 + $0x7558] sm:$0xff]
        %v4122 = vld [vmem:[%s286 + $0x7560] sm:$0xff]
        %v4123 = vld [vmem:[%s286 + $0x7568] sm:$0xff]
        %v4124 = vld [vmem:[%s286 + $0x7570] sm:$0xff]
        %v4125 = vld [vmem:[%s286 + $0x7578] sm:$0xff]
        %v4126 = vld [vmem:[%s286 + $0x7580] sm:$0xff]
        %v4127 = vld [vmem:[%s286 + $0x7588] sm:$0xff]
        %v4128 = vld [vmem:[%s286 + $0x7590] sm:$0xff]
        %v4129 = vld [vmem:[%s286 + $0x7598] sm:$0xff]
        %v4130 = vld [vmem:[%s286 + $0x75a0] sm:$0xff]
        %v4131 = vld [vmem:[%s286 + $0x75a8] sm:$0xff]
        %v4132 = vld [vmem:[%s286 + $0x75b0] sm:$0xff]
        %v4133 = vld [vmem:[%s286 + $0x75b8] sm:$0xff]
        %v4134 = vld [vmem:[%s286 + $0x75c0] sm:$0xff]
        %v4135 = vld [vmem:[%s286 + $0x75c8] sm:$0xff]
        %v4136 = vld [vmem:[%s286 + $0x75d0] sm:$0xff]
        %v4137 = vld [vmem:[%s286 + $0x75d8] sm:$0xff]
        %v4138 = vld [vmem:[%s286 + $0x75e0] sm:$0xff]
        %v4139 = vld [vmem:[%s286 + $0x75e8] sm:$0xff]
        %v4140 = vld [vmem:[%s286 + $0x75f0] sm:$0xff]
        %v4141 = vld [vmem:[%s286 + $0x75f8] sm:$0xff]
        %v4142 = vld [vmem:[%s286 + $0x7600] sm:$0xff]
        %v4143 = vld [vmem:[%s286 + $0x7608] sm:$0xff]
        %v4144 = vld [vmem:[%s286 + $0x7610] sm:$0xff]
        %v4145 = vld [vmem:[%s286 + $0x7618] sm:$0xff]
        %v4146 = vld [vmem:[%s286 + $0x7620] sm:$0xff]
        %v4147 = vld [vmem:[%s286 + $0x7628] sm:$0xff]
        %v4148 = vld [vmem:[%s286 + $0x7630] sm:$0xff]
        %v4149 = vld [vmem:[%s286 + $0x7638] sm:$0xff]
        %v4150 = vld [vmem:[%s286 + $0x7640] sm:$0xff]
        %v4151 = vld [vmem:[%s286 + $0x7648] sm:$0xff]
        %v4152 = vld [vmem:[%s286 + $0x7650] sm:$0xff]
        %v4153 = vld [vmem:[%s286 + $0x7658] sm:$0xff]
        %v4154 = vld [vmem:[%s286 + $0x7660] sm:$0xff]
        %v4155 = vld [vmem:[%s286 + $0x7668] sm:$0xff]
        %v4156 = vld [vmem:[%s286 + $0x7670] sm:$0xff]
        %v4157 = vld [vmem:[%s286 + $0x7678] sm:$0xff]
        %v4158 = vld [vmem:[%s286 + $0x7680] sm:$0xff]
        %v4159 = vld [vmem:[%s286 + $0x7688] sm:$0xff]
        %v4160 = vld [vmem:[%s286 + $0x7690] sm:$0xff]
        %v4161 = vld [vmem:[%s286 + $0x7698] sm:$0xff]
        %v4162 = vld [vmem:[%s286 + $0x76a0] sm:$0xff]
        %v4163 = vld [vmem:[%s286 + $0x76a8] sm:$0xff]
        %v4164 = vld [vmem:[%s286 + $0x76b0] sm:$0xff]
        %v4165 = vld [vmem:[%s286 + $0x76b8] sm:$0xff]
        %v4166 = vld [vmem:[%s286 + $0x76c0] sm:$0xff]
        %v4167 = vld [vmem:[%s286 + $0x76c8] sm:$0xff]
        %v4168 = vld [vmem:[%s286 + $0x76d0] sm:$0xff]
        %v4169 = vld [vmem:[%s286 + $0x76d8] sm:$0xff]
        %v4170 = vld [vmem:[%s286 + $0x76e0] sm:$0xff]
        %v4171 = vld [vmem:[%s286 + $0x76e8] sm:$0xff]
        %v4172 = vld [vmem:[%s286 + $0x76f0] sm:$0xff]
        %v4173 = vld [vmem:[%s286 + $0x76f8] sm:$0xff]
        %v4174 = vld [vmem:[%s286 + $0x7700] sm:$0xff]
        %v4175 = vld [vmem:[%s286 + $0x7708] sm:$0xff]
        %v4176 = vld [vmem:[%s286 + $0x7710] sm:$0xff]
        %v4177 = vld [vmem:[%s286 + $0x7718] sm:$0xff]
        %v4178 = vld [vmem:[%s286 + $0x7720] sm:$0xff]
        %v4179 = vld [vmem:[%s286 + $0x7728] sm:$0xff]
        %v4180 = vld [vmem:[%s286 + $0x7730] sm:$0xff]
        %v4181 = vld [vmem:[%s286 + $0x7738] sm:$0xff]
        %v4182 = vld [vmem:[%s286 + $0x7740] sm:$0xff]
        %v4183 = vld [vmem:[%s286 + $0x7748] sm:$0xff]
        %v4184 = vld [vmem:[%s286 + $0x7750] sm:$0xff]
        %v4185 = vld [vmem:[%s286 + $0x7758] sm:$0xff]
        %v4186 = vld [vmem:[%s286 + $0x7760] sm:$0xff]
        %v4187 = vld [vmem:[%s286 + $0x7768] sm:$0xff]
        %v4188 = vld [vmem:[%s286 + $0x7770] sm:$0xff]
        %v4189 = vld [vmem:[%s286 + $0x7778] sm:$0xff]
        %v4190 = vld [vmem:[%s286 + $0x7780] sm:$0xff]
        %v4191 = vld [vmem:[%s286 + $0x7788] sm:$0xff]
        %v4192 = vld [vmem:[%s286 + $0x7790] sm:$0xff]
        %v4193 = vld [vmem:[%s286 + $0x7798] sm:$0xff]
        %v4194 = vld [vmem:[%s286 + $0x77a0] sm:$0xff]
        %v4195 = vld [vmem:[%s286 + $0x77a8] sm:$0xff]
        %v4196 = vld [vmem:[%s286 + $0x77b0] sm:$0xff]
        %v4197 = vld [vmem:[%s286 + $0x77b8] sm:$0xff]
        %v4198 = vld [vmem:[%s286 + $0x77c0] sm:$0xff]
        %v4199 = vld [vmem:[%s286 + $0x77c8] sm:$0xff]
        %v4200 = vld [vmem:[%s286 + $0x77d0] sm:$0xff]
        %v4201 = vld [vmem:[%s286 + $0x77d8] sm:$0xff]
        %v4202 = vld [vmem:[%s286 + $0x77e0] sm:$0xff]
        %v4203 = vld [vmem:[%s286 + $0x77e8] sm:$0xff]
        %v4204 = vld [vmem:[%s286 + $0x77f0] sm:$0xff]
        %v4205 = vld [vmem:[%s286 + $0x77f8] sm:$0xff]
        %v4206 = vld [vmem:[%s286 + $0x7800] sm:$0xff]
        %v4207 = vld [vmem:[%s286 + $0x7808] sm:$0xff]
        %v4208 = vld [vmem:[%s286 + $0x7810] sm:$0xff]
        %v4209 = vld [vmem:[%s286 + $0x7818] sm:$0xff]
        %v4210 = vld [vmem:[%s286 + $0x7820] sm:$0xff]
        %v4211 = vld [vmem:[%s286 + $0x7828] sm:$0xff]
        %v4212 = vld [vmem:[%s286 + $0x7830] sm:$0xff]
        %v4213 = vld [vmem:[%s286 + $0x7838] sm:$0xff]
        %v4214 = vld [vmem:[%s286 + $0x7840] sm:$0xff]
        %v4215 = vld [vmem:[%s286 + $0x7848] sm:$0xff]
        %v4216 = vld [vmem:[%s286 + $0x7850] sm:$0xff]
        %v4217 = vld [vmem:[%s286 + $0x7858] sm:$0xff]
        %v4218 = vld [vmem:[%s286 + $0x7860] sm:$0xff]
        %v4219 = vld [vmem:[%s286 + $0x7868] sm:$0xff]
        %v4220 = vld [vmem:[%s286 + $0x7870] sm:$0xff]
        %v4221 = vld [vmem:[%s286 + $0x7878] sm:$0xff]
        %v4222 = vld [vmem:[%s286 + $0x7880] sm:$0xff]
        %v4223 = vld [vmem:[%s286 + $0x7888] sm:$0xff]
        %v4224 = vld [vmem:[%s286 + $0x7890] sm:$0xff]
        %v4225 = vld [vmem:[%s286 + $0x7898] sm:$0xff]
        %v4226 = vld [vmem:[%s286 + $0x78a0] sm:$0xff]
        %v4227 = vld [vmem:[%s286 + $0x78a8] sm:$0xff]
        %v4228 = vld [vmem:[%s286 + $0x78b0] sm:$0xff]
        %v4229 = vld [vmem:[%s286 + $0x78b8] sm:$0xff]
        %v4230 = vld [vmem:[%s286 + $0x78c0] sm:$0xff]
        %v4231 = vld [vmem:[%s286 + $0x78c8] sm:$0xff]
        %v4232 = vld [vmem:[%s286 + $0x78d0] sm:$0xff]
        %v4233 = vld [vmem:[%s286 + $0x78d8] sm:$0xff]
        %v4234 = vld [vmem:[%s286 + $0x78e0] sm:$0xff]
        %v4235 = vld [vmem:[%s286 + $0x78e8] sm:$0xff]
        %v4236 = vld [vmem:[%s286 + $0x78f0] sm:$0xff]
        %v4237 = vld [vmem:[%s286 + $0x78f8] sm:$0xff]
        %v4238 = vld [vmem:[%s286 + $0x7900] sm:$0xff]
        %v4239 = vld [vmem:[%s286 + $0x7908] sm:$0xff]
        %v4240 = vld [vmem:[%s286 + $0x7910] sm:$0xff]
        %v4241 = vld [vmem:[%s286 + $0x7918] sm:$0xff]
        %v4242 = vld [vmem:[%s286 + $0x7920] sm:$0xff]
        %v4243 = vld [vmem:[%s286 + $0x7928] sm:$0xff]
        %v4244 = vld [vmem:[%s286 + $0x7930] sm:$0xff]
        %v4245 = vld [vmem:[%s286 + $0x7938] sm:$0xff]
        %v4246 = vld [vmem:[%s286 + $0x7940] sm:$0xff]
        %v4247 = vld [vmem:[%s286 + $0x7948] sm:$0xff]
        %v4248 = vld [vmem:[%s286 + $0x7950] sm:$0xff]
        %v4249 = vld [vmem:[%s286 + $0x7958] sm:$0xff]
        %v4250 = vld [vmem:[%s286 + $0x7960] sm:$0xff]
        %v4251 = vld [vmem:[%s286 + $0x7968] sm:$0xff]
        %v4252 = vld [vmem:[%s286 + $0x7970] sm:$0xff]
        %v4253 = vld [vmem:[%s286 + $0x7978] sm:$0xff]
        %v4254 = vld [vmem:[%s286 + $0x7980] sm:$0xff]
        %v4255 = vld [vmem:[%s286 + $0x7988] sm:$0xff]
        %v4256 = vld [vmem:[%s286 + $0x7990] sm:$0xff]
        %v4257 = vld [vmem:[%s286 + $0x7998] sm:$0xff]
        %v4258 = vld [vmem:[%s286 + $0x79a0] sm:$0xff]
        %v4259 = vld [vmem:[%s286 + $0x79a8] sm:$0xff]
        %v4260 = vld [vmem:[%s286 + $0x79b0] sm:$0xff]
        %v4261 = vld [vmem:[%s286 + $0x79b8] sm:$0xff]
        %v4262 = vld [vmem:[%s286 + $0x79c0] sm:$0xff]
        %v4263 = vld [vmem:[%s286 + $0x79c8] sm:$0xff]
        %v4264 = vld [vmem:[%s286 + $0x79d0] sm:$0xff]
        %v4265 = vld [vmem:[%s286 + $0x79d8] sm:$0xff]
        %v4266 = vld [vmem:[%s286 + $0x79e0] sm:$0xff]
        %v4267 = vld [vmem:[%s286 + $0x79e8] sm:$0xff]
        %v4268 = vld [vmem:[%s286 + $0x79f0] sm:$0xff]
        %v4269 = vld [vmem:[%s286 + $0x79f8] sm:$0xff]
        %v4270 = vld [vmem:[%s286 + $0x7a00] sm:$0xff]
        %v4271 = vld [vmem:[%s286 + $0x7a08] sm:$0xff]
        %v4272 = vld [vmem:[%s286 + $0x7a10] sm:$0xff]
        %v4273 = vld [vmem:[%s286 + $0x7a18] sm:$0xff]
        %v4274 = vld [vmem:[%s286 + $0x7a20] sm:$0xff]
        %v4275 = vld [vmem:[%s286 + $0x7a28] sm:$0xff]
        %v4276 = vld [vmem:[%s286 + $0x7a30] sm:$0xff]
        %v4277 = vld [vmem:[%s286 + $0x7a38] sm:$0xff]
        %v4278 = vld [vmem:[%s286 + $0x7a40] sm:$0xff]
        %v4279 = vld [vmem:[%s286 + $0x7a48] sm:$0xff]
        %v4280 = vld [vmem:[%s286 + $0x7a50] sm:$0xff]
        %v4281 = vld [vmem:[%s286 + $0x7a58] sm:$0xff]
        %v4282 = vld [vmem:[%s286 + $0x7a60] sm:$0xff]
        %v4283 = vld [vmem:[%s286 + $0x7a68] sm:$0xff]
        %v4284 = vld [vmem:[%s286 + $0x7a70] sm:$0xff]
        %v4285 = vld [vmem:[%s286 + $0x7a78] sm:$0xff]
        %v4286 = vld [vmem:[%s286 + $0x7a80] sm:$0xff]
        %v4287 = vld [vmem:[%s286 + $0x7a88] sm:$0xff]
        %v4288 = vld [vmem:[%s286 + $0x7a90] sm:$0xff]
        %v4289 = vld [vmem:[%s286 + $0x7a98] sm:$0xff]
        %v4290 = vld [vmem:[%s286 + $0x7aa0] sm:$0xff]
        %v4291 = vld [vmem:[%s286 + $0x7aa8] sm:$0xff]
        %v4292 = vld [vmem:[%s286 + $0x7ab0] sm:$0xff]
        %v4293 = vld [vmem:[%s286 + $0x7ab8] sm:$0xff]
        %v4294 = vld [vmem:[%s286 + $0x7ac0] sm:$0xff]
        %v4295 = vld [vmem:[%s286 + $0x7ac8] sm:$0xff]
        %v4296 = vld [vmem:[%s286 + $0x7ad0] sm:$0xff]
        %v4297 = vld [vmem:[%s286 + $0x7ad8] sm:$0xff]
        %v4298 = vld [vmem:[%s286 + $0x7ae0] sm:$0xff]
        %v4299 = vld [vmem:[%s286 + $0x7ae8] sm:$0xff]
        %v4300 = vld [vmem:[%s286 + $0x7af0] sm:$0xff]
        %v4301 = vld [vmem:[%s286 + $0x7af8] sm:$0xff]
        %v4302 = vld [vmem:[%s286 + $0x7b00] sm:$0xff]
        %v4303 = vld [vmem:[%s286 + $0x7b08] sm:$0xff]
        %v4304 = vld [vmem:[%s286 + $0x7b10] sm:$0xff]
        %v4305 = vld [vmem:[%s286 + $0x7b18] sm:$0xff]
        %v4306 = vld [vmem:[%s286 + $0x7b20] sm:$0xff]
        %v4307 = vld [vmem:[%s286 + $0x7b28] sm:$0xff]
        %v4308 = vld [vmem:[%s286 + $0x7b30] sm:$0xff]
        %v4309 = vld [vmem:[%s286 + $0x7b38] sm:$0xff]
        %v4310 = vld [vmem:[%s286 + $0x7b40] sm:$0xff]
        %v4311 = vld [vmem:[%s286 + $0x7b48] sm:$0xff]
        %v4312 = vld [vmem:[%s286 + $0x7b50] sm:$0xff]
        %v4313 = vld [vmem:[%s286 + $0x7b58] sm:$0xff]
        %v4314 = vld [vmem:[%s286 + $0x7b60] sm:$0xff]
        %v4315 = vld [vmem:[%s286 + $0x7b68] sm:$0xff]
        %v4316 = vld [vmem:[%s286 + $0x7b70] sm:$0xff]
        %v4317 = vld [vmem:[%s286 + $0x7b78] sm:$0xff]
        %v4318 = vld [vmem:[%s286 + $0x7b80] sm:$0xff]
        %v4319 = vld [vmem:[%s286 + $0x7b88] sm:$0xff]
        %v4320 = vld [vmem:[%s286 + $0x7b90] sm:$0xff]
        %v4321 = vld [vmem:[%s286 + $0x7b98] sm:$0xff]
        %v4322 = vld [vmem:[%s286 + $0x7ba0] sm:$0xff]
        %v4323 = vld [vmem:[%s286 + $0x7ba8] sm:$0xff]
        %v4324 = vld [vmem:[%s286 + $0x7bb0] sm:$0xff]
        %v4325 = vld [vmem:[%s286 + $0x7bb8] sm:$0xff]
        %v4326 = vld [vmem:[%s286 + $0x7bc0] sm:$0xff]
        %v4327 = vld [vmem:[%s286 + $0x7bc8] sm:$0xff]
        %v4328 = vld [vmem:[%s286 + $0x7bd0] sm:$0xff]
        %v4329 = vld [vmem:[%s286 + $0x7bd8] sm:$0xff]
        %v4330 = vld [vmem:[%s286 + $0x7be0] sm:$0xff]
        %v4331 = vld [vmem:[%s286 + $0x7be8] sm:$0xff]
        %v4332 = vld [vmem:[%s286 + $0x7bf0] sm:$0xff]
        %v4333 = vld [vmem:[%s286 + $0x7bf8] sm:$0xff]
        %v4334 = vld [vmem:[%s286 + $0x7c00] sm:$0xff]
        %v4335 = vld [vmem:[%s286 + $0x7c08] sm:$0xff]
        %v4336 = vld [vmem:[%s286 + $0x7c10] sm:$0xff]
        %v4337 = vld [vmem:[%s286 + $0x7c18] sm:$0xff]
        %v4338 = vld [vmem:[%s286 + $0x7c20] sm:$0xff]
        %v4339 = vld [vmem:[%s286 + $0x7c28] sm:$0xff]
        %v4340 = vld [vmem:[%s286 + $0x7c30] sm:$0xff]
        %v4341 = vld [vmem:[%s286 + $0x7c38] sm:$0xff]
        %v4342 = vld [vmem:[%s286 + $0x7c40] sm:$0xff]
        %v4343 = vld [vmem:[%s286 + $0x7c48] sm:$0xff]
        %v4344 = vld [vmem:[%s286 + $0x7c50] sm:$0xff]
        %v4345 = vld [vmem:[%s286 + $0x7c58] sm:$0xff]
        %v4346 = vld [vmem:[%s286 + $0x7c60] sm:$0xff]
        %v4347 = vld [vmem:[%s286 + $0x7c68] sm:$0xff]
        %v4348 = vld [vmem:[%s286 + $0x7c70] sm:$0xff]
        %v4349 = vld [vmem:[%s286 + $0x7c78] sm:$0xff]
        %v4350 = vld [vmem:[%s286 + $0x7c80] sm:$0xff]
        %v4351 = vld [vmem:[%s286 + $0x7c88] sm:$0xff]
        %v4352 = vld [vmem:[%s286 + $0x7c90] sm:$0xff]
        %v4353 = vld [vmem:[%s286 + $0x7c98] sm:$0xff]
        %v4354 = vld [vmem:[%s286 + $0x7ca0] sm:$0xff]
        %v4355 = vld [vmem:[%s286 + $0x7ca8] sm:$0xff]
        %v4356 = vld [vmem:[%s286 + $0x7cb0] sm:$0xff]
        %v4357 = vld [vmem:[%s286 + $0x7cb8] sm:$0xff]
        %v4358 = vld [vmem:[%s286 + $0x7cc0] sm:$0xff]
        %v4359 = vld [vmem:[%s286 + $0x7cc8] sm:$0xff]
        %v4360 = vld [vmem:[%s286 + $0x7cd0] sm:$0xff]
        %v4361 = vld [vmem:[%s286 + $0x7cd8] sm:$0xff]
        %v4362 = vld [vmem:[%s286 + $0x7ce0] sm:$0xff]
        %v4363 = vld [vmem:[%s286 + $0x7ce8] sm:$0xff]
        %v4364 = vld [vmem:[%s286 + $0x7cf0] sm:$0xff]
        %v4365 = vld [vmem:[%s286 + $0x7cf8] sm:$0xff]
        %v4366 = vld [vmem:[%s286 + $0x7d00] sm:$0xff]
        %v4367 = vld [vmem:[%s286 + $0x7d08] sm:$0xff]
        %v4368 = vld [vmem:[%s286 + $0x7d10] sm:$0xff]
        %v4369 = vld [vmem:[%s286 + $0x7d18] sm:$0xff]
        %v4370 = vld [vmem:[%s286 + $0x7d20] sm:$0xff]
        %v4371 = vld [vmem:[%s286 + $0x7d28] sm:$0xff]
        %v4372 = vld [vmem:[%s286 + $0x7d30] sm:$0xff]
        %v4373 = vld [vmem:[%s286 + $0x7d38] sm:$0xff]
        %v4374 = vld [vmem:[%s286 + $0x7d40] sm:$0xff]
        %v4375 = vld [vmem:[%s286 + $0x7d48] sm:$0xff]
        %v4376 = vld [vmem:[%s286 + $0x7d50] sm:$0xff]
        %v4377 = vld [vmem:[%s286 + $0x7d58] sm:$0xff]
        %v4378 = vld [vmem:[%s286 + $0x7d60] sm:$0xff]
        %v4379 = vld [vmem:[%s286 + $0x7d68] sm:$0xff]
        %v4380 = vld [vmem:[%s286 + $0x7d70] sm:$0xff]
        %v4381 = vld [vmem:[%s286 + $0x7d78] sm:$0xff]
        %v4382 = vld [vmem:[%s286 + $0x7d80] sm:$0xff]
        %v4383 = vld [vmem:[%s286 + $0x7d88] sm:$0xff]
        %v4384 = vld [vmem:[%s286 + $0x7d90] sm:$0xff]
        %v4385 = vld [vmem:[%s286 + $0x7d98] sm:$0xff]
        %v4386 = vld [vmem:[%s286 + $0x7da0] sm:$0xff]
        %v4387 = vld [vmem:[%s286 + $0x7da8] sm:$0xff]
        %v4388 = vld [vmem:[%s286 + $0x7db0] sm:$0xff]
        %v4389 = vld [vmem:[%s286 + $0x7db8] sm:$0xff]
        %v4390 = vld [vmem:[%s286 + $0x7dc0] sm:$0xff]
        %v4391 = vld [vmem:[%s286 + $0x7dc8] sm:$0xff]
        %v4392 = vld [vmem:[%s286 + $0x7dd0] sm:$0xff]
        %v4393 = vld [vmem:[%s286 + $0x7dd8] sm:$0xff]
        %v4394 = vld [vmem:[%s286 + $0x7de0] sm:$0xff]
        %v4395 = vld [vmem:[%s286 + $0x7de8] sm:$0xff]
        %v4396 = vld [vmem:[%s286 + $0x7df0] sm:$0xff]
        %v4397 = vld [vmem:[%s286 + $0x7df8] sm:$0xff]
        %v4398 = vld [vmem:[%s286 + $0x7e00] sm:$0xff]
        %v4399 = vld [vmem:[%s286 + $0x7e08] sm:$0xff]
        %v4400 = vld [vmem:[%s286 + $0x7e10] sm:$0xff]
        %v4401 = vld [vmem:[%s286 + $0x7e18] sm:$0xff]
        %v4402 = vld [vmem:[%s286 + $0x7e20] sm:$0xff]
        %v4403 = vld [vmem:[%s286 + $0x7e28] sm:$0xff]
        %v4404 = vld [vmem:[%s286 + $0x7e30] sm:$0xff]
        %v4405 = vld [vmem:[%s286 + $0x7e38] sm:$0xff]
        %v4406 = vld [vmem:[%s286 + $0x7e40] sm:$0xff]
        %v4407 = vld [vmem:[%s286 + $0x7e48] sm:$0xff]
        %v4408 = vld [vmem:[%s286 + $0x7e50] sm:$0xff]
        %v4409 = vld [vmem:[%s286 + $0x7e58] sm:$0xff]
        %v4410 = vld [vmem:[%s286 + $0x7e60] sm:$0xff]
        %v4411 = vld [vmem:[%s286 + $0x7e68] sm:$0xff]
        %v4412 = vld [vmem:[%s286 + $0x7e70] sm:$0xff]
        %v4413 = vld [vmem:[%s286 + $0x7e78] sm:$0xff]
        %v4414 = vld [vmem:[%s286 + $0x7e80] sm:$0xff]
        %v4415 = vld [vmem:[%s286 + $0x7e88] sm:$0xff]
        %v4416 = vld [vmem:[%s286 + $0x7e90] sm:$0xff]
        %v4417 = vld [vmem:[%s286 + $0x7e98] sm:$0xff]
        %v4418 = vld [vmem:[%s286 + $0x7ea0] sm:$0xff]
        %v4419 = vld [vmem:[%s286 + $0x7ea8] sm:$0xff]
        %v4420 = vld [vmem:[%s286 + $0x7eb0] sm:$0xff]
        %v4421 = vld [vmem:[%s286 + $0x7eb8] sm:$0xff]
        %v4422 = vld [vmem:[%s286 + $0x7ec0] sm:$0xff]
        %v4423 = vld [vmem:[%s286 + $0x7ec8] sm:$0xff]
        %v4424 = vld [vmem:[%s286 + $0x7ed0] sm:$0xff]
        %v4425 = vld [vmem:[%s286 + $0x7ed8] sm:$0xff]
        %v4426 = vld [vmem:[%s286 + $0x7ee0] sm:$0xff]
        %v4427 = vld [vmem:[%s286 + $0x7ee8] sm:$0xff]
        %v4428 = vld [vmem:[%s286 + $0x7ef0] sm:$0xff]
        %v4429 = vld [vmem:[%s286 + $0x7ef8] sm:$0xff]
        %v4430 = vld [vmem:[%s286 + $0x7f00] sm:$0xff]
        %v4431 = vld [vmem:[%s286 + $0x7f08] sm:$0xff]
        %v4432 = vld [vmem:[%s286 + $0x7f10] sm:$0xff]
        %v4433 = vld [vmem:[%s286 + $0x7f18] sm:$0xff]
        %v4434 = vld [vmem:[%s286 + $0x7f20] sm:$0xff]
        %v4435 = vld [vmem:[%s286 + $0x7f28] sm:$0xff]
        %v4436 = vld [vmem:[%s286 + $0x7f30] sm:$0xff]
        %v4437 = vld [vmem:[%s286 + $0x7f38] sm:$0xff]
        %v4438 = vld [vmem:[%s286 + $0x7f40] sm:$0xff]
        %v4439 = vld [vmem:[%s286 + $0x7f48] sm:$0xff]
        %v4440 = vld [vmem:[%s286 + $0x7f50] sm:$0xff]
        %v4441 = vld [vmem:[%s286 + $0x7f58] sm:$0xff]
        %v4442 = vld [vmem:[%s286 + $0x7f60] sm:$0xff]
        %v4443 = vld [vmem:[%s286 + $0x7f68] sm:$0xff]
        %v4444 = vld [vmem:[%s286 + $0x7f70] sm:$0xff]
        %v4445 = vld [vmem:[%s286 + $0x7f78] sm:$0xff]
        %v4446 = vld [vmem:[%s286 + $0x7f80] sm:$0xff]
        %v4447 = vld [vmem:[%s286 + $0x7f88] sm:$0xff]
        %v4448 = vld [vmem:[%s286 + $0x7f90] sm:$0xff]
        %v4449 = vld [vmem:[%s286 + $0x7f98] sm:$0xff]
        %v4450 = vld [vmem:[%s286 + $0x7fa0] sm:$0xff]
        %v4451 = vld [vmem:[%s286 + $0x7fa8] sm:$0xff]
        %v4452 = vld [vmem:[%s286 + $0x7fb0] sm:$0xff]
        %v4453 = vld [vmem:[%s286 + $0x7fb8] sm:$0xff]
        %v4454 = vld [vmem:[%s286 + $0x7fc0] sm:$0xff]
        %v4455 = vld [vmem:[%s286 + $0x7fc8] sm:$0xff]
        %v4456 = vld [vmem:[%s286 + $0x7fd0] sm:$0xff]
        %v4457 = vld [vmem:[%s286 + $0x7fd8] sm:$0xff]
        %v4458 = vld [vmem:[%s286 + $0x7fe0] sm:$0xff]
        %v4459 = vld [vmem:[%s286 + $0x7fe8] sm:$0xff]
        %v4460 = vld [vmem:[%s286 + $0x7ff0] sm:$0xff]
        %v4461 = vld [vmem:[%s286 + $0x7ff8] sm:$0xff]
        %v4466 = vcombine.high %v362, %v362
        %v4468 = vunpack.c.l.s4 1983009808
        %v4469 = vunpack.c.0.s8 %v4468
        %v4470 = vlaneseq
        %v4471 = vshrl.u32 %v4470, 7
        %v4472 = vsub.s32 %v4469, %v4471
        %v4473 = vrot.slane %v362, %v4472
        %v4475 = vunpack.c.l.s4 1983009808
        %v4476 = vunpack.c.0.s8 %v4475
        %v4477 = vlaneseq
        %v4478 = vshrl.u32 %v4477, 7
        %v4479 = vsub.s32 %v4476, %v4478
        %v4480 = vrot.slane %v4466, %v4479
        %v4481 = vcombine.high %v4473, %v4473
        %v4482 = vcombine.high %v4480, %v4480
        %v4483 = vcombine.high %v363, %v363
        %v4485 = vunpack.c.l.s4 1983009808
        %v4486 = vunpack.c.0.s8 %v4485
        %v4487 = vlaneseq
        %v4488 = vshrl.u32 %v4487, 7
        %v4489 = vsub.s32 %v4486, %v4488
        %v4490 = vrot.slane %v363, %v4489
        %v4492 = vunpack.c.l.s4 1983009808
        %v4493 = vunpack.c.0.s8 %v4492
        %v4494 = vlaneseq
        %v4495 = vshrl.u32 %v4494, 7
        %v4496 = vsub.s32 %v4493, %v4495
        %v4497 = vrot.slane %v4483, %v4496
        %v4498 = vcombine.high %v4490, %v4490
        %v4499 = vcombine.high %v4497, %v4497
        %v4500 = vcombine.high %v364, %v364
        %v4502 = vunpack.c.l.s4 1983009808
        %v4503 = vunpack.c.0.s8 %v4502
        %v4504 = vlaneseq
        %v4505 = vshrl.u32 %v4504, 7
        %v4506 = vsub.s32 %v4503, %v4505
        %v4507 = vrot.slane %v364, %v4506
        %v4509 = vunpack.c.l.s4 1983009808
        %v4510 = vunpack.c.0.s8 %v4509
        %v4511 = vlaneseq
        %v4512 = vshrl.u32 %v4511, 7
        %v4513 = vsub.s32 %v4510, %v4512
        %v4514 = vrot.slane %v4500, %v4513
        %v4515 = vcombine.high %v4507, %v4507
        %v4516 = vcombine.high %v4514, %v4514
        %v4517 = vcombine.high %v365, %v365
        %v4519 = vunpack.c.l.s4 1983009808
        %v4520 = vunpack.c.0.s8 %v4519
        %v4521 = vlaneseq
        %v4522 = vshrl.u32 %v4521, 7
        %v4523 = vsub.s32 %v4520, %v4522
        %v4524 = vrot.slane %v365, %v4523
        %v4526 = vunpack.c.l.s4 1983009808
        %v4527 = vunpack.c.0.s8 %v4526
        %v4528 = vlaneseq
        %v4529 = vshrl.u32 %v4528, 7
        %v4530 = vsub.s32 %v4527, %v4529
        %v4531 = vrot.slane %v4517, %v4530
        %v4532 = vcombine.high %v4524, %v4524
        %v4533 = vcombine.high %v4531, %v4531
        %4550 = vmatprep.subr.mxu0 %v607
        %4551 = vmatpush1.msra.mxu0 %v606
        %4552 = vmatprep.subr.mxu0 %v591
        %4553 = vmatpush1.msra.mxu0 %v590
        %4554 = vmatprep.subr.mxu0 %v575
        %4555 = vmatpush1.msra.mxu0 %v574
        %4556 = vmatprep.subr.mxu0 %v559
        %4557 = vmatpush1.msra.mxu0 %v558
        %4558 = vmatprep.subr.mxu0 %v543
        %4559 = vmatpush1.msra.mxu0 %v542
        %4560 = vmatprep.subr.mxu0 %v527
        %4561 = vmatpush1.msra.mxu0 %v526
        %4562 = vmatprep.subr.mxu0 %v511
        %4563 = vmatpush1.msra.mxu0 %v510
        %4564 = vmatprep.subr.mxu0 %v495
        %4565 = vmatpush1.msra.mxu0 %v494
        %4566 = vmatprep.subr.mxu0 %v479
        %4567 = vmatpush1.msra.mxu0 %v478
        %4568 = vmatprep.subr.mxu0 %v463
        %4569 = vmatpush1.msra.mxu0 %v462
        %4570 = vmatprep.subr.mxu0 %v447
        %4571 = vmatpush1.msra.mxu0 %v446
        %4572 = vmatprep.subr.mxu0 %v431
        %4573 = vmatpush1.msra.mxu0 %v430
        %4574 = vmatprep.subr.mxu0 %v415
        %4575 = vmatpush1.msra.mxu0 %v414
        %4576 = vmatprep.subr.mxu0 %v399
        %4577 = vmatpush1.msra.mxu0 %v398
        %4578 = vmatprep.subr.mxu0 %v383
        %4579 = vmatpush1.msra.mxu0 %v382
        %4580 = vmatprep.subr.mxu0 %v367
        %4581 = vmatpush1.msra.mxu0 %v366
        %4582 = vmatprep.subr.mxu0 %v863
        %4583 = vmatpush2.msra.mxu0 %v862
        %4584 = vmatprep.subr.mxu0 %v847
        %4585 = vmatpush2.msra.mxu0 %v846
        %4586 = vmatprep.subr.mxu0 %v831
        %4587 = vmatpush2.msra.mxu0 %v830
        %4588 = vmatprep.subr.mxu0 %v815
        %4589 = vmatpush2.msra.mxu0 %v814
        %4590 = vmatprep.subr.mxu0 %v799
        %4591 = vmatpush2.msra.mxu0 %v798
        %4592 = vmatprep.subr.mxu0 %v783
        %4593 = vmatpush2.msra.mxu0 %v782
        %4594 = vmatprep.subr.mxu0 %v767
        %4595 = vmatpush2.msra.mxu0 %v766
        %4596 = vmatprep.subr.mxu0 %v751
        %4597 = vmatpush2.msra.mxu0 %v750
        %4598 = vmatprep.subr.mxu0 %v735
        %4599 = vmatpush2.msra.mxu0 %v734
        %4600 = vmatprep.subr.mxu0 %v719
        %4601 = vmatpush2.msra.mxu0 %v718
        %4602 = vmatprep.subr.mxu0 %v703
        %4603 = vmatpush2.msra.mxu0 %v702
        %4604 = vmatprep.subr.mxu0 %v687
        %4605 = vmatpush2.msra.mxu0 %v686
        %4606 = vmatprep.subr.mxu0 %v671
        %4607 = vmatpush2.msra.mxu0 %v670
        %4608 = vmatprep.subr.mxu0 %v655
        %4609 = vmatpush2.msra.mxu0 %v654
        %4610 = vmatprep.subr.mxu0 %v639
        %4611 = vmatpush2.msra.mxu0 %v638
        %4612 = vmatprep.subr.mxu0 %v623
        %4613 = vmatpush2.msra.mxu0 %v622
        %4614 = vmatprep.mubr.f32.mxu0 %v4481
        %4615 = vmatmul.mubr.f32.gmra.mxu0 %v4473
        %v4616 = vpop.f32.mrf.mxu0
        %v4617 = vadd.f32 0.0, %v4616
        %v4618 = vpop.f32.mrf.mxu0
        %v4619 = vadd.f32 0.0, %v4618
        %4620 = vdwg.mxu0
        %4621 = vmatprep.subr.mxu0 %v1119
        %4622 = vmatpush1.msra.mxu0 %v1118
        %4623 = vmatprep.subr.mxu0 %v1103
        %4624 = vmatpush1.msra.mxu0 %v1102
        %4625 = vmatprep.subr.mxu0 %v1087
        %4626 = vmatpush1.msra.mxu0 %v1086
        %4627 = vmatprep.subr.mxu0 %v1071
        %4628 = vmatpush1.msra.mxu0 %v1070
        %4629 = vmatprep.subr.mxu0 %v1055
        %4630 = vmatpush1.msra.mxu0 %v1054
        %4631 = vmatprep.subr.mxu0 %v1039
        %4632 = vmatpush1.msra.mxu0 %v1038
        %4633 = vmatprep.subr.mxu0 %v1023
        %4634 = vmatpush1.msra.mxu0 %v1022
        %4635 = vmatprep.subr.mxu0 %v1007
        %4636 = vmatpush1.msra.mxu0 %v1006
        %4637 = vmatprep.subr.mxu0 %v991
        %4638 = vmatpush1.msra.mxu0 %v990
        %4639 = vmatprep.subr.mxu0 %v975
        %4640 = vmatpush1.msra.mxu0 %v974
        %4641 = vmatprep.subr.mxu0 %v959
        %4642 = vmatpush1.msra.mxu0 %v958
        %4643 = vmatprep.subr.mxu0 %v943
        %4644 = vmatpush1.msra.mxu0 %v942
        %4645 = vmatprep.subr.mxu0 %v927
        %4646 = vmatpush1.msra.mxu0 %v926
        %4647 = vmatprep.subr.mxu0 %v911
        %4648 = vmatpush1.msra.mxu0 %v910
        %4649 = vmatprep.subr.mxu0 %v895
        %4650 = vmatpush1.msra.mxu0 %v894
        %4651 = vmatprep.subr.mxu0 %v879
        %4652 = vmatpush1.msra.mxu0 %v878
        %4653 = vmatprep.subr.mxu0 %v1375
        %4654 = vmatpush2.msra.mxu0 %v1374
        %4655 = vmatprep.subr.mxu0 %v1359
        %4656 = vmatpush2.msra.mxu0 %v1358
        %4657 = vmatprep.subr.mxu0 %v1343
        %4658 = vmatpush2.msra.mxu0 %v1342
        %4659 = vmatprep.subr.mxu0 %v1327
        %4660 = vmatpush2.msra.mxu0 %v1326
        %4661 = vmatprep.subr.mxu0 %v1311
        %4662 = vmatpush2.msra.mxu0 %v1310
        %4663 = vmatprep.subr.mxu0 %v1295
        %4664 = vmatpush2.msra.mxu0 %v1294
        %4665 = vmatprep.subr.mxu0 %v1279
        %4666 = vmatpush2.msra.mxu0 %v1278
        %4667 = vmatprep.subr.mxu0 %v1263
        %4668 = vmatpush2.msra.mxu0 %v1262
        %4669 = vmatprep.subr.mxu0 %v1247
        %4670 = vmatpush2.msra.mxu0 %v1246
        %4671 = vmatprep.subr.mxu0 %v1231
        %4672 = vmatpush2.msra.mxu0 %v1230
        %4673 = vmatprep.subr.mxu0 %v1215
        %4674 = vmatpush2.msra.mxu0 %v1214
        %4675 = vmatprep.subr.mxu0 %v1199
        %4676 = vmatpush2.msra.mxu0 %v1198
        %4677 = vmatprep.subr.mxu0 %v1183
        %4678 = vmatpush2.msra.mxu0 %v1182
        %4679 = vmatprep.subr.mxu0 %v1167
        %4680 = vmatpush2.msra.mxu0 %v1166
        %4681 = vmatprep.subr.mxu0 %v1151
        %4682 = vmatpush2.msra.mxu0 %v1150
        %4683 = vmatprep.subr.mxu0 %v1135
        %4684 = vmatpush2.msra.mxu0 %v1134
        %4685 = vmatprep.mubr.f32.mxu0 %v4482
        %4686 = vmatmul.mubr.f32.gmra.mxu0 %v4480
        %v4687 = vpop.f32.mrf.mxu0
        %v4688 = vadd.f32 %v4617, %v4687
        %v4689 = vpop.f32.mrf.mxu0
        %v4690 = vadd.f32 %v4619, %v4689
        %4691 = vdwg.mxu0
        %4692 = vmatprep.subr.mxu0 %v1631
        %4693 = vmatpush1.msra.mxu0 %v1630
        %4694 = vmatprep.subr.mxu0 %v1615
        %4695 = vmatpush1.msra.mxu0 %v1614
        %4696 = vmatprep.subr.mxu0 %v1599
        %4697 = vmatpush1.msra.mxu0 %v1598
        %4698 = vmatprep.subr.mxu0 %v1583
        %4699 = vmatpush1.msra.mxu0 %v1582
        %4700 = vmatprep.subr.mxu0 %v1567
        %4701 = vmatpush1.msra.mxu0 %v1566
        %4702 = vmatprep.subr.mxu0 %v1551
        %4703 = vmatpush1.msra.mxu0 %v1550
        %4704 = vmatprep.subr.mxu0 %v1535
        %4705 = vmatpush1.msra.mxu0 %v1534
        %4706 = vmatprep.subr.mxu0 %v1519
        %4707 = vmatpush1.msra.mxu0 %v1518
        %4708 = vmatprep.subr.mxu0 %v1503
        %4709 = vmatpush1.msra.mxu0 %v1502
        %4710 = vmatprep.subr.mxu0 %v1487
        %4711 = vmatpush1.msra.mxu0 %v1486
        %4712 = vmatprep.subr.mxu0 %v1471
        %4713 = vmatpush1.msra.mxu0 %v1470
        %4714 = vmatprep.subr.mxu0 %v1455
        %4715 = vmatpush1.msra.mxu0 %v1454
        %4716 = vmatprep.subr.mxu0 %v1439
        %4717 = vmatpush1.msra.mxu0 %v1438
        %4718 = vmatprep.subr.mxu0 %v1423
        %4719 = vmatpush1.msra.mxu0 %v1422
        %4720 = vmatprep.subr.mxu0 %v1407
        %4721 = vmatpush1.msra.mxu0 %v1406
        %4722 = vmatprep.subr.mxu0 %v1391
        %4723 = vmatpush1.msra.mxu0 %v1390
        %4724 = vmatprep.subr.mxu0 %v1887
        %4725 = vmatpush2.msra.mxu0 %v1886
        %4726 = vmatprep.subr.mxu0 %v1871
        %4727 = vmatpush2.msra.mxu0 %v1870
        %4728 = vmatprep.subr.mxu0 %v1855
        %4729 = vmatpush2.msra.mxu0 %v1854
        %4730 = vmatprep.subr.mxu0 %v1839
        %4731 = vmatpush2.msra.mxu0 %v1838
        %4732 = vmatprep.subr.mxu0 %v1823
        %4733 = vmatpush2.msra.mxu0 %v1822
        %4734 = vmatprep.subr.mxu0 %v1807
        %4735 = vmatpush2.msra.mxu0 %v1806
        %4736 = vmatprep.subr.mxu0 %v1791
        %4737 = vmatpush2.msra.mxu0 %v1790
        %4738 = vmatprep.subr.mxu0 %v1775
        %4739 = vmatpush2.msra.mxu0 %v1774
        %4740 = vmatprep.subr.mxu0 %v1759
        %4741 = vmatpush2.msra.mxu0 %v1758
        %4742 = vmatprep.subr.mxu0 %v1743
        %4743 = vmatpush2.msra.mxu0 %v1742
        %4744 = vmatprep.subr.mxu0 %v1727
        %4745 = vmatpush2.msra.mxu0 %v1726
        %4746 = vmatprep.subr.mxu0 %v1711
        %4747 = vmatpush2.msra.mxu0 %v1710
        %4748 = vmatprep.subr.mxu0 %v1695
        %4749 = vmatpush2.msra.mxu0 %v1694
        %4750 = vmatprep.subr.mxu0 %v1679
        %4751 = vmatpush2.msra.mxu0 %v1678
        %4752 = vmatprep.subr.mxu0 %v1663
        %4753 = vmatpush2.msra.mxu0 %v1662
        %4754 = vmatprep.subr.mxu0 %v1647
        %4755 = vmatpush2.msra.mxu0 %v1646
        %4756 = vmatprep.mubr.f32.mxu0 %v4498
        %4757 = vmatmul.mubr.f32.gmra.mxu0 %v4490
        %v4758 = vpop.f32.mrf.mxu0
        %v4759 = vadd.f32 %v4688, %v4758
        %v4760 = vpop.f32.mrf.mxu0
        %v4761 = vadd.f32 %v4690, %v4760
        %4762 = vdwg.mxu0
        %4763 = vmatprep.subr.mxu0 %v2143
        %4764 = vmatpush1.msra.mxu0 %v2142
        %4765 = vmatprep.subr.mxu0 %v2127
        %4766 = vmatpush1.msra.mxu0 %v2126
        %4767 = vmatprep.subr.mxu0 %v2111
        %4768 = vmatpush1.msra.mxu0 %v2110
        %4769 = vmatprep.subr.mxu0 %v2095
        %4770 = vmatpush1.msra.mxu0 %v2094
        %4771 = vmatprep.subr.mxu0 %v2079
        %4772 = vmatpush1.msra.mxu0 %v2078
        %4773 = vmatprep.subr.mxu0 %v2063
        %4774 = vmatpush1.msra.mxu0 %v2062
        %4775 = vmatprep.subr.mxu0 %v2047
        %4776 = vmatpush1.msra.mxu0 %v2046
        %4777 = vmatprep.subr.mxu0 %v2031
        %4778 = vmatpush1.msra.mxu0 %v2030
        %4779 = vmatprep.subr.mxu0 %v2015
        %4780 = vmatpush1.msra.mxu0 %v2014
        %4781 = vmatprep.subr.mxu0 %v1999
        %4782 = vmatpush1.msra.mxu0 %v1998
        %4783 = vmatprep.subr.mxu0 %v1983
        %4784 = vmatpush1.msra.mxu0 %v1982
        %4785 = vmatprep.subr.mxu0 %v1967
        %4786 = vmatpush1.msra.mxu0 %v1966
        %4787 = vmatprep.subr.mxu0 %v1951
        %4788 = vmatpush1.msra.mxu0 %v1950
        %4789 = vmatprep.subr.mxu0 %v1935
        %4790 = vmatpush1.msra.mxu0 %v1934
        %4791 = vmatprep.subr.mxu0 %v1919
        %4792 = vmatpush1.msra.mxu0 %v1918
        %4793 = vmatprep.subr.mxu0 %v1903
        %4794 = vmatpush1.msra.mxu0 %v1902
        %4795 = vmatprep.subr.mxu0 %v2399
        %4796 = vmatpush2.msra.mxu0 %v2398
        %4797 = vmatprep.subr.mxu0 %v2383
        %4798 = vmatpush2.msra.mxu0 %v2382
        %4799 = vmatprep.subr.mxu0 %v2367
        %4800 = vmatpush2.msra.mxu0 %v2366
        %4801 = vmatprep.subr.mxu0 %v2351
        %4802 = vmatpush2.msra.mxu0 %v2350
        %4803 = vmatprep.subr.mxu0 %v2335
        %4804 = vmatpush2.msra.mxu0 %v2334
        %4805 = vmatprep.subr.mxu0 %v2319
        %4806 = vmatpush2.msra.mxu0 %v2318
        %4807 = vmatprep.subr.mxu0 %v2303
        %4808 = vmatpush2.msra.mxu0 %v2302
        %4809 = vmatprep.subr.mxu0 %v2287
        %4810 = vmatpush2.msra.mxu0 %v2286
        %4811 = vmatprep.subr.mxu0 %v2271
        %4812 = vmatpush2.msra.mxu0 %v2270
        %4813 = vmatprep.subr.mxu0 %v2255
        %4814 = vmatpush2.msra.mxu0 %v2254
        %4815 = vmatprep.subr.mxu0 %v2239
        %4816 = vmatpush2.msra.mxu0 %v2238
        %4817 = vmatprep.subr.mxu0 %v2223
        %4818 = vmatpush2.msra.mxu0 %v2222
        %4819 = vmatprep.subr.mxu0 %v2207
        %4820 = vmatpush2.msra.mxu0 %v2206
        %4821 = vmatprep.subr.mxu0 %v2191
        %4822 = vmatpush2.msra.mxu0 %v2190
        %4823 = vmatprep.subr.mxu0 %v2175
        %4824 = vmatpush2.msra.mxu0 %v2174
        %4825 = vmatprep.subr.mxu0 %v2159
        %4826 = vmatpush2.msra.mxu0 %v2158
        %4827 = vmatprep.mubr.f32.mxu0 %v4499
        %4828 = vmatmul.mubr.f32.gmra.mxu0 %v4497
        %v4829 = vpop.f32.mrf.mxu0
        %v4830 = vadd.f32 %v4759, %v4829
        %v4831 = vpop.f32.mrf.mxu0
        %v4832 = vadd.f32 %v4761, %v4831
        %4833 = vdwg.mxu0
        %4834 = vmatprep.subr.mxu0 %v2655
        %4835 = vmatpush1.msra.mxu0 %v2654
        %4836 = vmatprep.subr.mxu0 %v2639
        %4837 = vmatpush1.msra.mxu0 %v2638
        %4838 = vmatprep.subr.mxu0 %v2623
        %4839 = vmatpush1.msra.mxu0 %v2622
        %4840 = vmatprep.subr.mxu0 %v2607
        %4841 = vmatpush1.msra.mxu0 %v2606
        %4842 = vmatprep.subr.mxu0 %v2591
        %4843 = vmatpush1.msra.mxu0 %v2590
        %4844 = vmatprep.subr.mxu0 %v2575
        %4845 = vmatpush1.msra.mxu0 %v2574
        %4846 = vmatprep.subr.mxu0 %v2559
        %4847 = vmatpush1.msra.mxu0 %v2558
        %4848 = vmatprep.subr.mxu0 %v2543
        %4849 = vmatpush1.msra.mxu0 %v2542
        %4850 = vmatprep.subr.mxu0 %v2527
        %4851 = vmatpush1.msra.mxu0 %v2526
        %4852 = vmatprep.subr.mxu0 %v2511
        %4853 = vmatpush1.msra.mxu0 %v2510
        %4854 = vmatprep.subr.mxu0 %v2495
        %4855 = vmatpush1.msra.mxu0 %v2494
        %4856 = vmatprep.subr.mxu0 %v2479
        %4857 = vmatpush1.msra.mxu0 %v2478
        %4858 = vmatprep.subr.mxu0 %v2463
        %4859 = vmatpush1.msra.mxu0 %v2462
        %4860 = vmatprep.subr.mxu0 %v2447
        %4861 = vmatpush1.msra.mxu0 %v2446
        %4862 = vmatprep.subr.mxu0 %v2431
        %4863 = vmatpush1.msra.mxu0 %v2430
        %4864 = vmatprep.subr.mxu0 %v2415
        %4865 = vmatpush1.msra.mxu0 %v2414
        %4866 = vmatprep.subr.mxu0 %v2911
        %4867 = vmatpush2.msra.mxu0 %v2910
        %4868 = vmatprep.subr.mxu0 %v2895
        %4869 = vmatpush2.msra.mxu0 %v2894
        %4870 = vmatprep.subr.mxu0 %v2879
        %4871 = vmatpush2.msra.mxu0 %v2878
        %4872 = vmatprep.subr.mxu0 %v2863
        %4873 = vmatpush2.msra.mxu0 %v2862
        %4874 = vmatprep.subr.mxu0 %v2847
        %4875 = vmatpush2.msra.mxu0 %v2846
        %4876 = vmatprep.subr.mxu0 %v2831
        %4877 = vmatpush2.msra.mxu0 %v2830
        %4878 = vmatprep.subr.mxu0 %v2815
        %4879 = vmatpush2.msra.mxu0 %v2814
        %4880 = vmatprep.subr.mxu0 %v2799
        %4881 = vmatpush2.msra.mxu0 %v2798
        %4882 = vmatprep.subr.mxu0 %v2783
        %4883 = vmatpush2.msra.mxu0 %v2782
        %4884 = vmatprep.subr.mxu0 %v2767
        %4885 = vmatpush2.msra.mxu0 %v2766
        %4886 = vmatprep.subr.mxu0 %v2751
        %4887 = vmatpush2.msra.mxu0 %v2750
        %4888 = vmatprep.subr.mxu0 %v2735
        %4889 = vmatpush2.msra.mxu0 %v2734
        %4890 = vmatprep.subr.mxu0 %v2719
        %4891 = vmatpush2.msra.mxu0 %v2718
        %4892 = vmatprep.subr.mxu0 %v2703
        %4893 = vmatpush2.msra.mxu0 %v2702
        %4894 = vmatprep.subr.mxu0 %v2687
        %4895 = vmatpush2.msra.mxu0 %v2686
        %4896 = vmatprep.subr.mxu0 %v2671
        %4897 = vmatpush2.msra.mxu0 %v2670
        %4898 = vmatprep.mubr.f32.mxu0 %v4515
        %4899 = vmatmul.mubr.f32.gmra.mxu0 %v4507
        %v4900 = vpop.f32.mrf.mxu0
        %v4901 = vadd.f32 %v4830, %v4900
        %v4902 = vpop.f32.mrf.mxu0
        %v4903 = vadd.f32 %v4832, %v4902
        %4904 = vdwg.mxu0
        %4905 = vmatprep.subr.mxu0 %v3167
        %4906 = vmatpush1.msra.mxu0 %v3166
        %4907 = vmatprep.subr.mxu0 %v3151
        %4908 = vmatpush1.msra.mxu0 %v3150
        %4909 = vmatprep.subr.mxu0 %v3135
        %4910 = vmatpush1.msra.mxu0 %v3134
        %4911 = vmatprep.subr.mxu0 %v3119
        %4912 = vmatpush1.msra.mxu0 %v3118
        %4913 = vmatprep.subr.mxu0 %v3103
        %4914 = vmatpush1.msra.mxu0 %v3102
        %4915 = vmatprep.subr.mxu0 %v3087
        %4916 = vmatpush1.msra.mxu0 %v3086
        %4917 = vmatprep.subr.mxu0 %v3071
        %4918 = vmatpush1.msra.mxu0 %v3070
        %4919 = vmatprep.subr.mxu0 %v3055
        %4920 = vmatpush1.msra.mxu0 %v3054
        %4921 = vmatprep.subr.mxu0 %v3039
        %4922 = vmatpush1.msra.mxu0 %v3038
        %4923 = vmatprep.subr.mxu0 %v3023
        %4924 = vmatpush1.msra.mxu0 %v3022
        %4925 = vmatprep.subr.mxu0 %v3007
        %4926 = vmatpush1.msra.mxu0 %v3006
        %4927 = vmatprep.subr.mxu0 %v2991
        %4928 = vmatpush1.msra.mxu0 %v2990
        %4929 = vmatprep.subr.mxu0 %v2975
        %4930 = vmatpush1.msra.mxu0 %v2974
        %4931 = vmatprep.subr.mxu0 %v2959
        %4932 = vmatpush1.msra.mxu0 %v2958
        %4933 = vmatprep.subr.mxu0 %v2943
        %4934 = vmatpush1.msra.mxu0 %v2942
        %4935 = vmatprep.subr.mxu0 %v2927
        %4936 = vmatpush1.msra.mxu0 %v2926
        %4937 = vmatprep.subr.mxu0 %v3423
        %4938 = vmatpush2.msra.mxu0 %v3422
        %4939 = vmatprep.subr.mxu0 %v3407
        %4940 = vmatpush2.msra.mxu0 %v3406
        %4941 = vmatprep.subr.mxu0 %v3391
        %4942 = vmatpush2.msra.mxu0 %v3390
        %4943 = vmatprep.subr.mxu0 %v3375
        %4944 = vmatpush2.msra.mxu0 %v3374
        %4945 = vmatprep.subr.mxu0 %v3359
        %4946 = vmatpush2.msra.mxu0 %v3358
        %4947 = vmatprep.subr.mxu0 %v3343
        %4948 = vmatpush2.msra.mxu0 %v3342
        %4949 = vmatprep.subr.mxu0 %v3327
        %4950 = vmatpush2.msra.mxu0 %v3326
        %4951 = vmatprep.subr.mxu0 %v3311
        %4952 = vmatpush2.msra.mxu0 %v3310
        %4953 = vmatprep.subr.mxu0 %v3295
        %4954 = vmatpush2.msra.mxu0 %v3294
        %4955 = vmatprep.subr.mxu0 %v3279
        %4956 = vmatpush2.msra.mxu0 %v3278
        %4957 = vmatprep.subr.mxu0 %v3263
        %4958 = vmatpush2.msra.mxu0 %v3262
        %4959 = vmatprep.subr.mxu0 %v3247
        %4960 = vmatpush2.msra.mxu0 %v3246
        %4961 = vmatprep.subr.mxu0 %v3231
        %4962 = vmatpush2.msra.mxu0 %v3230
        %4963 = vmatprep.subr.mxu0 %v3215
        %4964 = vmatpush2.msra.mxu0 %v3214
        %4965 = vmatprep.subr.mxu0 %v3199
        %4966 = vmatpush2.msra.mxu0 %v3198
        %4967 = vmatprep.subr.mxu0 %v3183
        %4968 = vmatpush2.msra.mxu0 %v3182
        %4969 = vmatprep.mubr.f32.mxu0 %v4516
        %4970 = vmatmul.mubr.f32.gmra.mxu0 %v4514
        %v4971 = vpop.f32.mrf.mxu0
        %v4972 = vadd.f32 %v4901, %v4971
        %v4973 = vpop.f32.mrf.mxu0
        %v4974 = vadd.f32 %v4903, %v4973
        %4975 = vdwg.mxu0
        %4976 = vmatprep.subr.mxu0 %v3679
        %4977 = vmatpush1.msra.mxu0 %v3678
        %4978 = vmatprep.subr.mxu0 %v3663
        %4979 = vmatpush1.msra.mxu0 %v3662
        %4980 = vmatprep.subr.mxu0 %v3647
        %4981 = vmatpush1.msra.mxu0 %v3646
        %4982 = vmatprep.subr.mxu0 %v3631
        %4983 = vmatpush1.msra.mxu0 %v3630
        %4984 = vmatprep.subr.mxu0 %v3615
        %4985 = vmatpush1.msra.mxu0 %v3614
        %4986 = vmatprep.subr.mxu0 %v3599
        %4987 = vmatpush1.msra.mxu0 %v3598
        %4988 = vmatprep.subr.mxu0 %v3583
        %4989 = vmatpush1.msra.mxu0 %v3582
        %4990 = vmatprep.subr.mxu0 %v3567
        %4991 = vmatpush1.msra.mxu0 %v3566
        %4992 = vmatprep.subr.mxu0 %v3551
        %4993 = vmatpush1.msra.mxu0 %v3550
        %4994 = vmatprep.subr.mxu0 %v3535
        %4995 = vmatpush1.msra.mxu0 %v3534
        %4996 = vmatprep.subr.mxu0 %v3519
        %4997 = vmatpush1.msra.mxu0 %v3518
        %4998 = vmatprep.subr.mxu0 %v3503
        %4999 = vmatpush1.msra.mxu0 %v3502
        %5000 = vmatprep.subr.mxu0 %v3487
        %5001 = vmatpush1.msra.mxu0 %v3486
        %5002 = vmatprep.subr.mxu0 %v3471
        %5003 = vmatpush1.msra.mxu0 %v3470
        %5004 = vmatprep.subr.mxu0 %v3455
        %5005 = vmatpush1.msra.mxu0 %v3454
        %5006 = vmatprep.subr.mxu0 %v3439
        %5007 = vmatpush1.msra.mxu0 %v3438
        %5008 = vmatprep.subr.mxu0 %v3935
        %5009 = vmatpush2.msra.mxu0 %v3934
        %5010 = vmatprep.subr.mxu0 %v3919
        %5011 = vmatpush2.msra.mxu0 %v3918
        %5012 = vmatprep.subr.mxu0 %v3903
        %5013 = vmatpush2.msra.mxu0 %v3902
        %5014 = vmatprep.subr.mxu0 %v3887
        %5015 = vmatpush2.msra.mxu0 %v3886
        %5016 = vmatprep.subr.mxu0 %v3871
        %5017 = vmatpush2.msra.mxu0 %v3870
        %5018 = vmatprep.subr.mxu0 %v3855
        %5019 = vmatpush2.msra.mxu0 %v3854
        %5020 = vmatprep.subr.mxu0 %v3839
        %5021 = vmatpush2.msra.mxu0 %v3838
        %5022 = vmatprep.subr.mxu0 %v3823
        %5023 = vmatpush2.msra.mxu0 %v3822
        %5024 = vmatprep.subr.mxu0 %v3807
        %5025 = vmatpush2.msra.mxu0 %v3806
        %5026 = vmatprep.subr.mxu0 %v3791
        %5027 = vmatpush2.msra.mxu0 %v3790
        %5028 = vmatprep.subr.mxu0 %v3775
        %5029 = vmatpush2.msra.mxu0 %v3774
        %5030 = vmatprep.subr.mxu0 %v3759
        %5031 = vmatpush2.msra.mxu0 %v3758
        %5032 = vmatprep.subr.mxu0 %v3743
        %5033 = vmatpush2.msra.mxu0 %v3742
        %5034 = vmatprep.subr.mxu0 %v3727
        %5035 = vmatpush2.msra.mxu0 %v3726
        %5036 = vmatprep.subr.mxu0 %v3711
        %5037 = vmatpush2.msra.mxu0 %v3710
        %5038 = vmatprep.subr.mxu0 %v3695
        %5039 = vmatpush2.msra.mxu0 %v3694
        %5040 = vmatprep.mubr.f32.mxu0 %v4532
        %5041 = vmatmul.mubr.f32.gmra.mxu0 %v4524
        %v5042 = vpop.f32.mrf.mxu0
        %v5043 = vadd.f32 %v4972, %v5042
        %v5044 = vpop.f32.mrf.mxu0
        %v5045 = vadd.f32 %v4974, %v5044
        %5046 = vdwg.mxu0
        %5047 = vmatprep.subr.mxu0 %v4191
        %5048 = vmatpush1.msra.mxu0 %v4190
        %5049 = vmatprep.subr.mxu0 %v4175
        %5050 = vmatpush1.msra.mxu0 %v4174
        %5051 = vmatprep.subr.mxu0 %v4159
        %5052 = vmatpush1.msra.mxu0 %v4158
        %5053 = vmatprep.subr.mxu0 %v4143
        %5054 = vmatpush1.msra.mxu0 %v4142
        %5055 = vmatprep.subr.mxu0 %v4127
        %5056 = vmatpush1.msra.mxu0 %v4126
        %5057 = vmatprep.subr.mxu0 %v4111
        %5058 = vmatpush1.msra.mxu0 %v4110
        %5059 = vmatprep.subr.mxu0 %v4095
        %5060 = vmatpush1.msra.mxu0 %v4094
        %5061 = vmatprep.subr.mxu0 %v4079
        %5062 = vmatpush1.msra.mxu0 %v4078
        %5063 = vmatprep.subr.mxu0 %v4063
        %5064 = vmatpush1.msra.mxu0 %v4062
        %5065 = vmatprep.subr.mxu0 %v4047
        %5066 = vmatpush1.msra.mxu0 %v4046
        %5067 = vmatprep.subr.mxu0 %v4031
        %5068 = vmatpush1.msra.mxu0 %v4030
        %5069 = vmatprep.subr.mxu0 %v4015
        %5070 = vmatpush1.msra.mxu0 %v4014
        %5071 = vmatprep.subr.mxu0 %v3999
        %5072 = vmatpush1.msra.mxu0 %v3998
        %5073 = vmatprep.subr.mxu0 %v3983
        %5074 = vmatpush1.msra.mxu0 %v3982
        %5075 = vmatprep.subr.mxu0 %v3967
        %5076 = vmatpush1.msra.mxu0 %v3966
        %5077 = vmatprep.subr.mxu0 %v3951
        %5078 = vmatpush1.msra.mxu0 %v3950
        %5079 = vmatprep.subr.mxu0 %v4447
        %5080 = vmatpush2.msra.mxu0 %v4446
        %5081 = vmatprep.subr.mxu0 %v4431
        %5082 = vmatpush2.msra.mxu0 %v4430
        %5083 = vmatprep.subr.mxu0 %v4415
        %5084 = vmatpush2.msra.mxu0 %v4414
        %5085 = vmatprep.subr.mxu0 %v4399
        %5086 = vmatpush2.msra.mxu0 %v4398
        %5087 = vmatprep.subr.mxu0 %v4383
        %5088 = vmatpush2.msra.mxu0 %v4382
        %5089 = vmatprep.subr.mxu0 %v4367
        %5090 = vmatpush2.msra.mxu0 %v4366
        %5091 = vmatprep.subr.mxu0 %v4351
        %5092 = vmatpush2.msra.mxu0 %v4350
        %5093 = vmatprep.subr.mxu0 %v4335
        %5094 = vmatpush2.msra.mxu0 %v4334
        %5095 = vmatprep.subr.mxu0 %v4319
        %5096 = vmatpush2.msra.mxu0 %v4318
        %5097 = vmatprep.subr.mxu0 %v4303
        %5098 = vmatpush2.msra.mxu0 %v4302
        %5099 = vmatprep.subr.mxu0 %v4287
        %5100 = vmatpush2.msra.mxu0 %v4286
        %5101 = vmatprep.subr.mxu0 %v4271
        %5102 = vmatpush2.msra.mxu0 %v4270
        %5103 = vmatprep.subr.mxu0 %v4255
        %5104 = vmatpush2.msra.mxu0 %v4254
        %5105 = vmatprep.subr.mxu0 %v4239
        %5106 = vmatpush2.msra.mxu0 %v4238
        %5107 = vmatprep.subr.mxu0 %v4223
        %5108 = vmatpush2.msra.mxu0 %v4222
        %5109 = vmatprep.subr.mxu0 %v4207
        %5110 = vmatpush2.msra.mxu0 %v4206
        %5111 = vmatprep.mubr.f32.mxu0 %v4533
        %5112 = vmatmul.mubr.f32.gmra.mxu0 %v4531
        %v5113 = vpop.f32.mrf.mxu0
        %v5114 = vadd.f32 %v5043, %v5113
        %v5115 = vpop.f32.mrf.mxu0
        %v5116 = vadd.f32 %v5045, %v5115
        %5117 = vdwg.mxu0
        %5118 = vmatprep.subr.mxu0 %v609
        %5119 = vmatpush1.msra.mxu0 %v608
        %5120 = vmatprep.subr.mxu0 %v593
        %5121 = vmatpush1.msra.mxu0 %v592
        %5122 = vmatprep.subr.mxu0 %v577
        %5123 = vmatpush1.msra.mxu0 %v576
        %5124 = vmatprep.subr.mxu0 %v561
        %5125 = vmatpush1.msra.mxu0 %v560
        %5126 = vmatprep.subr.mxu0 %v545
        %5127 = vmatpush1.msra.mxu0 %v544
        %5128 = vmatprep.subr.mxu0 %v529
        %5129 = vmatpush1.msra.mxu0 %v528
        %5130 = vmatprep.subr.mxu0 %v513
        %5131 = vmatpush1.msra.mxu0 %v512
        %5132 = vmatprep.subr.mxu0 %v497
        %5133 = vmatpush1.msra.mxu0 %v496
        %5134 = vmatprep.subr.mxu0 %v481
        %5135 = vmatpush1.msra.mxu0 %v480
        %5136 = vmatprep.subr.mxu0 %v465
        %5137 = vmatpush1.msra.mxu0 %v464
        %5138 = vmatprep.subr.mxu0 %v449
        %5139 = vmatpush1.msra.mxu0 %v448
        %5140 = vmatprep.subr.mxu0 %v433
        %5141 = vmatpush1.msra.mxu0 %v432
        %5142 = vmatprep.subr.mxu0 %v417
        %5143 = vmatpush1.msra.mxu0 %v416
        %5144 = vmatprep.subr.mxu0 %v401
        %5145 = vmatpush1.msra.mxu0 %v400
        %5146 = vmatprep.subr.mxu0 %v385
        %5147 = vmatpush1.msra.mxu0 %v384
        %5148 = vmatprep.subr.mxu0 %v369
        %5149 = vmatpush1.msra.mxu0 %v368
        %5150 = vmatprep.subr.mxu0 %v865
        %5151 = vmatpush2.msra.mxu0 %v864
        %5152 = vmatprep.subr.mxu0 %v849
        %5153 = vmatpush2.msra.mxu0 %v848
        %5154 = vmatprep.subr.mxu0 %v833
        %5155 = vmatpush2.msra.mxu0 %v832
        %5156 = vmatprep.subr.mxu0 %v817
        %5157 = vmatpush2.msra.mxu0 %v816
        %5158 = vmatprep.subr.mxu0 %v801
        %5159 = vmatpush2.msra.mxu0 %v800
        %5160 = vmatprep.subr.mxu0 %v785
        %5161 = vmatpush2.msra.mxu0 %v784
        %5162 = vmatprep.subr.mxu0 %v769
        %5163 = vmatpush2.msra.mxu0 %v768
        %5164 = vmatprep.subr.mxu0 %v753
        %5165 = vmatpush2.msra.mxu0 %v752
        %5166 = vmatprep.subr.mxu0 %v737
        %5167 = vmatpush2.msra.mxu0 %v736
        %5168 = vmatprep.subr.mxu0 %v721
        %5169 = vmatpush2.msra.mxu0 %v720
        %5170 = vmatprep.subr.mxu0 %v705
        %5171 = vmatpush2.msra.mxu0 %v704
        %5172 = vmatprep.subr.mxu0 %v689
        %5173 = vmatpush2.msra.mxu0 %v688
        %5174 = vmatprep.subr.mxu0 %v673
        %5175 = vmatpush2.msra.mxu0 %v672
        %5176 = vmatprep.subr.mxu0 %v657
        %5177 = vmatpush2.msra.mxu0 %v656
        %5178 = vmatprep.subr.mxu0 %v641
        %5179 = vmatpush2.msra.mxu0 %v640
        %5180 = vmatprep.subr.mxu0 %v625
        %5181 = vmatpush2.msra.mxu0 %v624
        %5182 = vmatprep.mubr.f32.mxu0 %v4481
        %5183 = vmatmul.mubr.f32.gmra.mxu0 %v4473
        %v5184 = vpop.f32.mrf.mxu0
        %v5185 = vadd.f32 0.0, %v5184
        %v5186 = vpop.f32.mrf.mxu0
        %v5187 = vadd.f32 0.0, %v5186
        %5188 = vdwg.mxu0
        %5189 = vmatprep.subr.mxu0 %v1121
        %5190 = vmatpush1.msra.mxu0 %v1120
        %5191 = vmatprep.subr.mxu0 %v1105
        %5192 = vmatpush1.msra.mxu0 %v1104
        %5193 = vmatprep.subr.mxu0 %v1089
        %5194 = vmatpush1.msra.mxu0 %v1088
        %5195 = vmatprep.subr.mxu0 %v1073
        %5196 = vmatpush1.msra.mxu0 %v1072
        %5197 = vmatprep.subr.mxu0 %v1057
        %5198 = vmatpush1.msra.mxu0 %v1056
        %5199 = vmatprep.subr.mxu0 %v1041
        %5200 = vmatpush1.msra.mxu0 %v1040
        %5201 = vmatprep.subr.mxu0 %v1025
        %5202 = vmatpush1.msra.mxu0 %v1024
        %5203 = vmatprep.subr.mxu0 %v1009
        %5204 = vmatpush1.msra.mxu0 %v1008
        %5205 = vmatprep.subr.mxu0 %v993
        %5206 = vmatpush1.msra.mxu0 %v992
        %5207 = vmatprep.subr.mxu0 %v977
        %5208 = vmatpush1.msra.mxu0 %v976
        %5209 = vmatprep.subr.mxu0 %v961
        %5210 = vmatpush1.msra.mxu0 %v960
        %5211 = vmatprep.subr.mxu0 %v945
        %5212 = vmatpush1.msra.mxu0 %v944
        %5213 = vmatprep.subr.mxu0 %v929
        %5214 = vmatpush1.msra.mxu0 %v928
        %5215 = vmatprep.subr.mxu0 %v913
        %5216 = vmatpush1.msra.mxu0 %v912
        %5217 = vmatprep.subr.mxu0 %v897
        %5218 = vmatpush1.msra.mxu0 %v896
        %5219 = vmatprep.subr.mxu0 %v881
        %5220 = vmatpush1.msra.mxu0 %v880
        %5221 = vmatprep.subr.mxu0 %v1377
        %5222 = vmatpush2.msra.mxu0 %v1376
        %5223 = vmatprep.subr.mxu0 %v1361
        %5224 = vmatpush2.msra.mxu0 %v1360
        %5225 = vmatprep.subr.mxu0 %v1345
        %5226 = vmatpush2.msra.mxu0 %v1344
        %5227 = vmatprep.subr.mxu0 %v1329
        %5228 = vmatpush2.msra.mxu0 %v1328
        %5229 = vmatprep.subr.mxu0 %v1313
        %5230 = vmatpush2.msra.mxu0 %v1312
        %5231 = vmatprep.subr.mxu0 %v1297
        %5232 = vmatpush2.msra.mxu0 %v1296
        %5233 = vmatprep.subr.mxu0 %v1281
        %5234 = vmatpush2.msra.mxu0 %v1280
        %5235 = vmatprep.subr.mxu0 %v1265
        %5236 = vmatpush2.msra.mxu0 %v1264
        %5237 = vmatprep.subr.mxu0 %v1249
        %5238 = vmatpush2.msra.mxu0 %v1248
        %5239 = vmatprep.subr.mxu0 %v1233
        %5240 = vmatpush2.msra.mxu0 %v1232
        %5241 = vmatprep.subr.mxu0 %v1217
        %5242 = vmatpush2.msra.mxu0 %v1216
        %5243 = vmatprep.subr.mxu0 %v1201
        %5244 = vmatpush2.msra.mxu0 %v1200
        %5245 = vmatprep.subr.mxu0 %v1185
        %5246 = vmatpush2.msra.mxu0 %v1184
        %5247 = vmatprep.subr.mxu0 %v1169
        %5248 = vmatpush2.msra.mxu0 %v1168
        %5249 = vmatprep.subr.mxu0 %v1153
        %5250 = vmatpush2.msra.mxu0 %v1152
        %5251 = vmatprep.subr.mxu0 %v1137
        %5252 = vmatpush2.msra.mxu0 %v1136
        %5253 = vmatprep.mubr.f32.mxu0 %v4482
        %5254 = vmatmul.mubr.f32.gmra.mxu0 %v4480
        %v5255 = vpop.f32.mrf.mxu0
        %v5256 = vadd.f32 %v5185, %v5255
        %v5257 = vpop.f32.mrf.mxu0
        %v5258 = vadd.f32 %v5187, %v5257
        %5259 = vdwg.mxu0
        %5260 = vmatprep.subr.mxu0 %v1633
        %5261 = vmatpush1.msra.mxu0 %v1632
        %5262 = vmatprep.subr.mxu0 %v1617
        %5263 = vmatpush1.msra.mxu0 %v1616
        %5264 = vmatprep.subr.mxu0 %v1601
        %5265 = vmatpush1.msra.mxu0 %v1600
        %5266 = vmatprep.subr.mxu0 %v1585
        %5267 = vmatpush1.msra.mxu0 %v1584
        %5268 = vmatprep.subr.mxu0 %v1569
        %5269 = vmatpush1.msra.mxu0 %v1568
        %5270 = vmatprep.subr.mxu0 %v1553
        %5271 = vmatpush1.msra.mxu0 %v1552
        %5272 = vmatprep.subr.mxu0 %v1537
        %5273 = vmatpush1.msra.mxu0 %v1536
        %5274 = vmatprep.subr.mxu0 %v1521
        %5275 = vmatpush1.msra.mxu0 %v1520
        %5276 = vmatprep.subr.mxu0 %v1505
        %5277 = vmatpush1.msra.mxu0 %v1504
        %5278 = vmatprep.subr.mxu0 %v1489
        %5279 = vmatpush1.msra.mxu0 %v1488
        %5280 = vmatprep.subr.mxu0 %v1473
        %5281 = vmatpush1.msra.mxu0 %v1472
        %5282 = vmatprep.subr.mxu0 %v1457
        %5283 = vmatpush1.msra.mxu0 %v1456
        %5284 = vmatprep.subr.mxu0 %v1441
        %5285 = vmatpush1.msra.mxu0 %v1440
        %5286 = vmatprep.subr.mxu0 %v1425
        %5287 = vmatpush1.msra.mxu0 %v1424
        %5288 = vmatprep.subr.mxu0 %v1409
        %5289 = vmatpush1.msra.mxu0 %v1408
        %5290 = vmatprep.subr.mxu0 %v1393
        %5291 = vmatpush1.msra.mxu0 %v1392
        %5292 = vmatprep.subr.mxu0 %v1889
        %5293 = vmatpush2.msra.mxu0 %v1888
        %5294 = vmatprep.subr.mxu0 %v1873
        %5295 = vmatpush2.msra.mxu0 %v1872
        %5296 = vmatprep.subr.mxu0 %v1857
        %5297 = vmatpush2.msra.mxu0 %v1856
        %5298 = vmatprep.subr.mxu0 %v1841
        %5299 = vmatpush2.msra.mxu0 %v1840
        %5300 = vmatprep.subr.mxu0 %v1825
        %5301 = vmatpush2.msra.mxu0 %v1824
        %5302 = vmatprep.subr.mxu0 %v1809
        %5303 = vmatpush2.msra.mxu0 %v1808
        %5304 = vmatprep.subr.mxu0 %v1793
        %5305 = vmatpush2.msra.mxu0 %v1792
        %5306 = vmatprep.subr.mxu0 %v1777
        %5307 = vmatpush2.msra.mxu0 %v1776
        %5308 = vmatprep.subr.mxu0 %v1761
        %5309 = vmatpush2.msra.mxu0 %v1760
        %5310 = vmatprep.subr.mxu0 %v1745
        %5311 = vmatpush2.msra.mxu0 %v1744
        %5312 = vmatprep.subr.mxu0 %v1729
        %5313 = vmatpush2.msra.mxu0 %v1728
        %5314 = vmatprep.subr.mxu0 %v1713
        %5315 = vmatpush2.msra.mxu0 %v1712
        %5316 = vmatprep.subr.mxu0 %v1697
        %5317 = vmatpush2.msra.mxu0 %v1696
        %5318 = vmatprep.subr.mxu0 %v1681
        %5319 = vmatpush2.msra.mxu0 %v1680
        %5320 = vmatprep.subr.mxu0 %v1665
        %5321 = vmatpush2.msra.mxu0 %v1664
        %5322 = vmatprep.subr.mxu0 %v1649
        %5323 = vmatpush2.msra.mxu0 %v1648
        %5324 = vmatprep.mubr.f32.mxu0 %v4498
        %5325 = vmatmul.mubr.f32.gmra.mxu0 %v4490
        %v5326 = vpop.f32.mrf.mxu0
        %v5327 = vadd.f32 %v5256, %v5326
        %v5328 = vpop.f32.mrf.mxu0
        %v5329 = vadd.f32 %v5258, %v5328
        %5330 = vdwg.mxu0
        %5331 = vmatprep.subr.mxu0 %v2145
        %5332 = vmatpush1.msra.mxu0 %v2144
        %5333 = vmatprep.subr.mxu0 %v2129
        %5334 = vmatpush1.msra.mxu0 %v2128
        %5335 = vmatprep.subr.mxu0 %v2113
        %5336 = vmatpush1.msra.mxu0 %v2112
        %5337 = vmatprep.subr.mxu0 %v2097
        %5338 = vmatpush1.msra.mxu0 %v2096
        %5339 = vmatprep.subr.mxu0 %v2081
        %5340 = vmatpush1.msra.mxu0 %v2080
        %5341 = vmatprep.subr.mxu0 %v2065
        %5342 = vmatpush1.msra.mxu0 %v2064
        %5343 = vmatprep.subr.mxu0 %v2049
        %5344 = vmatpush1.msra.mxu0 %v2048
        %5345 = vmatprep.subr.mxu0 %v2033
        %5346 = vmatpush1.msra.mxu0 %v2032
        %5347 = vmatprep.subr.mxu0 %v2017
        %5348 = vmatpush1.msra.mxu0 %v2016
        %5349 = vmatprep.subr.mxu0 %v2001
        %5350 = vmatpush1.msra.mxu0 %v2000
        %5351 = vmatprep.subr.mxu0 %v1985
        %5352 = vmatpush1.msra.mxu0 %v1984
        %5353 = vmatprep.subr.mxu0 %v1969
        %5354 = vmatpush1.msra.mxu0 %v1968
        %5355 = vmatprep.subr.mxu0 %v1953
        %5356 = vmatpush1.msra.mxu0 %v1952
        %5357 = vmatprep.subr.mxu0 %v1937
        %5358 = vmatpush1.msra.mxu0 %v1936
        %5359 = vmatprep.subr.mxu0 %v1921
        %5360 = vmatpush1.msra.mxu0 %v1920
        %5361 = vmatprep.subr.mxu0 %v1905
        %5362 = vmatpush1.msra.mxu0 %v1904
        %5363 = vmatprep.subr.mxu0 %v2401
        %5364 = vmatpush2.msra.mxu0 %v2400
        %5365 = vmatprep.subr.mxu0 %v2385
        %5366 = vmatpush2.msra.mxu0 %v2384
        %5367 = vmatprep.subr.mxu0 %v2369
        %5368 = vmatpush2.msra.mxu0 %v2368
        %5369 = vmatprep.subr.mxu0 %v2353
        %5370 = vmatpush2.msra.mxu0 %v2352
        %5371 = vmatprep.subr.mxu0 %v2337
        %5372 = vmatpush2.msra.mxu0 %v2336
        %5373 = vmatprep.subr.mxu0 %v2321
        %5374 = vmatpush2.msra.mxu0 %v2320
        %5375 = vmatprep.subr.mxu0 %v2305
        %5376 = vmatpush2.msra.mxu0 %v2304
        %5377 = vmatprep.subr.mxu0 %v2289
        %5378 = vmatpush2.msra.mxu0 %v2288
        %5379 = vmatprep.subr.mxu0 %v2273
        %5380 = vmatpush2.msra.mxu0 %v2272
        %5381 = vmatprep.subr.mxu0 %v2257
        %5382 = vmatpush2.msra.mxu0 %v2256
        %5383 = vmatprep.subr.mxu0 %v2241
        %5384 = vmatpush2.msra.mxu0 %v2240
        %5385 = vmatprep.subr.mxu0 %v2225
        %5386 = vmatpush2.msra.mxu0 %v2224
        %5387 = vmatprep.subr.mxu0 %v2209
        %5388 = vmatpush2.msra.mxu0 %v2208
        %5389 = vmatprep.subr.mxu0 %v2193
        %5390 = vmatpush2.msra.mxu0 %v2192
        %5391 = vmatprep.subr.mxu0 %v2177
        %5392 = vmatpush2.msra.mxu0 %v2176
        %5393 = vmatprep.subr.mxu0 %v2161
        %5394 = vmatpush2.msra.mxu0 %v2160
        %5395 = vmatprep.mubr.f32.mxu0 %v4499
        %5396 = vmatmul.mubr.f32.gmra.mxu0 %v4497
        %v5397 = vpop.f32.mrf.mxu0
        %v5398 = vadd.f32 %v5327, %v5397
        %v5399 = vpop.f32.mrf.mxu0
        %v5400 = vadd.f32 %v5329, %v5399
        %5401 = vdwg.mxu0
        %5402 = vmatprep.subr.mxu0 %v2657
        %5403 = vmatpush1.msra.mxu0 %v2656
        %5404 = vmatprep.subr.mxu0 %v2641
        %5405 = vmatpush1.msra.mxu0 %v2640
        %5406 = vmatprep.subr.mxu0 %v2625
        %5407 = vmatpush1.msra.mxu0 %v2624
        %5408 = vmatprep.subr.mxu0 %v2609
        %5409 = vmatpush1.msra.mxu0 %v2608
        %5410 = vmatprep.subr.mxu0 %v2593
        %5411 = vmatpush1.msra.mxu0 %v2592
        %5412 = vmatprep.subr.mxu0 %v2577
        %5413 = vmatpush1.msra.mxu0 %v2576
        %5414 = vmatprep.subr.mxu0 %v2561
        %5415 = vmatpush1.msra.mxu0 %v2560
        %5416 = vmatprep.subr.mxu0 %v2545
        %5417 = vmatpush1.msra.mxu0 %v2544
        %5418 = vmatprep.subr.mxu0 %v2529
        %5419 = vmatpush1.msra.mxu0 %v2528
        %5420 = vmatprep.subr.mxu0 %v2513
        %5421 = vmatpush1.msra.mxu0 %v2512
        %5422 = vmatprep.subr.mxu0 %v2497
        %5423 = vmatpush1.msra.mxu0 %v2496
        %5424 = vmatprep.subr.mxu0 %v2481
        %5425 = vmatpush1.msra.mxu0 %v2480
        %5426 = vmatprep.subr.mxu0 %v2465
        %5427 = vmatpush1.msra.mxu0 %v2464
        %5428 = vmatprep.subr.mxu0 %v2449
        %5429 = vmatpush1.msra.mxu0 %v2448
        %5430 = vmatprep.subr.mxu0 %v2433
        %5431 = vmatpush1.msra.mxu0 %v2432
        %5432 = vmatprep.subr.mxu0 %v2417
        %5433 = vmatpush1.msra.mxu0 %v2416
        %5434 = vmatprep.subr.mxu0 %v2913
        %5435 = vmatpush2.msra.mxu0 %v2912
        %5436 = vmatprep.subr.mxu0 %v2897
        %5437 = vmatpush2.msra.mxu0 %v2896
        %5438 = vmatprep.subr.mxu0 %v2881
        %5439 = vmatpush2.msra.mxu0 %v2880
        %5440 = vmatprep.subr.mxu0 %v2865
        %5441 = vmatpush2.msra.mxu0 %v2864
        %5442 = vmatprep.subr.mxu0 %v2849
        %5443 = vmatpush2.msra.mxu0 %v2848
        %5444 = vmatprep.subr.mxu0 %v2833
        %5445 = vmatpush2.msra.mxu0 %v2832
        %5446 = vmatprep.subr.mxu0 %v2817
        %5447 = vmatpush2.msra.mxu0 %v2816
        %5448 = vmatprep.subr.mxu0 %v2801
        %5449 = vmatpush2.msra.mxu0 %v2800
        %5450 = vmatprep.subr.mxu0 %v2785
        %5451 = vmatpush2.msra.mxu0 %v2784
        %5452 = vmatprep.subr.mxu0 %v2769
        %5453 = vmatpush2.msra.mxu0 %v2768
        %5454 = vmatprep.subr.mxu0 %v2753
        %5455 = vmatpush2.msra.mxu0 %v2752
        %5456 = vmatprep.subr.mxu0 %v2737
        %5457 = vmatpush2.msra.mxu0 %v2736
        %5458 = vmatprep.subr.mxu0 %v2721
        %5459 = vmatpush2.msra.mxu0 %v2720
        %5460 = vmatprep.subr.mxu0 %v2705
        %5461 = vmatpush2.msra.mxu0 %v2704
        %5462 = vmatprep.subr.mxu0 %v2689
        %5463 = vmatpush2.msra.mxu0 %v2688
        %5464 = vmatprep.subr.mxu0 %v2673
        %5465 = vmatpush2.msra.mxu0 %v2672
        %5466 = vmatprep.mubr.f32.mxu0 %v4515
        %5467 = vmatmul.mubr.f32.gmra.mxu0 %v4507
        %v5468 = vpop.f32.mrf.mxu0
        %v5469 = vadd.f32 %v5398, %v5468
        %v5470 = vpop.f32.mrf.mxu0
        %v5471 = vadd.f32 %v5400, %v5470
        %5472 = vdwg.mxu0
        %5473 = vmatprep.subr.mxu0 %v3169
        %5474 = vmatpush1.msra.mxu0 %v3168
        %5475 = vmatprep.subr.mxu0 %v3153
        %5476 = vmatpush1.msra.mxu0 %v3152
        %5477 = vmatprep.subr.mxu0 %v3137
        %5478 = vmatpush1.msra.mxu0 %v3136
        %5479 = vmatprep.subr.mxu0 %v3121
        %5480 = vmatpush1.msra.mxu0 %v3120
        %5481 = vmatprep.subr.mxu0 %v3105
        %5482 = vmatpush1.msra.mxu0 %v3104
        %5483 = vmatprep.subr.mxu0 %v3089
        %5484 = vmatpush1.msra.mxu0 %v3088
        %5485 = vmatprep.subr.mxu0 %v3073
        %5486 = vmatpush1.msra.mxu0 %v3072
        %5487 = vmatprep.subr.mxu0 %v3057
        %5488 = vmatpush1.msra.mxu0 %v3056
        %5489 = vmatprep.subr.mxu0 %v3041
        %5490 = vmatpush1.msra.mxu0 %v3040
        %5491 = vmatprep.subr.mxu0 %v3025
        %5492 = vmatpush1.msra.mxu0 %v3024
        %5493 = vmatprep.subr.mxu0 %v3009
        %5494 = vmatpush1.msra.mxu0 %v3008
        %5495 = vmatprep.subr.mxu0 %v2993
        %5496 = vmatpush1.msra.mxu0 %v2992
        %5497 = vmatprep.subr.mxu0 %v2977
        %5498 = vmatpush1.msra.mxu0 %v2976
        %5499 = vmatprep.subr.mxu0 %v2961
        %5500 = vmatpush1.msra.mxu0 %v2960
        %5501 = vmatprep.subr.mxu0 %v2945
        %5502 = vmatpush1.msra.mxu0 %v2944
        %5503 = vmatprep.subr.mxu0 %v2929
        %5504 = vmatpush1.msra.mxu0 %v2928
        %5505 = vmatprep.subr.mxu0 %v3425
        %5506 = vmatpush2.msra.mxu0 %v3424
        %5507 = vmatprep.subr.mxu0 %v3409
        %5508 = vmatpush2.msra.mxu0 %v3408
        %5509 = vmatprep.subr.mxu0 %v3393
        %5510 = vmatpush2.msra.mxu0 %v3392
        %5511 = vmatprep.subr.mxu0 %v3377
        %5512 = vmatpush2.msra.mxu0 %v3376
        %5513 = vmatprep.subr.mxu0 %v3361
        %5514 = vmatpush2.msra.mxu0 %v3360
        %5515 = vmatprep.subr.mxu0 %v3345
        %5516 = vmatpush2.msra.mxu0 %v3344
        %5517 = vmatprep.subr.mxu0 %v3329
        %5518 = vmatpush2.msra.mxu0 %v3328
        %5519 = vmatprep.subr.mxu0 %v3313
        %5520 = vmatpush2.msra.mxu0 %v3312
        %5521 = vmatprep.subr.mxu0 %v3297
        %5522 = vmatpush2.msra.mxu0 %v3296
        %5523 = vmatprep.subr.mxu0 %v3281
        %5524 = vmatpush2.msra.mxu0 %v3280
        %5525 = vmatprep.subr.mxu0 %v3265
        %5526 = vmatpush2.msra.mxu0 %v3264
        %5527 = vmatprep.subr.mxu0 %v3249
        %5528 = vmatpush2.msra.mxu0 %v3248
        %5529 = vmatprep.subr.mxu0 %v3233
        %5530 = vmatpush2.msra.mxu0 %v3232
        %5531 = vmatprep.subr.mxu0 %v3217
        %5532 = vmatpush2.msra.mxu0 %v3216
        %5533 = vmatprep.subr.mxu0 %v3201
        %5534 = vmatpush2.msra.mxu0 %v3200
        %5535 = vmatprep.subr.mxu0 %v3185
        %5536 = vmatpush2.msra.mxu0 %v3184
        %5537 = vmatprep.mubr.f32.mxu0 %v4516
        %5538 = vmatmul.mubr.f32.gmra.mxu0 %v4514
        %v5539 = vpop.f32.mrf.mxu0
        %v5540 = vadd.f32 %v5469, %v5539
        %v5541 = vpop.f32.mrf.mxu0
        %v5542 = vadd.f32 %v5471, %v5541
        %5543 = vdwg.mxu0
        %5544 = vmatprep.subr.mxu0 %v3681
        %5545 = vmatpush1.msra.mxu0 %v3680
        %5546 = vmatprep.subr.mxu0 %v3665
        %5547 = vmatpush1.msra.mxu0 %v3664
        %5548 = vmatprep.subr.mxu0 %v3649
        %5549 = vmatpush1.msra.mxu0 %v3648
        %5550 = vmatprep.subr.mxu0 %v3633
        %5551 = vmatpush1.msra.mxu0 %v3632
        %5552 = vmatprep.subr.mxu0 %v3617
        %5553 = vmatpush1.msra.mxu0 %v3616
        %5554 = vmatprep.subr.mxu0 %v3601
        %5555 = vmatpush1.msra.mxu0 %v3600
        %5556 = vmatprep.subr.mxu0 %v3585
        %5557 = vmatpush1.msra.mxu0 %v3584
        %5558 = vmatprep.subr.mxu0 %v3569
        %5559 = vmatpush1.msra.mxu0 %v3568
        %5560 = vmatprep.subr.mxu0 %v3553
        %5561 = vmatpush1.msra.mxu0 %v3552
        %5562 = vmatprep.subr.mxu0 %v3537
        %5563 = vmatpush1.msra.mxu0 %v3536
        %5564 = vmatprep.subr.mxu0 %v3521
        %5565 = vmatpush1.msra.mxu0 %v3520
        %5566 = vmatprep.subr.mxu0 %v3505
        %5567 = vmatpush1.msra.mxu0 %v3504
        %5568 = vmatprep.subr.mxu0 %v3489
        %5569 = vmatpush1.msra.mxu0 %v3488
        %5570 = vmatprep.subr.mxu0 %v3473
        %5571 = vmatpush1.msra.mxu0 %v3472
        %5572 = vmatprep.subr.mxu0 %v3457
        %5573 = vmatpush1.msra.mxu0 %v3456
        %5574 = vmatprep.subr.mxu0 %v3441
        %5575 = vmatpush1.msra.mxu0 %v3440
        %5576 = vmatprep.subr.mxu0 %v3937
        %5577 = vmatpush2.msra.mxu0 %v3936
        %5578 = vmatprep.subr.mxu0 %v3921
        %5579 = vmatpush2.msra.mxu0 %v3920
        %5580 = vmatprep.subr.mxu0 %v3905
        %5581 = vmatpush2.msra.mxu0 %v3904
        %5582 = vmatprep.subr.mxu0 %v3889
        %5583 = vmatpush2.msra.mxu0 %v3888
        %5584 = vmatprep.subr.mxu0 %v3873
        %5585 = vmatpush2.msra.mxu0 %v3872
        %5586 = vmatprep.subr.mxu0 %v3857
        %5587 = vmatpush2.msra.mxu0 %v3856
        %5588 = vmatprep.subr.mxu0 %v3841
        %5589 = vmatpush2.msra.mxu0 %v3840
        %5590 = vmatprep.subr.mxu0 %v3825
        %5591 = vmatpush2.msra.mxu0 %v3824
        %5592 = vmatprep.subr.mxu0 %v3809
        %5593 = vmatpush2.msra.mxu0 %v3808
        %5594 = vmatprep.subr.mxu0 %v3793
        %5595 = vmatpush2.msra.mxu0 %v3792
        %5596 = vmatprep.subr.mxu0 %v3777
        %5597 = vmatpush2.msra.mxu0 %v3776
        %5598 = vmatprep.subr.mxu0 %v3761
        %5599 = vmatpush2.msra.mxu0 %v3760
        %5600 = vmatprep.subr.mxu0 %v3745
        %5601 = vmatpush2.msra.mxu0 %v3744
        %5602 = vmatprep.subr.mxu0 %v3729
        %5603 = vmatpush2.msra.mxu0 %v3728
        %5604 = vmatprep.subr.mxu0 %v3713
        %5605 = vmatpush2.msra.mxu0 %v3712
        %5606 = vmatprep.subr.mxu0 %v3697
        %5607 = vmatpush2.msra.mxu0 %v3696
        %5608 = vmatprep.mubr.f32.mxu0 %v4532
        %5609 = vmatmul.mubr.f32.gmra.mxu0 %v4524
        %v5610 = vpop.f32.mrf.mxu0
        %v5611 = vadd.f32 %v5540, %v5610
        %v5612 = vpop.f32.mrf.mxu0
        %v5613 = vadd.f32 %v5542, %v5612
        %5614 = vdwg.mxu0
        %5615 = vmatprep.subr.mxu0 %v4193
        %5616 = vmatpush1.msra.mxu0 %v4192
        %5617 = vmatprep.subr.mxu0 %v4177
        %5618 = vmatpush1.msra.mxu0 %v4176
        %5619 = vmatprep.subr.mxu0 %v4161
        %5620 = vmatpush1.msra.mxu0 %v4160
        %5621 = vmatprep.subr.mxu0 %v4145
        %5622 = vmatpush1.msra.mxu0 %v4144
        %5623 = vmatprep.subr.mxu0 %v4129
        %5624 = vmatpush1.msra.mxu0 %v4128
        %5625 = vmatprep.subr.mxu0 %v4113
        %5626 = vmatpush1.msra.mxu0 %v4112
        %5627 = vmatprep.subr.mxu0 %v4097
        %5628 = vmatpush1.msra.mxu0 %v4096
        %5629 = vmatprep.subr.mxu0 %v4081
        %5630 = vmatpush1.msra.mxu0 %v4080
        %5631 = vmatprep.subr.mxu0 %v4065
        %5632 = vmatpush1.msra.mxu0 %v4064
        %5633 = vmatprep.subr.mxu0 %v4049
        %5634 = vmatpush1.msra.mxu0 %v4048
        %5635 = vmatprep.subr.mxu0 %v4033
        %5636 = vmatpush1.msra.mxu0 %v4032
        %5637 = vmatprep.subr.mxu0 %v4017
        %5638 = vmatpush1.msra.mxu0 %v4016
        %5639 = vmatprep.subr.mxu0 %v4001
        %5640 = vmatpush1.msra.mxu0 %v4000
        %5641 = vmatprep.subr.mxu0 %v3985
        %5642 = vmatpush1.msra.mxu0 %v3984
        %5643 = vmatprep.subr.mxu0 %v3969
        %5644 = vmatpush1.msra.mxu0 %v3968
        %5645 = vmatprep.subr.mxu0 %v3953
        %5646 = vmatpush1.msra.mxu0 %v3952
        %5647 = vmatprep.subr.mxu0 %v4449
        %5648 = vmatpush2.msra.mxu0 %v4448
        %5649 = vmatprep.subr.mxu0 %v4433
        %5650 = vmatpush2.msra.mxu0 %v4432
        %5651 = vmatprep.subr.mxu0 %v4417
        %5652 = vmatpush2.msra.mxu0 %v4416
        %5653 = vmatprep.subr.mxu0 %v4401
        %5654 = vmatpush2.msra.mxu0 %v4400
        %5655 = vmatprep.subr.mxu0 %v4385
        %5656 = vmatpush2.msra.mxu0 %v4384
        %5657 = vmatprep.subr.mxu0 %v4369
        %5658 = vmatpush2.msra.mxu0 %v4368
        %5659 = vmatprep.subr.mxu0 %v4353
        %5660 = vmatpush2.msra.mxu0 %v4352
        %5661 = vmatprep.subr.mxu0 %v4337
        %5662 = vmatpush2.msra.mxu0 %v4336
        %5663 = vmatprep.subr.mxu0 %v4321
        %5664 = vmatpush2.msra.mxu0 %v4320
        %5665 = vmatprep.subr.mxu0 %v4305
        %5666 = vmatpush2.msra.mxu0 %v4304
        %5667 = vmatprep.subr.mxu0 %v4289
        %5668 = vmatpush2.msra.mxu0 %v4288
        %5669 = vmatprep.subr.mxu0 %v4273
        %5670 = vmatpush2.msra.mxu0 %v4272
        %5671 = vmatprep.subr.mxu0 %v4257
        %5672 = vmatpush2.msra.mxu0 %v4256
        %5673 = vmatprep.subr.mxu0 %v4241
        %5674 = vmatpush2.msra.mxu0 %v4240
        %5675 = vmatprep.subr.mxu0 %v4225
        %5676 = vmatpush2.msra.mxu0 %v4224
        %5677 = vmatprep.subr.mxu0 %v4209
        %5678 = vmatpush2.msra.mxu0 %v4208
        %5679 = vmatprep.mubr.f32.mxu0 %v4533
        %5680 = vmatmul.mubr.f32.gmra.mxu0 %v4531
        %v5681 = vpop.f32.mrf.mxu0
        %v5682 = vadd.f32 %v5611, %v5681
        %v5683 = vpop.f32.mrf.mxu0
        %v5684 = vadd.f32 %v5613, %v5683
        %5685 = vdwg.mxu0
        %5686 = vmatprep.subr.mxu0 %v611
        %5687 = vmatpush1.msra.mxu0 %v610
        %5688 = vmatprep.subr.mxu0 %v595
        %5689 = vmatpush1.msra.mxu0 %v594
        %5690 = vmatprep.subr.mxu0 %v579
        %5691 = vmatpush1.msra.mxu0 %v578
        %5692 = vmatprep.subr.mxu0 %v563
        %5693 = vmatpush1.msra.mxu0 %v562
        %5694 = vmatprep.subr.mxu0 %v547
        %5695 = vmatpush1.msra.mxu0 %v546
        %5696 = vmatprep.subr.mxu0 %v531
        %5697 = vmatpush1.msra.mxu0 %v530
        %5698 = vmatprep.subr.mxu0 %v515
        %5699 = vmatpush1.msra.mxu0 %v514
        %5700 = vmatprep.subr.mxu0 %v499
        %5701 = vmatpush1.msra.mxu0 %v498
        %5702 = vmatprep.subr.mxu0 %v483
        %5703 = vmatpush1.msra.mxu0 %v482
        %5704 = vmatprep.subr.mxu0 %v467
        %5705 = vmatpush1.msra.mxu0 %v466
        %5706 = vmatprep.subr.mxu0 %v451
        %5707 = vmatpush1.msra.mxu0 %v450
        %5708 = vmatprep.subr.mxu0 %v435
        %5709 = vmatpush1.msra.mxu0 %v434
        %5710 = vmatprep.subr.mxu0 %v419
        %5711 = vmatpush1.msra.mxu0 %v418
        %5712 = vmatprep.subr.mxu0 %v403
        %5713 = vmatpush1.msra.mxu0 %v402
        %5714 = vmatprep.subr.mxu0 %v387
        %5715 = vmatpush1.msra.mxu0 %v386
        %5716 = vmatprep.subr.mxu0 %v371
        %5717 = vmatpush1.msra.mxu0 %v370
        %5718 = vmatprep.subr.mxu0 %v867
        %5719 = vmatpush2.msra.mxu0 %v866
        %5720 = vmatprep.subr.mxu0 %v851
        %5721 = vmatpush2.msra.mxu0 %v850
        %5722 = vmatprep.subr.mxu0 %v835
        %5723 = vmatpush2.msra.mxu0 %v834
        %5724 = vmatprep.subr.mxu0 %v819
        %5725 = vmatpush2.msra.mxu0 %v818
        %5726 = vmatprep.subr.mxu0 %v803
        %5727 = vmatpush2.msra.mxu0 %v802
        %5728 = vmatprep.subr.mxu0 %v787
        %5729 = vmatpush2.msra.mxu0 %v786
        %5730 = vmatprep.subr.mxu0 %v771
        %5731 = vmatpush2.msra.mxu0 %v770
        %5732 = vmatprep.subr.mxu0 %v755
        %5733 = vmatpush2.msra.mxu0 %v754
        %5734 = vmatprep.subr.mxu0 %v739
        %5735 = vmatpush2.msra.mxu0 %v738
        %5736 = vmatprep.subr.mxu0 %v723
        %5737 = vmatpush2.msra.mxu0 %v722
        %5738 = vmatprep.subr.mxu0 %v707
        %5739 = vmatpush2.msra.mxu0 %v706
        %5740 = vmatprep.subr.mxu0 %v691
        %5741 = vmatpush2.msra.mxu0 %v690
        %5742 = vmatprep.subr.mxu0 %v675
        %5743 = vmatpush2.msra.mxu0 %v674
        %5744 = vmatprep.subr.mxu0 %v659
        %5745 = vmatpush2.msra.mxu0 %v658
        %5746 = vmatprep.subr.mxu0 %v643
        %5747 = vmatpush2.msra.mxu0 %v642
        %5748 = vmatprep.subr.mxu0 %v627
        %5749 = vmatpush2.msra.mxu0 %v626
        %5750 = vmatprep.mubr.f32.mxu0 %v4481
        %5751 = vmatmul.mubr.f32.gmra.mxu0 %v4473
        %v5752 = vpop.f32.mrf.mxu0
        %v5753 = vadd.f32 0.0, %v5752
        %v5754 = vpop.f32.mrf.mxu0
        %v5755 = vadd.f32 0.0, %v5754
        %5756 = vdwg.mxu0
        %5757 = vmatprep.subr.mxu0 %v1123
        %5758 = vmatpush1.msra.mxu0 %v1122
        %5759 = vmatprep.subr.mxu0 %v1107
        %5760 = vmatpush1.msra.mxu0 %v1106
        %5761 = vmatprep.subr.mxu0 %v1091
        %5762 = vmatpush1.msra.mxu0 %v1090
        %5763 = vmatprep.subr.mxu0 %v1075
        %5764 = vmatpush1.msra.mxu0 %v1074
        %5765 = vmatprep.subr.mxu0 %v1059
        %5766 = vmatpush1.msra.mxu0 %v1058
        %5767 = vmatprep.subr.mxu0 %v1043
        %5768 = vmatpush1.msra.mxu0 %v1042
        %5769 = vmatprep.subr.mxu0 %v1027
        %5770 = vmatpush1.msra.mxu0 %v1026
        %5771 = vmatprep.subr.mxu0 %v1011
        %5772 = vmatpush1.msra.mxu0 %v1010
        %5773 = vmatprep.subr.mxu0 %v995
        %5774 = vmatpush1.msra.mxu0 %v994
        %5775 = vmatprep.subr.mxu0 %v979
        %5776 = vmatpush1.msra.mxu0 %v978
        %5777 = vmatprep.subr.mxu0 %v963
        %5778 = vmatpush1.msra.mxu0 %v962
        %5779 = vmatprep.subr.mxu0 %v947
        %5780 = vmatpush1.msra.mxu0 %v946
        %5781 = vmatprep.subr.mxu0 %v931
        %5782 = vmatpush1.msra.mxu0 %v930
        %5783 = vmatprep.subr.mxu0 %v915
        %5784 = vmatpush1.msra.mxu0 %v914
        %5785 = vmatprep.subr.mxu0 %v899
        %5786 = vmatpush1.msra.mxu0 %v898
        %5787 = vmatprep.subr.mxu0 %v883
        %5788 = vmatpush1.msra.mxu0 %v882
        %5789 = vmatprep.subr.mxu0 %v1379
        %5790 = vmatpush2.msra.mxu0 %v1378
        %5791 = vmatprep.subr.mxu0 %v1363
        %5792 = vmatpush2.msra.mxu0 %v1362
        %5793 = vmatprep.subr.mxu0 %v1347
        %5794 = vmatpush2.msra.mxu0 %v1346
        %5795 = vmatprep.subr.mxu0 %v1331
        %5796 = vmatpush2.msra.mxu0 %v1330
        %5797 = vmatprep.subr.mxu0 %v1315
        %5798 = vmatpush2.msra.mxu0 %v1314
        %5799 = vmatprep.subr.mxu0 %v1299
        %5800 = vmatpush2.msra.mxu0 %v1298
        %5801 = vmatprep.subr.mxu0 %v1283
        %5802 = vmatpush2.msra.mxu0 %v1282
        %5803 = vmatprep.subr.mxu0 %v1267
        %5804 = vmatpush2.msra.mxu0 %v1266
        %5805 = vmatprep.subr.mxu0 %v1251
        %5806 = vmatpush2.msra.mxu0 %v1250
        %5807 = vmatprep.subr.mxu0 %v1235
        %5808 = vmatpush2.msra.mxu0 %v1234
        %5809 = vmatprep.subr.mxu0 %v1219
        %5810 = vmatpush2.msra.mxu0 %v1218
        %5811 = vmatprep.subr.mxu0 %v1203
        %5812 = vmatpush2.msra.mxu0 %v1202
        %5813 = vmatprep.subr.mxu0 %v1187
        %5814 = vmatpush2.msra.mxu0 %v1186
        %5815 = vmatprep.subr.mxu0 %v1171
        %5816 = vmatpush2.msra.mxu0 %v1170
        %5817 = vmatprep.subr.mxu0 %v1155
        %5818 = vmatpush2.msra.mxu0 %v1154
        %5819 = vmatprep.subr.mxu0 %v1139
        %5820 = vmatpush2.msra.mxu0 %v1138
        %5821 = vmatprep.mubr.f32.mxu0 %v4482
        %5822 = vmatmul.mubr.f32.gmra.mxu0 %v4480
        %v5823 = vpop.f32.mrf.mxu0
        %v5824 = vadd.f32 %v5753, %v5823
        %v5825 = vpop.f32.mrf.mxu0
        %v5826 = vadd.f32 %v5755, %v5825
        %5827 = vdwg.mxu0
        %5828 = vmatprep.subr.mxu0 %v1635
        %5829 = vmatpush1.msra.mxu0 %v1634
        %5830 = vmatprep.subr.mxu0 %v1619
        %5831 = vmatpush1.msra.mxu0 %v1618
        %5832 = vmatprep.subr.mxu0 %v1603
        %5833 = vmatpush1.msra.mxu0 %v1602
        %5834 = vmatprep.subr.mxu0 %v1587
        %5835 = vmatpush1.msra.mxu0 %v1586
        %5836 = vmatprep.subr.mxu0 %v1571
        %5837 = vmatpush1.msra.mxu0 %v1570
        %5838 = vmatprep.subr.mxu0 %v1555
        %5839 = vmatpush1.msra.mxu0 %v1554
        %5840 = vmatprep.subr.mxu0 %v1539
        %5841 = vmatpush1.msra.mxu0 %v1538
        %5842 = vmatprep.subr.mxu0 %v1523
        %5843 = vmatpush1.msra.mxu0 %v1522
        %5844 = vmatprep.subr.mxu0 %v1507
        %5845 = vmatpush1.msra.mxu0 %v1506
        %5846 = vmatprep.subr.mxu0 %v1491
        %5847 = vmatpush1.msra.mxu0 %v1490
        %5848 = vmatprep.subr.mxu0 %v1475
        %5849 = vmatpush1.msra.mxu0 %v1474
        %5850 = vmatprep.subr.mxu0 %v1459
        %5851 = vmatpush1.msra.mxu0 %v1458
        %5852 = vmatprep.subr.mxu0 %v1443
        %5853 = vmatpush1.msra.mxu0 %v1442
        %5854 = vmatprep.subr.mxu0 %v1427
        %5855 = vmatpush1.msra.mxu0 %v1426
        %5856 = vmatprep.subr.mxu0 %v1411
        %5857 = vmatpush1.msra.mxu0 %v1410
        %5858 = vmatprep.subr.mxu0 %v1395
        %5859 = vmatpush1.msra.mxu0 %v1394
        %5860 = vmatprep.subr.mxu0 %v1891
        %5861 = vmatpush2.msra.mxu0 %v1890
        %5862 = vmatprep.subr.mxu0 %v1875
        %5863 = vmatpush2.msra.mxu0 %v1874
        %5864 = vmatprep.subr.mxu0 %v1859
        %5865 = vmatpush2.msra.mxu0 %v1858
        %5866 = vmatprep.subr.mxu0 %v1843
        %5867 = vmatpush2.msra.mxu0 %v1842
        %5868 = vmatprep.subr.mxu0 %v1827
        %5869 = vmatpush2.msra.mxu0 %v1826
        %5870 = vmatprep.subr.mxu0 %v1811
        %5871 = vmatpush2.msra.mxu0 %v1810
        %5872 = vmatprep.subr.mxu0 %v1795
        %5873 = vmatpush2.msra.mxu0 %v1794
        %5874 = vmatprep.subr.mxu0 %v1779
        %5875 = vmatpush2.msra.mxu0 %v1778
        %5876 = vmatprep.subr.mxu0 %v1763
        %5877 = vmatpush2.msra.mxu0 %v1762
        %5878 = vmatprep.subr.mxu0 %v1747
        %5879 = vmatpush2.msra.mxu0 %v1746
        %5880 = vmatprep.subr.mxu0 %v1731
        %5881 = vmatpush2.msra.mxu0 %v1730
        %5882 = vmatprep.subr.mxu0 %v1715
        %5883 = vmatpush2.msra.mxu0 %v1714
        %5884 = vmatprep.subr.mxu0 %v1699
        %5885 = vmatpush2.msra.mxu0 %v1698
        %5886 = vmatprep.subr.mxu0 %v1683
        %5887 = vmatpush2.msra.mxu0 %v1682
        %5888 = vmatprep.subr.mxu0 %v1667
        %5889 = vmatpush2.msra.mxu0 %v1666
        %5890 = vmatprep.subr.mxu0 %v1651
        %5891 = vmatpush2.msra.mxu0 %v1650
        %5892 = vmatprep.mubr.f32.mxu0 %v4498
        %5893 = vmatmul.mubr.f32.gmra.mxu0 %v4490
        %v5894 = vpop.f32.mrf.mxu0
        %v5895 = vadd.f32 %v5824, %v5894
        %v5896 = vpop.f32.mrf.mxu0
        %v5897 = vadd.f32 %v5826, %v5896
        %5898 = vdwg.mxu0
        %5899 = vmatprep.subr.mxu0 %v2147
        %5900 = vmatpush1.msra.mxu0 %v2146
        %5901 = vmatprep.subr.mxu0 %v2131
        %5902 = vmatpush1.msra.mxu0 %v2130
        %5903 = vmatprep.subr.mxu0 %v2115
        %5904 = vmatpush1.msra.mxu0 %v2114
        %5905 = vmatprep.subr.mxu0 %v2099
        %5906 = vmatpush1.msra.mxu0 %v2098
        %5907 = vmatprep.subr.mxu0 %v2083
        %5908 = vmatpush1.msra.mxu0 %v2082
        %5909 = vmatprep.subr.mxu0 %v2067
        %5910 = vmatpush1.msra.mxu0 %v2066
        %5911 = vmatprep.subr.mxu0 %v2051
        %5912 = vmatpush1.msra.mxu0 %v2050
        %5913 = vmatprep.subr.mxu0 %v2035
        %5914 = vmatpush1.msra.mxu0 %v2034
        %5915 = vmatprep.subr.mxu0 %v2019
        %5916 = vmatpush1.msra.mxu0 %v2018
        %5917 = vmatprep.subr.mxu0 %v2003
        %5918 = vmatpush1.msra.mxu0 %v2002
        %5919 = vmatprep.subr.mxu0 %v1987
        %5920 = vmatpush1.msra.mxu0 %v1986
        %5921 = vmatprep.subr.mxu0 %v1971
        %5922 = vmatpush1.msra.mxu0 %v1970
        %5923 = vmatprep.subr.mxu0 %v1955
        %5924 = vmatpush1.msra.mxu0 %v1954
        %5925 = vmatprep.subr.mxu0 %v1939
        %5926 = vmatpush1.msra.mxu0 %v1938
        %5927 = vmatprep.subr.mxu0 %v1923
        %5928 = vmatpush1.msra.mxu0 %v1922
        %5929 = vmatprep.subr.mxu0 %v1907
        %5930 = vmatpush1.msra.mxu0 %v1906
        %5931 = vmatprep.subr.mxu0 %v2403
        %5932 = vmatpush2.msra.mxu0 %v2402
        %5933 = vmatprep.subr.mxu0 %v2387
        %5934 = vmatpush2.msra.mxu0 %v2386
        %5935 = vmatprep.subr.mxu0 %v2371
        %5936 = vmatpush2.msra.mxu0 %v2370
        %5937 = vmatprep.subr.mxu0 %v2355
        %5938 = vmatpush2.msra.mxu0 %v2354
        %5939 = vmatprep.subr.mxu0 %v2339
        %5940 = vmatpush2.msra.mxu0 %v2338
        %5941 = vmatprep.subr.mxu0 %v2323
        %5942 = vmatpush2.msra.mxu0 %v2322
        %5943 = vmatprep.subr.mxu0 %v2307
        %5944 = vmatpush2.msra.mxu0 %v2306
        %5945 = vmatprep.subr.mxu0 %v2291
        %5946 = vmatpush2.msra.mxu0 %v2290
        %5947 = vmatprep.subr.mxu0 %v2275
        %5948 = vmatpush2.msra.mxu0 %v2274
        %5949 = vmatprep.subr.mxu0 %v2259
        %5950 = vmatpush2.msra.mxu0 %v2258
        %5951 = vmatprep.subr.mxu0 %v2243
        %5952 = vmatpush2.msra.mxu0 %v2242
        %5953 = vmatprep.subr.mxu0 %v2227
        %5954 = vmatpush2.msra.mxu0 %v2226
        %5955 = vmatprep.subr.mxu0 %v2211
        %5956 = vmatpush2.msra.mxu0 %v2210
        %5957 = vmatprep.subr.mxu0 %v2195
        %5958 = vmatpush2.msra.mxu0 %v2194
        %5959 = vmatprep.subr.mxu0 %v2179
        %5960 = vmatpush2.msra.mxu0 %v2178
        %5961 = vmatprep.subr.mxu0 %v2163
        %5962 = vmatpush2.msra.mxu0 %v2162
        %5963 = vmatprep.mubr.f32.mxu0 %v4499
        %5964 = vmatmul.mubr.f32.gmra.mxu0 %v4497
        %v5965 = vpop.f32.mrf.mxu0
        %v5966 = vadd.f32 %v5895, %v5965
        %v5967 = vpop.f32.mrf.mxu0
        %v5968 = vadd.f32 %v5897, %v5967
        %5969 = vdwg.mxu0
        %5970 = vmatprep.subr.mxu0 %v2659
        %5971 = vmatpush1.msra.mxu0 %v2658
        %5972 = vmatprep.subr.mxu0 %v2643
        %5973 = vmatpush1.msra.mxu0 %v2642
        %5974 = vmatprep.subr.mxu0 %v2627
        %5975 = vmatpush1.msra.mxu0 %v2626
        %5976 = vmatprep.subr.mxu0 %v2611
        %5977 = vmatpush1.msra.mxu0 %v2610
        %5978 = vmatprep.subr.mxu0 %v2595
        %5979 = vmatpush1.msra.mxu0 %v2594
        %5980 = vmatprep.subr.mxu0 %v2579
        %5981 = vmatpush1.msra.mxu0 %v2578
        %5982 = vmatprep.subr.mxu0 %v2563
        %5983 = vmatpush1.msra.mxu0 %v2562
        %5984 = vmatprep.subr.mxu0 %v2547
        %5985 = vmatpush1.msra.mxu0 %v2546
        %5986 = vmatprep.subr.mxu0 %v2531
        %5987 = vmatpush1.msra.mxu0 %v2530
        %5988 = vmatprep.subr.mxu0 %v2515
        %5989 = vmatpush1.msra.mxu0 %v2514
        %5990 = vmatprep.subr.mxu0 %v2499
        %5991 = vmatpush1.msra.mxu0 %v2498
        %5992 = vmatprep.subr.mxu0 %v2483
        %5993 = vmatpush1.msra.mxu0 %v2482
        %5994 = vmatprep.subr.mxu0 %v2467
        %5995 = vmatpush1.msra.mxu0 %v2466
        %5996 = vmatprep.subr.mxu0 %v2451
        %5997 = vmatpush1.msra.mxu0 %v2450
        %5998 = vmatprep.subr.mxu0 %v2435
        %5999 = vmatpush1.msra.mxu0 %v2434
        %6000 = vmatprep.subr.mxu0 %v2419
        %6001 = vmatpush1.msra.mxu0 %v2418
        %6002 = vmatprep.subr.mxu0 %v2915
        %6003 = vmatpush2.msra.mxu0 %v2914
        %6004 = vmatprep.subr.mxu0 %v2899
        %6005 = vmatpush2.msra.mxu0 %v2898
        %6006 = vmatprep.subr.mxu0 %v2883
        %6007 = vmatpush2.msra.mxu0 %v2882
        %6008 = vmatprep.subr.mxu0 %v2867
        %6009 = vmatpush2.msra.mxu0 %v2866
        %6010 = vmatprep.subr.mxu0 %v2851
        %6011 = vmatpush2.msra.mxu0 %v2850
        %6012 = vmatprep.subr.mxu0 %v2835
        %6013 = vmatpush2.msra.mxu0 %v2834
        %6014 = vmatprep.subr.mxu0 %v2819
        %6015 = vmatpush2.msra.mxu0 %v2818
        %6016 = vmatprep.subr.mxu0 %v2803
        %6017 = vmatpush2.msra.mxu0 %v2802
        %6018 = vmatprep.subr.mxu0 %v2787
        %6019 = vmatpush2.msra.mxu0 %v2786
        %6020 = vmatprep.subr.mxu0 %v2771
        %6021 = vmatpush2.msra.mxu0 %v2770
        %6022 = vmatprep.subr.mxu0 %v2755
        %6023 = vmatpush2.msra.mxu0 %v2754
        %6024 = vmatprep.subr.mxu0 %v2739
        %6025 = vmatpush2.msra.mxu0 %v2738
        %6026 = vmatprep.subr.mxu0 %v2723
        %6027 = vmatpush2.msra.mxu0 %v2722
        %6028 = vmatprep.subr.mxu0 %v2707
        %6029 = vmatpush2.msra.mxu0 %v2706
        %6030 = vmatprep.subr.mxu0 %v2691
        %6031 = vmatpush2.msra.mxu0 %v2690
        %6032 = vmatprep.subr.mxu0 %v2675
        %6033 = vmatpush2.msra.mxu0 %v2674
        %6034 = vmatprep.mubr.f32.mxu0 %v4515
        %6035 = vmatmul.mubr.f32.gmra.mxu0 %v4507
        %v6036 = vpop.f32.mrf.mxu0
        %v6037 = vadd.f32 %v5966, %v6036
        %v6038 = vpop.f32.mrf.mxu0
        %v6039 = vadd.f32 %v5968, %v6038
        %6040 = vdwg.mxu0
        %6041 = vmatprep.subr.mxu0 %v3171
        %6042 = vmatpush1.msra.mxu0 %v3170
        %6043 = vmatprep.subr.mxu0 %v3155
        %6044 = vmatpush1.msra.mxu0 %v3154
        %6045 = vmatprep.subr.mxu0 %v3139
        %6046 = vmatpush1.msra.mxu0 %v3138
        %6047 = vmatprep.subr.mxu0 %v3123
        %6048 = vmatpush1.msra.mxu0 %v3122
        %6049 = vmatprep.subr.mxu0 %v3107
        %6050 = vmatpush1.msra.mxu0 %v3106
        %6051 = vmatprep.subr.mxu0 %v3091
        %6052 = vmatpush1.msra.mxu0 %v3090
        %6053 = vmatprep.subr.mxu0 %v3075
        %6054 = vmatpush1.msra.mxu0 %v3074
        %6055 = vmatprep.subr.mxu0 %v3059
        %6056 = vmatpush1.msra.mxu0 %v3058
        %6057 = vmatprep.subr.mxu0 %v3043
        %6058 = vmatpush1.msra.mxu0 %v3042
        %6059 = vmatprep.subr.mxu0 %v3027
        %6060 = vmatpush1.msra.mxu0 %v3026
        %6061 = vmatprep.subr.mxu0 %v3011
        %6062 = vmatpush1.msra.mxu0 %v3010
        %6063 = vmatprep.subr.mxu0 %v2995
        %6064 = vmatpush1.msra.mxu0 %v2994
        %6065 = vmatprep.subr.mxu0 %v2979
        %6066 = vmatpush1.msra.mxu0 %v2978
        %6067 = vmatprep.subr.mxu0 %v2963
        %6068 = vmatpush1.msra.mxu0 %v2962
        %6069 = vmatprep.subr.mxu0 %v2947
        %6070 = vmatpush1.msra.mxu0 %v2946
        %6071 = vmatprep.subr.mxu0 %v2931
        %6072 = vmatpush1.msra.mxu0 %v2930
        %6073 = vmatprep.subr.mxu0 %v3427
        %6074 = vmatpush2.msra.mxu0 %v3426
        %6075 = vmatprep.subr.mxu0 %v3411
        %6076 = vmatpush2.msra.mxu0 %v3410
        %6077 = vmatprep.subr.mxu0 %v3395
        %6078 = vmatpush2.msra.mxu0 %v3394
        %6079 = vmatprep.subr.mxu0 %v3379
        %6080 = vmatpush2.msra.mxu0 %v3378
        %6081 = vmatprep.subr.mxu0 %v3363
        %6082 = vmatpush2.msra.mxu0 %v3362
        %6083 = vmatprep.subr.mxu0 %v3347
        %6084 = vmatpush2.msra.mxu0 %v3346
        %6085 = vmatprep.subr.mxu0 %v3331
        %6086 = vmatpush2.msra.mxu0 %v3330
        %6087 = vmatprep.subr.mxu0 %v3315
        %6088 = vmatpush2.msra.mxu0 %v3314
        %6089 = vmatprep.subr.mxu0 %v3299
        %6090 = vmatpush2.msra.mxu0 %v3298
        %6091 = vmatprep.subr.mxu0 %v3283
        %6092 = vmatpush2.msra.mxu0 %v3282
        %6093 = vmatprep.subr.mxu0 %v3267
        %6094 = vmatpush2.msra.mxu0 %v3266
        %6095 = vmatprep.subr.mxu0 %v3251
        %6096 = vmatpush2.msra.mxu0 %v3250
        %6097 = vmatprep.subr.mxu0 %v3235
        %6098 = vmatpush2.msra.mxu0 %v3234
        %6099 = vmatprep.subr.mxu0 %v3219
        %6100 = vmatpush2.msra.mxu0 %v3218
        %6101 = vmatprep.subr.mxu0 %v3203
        %6102 = vmatpush2.msra.mxu0 %v3202
        %6103 = vmatprep.subr.mxu0 %v3187
        %6104 = vmatpush2.msra.mxu0 %v3186
        %6105 = vmatprep.mubr.f32.mxu0 %v4516
        %6106 = vmatmul.mubr.f32.gmra.mxu0 %v4514
        %v6107 = vpop.f32.mrf.mxu0
        %v6108 = vadd.f32 %v6037, %v6107
        %v6109 = vpop.f32.mrf.mxu0
        %v6110 = vadd.f32 %v6039, %v6109
        %6111 = vdwg.mxu0
        %6112 = vmatprep.subr.mxu0 %v3683
        %6113 = vmatpush1.msra.mxu0 %v3682
        %6114 = vmatprep.subr.mxu0 %v3667
        %6115 = vmatpush1.msra.mxu0 %v3666
        %6116 = vmatprep.subr.mxu0 %v3651
        %6117 = vmatpush1.msra.mxu0 %v3650
        %6118 = vmatprep.subr.mxu0 %v3635
        %6119 = vmatpush1.msra.mxu0 %v3634
        %6120 = vmatprep.subr.mxu0 %v3619
        %6121 = vmatpush1.msra.mxu0 %v3618
        %6122 = vmatprep.subr.mxu0 %v3603
        %6123 = vmatpush1.msra.mxu0 %v3602
        %6124 = vmatprep.subr.mxu0 %v3587
        %6125 = vmatpush1.msra.mxu0 %v3586
        %6126 = vmatprep.subr.mxu0 %v3571
        %6127 = vmatpush1.msra.mxu0 %v3570
        %6128 = vmatprep.subr.mxu0 %v3555
        %6129 = vmatpush1.msra.mxu0 %v3554
        %6130 = vmatprep.subr.mxu0 %v3539
        %6131 = vmatpush1.msra.mxu0 %v3538
        %6132 = vmatprep.subr.mxu0 %v3523
        %6133 = vmatpush1.msra.mxu0 %v3522
        %6134 = vmatprep.subr.mxu0 %v3507
        %6135 = vmatpush1.msra.mxu0 %v3506
        %6136 = vmatprep.subr.mxu0 %v3491
        %6137 = vmatpush1.msra.mxu0 %v3490
        %6138 = vmatprep.subr.mxu0 %v3475
        %6139 = vmatpush1.msra.mxu0 %v3474
        %6140 = vmatprep.subr.mxu0 %v3459
        %6141 = vmatpush1.msra.mxu0 %v3458
        %6142 = vmatprep.subr.mxu0 %v3443
        %6143 = vmatpush1.msra.mxu0 %v3442
        %6144 = vmatprep.subr.mxu0 %v3939
        %6145 = vmatpush2.msra.mxu0 %v3938
        %6146 = vmatprep.subr.mxu0 %v3923
        %6147 = vmatpush2.msra.mxu0 %v3922
        %6148 = vmatprep.subr.mxu0 %v3907
        %6149 = vmatpush2.msra.mxu0 %v3906
        %6150 = vmatprep.subr.mxu0 %v3891
        %6151 = vmatpush2.msra.mxu0 %v3890
        %6152 = vmatprep.subr.mxu0 %v3875
        %6153 = vmatpush2.msra.mxu0 %v3874
        %6154 = vmatprep.subr.mxu0 %v3859
        %6155 = vmatpush2.msra.mxu0 %v3858
        %6156 = vmatprep.subr.mxu0 %v3843
        %6157 = vmatpush2.msra.mxu0 %v3842
        %6158 = vmatprep.subr.mxu0 %v3827
        %6159 = vmatpush2.msra.mxu0 %v3826
        %6160 = vmatprep.subr.mxu0 %v3811
        %6161 = vmatpush2.msra.mxu0 %v3810
        %6162 = vmatprep.subr.mxu0 %v3795
        %6163 = vmatpush2.msra.mxu0 %v3794
        %6164 = vmatprep.subr.mxu0 %v3779
        %6165 = vmatpush2.msra.mxu0 %v3778
        %6166 = vmatprep.subr.mxu0 %v3763
        %6167 = vmatpush2.msra.mxu0 %v3762
        %6168 = vmatprep.subr.mxu0 %v3747
        %6169 = vmatpush2.msra.mxu0 %v3746
        %6170 = vmatprep.subr.mxu0 %v3731
        %6171 = vmatpush2.msra.mxu0 %v3730
        %6172 = vmatprep.subr.mxu0 %v3715
        %6173 = vmatpush2.msra.mxu0 %v3714
        %6174 = vmatprep.subr.mxu0 %v3699
        %6175 = vmatpush2.msra.mxu0 %v3698
        %6176 = vmatprep.mubr.f32.mxu0 %v4532
        %6177 = vmatmul.mubr.f32.gmra.mxu0 %v4524
        %v6178 = vpop.f32.mrf.mxu0
        %v6179 = vadd.f32 %v6108, %v6178
        %v6180 = vpop.f32.mrf.mxu0
        %v6181 = vadd.f32 %v6110, %v6180
        %6182 = vdwg.mxu0
        %6183 = vmatprep.subr.mxu0 %v4195
        %6184 = vmatpush1.msra.mxu0 %v4194
        %6185 = vmatprep.subr.mxu0 %v4179
        %6186 = vmatpush1.msra.mxu0 %v4178
        %6187 = vmatprep.subr.mxu0 %v4163
        %6188 = vmatpush1.msra.mxu0 %v4162
        %6189 = vmatprep.subr.mxu0 %v4147
        %6190 = vmatpush1.msra.mxu0 %v4146
        %6191 = vmatprep.subr.mxu0 %v4131
        %6192 = vmatpush1.msra.mxu0 %v4130
        %6193 = vmatprep.subr.mxu0 %v4115
        %6194 = vmatpush1.msra.mxu0 %v4114
        %6195 = vmatprep.subr.mxu0 %v4099
        %6196 = vmatpush1.msra.mxu0 %v4098
        %6197 = vmatprep.subr.mxu0 %v4083
        %6198 = vmatpush1.msra.mxu0 %v4082
        %6199 = vmatprep.subr.mxu0 %v4067
        %6200 = vmatpush1.msra.mxu0 %v4066
        %6201 = vmatprep.subr.mxu0 %v4051
        %6202 = vmatpush1.msra.mxu0 %v4050
        %6203 = vmatprep.subr.mxu0 %v4035
        %6204 = vmatpush1.msra.mxu0 %v4034
        %6205 = vmatprep.subr.mxu0 %v4019
        %6206 = vmatpush1.msra.mxu0 %v4018
        %6207 = vmatprep.subr.mxu0 %v4003
        %6208 = vmatpush1.msra.mxu0 %v4002
        %6209 = vmatprep.subr.mxu0 %v3987
        %6210 = vmatpush1.msra.mxu0 %v3986
        %6211 = vmatprep.subr.mxu0 %v3971
        %6212 = vmatpush1.msra.mxu0 %v3970
        %6213 = vmatprep.subr.mxu0 %v3955
        %6214 = vmatpush1.msra.mxu0 %v3954
        %6215 = vmatprep.subr.mxu0 %v4451
        %6216 = vmatpush2.msra.mxu0 %v4450
        %6217 = vmatprep.subr.mxu0 %v4435
        %6218 = vmatpush2.msra.mxu0 %v4434
        %6219 = vmatprep.subr.mxu0 %v4419
        %6220 = vmatpush2.msra.mxu0 %v4418
        %6221 = vmatprep.subr.mxu0 %v4403
        %6222 = vmatpush2.msra.mxu0 %v4402
        %6223 = vmatprep.subr.mxu0 %v4387
        %6224 = vmatpush2.msra.mxu0 %v4386
        %6225 = vmatprep.subr.mxu0 %v4371
        %6226 = vmatpush2.msra.mxu0 %v4370
        %6227 = vmatprep.subr.mxu0 %v4355
        %6228 = vmatpush2.msra.mxu0 %v4354
        %6229 = vmatprep.subr.mxu0 %v4339
        %6230 = vmatpush2.msra.mxu0 %v4338
        %6231 = vmatprep.subr.mxu0 %v4323
        %6232 = vmatpush2.msra.mxu0 %v4322
        %6233 = vmatprep.subr.mxu0 %v4307
        %6234 = vmatpush2.msra.mxu0 %v4306
        %6235 = vmatprep.subr.mxu0 %v4291
        %6236 = vmatpush2.msra.mxu0 %v4290
        %6237 = vmatprep.subr.mxu0 %v4275
        %6238 = vmatpush2.msra.mxu0 %v4274
        %6239 = vmatprep.subr.mxu0 %v4259
        %6240 = vmatpush2.msra.mxu0 %v4258
        %6241 = vmatprep.subr.mxu0 %v4243
        %6242 = vmatpush2.msra.mxu0 %v4242
        %6243 = vmatprep.subr.mxu0 %v4227
        %6244 = vmatpush2.msra.mxu0 %v4226
        %6245 = vmatprep.subr.mxu0 %v4211
        %6246 = vmatpush2.msra.mxu0 %v4210
        %6247 = vmatprep.mubr.f32.mxu0 %v4533
        %6248 = vmatmul.mubr.f32.gmra.mxu0 %v4531
        %v6249 = vpop.f32.mrf.mxu0
        %v6250 = vadd.f32 %v6179, %v6249
        %v6251 = vpop.f32.mrf.mxu0
        %v6252 = vadd.f32 %v6181, %v6251
        %6253 = vdwg.mxu0
        %6254 = vmatprep.subr.mxu0 %v613
        %6255 = vmatpush1.msra.mxu0 %v612
        %6256 = vmatprep.subr.mxu0 %v597
        %6257 = vmatpush1.msra.mxu0 %v596
        %6258 = vmatprep.subr.mxu0 %v581
        %6259 = vmatpush1.msra.mxu0 %v580
        %6260 = vmatprep.subr.mxu0 %v565
        %6261 = vmatpush1.msra.mxu0 %v564
        %6262 = vmatprep.subr.mxu0 %v549
        %6263 = vmatpush1.msra.mxu0 %v548
        %6264 = vmatprep.subr.mxu0 %v533
        %6265 = vmatpush1.msra.mxu0 %v532
        %6266 = vmatprep.subr.mxu0 %v517
        %6267 = vmatpush1.msra.mxu0 %v516
        %6268 = vmatprep.subr.mxu0 %v501
        %6269 = vmatpush1.msra.mxu0 %v500
        %6270 = vmatprep.subr.mxu0 %v485
        %6271 = vmatpush1.msra.mxu0 %v484
        %6272 = vmatprep.subr.mxu0 %v469
        %6273 = vmatpush1.msra.mxu0 %v468
        %6274 = vmatprep.subr.mxu0 %v453
        %6275 = vmatpush1.msra.mxu0 %v452
        %6276 = vmatprep.subr.mxu0 %v437
        %6277 = vmatpush1.msra.mxu0 %v436
        %6278 = vmatprep.subr.mxu0 %v421
        %6279 = vmatpush1.msra.mxu0 %v420
        %6280 = vmatprep.subr.mxu0 %v405
        %6281 = vmatpush1.msra.mxu0 %v404
        %6282 = vmatprep.subr.mxu0 %v389
        %6283 = vmatpush1.msra.mxu0 %v388
        %6284 = vmatprep.subr.mxu0 %v373
        %6285 = vmatpush1.msra.mxu0 %v372
        %6286 = vmatprep.subr.mxu0 %v869
        %6287 = vmatpush2.msra.mxu0 %v868
        %6288 = vmatprep.subr.mxu0 %v853
        %6289 = vmatpush2.msra.mxu0 %v852
        %6290 = vmatprep.subr.mxu0 %v837
        %6291 = vmatpush2.msra.mxu0 %v836
        %6292 = vmatprep.subr.mxu0 %v821
        %6293 = vmatpush2.msra.mxu0 %v820
        %6294 = vmatprep.subr.mxu0 %v805
        %6295 = vmatpush2.msra.mxu0 %v804
        %6296 = vmatprep.subr.mxu0 %v789
        %6297 = vmatpush2.msra.mxu0 %v788
        %6298 = vmatprep.subr.mxu0 %v773
        %6299 = vmatpush2.msra.mxu0 %v772
        %6300 = vmatprep.subr.mxu0 %v757
        %6301 = vmatpush2.msra.mxu0 %v756
        %6302 = vmatprep.subr.mxu0 %v741
        %6303 = vmatpush2.msra.mxu0 %v740
        %6304 = vmatprep.subr.mxu0 %v725
        %6305 = vmatpush2.msra.mxu0 %v724
        %6306 = vmatprep.subr.mxu0 %v709
        %6307 = vmatpush2.msra.mxu0 %v708
        %6308 = vmatprep.subr.mxu0 %v693
        %6309 = vmatpush2.msra.mxu0 %v692
        %6310 = vmatprep.subr.mxu0 %v677
        %6311 = vmatpush2.msra.mxu0 %v676
        %6312 = vmatprep.subr.mxu0 %v661
        %6313 = vmatpush2.msra.mxu0 %v660
        %6314 = vmatprep.subr.mxu0 %v645
        %6315 = vmatpush2.msra.mxu0 %v644
        %6316 = vmatprep.subr.mxu0 %v629
        %6317 = vmatpush2.msra.mxu0 %v628
        %6318 = vmatprep.mubr.f32.mxu0 %v4481
        %6319 = vmatmul.mubr.f32.gmra.mxu0 %v4473
        %v6320 = vpop.f32.mrf.mxu0
        %v6321 = vadd.f32 0.0, %v6320
        %v6322 = vpop.f32.mrf.mxu0
        %v6323 = vadd.f32 0.0, %v6322
        %6324 = vdwg.mxu0
        %6325 = vmatprep.subr.mxu0 %v1125
        %6326 = vmatpush1.msra.mxu0 %v1124
        %6327 = vmatprep.subr.mxu0 %v1109
        %6328 = vmatpush1.msra.mxu0 %v1108
        %6329 = vmatprep.subr.mxu0 %v1093
        %6330 = vmatpush1.msra.mxu0 %v1092
        %6331 = vmatprep.subr.mxu0 %v1077
        %6332 = vmatpush1.msra.mxu0 %v1076
        %6333 = vmatprep.subr.mxu0 %v1061
        %6334 = vmatpush1.msra.mxu0 %v1060
        %6335 = vmatprep.subr.mxu0 %v1045
        %6336 = vmatpush1.msra.mxu0 %v1044
        %6337 = vmatprep.subr.mxu0 %v1029
        %6338 = vmatpush1.msra.mxu0 %v1028
        %6339 = vmatprep.subr.mxu0 %v1013
        %6340 = vmatpush1.msra.mxu0 %v1012
        %6341 = vmatprep.subr.mxu0 %v997
        %6342 = vmatpush1.msra.mxu0 %v996
        %6343 = vmatprep.subr.mxu0 %v981
        %6344 = vmatpush1.msra.mxu0 %v980
        %6345 = vmatprep.subr.mxu0 %v965
        %6346 = vmatpush1.msra.mxu0 %v964
        %6347 = vmatprep.subr.mxu0 %v949
        %6348 = vmatpush1.msra.mxu0 %v948
        %6349 = vmatprep.subr.mxu0 %v933
        %6350 = vmatpush1.msra.mxu0 %v932
        %6351 = vmatprep.subr.mxu0 %v917
        %6352 = vmatpush1.msra.mxu0 %v916
        %6353 = vmatprep.subr.mxu0 %v901
        %6354 = vmatpush1.msra.mxu0 %v900
        %6355 = vmatprep.subr.mxu0 %v885
        %6356 = vmatpush1.msra.mxu0 %v884
        %6357 = vmatprep.subr.mxu0 %v1381
        %6358 = vmatpush2.msra.mxu0 %v1380
        %6359 = vmatprep.subr.mxu0 %v1365
        %6360 = vmatpush2.msra.mxu0 %v1364
        %6361 = vmatprep.subr.mxu0 %v1349
        %6362 = vmatpush2.msra.mxu0 %v1348
        %6363 = vmatprep.subr.mxu0 %v1333
        %6364 = vmatpush2.msra.mxu0 %v1332
        %6365 = vmatprep.subr.mxu0 %v1317
        %6366 = vmatpush2.msra.mxu0 %v1316
        %6367 = vmatprep.subr.mxu0 %v1301
        %6368 = vmatpush2.msra.mxu0 %v1300
        %6369 = vmatprep.subr.mxu0 %v1285
        %6370 = vmatpush2.msra.mxu0 %v1284
        %6371 = vmatprep.subr.mxu0 %v1269
        %6372 = vmatpush2.msra.mxu0 %v1268
        %6373 = vmatprep.subr.mxu0 %v1253
        %6374 = vmatpush2.msra.mxu0 %v1252
        %6375 = vmatprep.subr.mxu0 %v1237
        %6376 = vmatpush2.msra.mxu0 %v1236
        %6377 = vmatprep.subr.mxu0 %v1221
        %6378 = vmatpush2.msra.mxu0 %v1220
        %6379 = vmatprep.subr.mxu0 %v1205
        %6380 = vmatpush2.msra.mxu0 %v1204
        %6381 = vmatprep.subr.mxu0 %v1189
        %6382 = vmatpush2.msra.mxu0 %v1188
        %6383 = vmatprep.subr.mxu0 %v1173
        %6384 = vmatpush2.msra.mxu0 %v1172
        %6385 = vmatprep.subr.mxu0 %v1157
        %6386 = vmatpush2.msra.mxu0 %v1156
        %6387 = vmatprep.subr.mxu0 %v1141
        %6388 = vmatpush2.msra.mxu0 %v1140
        %6389 = vmatprep.mubr.f32.mxu0 %v4482
        %6390 = vmatmul.mubr.f32.gmra.mxu0 %v4480
        %v6391 = vpop.f32.mrf.mxu0
        %v6392 = vadd.f32 %v6321, %v6391
        %v6393 = vpop.f32.mrf.mxu0
        %v6394 = vadd.f32 %v6323, %v6393
        %6395 = vdwg.mxu0
        %6396 = vmatprep.subr.mxu0 %v1637
        %6397 = vmatpush1.msra.mxu0 %v1636
        %6398 = vmatprep.subr.mxu0 %v1621
        %6399 = vmatpush1.msra.mxu0 %v1620
        %6400 = vmatprep.subr.mxu0 %v1605
        %6401 = vmatpush1.msra.mxu0 %v1604
        %6402 = vmatprep.subr.mxu0 %v1589
        %6403 = vmatpush1.msra.mxu0 %v1588
        %6404 = vmatprep.subr.mxu0 %v1573
        %6405 = vmatpush1.msra.mxu0 %v1572
        %6406 = vmatprep.subr.mxu0 %v1557
        %6407 = vmatpush1.msra.mxu0 %v1556
        %6408 = vmatprep.subr.mxu0 %v1541
        %6409 = vmatpush1.msra.mxu0 %v1540
        %6410 = vmatprep.subr.mxu0 %v1525
        %6411 = vmatpush1.msra.mxu0 %v1524
        %6412 = vmatprep.subr.mxu0 %v1509
        %6413 = vmatpush1.msra.mxu0 %v1508
        %6414 = vmatprep.subr.mxu0 %v1493
        %6415 = vmatpush1.msra.mxu0 %v1492
        %6416 = vmatprep.subr.mxu0 %v1477
        %6417 = vmatpush1.msra.mxu0 %v1476
        %6418 = vmatprep.subr.mxu0 %v1461
        %6419 = vmatpush1.msra.mxu0 %v1460
        %6420 = vmatprep.subr.mxu0 %v1445
        %6421 = vmatpush1.msra.mxu0 %v1444
        %6422 = vmatprep.subr.mxu0 %v1429
        %6423 = vmatpush1.msra.mxu0 %v1428
        %6424 = vmatprep.subr.mxu0 %v1413
        %6425 = vmatpush1.msra.mxu0 %v1412
        %6426 = vmatprep.subr.mxu0 %v1397
        %6427 = vmatpush1.msra.mxu0 %v1396
        %6428 = vmatprep.subr.mxu0 %v1893
        %6429 = vmatpush2.msra.mxu0 %v1892
        %6430 = vmatprep.subr.mxu0 %v1877
        %6431 = vmatpush2.msra.mxu0 %v1876
        %6432 = vmatprep.subr.mxu0 %v1861
        %6433 = vmatpush2.msra.mxu0 %v1860
        %6434 = vmatprep.subr.mxu0 %v1845
        %6435 = vmatpush2.msra.mxu0 %v1844
        %6436 = vmatprep.subr.mxu0 %v1829
        %6437 = vmatpush2.msra.mxu0 %v1828
        %6438 = vmatprep.subr.mxu0 %v1813
        %6439 = vmatpush2.msra.mxu0 %v1812
        %6440 = vmatprep.subr.mxu0 %v1797
        %6441 = vmatpush2.msra.mxu0 %v1796
        %6442 = vmatprep.subr.mxu0 %v1781
        %6443 = vmatpush2.msra.mxu0 %v1780
        %6444 = vmatprep.subr.mxu0 %v1765
        %6445 = vmatpush2.msra.mxu0 %v1764
        %6446 = vmatprep.subr.mxu0 %v1749
        %6447 = vmatpush2.msra.mxu0 %v1748
        %6448 = vmatprep.subr.mxu0 %v1733
        %6449 = vmatpush2.msra.mxu0 %v1732
        %6450 = vmatprep.subr.mxu0 %v1717
        %6451 = vmatpush2.msra.mxu0 %v1716
        %6452 = vmatprep.subr.mxu0 %v1701
        %6453 = vmatpush2.msra.mxu0 %v1700
        %6454 = vmatprep.subr.mxu0 %v1685
        %6455 = vmatpush2.msra.mxu0 %v1684
        %6456 = vmatprep.subr.mxu0 %v1669
        %6457 = vmatpush2.msra.mxu0 %v1668
        %6458 = vmatprep.subr.mxu0 %v1653
        %6459 = vmatpush2.msra.mxu0 %v1652
        %6460 = vmatprep.mubr.f32.mxu0 %v4498
        %6461 = vmatmul.mubr.f32.gmra.mxu0 %v4490
        %v6462 = vpop.f32.mrf.mxu0
        %v6463 = vadd.f32 %v6392, %v6462
        %v6464 = vpop.f32.mrf.mxu0
        %v6465 = vadd.f32 %v6394, %v6464
        %6466 = vdwg.mxu0
        %6467 = vmatprep.subr.mxu0 %v2149
        %6468 = vmatpush1.msra.mxu0 %v2148
        %6469 = vmatprep.subr.mxu0 %v2133
        %6470 = vmatpush1.msra.mxu0 %v2132
        %6471 = vmatprep.subr.mxu0 %v2117
        %6472 = vmatpush1.msra.mxu0 %v2116
        %6473 = vmatprep.subr.mxu0 %v2101
        %6474 = vmatpush1.msra.mxu0 %v2100
        %6475 = vmatprep.subr.mxu0 %v2085
        %6476 = vmatpush1.msra.mxu0 %v2084
        %6477 = vmatprep.subr.mxu0 %v2069
        %6478 = vmatpush1.msra.mxu0 %v2068
        %6479 = vmatprep.subr.mxu0 %v2053
        %6480 = vmatpush1.msra.mxu0 %v2052
        %6481 = vmatprep.subr.mxu0 %v2037
        %6482 = vmatpush1.msra.mxu0 %v2036
        %6483 = vmatprep.subr.mxu0 %v2021
        %6484 = vmatpush1.msra.mxu0 %v2020
        %6485 = vmatprep.subr.mxu0 %v2005
        %6486 = vmatpush1.msra.mxu0 %v2004
        %6487 = vmatprep.subr.mxu0 %v1989
        %6488 = vmatpush1.msra.mxu0 %v1988
        %6489 = vmatprep.subr.mxu0 %v1973
        %6490 = vmatpush1.msra.mxu0 %v1972
        %6491 = vmatprep.subr.mxu0 %v1957
        %6492 = vmatpush1.msra.mxu0 %v1956
        %6493 = vmatprep.subr.mxu0 %v1941
        %6494 = vmatpush1.msra.mxu0 %v1940
        %6495 = vmatprep.subr.mxu0 %v1925
        %6496 = vmatpush1.msra.mxu0 %v1924
        %6497 = vmatprep.subr.mxu0 %v1909
        %6498 = vmatpush1.msra.mxu0 %v1908
        %6499 = vmatprep.subr.mxu0 %v2405
        %6500 = vmatpush2.msra.mxu0 %v2404
        %6501 = vmatprep.subr.mxu0 %v2389
        %6502 = vmatpush2.msra.mxu0 %v2388
        %6503 = vmatprep.subr.mxu0 %v2373
        %6504 = vmatpush2.msra.mxu0 %v2372
        %6505 = vmatprep.subr.mxu0 %v2357
        %6506 = vmatpush2.msra.mxu0 %v2356
        %6507 = vmatprep.subr.mxu0 %v2341
        %6508 = vmatpush2.msra.mxu0 %v2340
        %6509 = vmatprep.subr.mxu0 %v2325
        %6510 = vmatpush2.msra.mxu0 %v2324
        %6511 = vmatprep.subr.mxu0 %v2309
        %6512 = vmatpush2.msra.mxu0 %v2308
        %6513 = vmatprep.subr.mxu0 %v2293
        %6514 = vmatpush2.msra.mxu0 %v2292
        %6515 = vmatprep.subr.mxu0 %v2277
        %6516 = vmatpush2.msra.mxu0 %v2276
        %6517 = vmatprep.subr.mxu0 %v2261
        %6518 = vmatpush2.msra.mxu0 %v2260
        %6519 = vmatprep.subr.mxu0 %v2245
        %6520 = vmatpush2.msra.mxu0 %v2244
        %6521 = vmatprep.subr.mxu0 %v2229
        %6522 = vmatpush2.msra.mxu0 %v2228
        %6523 = vmatprep.subr.mxu0 %v2213
        %6524 = vmatpush2.msra.mxu0 %v2212
        %6525 = vmatprep.subr.mxu0 %v2197
        %6526 = vmatpush2.msra.mxu0 %v2196
        %6527 = vmatprep.subr.mxu0 %v2181
        %6528 = vmatpush2.msra.mxu0 %v2180
        %6529 = vmatprep.subr.mxu0 %v2165
        %6530 = vmatpush2.msra.mxu0 %v2164
        %6531 = vmatprep.mubr.f32.mxu0 %v4499
        %6532 = vmatmul.mubr.f32.gmra.mxu0 %v4497
        %v6533 = vpop.f32.mrf.mxu0
        %v6534 = vadd.f32 %v6463, %v6533
        %v6535 = vpop.f32.mrf.mxu0
        %v6536 = vadd.f32 %v6465, %v6535
        %6537 = vdwg.mxu0
        %6538 = vmatprep.subr.mxu0 %v2661
        %6539 = vmatpush1.msra.mxu0 %v2660
        %6540 = vmatprep.subr.mxu0 %v2645
        %6541 = vmatpush1.msra.mxu0 %v2644
        %6542 = vmatprep.subr.mxu0 %v2629
        %6543 = vmatpush1.msra.mxu0 %v2628
        %6544 = vmatprep.subr.mxu0 %v2613
        %6545 = vmatpush1.msra.mxu0 %v2612
        %6546 = vmatprep.subr.mxu0 %v2597
        %6547 = vmatpush1.msra.mxu0 %v2596
        %6548 = vmatprep.subr.mxu0 %v2581
        %6549 = vmatpush1.msra.mxu0 %v2580
        %6550 = vmatprep.subr.mxu0 %v2565
        %6551 = vmatpush1.msra.mxu0 %v2564
        %6552 = vmatprep.subr.mxu0 %v2549
        %6553 = vmatpush1.msra.mxu0 %v2548
        %6554 = vmatprep.subr.mxu0 %v2533
        %6555 = vmatpush1.msra.mxu0 %v2532
        %6556 = vmatprep.subr.mxu0 %v2517
        %6557 = vmatpush1.msra.mxu0 %v2516
        %6558 = vmatprep.subr.mxu0 %v2501
        %6559 = vmatpush1.msra.mxu0 %v2500
        %6560 = vmatprep.subr.mxu0 %v2485
        %6561 = vmatpush1.msra.mxu0 %v2484
        %6562 = vmatprep.subr.mxu0 %v2469
        %6563 = vmatpush1.msra.mxu0 %v2468
        %6564 = vmatprep.subr.mxu0 %v2453
        %6565 = vmatpush1.msra.mxu0 %v2452
        %6566 = vmatprep.subr.mxu0 %v2437
        %6567 = vmatpush1.msra.mxu0 %v2436
        %6568 = vmatprep.subr.mxu0 %v2421
        %6569 = vmatpush1.msra.mxu0 %v2420
        %6570 = vmatprep.subr.mxu0 %v2917
        %6571 = vmatpush2.msra.mxu0 %v2916
        %6572 = vmatprep.subr.mxu0 %v2901
        %6573 = vmatpush2.msra.mxu0 %v2900
        %6574 = vmatprep.subr.mxu0 %v2885
        %6575 = vmatpush2.msra.mxu0 %v2884
        %6576 = vmatprep.subr.mxu0 %v2869
        %6577 = vmatpush2.msra.mxu0 %v2868
        %6578 = vmatprep.subr.mxu0 %v2853
        %6579 = vmatpush2.msra.mxu0 %v2852
        %6580 = vmatprep.subr.mxu0 %v2837
        %6581 = vmatpush2.msra.mxu0 %v2836
        %6582 = vmatprep.subr.mxu0 %v2821
        %6583 = vmatpush2.msra.mxu0 %v2820
        %6584 = vmatprep.subr.mxu0 %v2805
        %6585 = vmatpush2.msra.mxu0 %v2804
        %6586 = vmatprep.subr.mxu0 %v2789
        %6587 = vmatpush2.msra.mxu0 %v2788
        %6588 = vmatprep.subr.mxu0 %v2773
        %6589 = vmatpush2.msra.mxu0 %v2772
        %6590 = vmatprep.subr.mxu0 %v2757
        %6591 = vmatpush2.msra.mxu0 %v2756
        %6592 = vmatprep.subr.mxu0 %v2741
        %6593 = vmatpush2.msra.mxu0 %v2740
        %6594 = vmatprep.subr.mxu0 %v2725
        %6595 = vmatpush2.msra.mxu0 %v2724
        %6596 = vmatprep.subr.mxu0 %v2709
        %6597 = vmatpush2.msra.mxu0 %v2708
        %6598 = vmatprep.subr.mxu0 %v2693
        %6599 = vmatpush2.msra.mxu0 %v2692
        %6600 = vmatprep.subr.mxu0 %v2677
        %6601 = vmatpush2.msra.mxu0 %v2676
        %6602 = vmatprep.mubr.f32.mxu0 %v4515
        %6603 = vmatmul.mubr.f32.gmra.mxu0 %v4507
        %v6604 = vpop.f32.mrf.mxu0
        %v6605 = vadd.f32 %v6534, %v6604
        %v6606 = vpop.f32.mrf.mxu0
        %v6607 = vadd.f32 %v6536, %v6606
        %6608 = vdwg.mxu0
        %6609 = vmatprep.subr.mxu0 %v3173
        %6610 = vmatpush1.msra.mxu0 %v3172
        %6611 = vmatprep.subr.mxu0 %v3157
        %6612 = vmatpush1.msra.mxu0 %v3156
        %6613 = vmatprep.subr.mxu0 %v3141
        %6614 = vmatpush1.msra.mxu0 %v3140
        %6615 = vmatprep.subr.mxu0 %v3125
        %6616 = vmatpush1.msra.mxu0 %v3124
        %6617 = vmatprep.subr.mxu0 %v3109
        %6618 = vmatpush1.msra.mxu0 %v3108
        %6619 = vmatprep.subr.mxu0 %v3093
        %6620 = vmatpush1.msra.mxu0 %v3092
        %6621 = vmatprep.subr.mxu0 %v3077
        %6622 = vmatpush1.msra.mxu0 %v3076
        %6623 = vmatprep.subr.mxu0 %v3061
        %6624 = vmatpush1.msra.mxu0 %v3060
        %6625 = vmatprep.subr.mxu0 %v3045
        %6626 = vmatpush1.msra.mxu0 %v3044
        %6627 = vmatprep.subr.mxu0 %v3029
        %6628 = vmatpush1.msra.mxu0 %v3028
        %6629 = vmatprep.subr.mxu0 %v3013
        %6630 = vmatpush1.msra.mxu0 %v3012
        %6631 = vmatprep.subr.mxu0 %v2997
        %6632 = vmatpush1.msra.mxu0 %v2996
        %6633 = vmatprep.subr.mxu0 %v2981
        %6634 = vmatpush1.msra.mxu0 %v2980
        %6635 = vmatprep.subr.mxu0 %v2965
        %6636 = vmatpush1.msra.mxu0 %v2964
        %6637 = vmatprep.subr.mxu0 %v2949
        %6638 = vmatpush1.msra.mxu0 %v2948
        %6639 = vmatprep.subr.mxu0 %v2933
        %6640 = vmatpush1.msra.mxu0 %v2932
        %6641 = vmatprep.subr.mxu0 %v3429
        %6642 = vmatpush2.msra.mxu0 %v3428
        %6643 = vmatprep.subr.mxu0 %v3413
        %6644 = vmatpush2.msra.mxu0 %v3412
        %6645 = vmatprep.subr.mxu0 %v3397
        %6646 = vmatpush2.msra.mxu0 %v3396
        %6647 = vmatprep.subr.mxu0 %v3381
        %6648 = vmatpush2.msra.mxu0 %v3380
        %6649 = vmatprep.subr.mxu0 %v3365
        %6650 = vmatpush2.msra.mxu0 %v3364
        %6651 = vmatprep.subr.mxu0 %v3349
        %6652 = vmatpush2.msra.mxu0 %v3348
        %6653 = vmatprep.subr.mxu0 %v3333
        %6654 = vmatpush2.msra.mxu0 %v3332
        %6655 = vmatprep.subr.mxu0 %v3317
        %6656 = vmatpush2.msra.mxu0 %v3316
        %6657 = vmatprep.subr.mxu0 %v3301
        %6658 = vmatpush2.msra.mxu0 %v3300
        %6659 = vmatprep.subr.mxu0 %v3285
        %6660 = vmatpush2.msra.mxu0 %v3284
        %6661 = vmatprep.subr.mxu0 %v3269
        %6662 = vmatpush2.msra.mxu0 %v3268
        %6663 = vmatprep.subr.mxu0 %v3253
        %6664 = vmatpush2.msra.mxu0 %v3252
        %6665 = vmatprep.subr.mxu0 %v3237
        %6666 = vmatpush2.msra.mxu0 %v3236
        %6667 = vmatprep.subr.mxu0 %v3221
        %6668 = vmatpush2.msra.mxu0 %v3220
        %6669 = vmatprep.subr.mxu0 %v3205
        %6670 = vmatpush2.msra.mxu0 %v3204
        %6671 = vmatprep.subr.mxu0 %v3189
        %6672 = vmatpush2.msra.mxu0 %v3188
        %6673 = vmatprep.mubr.f32.mxu0 %v4516
        %6674 = vmatmul.mubr.f32.gmra.mxu0 %v4514
        %v6675 = vpop.f32.mrf.mxu0
        %v6676 = vadd.f32 %v6605, %v6675
        %v6677 = vpop.f32.mrf.mxu0
        %v6678 = vadd.f32 %v6607, %v6677
        %6679 = vdwg.mxu0
        %6680 = vmatprep.subr.mxu0 %v3685
        %6681 = vmatpush1.msra.mxu0 %v3684
        %6682 = vmatprep.subr.mxu0 %v3669
        %6683 = vmatpush1.msra.mxu0 %v3668
        %6684 = vmatprep.subr.mxu0 %v3653
        %6685 = vmatpush1.msra.mxu0 %v3652
        %6686 = vmatprep.subr.mxu0 %v3637
        %6687 = vmatpush1.msra.mxu0 %v3636
        %6688 = vmatprep.subr.mxu0 %v3621
        %6689 = vmatpush1.msra.mxu0 %v3620
        %6690 = vmatprep.subr.mxu0 %v3605
        %6691 = vmatpush1.msra.mxu0 %v3604
        %6692 = vmatprep.subr.mxu0 %v3589
        %6693 = vmatpush1.msra.mxu0 %v3588
        %6694 = vmatprep.subr.mxu0 %v3573
        %6695 = vmatpush1.msra.mxu0 %v3572
        %6696 = vmatprep.subr.mxu0 %v3557
        %6697 = vmatpush1.msra.mxu0 %v3556
        %6698 = vmatprep.subr.mxu0 %v3541
        %6699 = vmatpush1.msra.mxu0 %v3540
        %6700 = vmatprep.subr.mxu0 %v3525
        %6701 = vmatpush1.msra.mxu0 %v3524
        %6702 = vmatprep.subr.mxu0 %v3509
        %6703 = vmatpush1.msra.mxu0 %v3508
        %6704 = vmatprep.subr.mxu0 %v3493
        %6705 = vmatpush1.msra.mxu0 %v3492
        %6706 = vmatprep.subr.mxu0 %v3477
        %6707 = vmatpush1.msra.mxu0 %v3476
        %6708 = vmatprep.subr.mxu0 %v3461
        %6709 = vmatpush1.msra.mxu0 %v3460
        %6710 = vmatprep.subr.mxu0 %v3445
        %6711 = vmatpush1.msra.mxu0 %v3444
        %6712 = vmatprep.subr.mxu0 %v3941
        %6713 = vmatpush2.msra.mxu0 %v3940
        %6714 = vmatprep.subr.mxu0 %v3925
        %6715 = vmatpush2.msra.mxu0 %v3924
        %6716 = vmatprep.subr.mxu0 %v3909
        %6717 = vmatpush2.msra.mxu0 %v3908
        %6718 = vmatprep.subr.mxu0 %v3893
        %6719 = vmatpush2.msra.mxu0 %v3892
        %6720 = vmatprep.subr.mxu0 %v3877
        %6721 = vmatpush2.msra.mxu0 %v3876
        %6722 = vmatprep.subr.mxu0 %v3861
        %6723 = vmatpush2.msra.mxu0 %v3860
        %6724 = vmatprep.subr.mxu0 %v3845
        %6725 = vmatpush2.msra.mxu0 %v3844
        %6726 = vmatprep.subr.mxu0 %v3829
        %6727 = vmatpush2.msra.mxu0 %v3828
        %6728 = vmatprep.subr.mxu0 %v3813
        %6729 = vmatpush2.msra.mxu0 %v3812
        %6730 = vmatprep.subr.mxu0 %v3797
        %6731 = vmatpush2.msra.mxu0 %v3796
        %6732 = vmatprep.subr.mxu0 %v3781
        %6733 = vmatpush2.msra.mxu0 %v3780
        %6734 = vmatprep.subr.mxu0 %v3765
        %6735 = vmatpush2.msra.mxu0 %v3764
        %6736 = vmatprep.subr.mxu0 %v3749
        %6737 = vmatpush2.msra.mxu0 %v3748
        %6738 = vmatprep.subr.mxu0 %v3733
        %6739 = vmatpush2.msra.mxu0 %v3732
        %6740 = vmatprep.subr.mxu0 %v3717
        %6741 = vmatpush2.msra.mxu0 %v3716
        %6742 = vmatprep.subr.mxu0 %v3701
        %6743 = vmatpush2.msra.mxu0 %v3700
        %6744 = vmatprep.mubr.f32.mxu0 %v4532
        %6745 = vmatmul.mubr.f32.gmra.mxu0 %v4524
        %v6746 = vpop.f32.mrf.mxu0
        %v6747 = vadd.f32 %v6676, %v6746
        %v6748 = vpop.f32.mrf.mxu0
        %v6749 = vadd.f32 %v6678, %v6748
        %6750 = vdwg.mxu0
        %6751 = vmatprep.subr.mxu0 %v4197
        %6752 = vmatpush1.msra.mxu0 %v4196
        %6753 = vmatprep.subr.mxu0 %v4181
        %6754 = vmatpush1.msra.mxu0 %v4180
        %6755 = vmatprep.subr.mxu0 %v4165
        %6756 = vmatpush1.msra.mxu0 %v4164
        %6757 = vmatprep.subr.mxu0 %v4149
        %6758 = vmatpush1.msra.mxu0 %v4148
        %6759 = vmatprep.subr.mxu0 %v4133
        %6760 = vmatpush1.msra.mxu0 %v4132
        %6761 = vmatprep.subr.mxu0 %v4117
        %6762 = vmatpush1.msra.mxu0 %v4116
        %6763 = vmatprep.subr.mxu0 %v4101
        %6764 = vmatpush1.msra.mxu0 %v4100
        %6765 = vmatprep.subr.mxu0 %v4085
        %6766 = vmatpush1.msra.mxu0 %v4084
        %6767 = vmatprep.subr.mxu0 %v4069
        %6768 = vmatpush1.msra.mxu0 %v4068
        %6769 = vmatprep.subr.mxu0 %v4053
        %6770 = vmatpush1.msra.mxu0 %v4052
        %6771 = vmatprep.subr.mxu0 %v4037
        %6772 = vmatpush1.msra.mxu0 %v4036
        %6773 = vmatprep.subr.mxu0 %v4021
        %6774 = vmatpush1.msra.mxu0 %v4020
        %6775 = vmatprep.subr.mxu0 %v4005
        %6776 = vmatpush1.msra.mxu0 %v4004
        %6777 = vmatprep.subr.mxu0 %v3989
        %6778 = vmatpush1.msra.mxu0 %v3988
        %6779 = vmatprep.subr.mxu0 %v3973
        %6780 = vmatpush1.msra.mxu0 %v3972
        %6781 = vmatprep.subr.mxu0 %v3957
        %6782 = vmatpush1.msra.mxu0 %v3956
        %6783 = vmatprep.subr.mxu0 %v4453
        %6784 = vmatpush2.msra.mxu0 %v4452
        %6785 = vmatprep.subr.mxu0 %v4437
        %6786 = vmatpush2.msra.mxu0 %v4436
        %6787 = vmatprep.subr.mxu0 %v4421
        %6788 = vmatpush2.msra.mxu0 %v4420
        %6789 = vmatprep.subr.mxu0 %v4405
        %6790 = vmatpush2.msra.mxu0 %v4404
        %6791 = vmatprep.subr.mxu0 %v4389
        %6792 = vmatpush2.msra.mxu0 %v4388
        %6793 = vmatprep.subr.mxu0 %v4373
        %6794 = vmatpush2.msra.mxu0 %v4372
        %6795 = vmatprep.subr.mxu0 %v4357
        %6796 = vmatpush2.msra.mxu0 %v4356
        %6797 = vmatprep.subr.mxu0 %v4341
        %6798 = vmatpush2.msra.mxu0 %v4340
        %6799 = vmatprep.subr.mxu0 %v4325
        %6800 = vmatpush2.msra.mxu0 %v4324
        %6801 = vmatprep.subr.mxu0 %v4309
        %6802 = vmatpush2.msra.mxu0 %v4308
        %6803 = vmatprep.subr.mxu0 %v4293
        %6804 = vmatpush2.msra.mxu0 %v4292
        %6805 = vmatprep.subr.mxu0 %v4277
        %6806 = vmatpush2.msra.mxu0 %v4276
        %6807 = vmatprep.subr.mxu0 %v4261
        %6808 = vmatpush2.msra.mxu0 %v4260
        %6809 = vmatprep.subr.mxu0 %v4245
        %6810 = vmatpush2.msra.mxu0 %v4244
        %6811 = vmatprep.subr.mxu0 %v4229
        %6812 = vmatpush2.msra.mxu0 %v4228
        %6813 = vmatprep.subr.mxu0 %v4213
        %6814 = vmatpush2.msra.mxu0 %v4212
        %6815 = vmatprep.mubr.f32.mxu0 %v4533
        %6816 = vmatmul.mubr.f32.gmra.mxu0 %v4531
        %v6817 = vpop.f32.mrf.mxu0
        %v6818 = vadd.f32 %v6747, %v6817
        %v6819 = vpop.f32.mrf.mxu0
        %v6820 = vadd.f32 %v6749, %v6819
        %6821 = vdwg.mxu0
        %6822 = vmatprep.subr.mxu0 %v615
        %6823 = vmatpush1.msra.mxu0 %v614
        %6824 = vmatprep.subr.mxu0 %v599
        %6825 = vmatpush1.msra.mxu0 %v598
        %6826 = vmatprep.subr.mxu0 %v583
        %6827 = vmatpush1.msra.mxu0 %v582
        %6828 = vmatprep.subr.mxu0 %v567
        %6829 = vmatpush1.msra.mxu0 %v566
        %6830 = vmatprep.subr.mxu0 %v551
        %6831 = vmatpush1.msra.mxu0 %v550
        %6832 = vmatprep.subr.mxu0 %v535
        %6833 = vmatpush1.msra.mxu0 %v534
        %6834 = vmatprep.subr.mxu0 %v519
        %6835 = vmatpush1.msra.mxu0 %v518
        %6836 = vmatprep.subr.mxu0 %v503
        %6837 = vmatpush1.msra.mxu0 %v502
        %6838 = vmatprep.subr.mxu0 %v487
        %6839 = vmatpush1.msra.mxu0 %v486
        %6840 = vmatprep.subr.mxu0 %v471
        %6841 = vmatpush1.msra.mxu0 %v470
        %6842 = vmatprep.subr.mxu0 %v455
        %6843 = vmatpush1.msra.mxu0 %v454
        %6844 = vmatprep.subr.mxu0 %v439
        %6845 = vmatpush1.msra.mxu0 %v438
        %6846 = vmatprep.subr.mxu0 %v423
        %6847 = vmatpush1.msra.mxu0 %v422
        %6848 = vmatprep.subr.mxu0 %v407
        %6849 = vmatpush1.msra.mxu0 %v406
        %6850 = vmatprep.subr.mxu0 %v391
        %6851 = vmatpush1.msra.mxu0 %v390
        %6852 = vmatprep.subr.mxu0 %v375
        %6853 = vmatpush1.msra.mxu0 %v374
        %6854 = vmatprep.subr.mxu0 %v871
        %6855 = vmatpush2.msra.mxu0 %v870
        %6856 = vmatprep.subr.mxu0 %v855
        %6857 = vmatpush2.msra.mxu0 %v854
        %6858 = vmatprep.subr.mxu0 %v839
        %6859 = vmatpush2.msra.mxu0 %v838
        %6860 = vmatprep.subr.mxu0 %v823
        %6861 = vmatpush2.msra.mxu0 %v822
        %6862 = vmatprep.subr.mxu0 %v807
        %6863 = vmatpush2.msra.mxu0 %v806
        %6864 = vmatprep.subr.mxu0 %v791
        %6865 = vmatpush2.msra.mxu0 %v790
        %6866 = vmatprep.subr.mxu0 %v775
        %6867 = vmatpush2.msra.mxu0 %v774
        %6868 = vmatprep.subr.mxu0 %v759
        %6869 = vmatpush2.msra.mxu0 %v758
        %6870 = vmatprep.subr.mxu0 %v743
        %6871 = vmatpush2.msra.mxu0 %v742
        %6872 = vmatprep.subr.mxu0 %v727
        %6873 = vmatpush2.msra.mxu0 %v726
        %6874 = vmatprep.subr.mxu0 %v711
        %6875 = vmatpush2.msra.mxu0 %v710
        %6876 = vmatprep.subr.mxu0 %v695
        %6877 = vmatpush2.msra.mxu0 %v694
        %6878 = vmatprep.subr.mxu0 %v679
        %6879 = vmatpush2.msra.mxu0 %v678
        %6880 = vmatprep.subr.mxu0 %v663
        %6881 = vmatpush2.msra.mxu0 %v662
        %6882 = vmatprep.subr.mxu0 %v647
        %6883 = vmatpush2.msra.mxu0 %v646
        %6884 = vmatprep.subr.mxu0 %v631
        %6885 = vmatpush2.msra.mxu0 %v630
        %6886 = vmatprep.mubr.f32.mxu0 %v4481
        %6887 = vmatmul.mubr.f32.gmra.mxu0 %v4473
        %v6888 = vpop.f32.mrf.mxu0
        %v6889 = vadd.f32 0.0, %v6888
        %v6890 = vpop.f32.mrf.mxu0
        %v6891 = vadd.f32 0.0, %v6890
        %6892 = vdwg.mxu0
        %6893 = vmatprep.subr.mxu0 %v1127
        %6894 = vmatpush1.msra.mxu0 %v1126
        %6895 = vmatprep.subr.mxu0 %v1111
        %6896 = vmatpush1.msra.mxu0 %v1110
        %6897 = vmatprep.subr.mxu0 %v1095
        %6898 = vmatpush1.msra.mxu0 %v1094
        %6899 = vmatprep.subr.mxu0 %v1079
        %6900 = vmatpush1.msra.mxu0 %v1078
        %6901 = vmatprep.subr.mxu0 %v1063
        %6902 = vmatpush1.msra.mxu0 %v1062
        %6903 = vmatprep.subr.mxu0 %v1047
        %6904 = vmatpush1.msra.mxu0 %v1046
        %6905 = vmatprep.subr.mxu0 %v1031
        %6906 = vmatpush1.msra.mxu0 %v1030
        %6907 = vmatprep.subr.mxu0 %v1015
        %6908 = vmatpush1.msra.mxu0 %v1014
        %6909 = vmatprep.subr.mxu0 %v999
        %6910 = vmatpush1.msra.mxu0 %v998
        %6911 = vmatprep.subr.mxu0 %v983
        %6912 = vmatpush1.msra.mxu0 %v982
        %6913 = vmatprep.subr.mxu0 %v967
        %6914 = vmatpush1.msra.mxu0 %v966
        %6915 = vmatprep.subr.mxu0 %v951
        %6916 = vmatpush1.msra.mxu0 %v950
        %6917 = vmatprep.subr.mxu0 %v935
        %6918 = vmatpush1.msra.mxu0 %v934
        %6919 = vmatprep.subr.mxu0 %v919
        %6920 = vmatpush1.msra.mxu0 %v918
        %6921 = vmatprep.subr.mxu0 %v903
        %6922 = vmatpush1.msra.mxu0 %v902
        %6923 = vmatprep.subr.mxu0 %v887
        %6924 = vmatpush1.msra.mxu0 %v886
        %6925 = vmatprep.subr.mxu0 %v1383
        %6926 = vmatpush2.msra.mxu0 %v1382
        %6927 = vmatprep.subr.mxu0 %v1367
        %6928 = vmatpush2.msra.mxu0 %v1366
        %6929 = vmatprep.subr.mxu0 %v1351
        %6930 = vmatpush2.msra.mxu0 %v1350
        %6931 = vmatprep.subr.mxu0 %v1335
        %6932 = vmatpush2.msra.mxu0 %v1334
        %6933 = vmatprep.subr.mxu0 %v1319
        %6934 = vmatpush2.msra.mxu0 %v1318
        %6935 = vmatprep.subr.mxu0 %v1303
        %6936 = vmatpush2.msra.mxu0 %v1302
        %6937 = vmatprep.subr.mxu0 %v1287
        %6938 = vmatpush2.msra.mxu0 %v1286
        %6939 = vmatprep.subr.mxu0 %v1271
        %6940 = vmatpush2.msra.mxu0 %v1270
        %6941 = vmatprep.subr.mxu0 %v1255
        %6942 = vmatpush2.msra.mxu0 %v1254
        %6943 = vmatprep.subr.mxu0 %v1239
        %6944 = vmatpush2.msra.mxu0 %v1238
        %6945 = vmatprep.subr.mxu0 %v1223
        %6946 = vmatpush2.msra.mxu0 %v1222
        %6947 = vmatprep.subr.mxu0 %v1207
        %6948 = vmatpush2.msra.mxu0 %v1206
        %6949 = vmatprep.subr.mxu0 %v1191
        %6950 = vmatpush2.msra.mxu0 %v1190
        %6951 = vmatprep.subr.mxu0 %v1175
        %6952 = vmatpush2.msra.mxu0 %v1174
        %6953 = vmatprep.subr.mxu0 %v1159
        %6954 = vmatpush2.msra.mxu0 %v1158
        %6955 = vmatprep.subr.mxu0 %v1143
        %6956 = vmatpush2.msra.mxu0 %v1142
        %6957 = vmatprep.mubr.f32.mxu0 %v4482
        %6958 = vmatmul.mubr.f32.gmra.mxu0 %v4480
        %v6959 = vpop.f32.mrf.mxu0
        %v6960 = vadd.f32 %v6889, %v6959
        %v6961 = vpop.f32.mrf.mxu0
        %v6962 = vadd.f32 %v6891, %v6961
        %6963 = vdwg.mxu0
        %6964 = vmatprep.subr.mxu0 %v1639
        %6965 = vmatpush1.msra.mxu0 %v1638
        %6966 = vmatprep.subr.mxu0 %v1623
        %6967 = vmatpush1.msra.mxu0 %v1622
        %6968 = vmatprep.subr.mxu0 %v1607
        %6969 = vmatpush1.msra.mxu0 %v1606
        %6970 = vmatprep.subr.mxu0 %v1591
        %6971 = vmatpush1.msra.mxu0 %v1590
        %6972 = vmatprep.subr.mxu0 %v1575
        %6973 = vmatpush1.msra.mxu0 %v1574
        %6974 = vmatprep.subr.mxu0 %v1559
        %6975 = vmatpush1.msra.mxu0 %v1558
        %6976 = vmatprep.subr.mxu0 %v1543
        %6977 = vmatpush1.msra.mxu0 %v1542
        %6978 = vmatprep.subr.mxu0 %v1527
        %6979 = vmatpush1.msra.mxu0 %v1526
        %6980 = vmatprep.subr.mxu0 %v1511
        %6981 = vmatpush1.msra.mxu0 %v1510
        %6982 = vmatprep.subr.mxu0 %v1495
        %6983 = vmatpush1.msra.mxu0 %v1494
        %6984 = vmatprep.subr.mxu0 %v1479
        %6985 = vmatpush1.msra.mxu0 %v1478
        %6986 = vmatprep.subr.mxu0 %v1463
        %6987 = vmatpush1.msra.mxu0 %v1462
        %6988 = vmatprep.subr.mxu0 %v1447
        %6989 = vmatpush1.msra.mxu0 %v1446
        %6990 = vmatprep.subr.mxu0 %v1431
        %6991 = vmatpush1.msra.mxu0 %v1430
        %6992 = vmatprep.subr.mxu0 %v1415
        %6993 = vmatpush1.msra.mxu0 %v1414
        %6994 = vmatprep.subr.mxu0 %v1399
        %6995 = vmatpush1.msra.mxu0 %v1398
        %6996 = vmatprep.subr.mxu0 %v1895
        %6997 = vmatpush2.msra.mxu0 %v1894
        %6998 = vmatprep.subr.mxu0 %v1879
        %6999 = vmatpush2.msra.mxu0 %v1878
        %7000 = vmatprep.subr.mxu0 %v1863
        %7001 = vmatpush2.msra.mxu0 %v1862
        %7002 = vmatprep.subr.mxu0 %v1847
        %7003 = vmatpush2.msra.mxu0 %v1846
        %7004 = vmatprep.subr.mxu0 %v1831
        %7005 = vmatpush2.msra.mxu0 %v1830
        %7006 = vmatprep.subr.mxu0 %v1815
        %7007 = vmatpush2.msra.mxu0 %v1814
        %7008 = vmatprep.subr.mxu0 %v1799
        %7009 = vmatpush2.msra.mxu0 %v1798
        %7010 = vmatprep.subr.mxu0 %v1783
        %7011 = vmatpush2.msra.mxu0 %v1782
        %7012 = vmatprep.subr.mxu0 %v1767
        %7013 = vmatpush2.msra.mxu0 %v1766
        %7014 = vmatprep.subr.mxu0 %v1751
        %7015 = vmatpush2.msra.mxu0 %v1750
        %7016 = vmatprep.subr.mxu0 %v1735
        %7017 = vmatpush2.msra.mxu0 %v1734
        %7018 = vmatprep.subr.mxu0 %v1719
        %7019 = vmatpush2.msra.mxu0 %v1718
        %7020 = vmatprep.subr.mxu0 %v1703
        %7021 = vmatpush2.msra.mxu0 %v1702
        %7022 = vmatprep.subr.mxu0 %v1687
        %7023 = vmatpush2.msra.mxu0 %v1686
        %7024 = vmatprep.subr.mxu0 %v1671
        %7025 = vmatpush2.msra.mxu0 %v1670
        %7026 = vmatprep.subr.mxu0 %v1655
        %7027 = vmatpush2.msra.mxu0 %v1654
        %7028 = vmatprep.mubr.f32.mxu0 %v4498
        %7029 = vmatmul.mubr.f32.gmra.mxu0 %v4490
        %v7030 = vpop.f32.mrf.mxu0
        %v7031 = vadd.f32 %v6960, %v7030
        %v7032 = vpop.f32.mrf.mxu0
        %v7033 = vadd.f32 %v6962, %v7032
        %7034 = vdwg.mxu0
        %7035 = vmatprep.subr.mxu0 %v2151
        %7036 = vmatpush1.msra.mxu0 %v2150
        %7037 = vmatprep.subr.mxu0 %v2135
        %7038 = vmatpush1.msra.mxu0 %v2134
        %7039 = vmatprep.subr.mxu0 %v2119
        %7040 = vmatpush1.msra.mxu0 %v2118
        %7041 = vmatprep.subr.mxu0 %v2103
        %7042 = vmatpush1.msra.mxu0 %v2102
        %7043 = vmatprep.subr.mxu0 %v2087
        %7044 = vmatpush1.msra.mxu0 %v2086
        %7045 = vmatprep.subr.mxu0 %v2071
        %7046 = vmatpush1.msra.mxu0 %v2070
        %7047 = vmatprep.subr.mxu0 %v2055
        %7048 = vmatpush1.msra.mxu0 %v2054
        %7049 = vmatprep.subr.mxu0 %v2039
        %7050 = vmatpush1.msra.mxu0 %v2038
        %7051 = vmatprep.subr.mxu0 %v2023
        %7052 = vmatpush1.msra.mxu0 %v2022
        %7053 = vmatprep.subr.mxu0 %v2007
        %7054 = vmatpush1.msra.mxu0 %v2006
        %7055 = vmatprep.subr.mxu0 %v1991
        %7056 = vmatpush1.msra.mxu0 %v1990
        %7057 = vmatprep.subr.mxu0 %v1975
        %7058 = vmatpush1.msra.mxu0 %v1974
        %7059 = vmatprep.subr.mxu0 %v1959
        %7060 = vmatpush1.msra.mxu0 %v1958
        %7061 = vmatprep.subr.mxu0 %v1943
        %7062 = vmatpush1.msra.mxu0 %v1942
        %7063 = vmatprep.subr.mxu0 %v1927
        %7064 = vmatpush1.msra.mxu0 %v1926
        %7065 = vmatprep.subr.mxu0 %v1911
        %7066 = vmatpush1.msra.mxu0 %v1910
        %7067 = vmatprep.subr.mxu0 %v2407
        %7068 = vmatpush2.msra.mxu0 %v2406
        %7069 = vmatprep.subr.mxu0 %v2391
        %7070 = vmatpush2.msra.mxu0 %v2390
        %7071 = vmatprep.subr.mxu0 %v2375
        %7072 = vmatpush2.msra.mxu0 %v2374
        %7073 = vmatprep.subr.mxu0 %v2359
        %7074 = vmatpush2.msra.mxu0 %v2358
        %7075 = vmatprep.subr.mxu0 %v2343
        %7076 = vmatpush2.msra.mxu0 %v2342
        %7077 = vmatprep.subr.mxu0 %v2327
        %7078 = vmatpush2.msra.mxu0 %v2326
        %7079 = vmatprep.subr.mxu0 %v2311
        %7080 = vmatpush2.msra.mxu0 %v2310
        %7081 = vmatprep.subr.mxu0 %v2295
        %7082 = vmatpush2.msra.mxu0 %v2294
        %7083 = vmatprep.subr.mxu0 %v2279
        %7084 = vmatpush2.msra.mxu0 %v2278
        %7085 = vmatprep.subr.mxu0 %v2263
        %7086 = vmatpush2.msra.mxu0 %v2262
        %7087 = vmatprep.subr.mxu0 %v2247
        %7088 = vmatpush2.msra.mxu0 %v2246
        %7089 = vmatprep.subr.mxu0 %v2231
        %7090 = vmatpush2.msra.mxu0 %v2230
        %7091 = vmatprep.subr.mxu0 %v2215
        %7092 = vmatpush2.msra.mxu0 %v2214
        %7093 = vmatprep.subr.mxu0 %v2199
        %7094 = vmatpush2.msra.mxu0 %v2198
        %7095 = vmatprep.subr.mxu0 %v2183
        %7096 = vmatpush2.msra.mxu0 %v2182
        %7097 = vmatprep.subr.mxu0 %v2167
        %7098 = vmatpush2.msra.mxu0 %v2166
        %7099 = vmatprep.mubr.f32.mxu0 %v4499
        %7100 = vmatmul.mubr.f32.gmra.mxu0 %v4497
        %v7101 = vpop.f32.mrf.mxu0
        %v7102 = vadd.f32 %v7031, %v7101
        %v7103 = vpop.f32.mrf.mxu0
        %v7104 = vadd.f32 %v7033, %v7103
        %7105 = vdwg.mxu0
        %7106 = vmatprep.subr.mxu0 %v2663
        %7107 = vmatpush1.msra.mxu0 %v2662
        %7108 = vmatprep.subr.mxu0 %v2647
        %7109 = vmatpush1.msra.mxu0 %v2646
        %7110 = vmatprep.subr.mxu0 %v2631
        %7111 = vmatpush1.msra.mxu0 %v2630
        %7112 = vmatprep.subr.mxu0 %v2615
        %7113 = vmatpush1.msra.mxu0 %v2614
        %7114 = vmatprep.subr.mxu0 %v2599
        %7115 = vmatpush1.msra.mxu0 %v2598
        %7116 = vmatprep.subr.mxu0 %v2583
        %7117 = vmatpush1.msra.mxu0 %v2582
        %7118 = vmatprep.subr.mxu0 %v2567
        %7119 = vmatpush1.msra.mxu0 %v2566
        %7120 = vmatprep.subr.mxu0 %v2551
        %7121 = vmatpush1.msra.mxu0 %v2550
        %7122 = vmatprep.subr.mxu0 %v2535
        %7123 = vmatpush1.msra.mxu0 %v2534
        %7124 = vmatprep.subr.mxu0 %v2519
        %7125 = vmatpush1.msra.mxu0 %v2518
        %7126 = vmatprep.subr.mxu0 %v2503
        %7127 = vmatpush1.msra.mxu0 %v2502
        %7128 = vmatprep.subr.mxu0 %v2487
        %7129 = vmatpush1.msra.mxu0 %v2486
        %7130 = vmatprep.subr.mxu0 %v2471
        %7131 = vmatpush1.msra.mxu0 %v2470
        %7132 = vmatprep.subr.mxu0 %v2455
        %7133 = vmatpush1.msra.mxu0 %v2454
        %7134 = vmatprep.subr.mxu0 %v2439
        %7135 = vmatpush1.msra.mxu0 %v2438
        %7136 = vmatprep.subr.mxu0 %v2423
        %7137 = vmatpush1.msra.mxu0 %v2422
        %7138 = vmatprep.subr.mxu0 %v2919
        %7139 = vmatpush2.msra.mxu0 %v2918
        %7140 = vmatprep.subr.mxu0 %v2903
        %7141 = vmatpush2.msra.mxu0 %v2902
        %7142 = vmatprep.subr.mxu0 %v2887
        %7143 = vmatpush2.msra.mxu0 %v2886
        %7144 = vmatprep.subr.mxu0 %v2871
        %7145 = vmatpush2.msra.mxu0 %v2870
        %7146 = vmatprep.subr.mxu0 %v2855
        %7147 = vmatpush2.msra.mxu0 %v2854
        %7148 = vmatprep.subr.mxu0 %v2839
        %7149 = vmatpush2.msra.mxu0 %v2838
        %7150 = vmatprep.subr.mxu0 %v2823
        %7151 = vmatpush2.msra.mxu0 %v2822
        %7152 = vmatprep.subr.mxu0 %v2807
        %7153 = vmatpush2.msra.mxu0 %v2806
        %7154 = vmatprep.subr.mxu0 %v2791
        %7155 = vmatpush2.msra.mxu0 %v2790
        %7156 = vmatprep.subr.mxu0 %v2775
        %7157 = vmatpush2.msra.mxu0 %v2774
        %7158 = vmatprep.subr.mxu0 %v2759
        %7159 = vmatpush2.msra.mxu0 %v2758
        %7160 = vmatprep.subr.mxu0 %v2743
        %7161 = vmatpush2.msra.mxu0 %v2742
        %7162 = vmatprep.subr.mxu0 %v2727
        %7163 = vmatpush2.msra.mxu0 %v2726
        %7164 = vmatprep.subr.mxu0 %v2711
        %7165 = vmatpush2.msra.mxu0 %v2710
        %7166 = vmatprep.subr.mxu0 %v2695
        %7167 = vmatpush2.msra.mxu0 %v2694
        %7168 = vmatprep.subr.mxu0 %v2679
        %7169 = vmatpush2.msra.mxu0 %v2678
        %7170 = vmatprep.mubr.f32.mxu0 %v4515
        %7171 = vmatmul.mubr.f32.gmra.mxu0 %v4507
        %v7172 = vpop.f32.mrf.mxu0
        %v7173 = vadd.f32 %v7102, %v7172
        %v7174 = vpop.f32.mrf.mxu0
        %v7175 = vadd.f32 %v7104, %v7174
        %7176 = vdwg.mxu0
        %7177 = vmatprep.subr.mxu0 %v3175
        %7178 = vmatpush1.msra.mxu0 %v3174
        %7179 = vmatprep.subr.mxu0 %v3159
        %7180 = vmatpush1.msra.mxu0 %v3158
        %7181 = vmatprep.subr.mxu0 %v3143
        %7182 = vmatpush1.msra.mxu0 %v3142
        %7183 = vmatprep.subr.mxu0 %v3127
        %7184 = vmatpush1.msra.mxu0 %v3126
        %7185 = vmatprep.subr.mxu0 %v3111
        %7186 = vmatpush1.msra.mxu0 %v3110
        %7187 = vmatprep.subr.mxu0 %v3095
        %7188 = vmatpush1.msra.mxu0 %v3094
        %7189 = vmatprep.subr.mxu0 %v3079
        %7190 = vmatpush1.msra.mxu0 %v3078
        %7191 = vmatprep.subr.mxu0 %v3063
        %7192 = vmatpush1.msra.mxu0 %v3062
        %7193 = vmatprep.subr.mxu0 %v3047
        %7194 = vmatpush1.msra.mxu0 %v3046
        %7195 = vmatprep.subr.mxu0 %v3031
        %7196 = vmatpush1.msra.mxu0 %v3030
        %7197 = vmatprep.subr.mxu0 %v3015
        %7198 = vmatpush1.msra.mxu0 %v3014
        %7199 = vmatprep.subr.mxu0 %v2999
        %7200 = vmatpush1.msra.mxu0 %v2998
        %7201 = vmatprep.subr.mxu0 %v2983
        %7202 = vmatpush1.msra.mxu0 %v2982
        %7203 = vmatprep.subr.mxu0 %v2967
        %7204 = vmatpush1.msra.mxu0 %v2966
        %7205 = vmatprep.subr.mxu0 %v2951
        %7206 = vmatpush1.msra.mxu0 %v2950
        %7207 = vmatprep.subr.mxu0 %v2935
        %7208 = vmatpush1.msra.mxu0 %v2934
        %7209 = vmatprep.subr.mxu0 %v3431
        %7210 = vmatpush2.msra.mxu0 %v3430
        %7211 = vmatprep.subr.mxu0 %v3415
        %7212 = vmatpush2.msra.mxu0 %v3414
        %7213 = vmatprep.subr.mxu0 %v3399
        %7214 = vmatpush2.msra.mxu0 %v3398
        %7215 = vmatprep.subr.mxu0 %v3383
        %7216 = vmatpush2.msra.mxu0 %v3382
        %7217 = vmatprep.subr.mxu0 %v3367
        %7218 = vmatpush2.msra.mxu0 %v3366
        %7219 = vmatprep.subr.mxu0 %v3351
        %7220 = vmatpush2.msra.mxu0 %v3350
        %7221 = vmatprep.subr.mxu0 %v3335
        %7222 = vmatpush2.msra.mxu0 %v3334
        %7223 = vmatprep.subr.mxu0 %v3319
        %7224 = vmatpush2.msra.mxu0 %v3318
        %7225 = vmatprep.subr.mxu0 %v3303
        %7226 = vmatpush2.msra.mxu0 %v3302
        %7227 = vmatprep.subr.mxu0 %v3287
        %7228 = vmatpush2.msra.mxu0 %v3286
        %7229 = vmatprep.subr.mxu0 %v3271
        %7230 = vmatpush2.msra.mxu0 %v3270
        %7231 = vmatprep.subr.mxu0 %v3255
        %7232 = vmatpush2.msra.mxu0 %v3254
        %7233 = vmatprep.subr.mxu0 %v3239
        %7234 = vmatpush2.msra.mxu0 %v3238
        %7235 = vmatprep.subr.mxu0 %v3223
        %7236 = vmatpush2.msra.mxu0 %v3222
        %7237 = vmatprep.subr.mxu0 %v3207
        %7238 = vmatpush2.msra.mxu0 %v3206
        %7239 = vmatprep.subr.mxu0 %v3191
        %7240 = vmatpush2.msra.mxu0 %v3190
        %7241 = vmatprep.mubr.f32.mxu0 %v4516
        %7242 = vmatmul.mubr.f32.gmra.mxu0 %v4514
        %v7243 = vpop.f32.mrf.mxu0
        %v7244 = vadd.f32 %v7173, %v7243
        %v7245 = vpop.f32.mrf.mxu0
        %v7246 = vadd.f32 %v7175, %v7245
        %7247 = vdwg.mxu0
        %7248 = vmatprep.subr.mxu0 %v3687
        %7249 = vmatpush1.msra.mxu0 %v3686
        %7250 = vmatprep.subr.mxu0 %v3671
        %7251 = vmatpush1.msra.mxu0 %v3670
        %7252 = vmatprep.subr.mxu0 %v3655
        %7253 = vmatpush1.msra.mxu0 %v3654
        %7254 = vmatprep.subr.mxu0 %v3639
        %7255 = vmatpush1.msra.mxu0 %v3638
        %7256 = vmatprep.subr.mxu0 %v3623
        %7257 = vmatpush1.msra.mxu0 %v3622
        %7258 = vmatprep.subr.mxu0 %v3607
        %7259 = vmatpush1.msra.mxu0 %v3606
        %7260 = vmatprep.subr.mxu0 %v3591
        %7261 = vmatpush1.msra.mxu0 %v3590
        %7262 = vmatprep.subr.mxu0 %v3575
        %7263 = vmatpush1.msra.mxu0 %v3574
        %7264 = vmatprep.subr.mxu0 %v3559
        %7265 = vmatpush1.msra.mxu0 %v3558
        %7266 = vmatprep.subr.mxu0 %v3543
        %7267 = vmatpush1.msra.mxu0 %v3542
        %7268 = vmatprep.subr.mxu0 %v3527
        %7269 = vmatpush1.msra.mxu0 %v3526
        %7270 = vmatprep.subr.mxu0 %v3511
        %7271 = vmatpush1.msra.mxu0 %v3510
        %7272 = vmatprep.subr.mxu0 %v3495
        %7273 = vmatpush1.msra.mxu0 %v3494
        %7274 = vmatprep.subr.mxu0 %v3479
        %7275 = vmatpush1.msra.mxu0 %v3478
        %7276 = vmatprep.subr.mxu0 %v3463
        %7277 = vmatpush1.msra.mxu0 %v3462
        %7278 = vmatprep.subr.mxu0 %v3447
        %7279 = vmatpush1.msra.mxu0 %v3446
        %7280 = vmatprep.subr.mxu0 %v3943
        %7281 = vmatpush2.msra.mxu0 %v3942
        %7282 = vmatprep.subr.mxu0 %v3927
        %7283 = vmatpush2.msra.mxu0 %v3926
        %7284 = vmatprep.subr.mxu0 %v3911
        %7285 = vmatpush2.msra.mxu0 %v3910
        %7286 = vmatprep.subr.mxu0 %v3895
        %7287 = vmatpush2.msra.mxu0 %v3894
        %7288 = vmatprep.subr.mxu0 %v3879
        %7289 = vmatpush2.msra.mxu0 %v3878
        %7290 = vmatprep.subr.mxu0 %v3863
        %7291 = vmatpush2.msra.mxu0 %v3862
        %7292 = vmatprep.subr.mxu0 %v3847
        %7293 = vmatpush2.msra.mxu0 %v3846
        %7294 = vmatprep.subr.mxu0 %v3831
        %7295 = vmatpush2.msra.mxu0 %v3830
        %7296 = vmatprep.subr.mxu0 %v3815
        %7297 = vmatpush2.msra.mxu0 %v3814
        %7298 = vmatprep.subr.mxu0 %v3799
        %7299 = vmatpush2.msra.mxu0 %v3798
        %7300 = vmatprep.subr.mxu0 %v3783
        %7301 = vmatpush2.msra.mxu0 %v3782
        %7302 = vmatprep.subr.mxu0 %v3767
        %7303 = vmatpush2.msra.mxu0 %v3766
        %7304 = vmatprep.subr.mxu0 %v3751
        %7305 = vmatpush2.msra.mxu0 %v3750
        %7306 = vmatprep.subr.mxu0 %v3735
        %7307 = vmatpush2.msra.mxu0 %v3734
        %7308 = vmatprep.subr.mxu0 %v3719
        %7309 = vmatpush2.msra.mxu0 %v3718
        %7310 = vmatprep.subr.mxu0 %v3703
        %7311 = vmatpush2.msra.mxu0 %v3702
        %7312 = vmatprep.mubr.f32.mxu0 %v4532
        %7313 = vmatmul.mubr.f32.gmra.mxu0 %v4524
        %v7314 = vpop.f32.mrf.mxu0
        %v7315 = vadd.f32 %v7244, %v7314
        %v7316 = vpop.f32.mrf.mxu0
        %v7317 = vadd.f32 %v7246, %v7316
        %7318 = vdwg.mxu0
        %7319 = vmatprep.subr.mxu0 %v4199
        %7320 = vmatpush1.msra.mxu0 %v4198
        %7321 = vmatprep.subr.mxu0 %v4183
        %7322 = vmatpush1.msra.mxu0 %v4182
        %7323 = vmatprep.subr.mxu0 %v4167
        %7324 = vmatpush1.msra.mxu0 %v4166
        %7325 = vmatprep.subr.mxu0 %v4151
        %7326 = vmatpush1.msra.mxu0 %v4150
        %7327 = vmatprep.subr.mxu0 %v4135
        %7328 = vmatpush1.msra.mxu0 %v4134
        %7329 = vmatprep.subr.mxu0 %v4119
        %7330 = vmatpush1.msra.mxu0 %v4118
        %7331 = vmatprep.subr.mxu0 %v4103
        %7332 = vmatpush1.msra.mxu0 %v4102
        %7333 = vmatprep.subr.mxu0 %v4087
        %7334 = vmatpush1.msra.mxu0 %v4086
        %7335 = vmatprep.subr.mxu0 %v4071
        %7336 = vmatpush1.msra.mxu0 %v4070
        %7337 = vmatprep.subr.mxu0 %v4055
        %7338 = vmatpush1.msra.mxu0 %v4054
        %7339 = vmatprep.subr.mxu0 %v4039
        %7340 = vmatpush1.msra.mxu0 %v4038
        %7341 = vmatprep.subr.mxu0 %v4023
        %7342 = vmatpush1.msra.mxu0 %v4022
        %7343 = vmatprep.subr.mxu0 %v4007
        %7344 = vmatpush1.msra.mxu0 %v4006
        %7345 = vmatprep.subr.mxu0 %v3991
        %7346 = vmatpush1.msra.mxu0 %v3990
        %7347 = vmatprep.subr.mxu0 %v3975
        %7348 = vmatpush1.msra.mxu0 %v3974
        %7349 = vmatprep.subr.mxu0 %v3959
        %7350 = vmatpush1.msra.mxu0 %v3958
        %7351 = vmatprep.subr.mxu0 %v4455
        %7352 = vmatpush2.msra.mxu0 %v4454
        %7353 = vmatprep.subr.mxu0 %v4439
        %7354 = vmatpush2.msra.mxu0 %v4438
        %7355 = vmatprep.subr.mxu0 %v4423
        %7356 = vmatpush2.msra.mxu0 %v4422
        %7357 = vmatprep.subr.mxu0 %v4407
        %7358 = vmatpush2.msra.mxu0 %v4406
        %7359 = vmatprep.subr.mxu0 %v4391
        %7360 = vmatpush2.msra.mxu0 %v4390
        %7361 = vmatprep.subr.mxu0 %v4375
        %7362 = vmatpush2.msra.mxu0 %v4374
        %7363 = vmatprep.subr.mxu0 %v4359
        %7364 = vmatpush2.msra.mxu0 %v4358
        %7365 = vmatprep.subr.mxu0 %v4343
        %7366 = vmatpush2.msra.mxu0 %v4342
        %7367 = vmatprep.subr.mxu0 %v4327
        %7368 = vmatpush2.msra.mxu0 %v4326
        %7369 = vmatprep.subr.mxu0 %v4311
        %7370 = vmatpush2.msra.mxu0 %v4310
        %7371 = vmatprep.subr.mxu0 %v4295
        %7372 = vmatpush2.msra.mxu0 %v4294
        %7373 = vmatprep.subr.mxu0 %v4279
        %7374 = vmatpush2.msra.mxu0 %v4278
        %7375 = vmatprep.subr.mxu0 %v4263
        %7376 = vmatpush2.msra.mxu0 %v4262
        %7377 = vmatprep.subr.mxu0 %v4247
        %7378 = vmatpush2.msra.mxu0 %v4246
        %7379 = vmatprep.subr.mxu0 %v4231
        %7380 = vmatpush2.msra.mxu0 %v4230
        %7381 = vmatprep.subr.mxu0 %v4215
        %7382 = vmatpush2.msra.mxu0 %v4214
        %7383 = vmatprep.mubr.f32.mxu0 %v4533
        %7384 = vmatmul.mubr.f32.gmra.mxu0 %v4531
        %v7385 = vpop.f32.mrf.mxu0
        %v7386 = vadd.f32 %v7315, %v7385
        %v7387 = vpop.f32.mrf.mxu0
        %v7388 = vadd.f32 %v7317, %v7387
        %7389 = vdwg.mxu0
        %7390 = vmatprep.subr.mxu0 %v617
        %7391 = vmatpush1.msra.mxu0 %v616
        %7392 = vmatprep.subr.mxu0 %v601
        %7393 = vmatpush1.msra.mxu0 %v600
        %7394 = vmatprep.subr.mxu0 %v585
        %7395 = vmatpush1.msra.mxu0 %v584
        %7396 = vmatprep.subr.mxu0 %v569
        %7397 = vmatpush1.msra.mxu0 %v568
        %7398 = vmatprep.subr.mxu0 %v553
        %7399 = vmatpush1.msra.mxu0 %v552
        %7400 = vmatprep.subr.mxu0 %v537
        %7401 = vmatpush1.msra.mxu0 %v536
        %7402 = vmatprep.subr.mxu0 %v521
        %7403 = vmatpush1.msra.mxu0 %v520
        %7404 = vmatprep.subr.mxu0 %v505
        %7405 = vmatpush1.msra.mxu0 %v504
        %7406 = vmatprep.subr.mxu0 %v489
        %7407 = vmatpush1.msra.mxu0 %v488
        %7408 = vmatprep.subr.mxu0 %v473
        %7409 = vmatpush1.msra.mxu0 %v472
        %7410 = vmatprep.subr.mxu0 %v457
        %7411 = vmatpush1.msra.mxu0 %v456
        %7412 = vmatprep.subr.mxu0 %v441
        %7413 = vmatpush1.msra.mxu0 %v440
        %7414 = vmatprep.subr.mxu0 %v425
        %7415 = vmatpush1.msra.mxu0 %v424
        %7416 = vmatprep.subr.mxu0 %v409
        %7417 = vmatpush1.msra.mxu0 %v408
        %7418 = vmatprep.subr.mxu0 %v393
        %7419 = vmatpush1.msra.mxu0 %v392
        %7420 = vmatprep.subr.mxu0 %v377
        %7421 = vmatpush1.msra.mxu0 %v376
        %7422 = vmatprep.subr.mxu0 %v873
        %7423 = vmatpush2.msra.mxu0 %v872
        %7424 = vmatprep.subr.mxu0 %v857
        %7425 = vmatpush2.msra.mxu0 %v856
        %7426 = vmatprep.subr.mxu0 %v841
        %7427 = vmatpush2.msra.mxu0 %v840
        %7428 = vmatprep.subr.mxu0 %v825
        %7429 = vmatpush2.msra.mxu0 %v824
        %7430 = vmatprep.subr.mxu0 %v809
        %7431 = vmatpush2.msra.mxu0 %v808
        %7432 = vmatprep.subr.mxu0 %v793
        %7433 = vmatpush2.msra.mxu0 %v792
        %7434 = vmatprep.subr.mxu0 %v777
        %7435 = vmatpush2.msra.mxu0 %v776
        %7436 = vmatprep.subr.mxu0 %v761
        %7437 = vmatpush2.msra.mxu0 %v760
        %7438 = vmatprep.subr.mxu0 %v745
        %7439 = vmatpush2.msra.mxu0 %v744
        %7440 = vmatprep.subr.mxu0 %v729
        %7441 = vmatpush2.msra.mxu0 %v728
        %7442 = vmatprep.subr.mxu0 %v713
        %7443 = vmatpush2.msra.mxu0 %v712
        %7444 = vmatprep.subr.mxu0 %v697
        %7445 = vmatpush2.msra.mxu0 %v696
        %7446 = vmatprep.subr.mxu0 %v681
        %7447 = vmatpush2.msra.mxu0 %v680
        %7448 = vmatprep.subr.mxu0 %v665
        %7449 = vmatpush2.msra.mxu0 %v664
        %7450 = vmatprep.subr.mxu0 %v649
        %7451 = vmatpush2.msra.mxu0 %v648
        %7452 = vmatprep.subr.mxu0 %v633
        %7453 = vmatpush2.msra.mxu0 %v632
        %7454 = vmatprep.mubr.f32.mxu0 %v4481
        %7455 = vmatmul.mubr.f32.gmra.mxu0 %v4473
        %v7456 = vpop.f32.mrf.mxu0
        %v7457 = vadd.f32 0.0, %v7456
        %v7458 = vpop.f32.mrf.mxu0
        %v7459 = vadd.f32 0.0, %v7458
        %7460 = vdwg.mxu0
        %7461 = vmatprep.subr.mxu0 %v1129
        %7462 = vmatpush1.msra.mxu0 %v1128
        %7463 = vmatprep.subr.mxu0 %v1113
        %7464 = vmatpush1.msra.mxu0 %v1112
        %7465 = vmatprep.subr.mxu0 %v1097
        %7466 = vmatpush1.msra.mxu0 %v1096
        %7467 = vmatprep.subr.mxu0 %v1081
        %7468 = vmatpush1.msra.mxu0 %v1080
        %7469 = vmatprep.subr.mxu0 %v1065
        %7470 = vmatpush1.msra.mxu0 %v1064
        %7471 = vmatprep.subr.mxu0 %v1049
        %7472 = vmatpush1.msra.mxu0 %v1048
        %7473 = vmatprep.subr.mxu0 %v1033
        %7474 = vmatpush1.msra.mxu0 %v1032
        %7475 = vmatprep.subr.mxu0 %v1017
        %7476 = vmatpush1.msra.mxu0 %v1016
        %7477 = vmatprep.subr.mxu0 %v1001
        %7478 = vmatpush1.msra.mxu0 %v1000
        %7479 = vmatprep.subr.mxu0 %v985
        %7480 = vmatpush1.msra.mxu0 %v984
        %7481 = vmatprep.subr.mxu0 %v969
        %7482 = vmatpush1.msra.mxu0 %v968
        %7483 = vmatprep.subr.mxu0 %v953
        %7484 = vmatpush1.msra.mxu0 %v952
        %7485 = vmatprep.subr.mxu0 %v937
        %7486 = vmatpush1.msra.mxu0 %v936
        %7487 = vmatprep.subr.mxu0 %v921
        %7488 = vmatpush1.msra.mxu0 %v920
        %7489 = vmatprep.subr.mxu0 %v905
        %7490 = vmatpush1.msra.mxu0 %v904
        %7491 = vmatprep.subr.mxu0 %v889
        %7492 = vmatpush1.msra.mxu0 %v888
        %7493 = vmatprep.subr.mxu0 %v1385
        %7494 = vmatpush2.msra.mxu0 %v1384
        %7495 = vmatprep.subr.mxu0 %v1369
        %7496 = vmatpush2.msra.mxu0 %v1368
        %7497 = vmatprep.subr.mxu0 %v1353
        %7498 = vmatpush2.msra.mxu0 %v1352
        %7499 = vmatprep.subr.mxu0 %v1337
        %7500 = vmatpush2.msra.mxu0 %v1336
        %7501 = vmatprep.subr.mxu0 %v1321
        %7502 = vmatpush2.msra.mxu0 %v1320
        %7503 = vmatprep.subr.mxu0 %v1305
        %7504 = vmatpush2.msra.mxu0 %v1304
        %7505 = vmatprep.subr.mxu0 %v1289
        %7506 = vmatpush2.msra.mxu0 %v1288
        %7507 = vmatprep.subr.mxu0 %v1273
        %7508 = vmatpush2.msra.mxu0 %v1272
        %7509 = vmatprep.subr.mxu0 %v1257
        %7510 = vmatpush2.msra.mxu0 %v1256
        %7511 = vmatprep.subr.mxu0 %v1241
        %7512 = vmatpush2.msra.mxu0 %v1240
        %7513 = vmatprep.subr.mxu0 %v1225
        %7514 = vmatpush2.msra.mxu0 %v1224
        %7515 = vmatprep.subr.mxu0 %v1209
        %7516 = vmatpush2.msra.mxu0 %v1208
        %7517 = vmatprep.subr.mxu0 %v1193
        %7518 = vmatpush2.msra.mxu0 %v1192
        %7519 = vmatprep.subr.mxu0 %v1177
        %7520 = vmatpush2.msra.mxu0 %v1176
        %7521 = vmatprep.subr.mxu0 %v1161
        %7522 = vmatpush2.msra.mxu0 %v1160
        %7523 = vmatprep.subr.mxu0 %v1145
        %7524 = vmatpush2.msra.mxu0 %v1144
        %7525 = vmatprep.mubr.f32.mxu0 %v4482
        %7526 = vmatmul.mubr.f32.gmra.mxu0 %v4480
        %v7527 = vpop.f32.mrf.mxu0
        %v7528 = vadd.f32 %v7457, %v7527
        %v7529 = vpop.f32.mrf.mxu0
        %v7530 = vadd.f32 %v7459, %v7529
        %7531 = vdwg.mxu0
        %7532 = vmatprep.subr.mxu0 %v1641
        %7533 = vmatpush1.msra.mxu0 %v1640
        %7534 = vmatprep.subr.mxu0 %v1625
        %7535 = vmatpush1.msra.mxu0 %v1624
        %7536 = vmatprep.subr.mxu0 %v1609
        %7537 = vmatpush1.msra.mxu0 %v1608
        %7538 = vmatprep.subr.mxu0 %v1593
        %7539 = vmatpush1.msra.mxu0 %v1592
        %7540 = vmatprep.subr.mxu0 %v1577
        %7541 = vmatpush1.msra.mxu0 %v1576
        %7542 = vmatprep.subr.mxu0 %v1561
        %7543 = vmatpush1.msra.mxu0 %v1560
        %7544 = vmatprep.subr.mxu0 %v1545
        %7545 = vmatpush1.msra.mxu0 %v1544
        %7546 = vmatprep.subr.mxu0 %v1529
        %7547 = vmatpush1.msra.mxu0 %v1528
        %7548 = vmatprep.subr.mxu0 %v1513
        %7549 = vmatpush1.msra.mxu0 %v1512
        %7550 = vmatprep.subr.mxu0 %v1497
        %7551 = vmatpush1.msra.mxu0 %v1496
        %7552 = vmatprep.subr.mxu0 %v1481
        %7553 = vmatpush1.msra.mxu0 %v1480
        %7554 = vmatprep.subr.mxu0 %v1465
        %7555 = vmatpush1.msra.mxu0 %v1464
        %7556 = vmatprep.subr.mxu0 %v1449
        %7557 = vmatpush1.msra.mxu0 %v1448
        %7558 = vmatprep.subr.mxu0 %v1433
        %7559 = vmatpush1.msra.mxu0 %v1432
        %7560 = vmatprep.subr.mxu0 %v1417
        %7561 = vmatpush1.msra.mxu0 %v1416
        %7562 = vmatprep.subr.mxu0 %v1401
        %7563 = vmatpush1.msra.mxu0 %v1400
        %7564 = vmatprep.subr.mxu0 %v1897
        %7565 = vmatpush2.msra.mxu0 %v1896
        %7566 = vmatprep.subr.mxu0 %v1881
        %7567 = vmatpush2.msra.mxu0 %v1880
        %7568 = vmatprep.subr.mxu0 %v1865
        %7569 = vmatpush2.msra.mxu0 %v1864
        %7570 = vmatprep.subr.mxu0 %v1849
        %7571 = vmatpush2.msra.mxu0 %v1848
        %7572 = vmatprep.subr.mxu0 %v1833
        %7573 = vmatpush2.msra.mxu0 %v1832
        %7574 = vmatprep.subr.mxu0 %v1817
        %7575 = vmatpush2.msra.mxu0 %v1816
        %7576 = vmatprep.subr.mxu0 %v1801
        %7577 = vmatpush2.msra.mxu0 %v1800
        %7578 = vmatprep.subr.mxu0 %v1785
        %7579 = vmatpush2.msra.mxu0 %v1784
        %7580 = vmatprep.subr.mxu0 %v1769
        %7581 = vmatpush2.msra.mxu0 %v1768
        %7582 = vmatprep.subr.mxu0 %v1753
        %7583 = vmatpush2.msra.mxu0 %v1752
        %7584 = vmatprep.subr.mxu0 %v1737
        %7585 = vmatpush2.msra.mxu0 %v1736
        %7586 = vmatprep.subr.mxu0 %v1721
        %7587 = vmatpush2.msra.mxu0 %v1720
        %7588 = vmatprep.subr.mxu0 %v1705
        %7589 = vmatpush2.msra.mxu0 %v1704
        %7590 = vmatprep.subr.mxu0 %v1689
        %7591 = vmatpush2.msra.mxu0 %v1688
        %7592 = vmatprep.subr.mxu0 %v1673
        %7593 = vmatpush2.msra.mxu0 %v1672
        %7594 = vmatprep.subr.mxu0 %v1657
        %7595 = vmatpush2.msra.mxu0 %v1656
        %7596 = vmatprep.mubr.f32.mxu0 %v4498
        %7597 = vmatmul.mubr.f32.gmra.mxu0 %v4490
        %v7598 = vpop.f32.mrf.mxu0
        %v7599 = vadd.f32 %v7528, %v7598
        %v7600 = vpop.f32.mrf.mxu0
        %v7601 = vadd.f32 %v7530, %v7600
        %7602 = vdwg.mxu0
        %7603 = vmatprep.subr.mxu0 %v2153
        %7604 = vmatpush1.msra.mxu0 %v2152
        %7605 = vmatprep.subr.mxu0 %v2137
        %7606 = vmatpush1.msra.mxu0 %v2136
        %7607 = vmatprep.subr.mxu0 %v2121
        %7608 = vmatpush1.msra.mxu0 %v2120
        %7609 = vmatprep.subr.mxu0 %v2105
        %7610 = vmatpush1.msra.mxu0 %v2104
        %7611 = vmatprep.subr.mxu0 %v2089
        %7612 = vmatpush1.msra.mxu0 %v2088
        %7613 = vmatprep.subr.mxu0 %v2073
        %7614 = vmatpush1.msra.mxu0 %v2072
        %7615 = vmatprep.subr.mxu0 %v2057
        %7616 = vmatpush1.msra.mxu0 %v2056
        %7617 = vmatprep.subr.mxu0 %v2041
        %7618 = vmatpush1.msra.mxu0 %v2040
        %7619 = vmatprep.subr.mxu0 %v2025
        %7620 = vmatpush1.msra.mxu0 %v2024
        %7621 = vmatprep.subr.mxu0 %v2009
        %7622 = vmatpush1.msra.mxu0 %v2008
        %7623 = vmatprep.subr.mxu0 %v1993
        %7624 = vmatpush1.msra.mxu0 %v1992
        %7625 = vmatprep.subr.mxu0 %v1977
        %7626 = vmatpush1.msra.mxu0 %v1976
        %7627 = vmatprep.subr.mxu0 %v1961
        %7628 = vmatpush1.msra.mxu0 %v1960
        %7629 = vmatprep.subr.mxu0 %v1945
        %7630 = vmatpush1.msra.mxu0 %v1944
        %7631 = vmatprep.subr.mxu0 %v1929
        %7632 = vmatpush1.msra.mxu0 %v1928
        %7633 = vmatprep.subr.mxu0 %v1913
        %7634 = vmatpush1.msra.mxu0 %v1912
        %7635 = vmatprep.subr.mxu0 %v2409
        %7636 = vmatpush2.msra.mxu0 %v2408
        %7637 = vmatprep.subr.mxu0 %v2393
        %7638 = vmatpush2.msra.mxu0 %v2392
        %7639 = vmatprep.subr.mxu0 %v2377
        %7640 = vmatpush2.msra.mxu0 %v2376
        %7641 = vmatprep.subr.mxu0 %v2361
        %7642 = vmatpush2.msra.mxu0 %v2360
        %7643 = vmatprep.subr.mxu0 %v2345
        %7644 = vmatpush2.msra.mxu0 %v2344
        %7645 = vmatprep.subr.mxu0 %v2329
        %7646 = vmatpush2.msra.mxu0 %v2328
        %7647 = vmatprep.subr.mxu0 %v2313
        %7648 = vmatpush2.msra.mxu0 %v2312
        %7649 = vmatprep.subr.mxu0 %v2297
        %7650 = vmatpush2.msra.mxu0 %v2296
        %7651 = vmatprep.subr.mxu0 %v2281
        %7652 = vmatpush2.msra.mxu0 %v2280
        %7653 = vmatprep.subr.mxu0 %v2265
        %7654 = vmatpush2.msra.mxu0 %v2264
        %7655 = vmatprep.subr.mxu0 %v2249
        %7656 = vmatpush2.msra.mxu0 %v2248
        %7657 = vmatprep.subr.mxu0 %v2233
        %7658 = vmatpush2.msra.mxu0 %v2232
        %7659 = vmatprep.subr.mxu0 %v2217
        %7660 = vmatpush2.msra.mxu0 %v2216
        %7661 = vmatprep.subr.mxu0 %v2201
        %7662 = vmatpush2.msra.mxu0 %v2200
        %7663 = vmatprep.subr.mxu0 %v2185
        %7664 = vmatpush2.msra.mxu0 %v2184
        %7665 = vmatprep.subr.mxu0 %v2169
        %7666 = vmatpush2.msra.mxu0 %v2168
        %7667 = vmatprep.mubr.f32.mxu0 %v4499
        %7668 = vmatmul.mubr.f32.gmra.mxu0 %v4497
        %v7669 = vpop.f32.mrf.mxu0
        %v7670 = vadd.f32 %v7599, %v7669
        %v7671 = vpop.f32.mrf.mxu0
        %v7672 = vadd.f32 %v7601, %v7671
        %7673 = vdwg.mxu0
        %7674 = vmatprep.subr.mxu0 %v2665
        %7675 = vmatpush1.msra.mxu0 %v2664
        %7676 = vmatprep.subr.mxu0 %v2649
        %7677 = vmatpush1.msra.mxu0 %v2648
        %7678 = vmatprep.subr.mxu0 %v2633
        %7679 = vmatpush1.msra.mxu0 %v2632
        %7680 = vmatprep.subr.mxu0 %v2617
        %7681 = vmatpush1.msra.mxu0 %v2616
        %7682 = vmatprep.subr.mxu0 %v2601
        %7683 = vmatpush1.msra.mxu0 %v2600
        %7684 = vmatprep.subr.mxu0 %v2585
        %7685 = vmatpush1.msra.mxu0 %v2584
        %7686 = vmatprep.subr.mxu0 %v2569
        %7687 = vmatpush1.msra.mxu0 %v2568
        %7688 = vmatprep.subr.mxu0 %v2553
        %7689 = vmatpush1.msra.mxu0 %v2552
        %7690 = vmatprep.subr.mxu0 %v2537
        %7691 = vmatpush1.msra.mxu0 %v2536
        %7692 = vmatprep.subr.mxu0 %v2521
        %7693 = vmatpush1.msra.mxu0 %v2520
        %7694 = vmatprep.subr.mxu0 %v2505
        %7695 = vmatpush1.msra.mxu0 %v2504
        %7696 = vmatprep.subr.mxu0 %v2489
        %7697 = vmatpush1.msra.mxu0 %v2488
        %7698 = vmatprep.subr.mxu0 %v2473
        %7699 = vmatpush1.msra.mxu0 %v2472
        %7700 = vmatprep.subr.mxu0 %v2457
        %7701 = vmatpush1.msra.mxu0 %v2456
        %7702 = vmatprep.subr.mxu0 %v2441
        %7703 = vmatpush1.msra.mxu0 %v2440
        %7704 = vmatprep.subr.mxu0 %v2425
        %7705 = vmatpush1.msra.mxu0 %v2424
        %7706 = vmatprep.subr.mxu0 %v2921
        %7707 = vmatpush2.msra.mxu0 %v2920
        %7708 = vmatprep.subr.mxu0 %v2905
        %7709 = vmatpush2.msra.mxu0 %v2904
        %7710 = vmatprep.subr.mxu0 %v2889
        %7711 = vmatpush2.msra.mxu0 %v2888
        %7712 = vmatprep.subr.mxu0 %v2873
        %7713 = vmatpush2.msra.mxu0 %v2872
        %7714 = vmatprep.subr.mxu0 %v2857
        %7715 = vmatpush2.msra.mxu0 %v2856
        %7716 = vmatprep.subr.mxu0 %v2841
        %7717 = vmatpush2.msra.mxu0 %v2840
        %7718 = vmatprep.subr.mxu0 %v2825
        %7719 = vmatpush2.msra.mxu0 %v2824
        %7720 = vmatprep.subr.mxu0 %v2809
        %7721 = vmatpush2.msra.mxu0 %v2808
        %7722 = vmatprep.subr.mxu0 %v2793
        %7723 = vmatpush2.msra.mxu0 %v2792
        %7724 = vmatprep.subr.mxu0 %v2777
        %7725 = vmatpush2.msra.mxu0 %v2776
        %7726 = vmatprep.subr.mxu0 %v2761
        %7727 = vmatpush2.msra.mxu0 %v2760
        %7728 = vmatprep.subr.mxu0 %v2745
        %7729 = vmatpush2.msra.mxu0 %v2744
        %7730 = vmatprep.subr.mxu0 %v2729
        %7731 = vmatpush2.msra.mxu0 %v2728
        %7732 = vmatprep.subr.mxu0 %v2713
        %7733 = vmatpush2.msra.mxu0 %v2712
        %7734 = vmatprep.subr.mxu0 %v2697
        %7735 = vmatpush2.msra.mxu0 %v2696
        %7736 = vmatprep.subr.mxu0 %v2681
        %7737 = vmatpush2.msra.mxu0 %v2680
        %7738 = vmatprep.mubr.f32.mxu0 %v4515
        %7739 = vmatmul.mubr.f32.gmra.mxu0 %v4507
        %v7740 = vpop.f32.mrf.mxu0
        %v7741 = vadd.f32 %v7670, %v7740
        %v7742 = vpop.f32.mrf.mxu0
        %v7743 = vadd.f32 %v7672, %v7742
        %7744 = vdwg.mxu0
        %7745 = vmatprep.subr.mxu0 %v3177
        %7746 = vmatpush1.msra.mxu0 %v3176
        %7747 = vmatprep.subr.mxu0 %v3161
        %7748 = vmatpush1.msra.mxu0 %v3160
        %7749 = vmatprep.subr.mxu0 %v3145
        %7750 = vmatpush1.msra.mxu0 %v3144
        %7751 = vmatprep.subr.mxu0 %v3129
        %7752 = vmatpush1.msra.mxu0 %v3128
        %7753 = vmatprep.subr.mxu0 %v3113
        %7754 = vmatpush1.msra.mxu0 %v3112
        %7755 = vmatprep.subr.mxu0 %v3097
        %7756 = vmatpush1.msra.mxu0 %v3096
        %7757 = vmatprep.subr.mxu0 %v3081
        %7758 = vmatpush1.msra.mxu0 %v3080
        %7759 = vmatprep.subr.mxu0 %v3065
        %7760 = vmatpush1.msra.mxu0 %v3064
        %7761 = vmatprep.subr.mxu0 %v3049
        %7762 = vmatpush1.msra.mxu0 %v3048
        %7763 = vmatprep.subr.mxu0 %v3033
        %7764 = vmatpush1.msra.mxu0 %v3032
        %7765 = vmatprep.subr.mxu0 %v3017
        %7766 = vmatpush1.msra.mxu0 %v3016
        %7767 = vmatprep.subr.mxu0 %v3001
        %7768 = vmatpush1.msra.mxu0 %v3000
        %7769 = vmatprep.subr.mxu0 %v2985
        %7770 = vmatpush1.msra.mxu0 %v2984
        %7771 = vmatprep.subr.mxu0 %v2969
        %7772 = vmatpush1.msra.mxu0 %v2968
        %7773 = vmatprep.subr.mxu0 %v2953
        %7774 = vmatpush1.msra.mxu0 %v2952
        %7775 = vmatprep.subr.mxu0 %v2937
        %7776 = vmatpush1.msra.mxu0 %v2936
        %7777 = vmatprep.subr.mxu0 %v3433
        %7778 = vmatpush2.msra.mxu0 %v3432
        %7779 = vmatprep.subr.mxu0 %v3417
        %7780 = vmatpush2.msra.mxu0 %v3416
        %7781 = vmatprep.subr.mxu0 %v3401
        %7782 = vmatpush2.msra.mxu0 %v3400
        %7783 = vmatprep.subr.mxu0 %v3385
        %7784 = vmatpush2.msra.mxu0 %v3384
        %7785 = vmatprep.subr.mxu0 %v3369
        %7786 = vmatpush2.msra.mxu0 %v3368
        %7787 = vmatprep.subr.mxu0 %v3353
        %7788 = vmatpush2.msra.mxu0 %v3352
        %7789 = vmatprep.subr.mxu0 %v3337
        %7790 = vmatpush2.msra.mxu0 %v3336
        %7791 = vmatprep.subr.mxu0 %v3321
        %7792 = vmatpush2.msra.mxu0 %v3320
        %7793 = vmatprep.subr.mxu0 %v3305
        %7794 = vmatpush2.msra.mxu0 %v3304
        %7795 = vmatprep.subr.mxu0 %v3289
        %7796 = vmatpush2.msra.mxu0 %v3288
        %7797 = vmatprep.subr.mxu0 %v3273
        %7798 = vmatpush2.msra.mxu0 %v3272
        %7799 = vmatprep.subr.mxu0 %v3257
        %7800 = vmatpush2.msra.mxu0 %v3256
        %7801 = vmatprep.subr.mxu0 %v3241
        %7802 = vmatpush2.msra.mxu0 %v3240
        %7803 = vmatprep.subr.mxu0 %v3225
        %7804 = vmatpush2.msra.mxu0 %v3224
        %7805 = vmatprep.subr.mxu0 %v3209
        %7806 = vmatpush2.msra.mxu0 %v3208
        %7807 = vmatprep.subr.mxu0 %v3193
        %7808 = vmatpush2.msra.mxu0 %v3192
        %7809 = vmatprep.mubr.f32.mxu0 %v4516
        %7810 = vmatmul.mubr.f32.gmra.mxu0 %v4514
        %v7811 = vpop.f32.mrf.mxu0
        %v7812 = vadd.f32 %v7741, %v7811
        %v7813 = vpop.f32.mrf.mxu0
        %v7814 = vadd.f32 %v7743, %v7813
        %7815 = vdwg.mxu0
        %7816 = vmatprep.subr.mxu0 %v3689
        %7817 = vmatpush1.msra.mxu0 %v3688
        %7818 = vmatprep.subr.mxu0 %v3673
        %7819 = vmatpush1.msra.mxu0 %v3672
        %7820 = vmatprep.subr.mxu0 %v3657
        %7821 = vmatpush1.msra.mxu0 %v3656
        %7822 = vmatprep.subr.mxu0 %v3641
        %7823 = vmatpush1.msra.mxu0 %v3640
        %7824 = vmatprep.subr.mxu0 %v3625
        %7825 = vmatpush1.msra.mxu0 %v3624
        %7826 = vmatprep.subr.mxu0 %v3609
        %7827 = vmatpush1.msra.mxu0 %v3608
        %7828 = vmatprep.subr.mxu0 %v3593
        %7829 = vmatpush1.msra.mxu0 %v3592
        %7830 = vmatprep.subr.mxu0 %v3577
        %7831 = vmatpush1.msra.mxu0 %v3576
        %7832 = vmatprep.subr.mxu0 %v3561
        %7833 = vmatpush1.msra.mxu0 %v3560
        %7834 = vmatprep.subr.mxu0 %v3545
        %7835 = vmatpush1.msra.mxu0 %v3544
        %7836 = vmatprep.subr.mxu0 %v3529
        %7837 = vmatpush1.msra.mxu0 %v3528
        %7838 = vmatprep.subr.mxu0 %v3513
        %7839 = vmatpush1.msra.mxu0 %v3512
        %7840 = vmatprep.subr.mxu0 %v3497
        %7841 = vmatpush1.msra.mxu0 %v3496
        %7842 = vmatprep.subr.mxu0 %v3481
        %7843 = vmatpush1.msra.mxu0 %v3480
        %7844 = vmatprep.subr.mxu0 %v3465
        %7845 = vmatpush1.msra.mxu0 %v3464
        %7846 = vmatprep.subr.mxu0 %v3449
        %7847 = vmatpush1.msra.mxu0 %v3448
        %7848 = vmatprep.subr.mxu0 %v3945
        %7849 = vmatpush2.msra.mxu0 %v3944
        %7850 = vmatprep.subr.mxu0 %v3929
        %7851 = vmatpush2.msra.mxu0 %v3928
        %7852 = vmatprep.subr.mxu0 %v3913
        %7853 = vmatpush2.msra.mxu0 %v3912
        %7854 = vmatprep.subr.mxu0 %v3897
        %7855 = vmatpush2.msra.mxu0 %v3896
        %7856 = vmatprep.subr.mxu0 %v3881
        %7857 = vmatpush2.msra.mxu0 %v3880
        %7858 = vmatprep.subr.mxu0 %v3865
        %7859 = vmatpush2.msra.mxu0 %v3864
        %7860 = vmatprep.subr.mxu0 %v3849
        %7861 = vmatpush2.msra.mxu0 %v3848
        %7862 = vmatprep.subr.mxu0 %v3833
        %7863 = vmatpush2.msra.mxu0 %v3832
        %7864 = vmatprep.subr.mxu0 %v3817
        %7865 = vmatpush2.msra.mxu0 %v3816
        %7866 = vmatprep.subr.mxu0 %v3801
        %7867 = vmatpush2.msra.mxu0 %v3800
        %7868 = vmatprep.subr.mxu0 %v3785
        %7869 = vmatpush2.msra.mxu0 %v3784
        %7870 = vmatprep.subr.mxu0 %v3769
        %7871 = vmatpush2.msra.mxu0 %v3768
        %7872 = vmatprep.subr.mxu0 %v3753
        %7873 = vmatpush2.msra.mxu0 %v3752
        %7874 = vmatprep.subr.mxu0 %v3737
        %7875 = vmatpush2.msra.mxu0 %v3736
        %7876 = vmatprep.subr.mxu0 %v3721
        %7877 = vmatpush2.msra.mxu0 %v3720
        %7878 = vmatprep.subr.mxu0 %v3705
        %7879 = vmatpush2.msra.mxu0 %v3704
        %7880 = vmatprep.mubr.f32.mxu0 %v4532
        %7881 = vmatmul.mubr.f32.gmra.mxu0 %v4524
        %v7882 = vpop.f32.mrf.mxu0
        %v7883 = vadd.f32 %v7812, %v7882
        %v7884 = vpop.f32.mrf.mxu0
        %v7885 = vadd.f32 %v7814, %v7884
        %7886 = vdwg.mxu0
        %7887 = vmatprep.subr.mxu0 %v4201
        %7888 = vmatpush1.msra.mxu0 %v4200
        %7889 = vmatprep.subr.mxu0 %v4185
        %7890 = vmatpush1.msra.mxu0 %v4184
        %7891 = vmatprep.subr.mxu0 %v4169
        %7892 = vmatpush1.msra.mxu0 %v4168
        %7893 = vmatprep.subr.mxu0 %v4153
        %7894 = vmatpush1.msra.mxu0 %v4152
        %7895 = vmatprep.subr.mxu0 %v4137
        %7896 = vmatpush1.msra.mxu0 %v4136
        %7897 = vmatprep.subr.mxu0 %v4121
        %7898 = vmatpush1.msra.mxu0 %v4120
        %7899 = vmatprep.subr.mxu0 %v4105
        %7900 = vmatpush1.msra.mxu0 %v4104
        %7901 = vmatprep.subr.mxu0 %v4089
        %7902 = vmatpush1.msra.mxu0 %v4088
        %7903 = vmatprep.subr.mxu0 %v4073
        %7904 = vmatpush1.msra.mxu0 %v4072
        %7905 = vmatprep.subr.mxu0 %v4057
        %7906 = vmatpush1.msra.mxu0 %v4056
        %7907 = vmatprep.subr.mxu0 %v4041
        %7908 = vmatpush1.msra.mxu0 %v4040
        %7909 = vmatprep.subr.mxu0 %v4025
        %7910 = vmatpush1.msra.mxu0 %v4024
        %7911 = vmatprep.subr.mxu0 %v4009
        %7912 = vmatpush1.msra.mxu0 %v4008
        %7913 = vmatprep.subr.mxu0 %v3993
        %7914 = vmatpush1.msra.mxu0 %v3992
        %7915 = vmatprep.subr.mxu0 %v3977
        %7916 = vmatpush1.msra.mxu0 %v3976
        %7917 = vmatprep.subr.mxu0 %v3961
        %7918 = vmatpush1.msra.mxu0 %v3960
        %7919 = vmatprep.subr.mxu0 %v4457
        %7920 = vmatpush2.msra.mxu0 %v4456
        %7921 = vmatprep.subr.mxu0 %v4441
        %7922 = vmatpush2.msra.mxu0 %v4440
        %7923 = vmatprep.subr.mxu0 %v4425
        %7924 = vmatpush2.msra.mxu0 %v4424
        %7925 = vmatprep.subr.mxu0 %v4409
        %7926 = vmatpush2.msra.mxu0 %v4408
        %7927 = vmatprep.subr.mxu0 %v4393
        %7928 = vmatpush2.msra.mxu0 %v4392
        %7929 = vmatprep.subr.mxu0 %v4377
        %7930 = vmatpush2.msra.mxu0 %v4376
        %7931 = vmatprep.subr.mxu0 %v4361
        %7932 = vmatpush2.msra.mxu0 %v4360
        %7933 = vmatprep.subr.mxu0 %v4345
        %7934 = vmatpush2.msra.mxu0 %v4344
        %7935 = vmatprep.subr.mxu0 %v4329
        %7936 = vmatpush2.msra.mxu0 %v4328
        %7937 = vmatprep.subr.mxu0 %v4313
        %7938 = vmatpush2.msra.mxu0 %v4312
        %7939 = vmatprep.subr.mxu0 %v4297
        %7940 = vmatpush2.msra.mxu0 %v4296
        %7941 = vmatprep.subr.mxu0 %v4281
        %7942 = vmatpush2.msra.mxu0 %v4280
        %7943 = vmatprep.subr.mxu0 %v4265
        %7944 = vmatpush2.msra.mxu0 %v4264
        %7945 = vmatprep.subr.mxu0 %v4249
        %7946 = vmatpush2.msra.mxu0 %v4248
        %7947 = vmatprep.subr.mxu0 %v4233
        %7948 = vmatpush2.msra.mxu0 %v4232
        %7949 = vmatprep.subr.mxu0 %v4217
        %7950 = vmatpush2.msra.mxu0 %v4216
        %7951 = vmatprep.mubr.f32.mxu0 %v4533
        %7952 = vmatmul.mubr.f32.gmra.mxu0 %v4531
        %v7953 = vpop.f32.mrf.mxu0
        %v7954 = vadd.f32 %v7883, %v7953
        %v7955 = vpop.f32.mrf.mxu0
        %v7956 = vadd.f32 %v7885, %v7955
        %7957 = vdwg.mxu0
        %7958 = vmatprep.subr.mxu0 %v619
        %7959 = vmatpush1.msra.mxu0 %v618
        %7960 = vmatprep.subr.mxu0 %v603
        %7961 = vmatpush1.msra.mxu0 %v602
        %7962 = vmatprep.subr.mxu0 %v587
        %7963 = vmatpush1.msra.mxu0 %v586
        %7964 = vmatprep.subr.mxu0 %v571
        %7965 = vmatpush1.msra.mxu0 %v570
        %7966 = vmatprep.subr.mxu0 %v555
        %7967 = vmatpush1.msra.mxu0 %v554
        %7968 = vmatprep.subr.mxu0 %v539
        %7969 = vmatpush1.msra.mxu0 %v538
        %7970 = vmatprep.subr.mxu0 %v523
        %7971 = vmatpush1.msra.mxu0 %v522
        %7972 = vmatprep.subr.mxu0 %v507
        %7973 = vmatpush1.msra.mxu0 %v506
        %7974 = vmatprep.subr.mxu0 %v491
        %7975 = vmatpush1.msra.mxu0 %v490
        %7976 = vmatprep.subr.mxu0 %v475
        %7977 = vmatpush1.msra.mxu0 %v474
        %7978 = vmatprep.subr.mxu0 %v459
        %7979 = vmatpush1.msra.mxu0 %v458
        %7980 = vmatprep.subr.mxu0 %v443
        %7981 = vmatpush1.msra.mxu0 %v442
        %7982 = vmatprep.subr.mxu0 %v427
        %7983 = vmatpush1.msra.mxu0 %v426
        %7984 = vmatprep.subr.mxu0 %v411
        %7985 = vmatpush1.msra.mxu0 %v410
        %7986 = vmatprep.subr.mxu0 %v395
        %7987 = vmatpush1.msra.mxu0 %v394
        %7988 = vmatprep.subr.mxu0 %v379
        %7989 = vmatpush1.msra.mxu0 %v378
        %7990 = vmatprep.subr.mxu0 %v875
        %7991 = vmatpush2.msra.mxu0 %v874
        %7992 = vmatprep.subr.mxu0 %v859
        %7993 = vmatpush2.msra.mxu0 %v858
        %7994 = vmatprep.subr.mxu0 %v843
        %7995 = vmatpush2.msra.mxu0 %v842
        %7996 = vmatprep.subr.mxu0 %v827
        %7997 = vmatpush2.msra.mxu0 %v826
        %7998 = vmatprep.subr.mxu0 %v811
        %7999 = vmatpush2.msra.mxu0 %v810
        %8000 = vmatprep.subr.mxu0 %v795
        %8001 = vmatpush2.msra.mxu0 %v794
        %8002 = vmatprep.subr.mxu0 %v779
        %8003 = vmatpush2.msra.mxu0 %v778
        %8004 = vmatprep.subr.mxu0 %v763
        %8005 = vmatpush2.msra.mxu0 %v762
        %8006 = vmatprep.subr.mxu0 %v747
        %8007 = vmatpush2.msra.mxu0 %v746
        %8008 = vmatprep.subr.mxu0 %v731
        %8009 = vmatpush2.msra.mxu0 %v730
        %8010 = vmatprep.subr.mxu0 %v715
        %8011 = vmatpush2.msra.mxu0 %v714
        %8012 = vmatprep.subr.mxu0 %v699
        %8013 = vmatpush2.msra.mxu0 %v698
        %8014 = vmatprep.subr.mxu0 %v683
        %8015 = vmatpush2.msra.mxu0 %v682
        %8016 = vmatprep.subr.mxu0 %v667
        %8017 = vmatpush2.msra.mxu0 %v666
        %8018 = vmatprep.subr.mxu0 %v651
        %8019 = vmatpush2.msra.mxu0 %v650
        %8020 = vmatprep.subr.mxu0 %v635
        %8021 = vmatpush2.msra.mxu0 %v634
        %8022 = vmatprep.mubr.f32.mxu0 %v4481
        %8023 = vmatmul.mubr.f32.gmra.mxu0 %v4473
        %v8024 = vpop.f32.mrf.mxu0
        %v8025 = vadd.f32 0.0, %v8024
        %v8026 = vpop.f32.mrf.mxu0
        %v8027 = vadd.f32 0.0, %v8026
        %8028 = vdwg.mxu0
        %8029 = vmatprep.subr.mxu0 %v1131
        %8030 = vmatpush1.msra.mxu0 %v1130
        %8031 = vmatprep.subr.mxu0 %v1115
        %8032 = vmatpush1.msra.mxu0 %v1114
        %8033 = vmatprep.subr.mxu0 %v1099
        %8034 = vmatpush1.msra.mxu0 %v1098
        %8035 = vmatprep.subr.mxu0 %v1083
        %8036 = vmatpush1.msra.mxu0 %v1082
        %8037 = vmatprep.subr.mxu0 %v1067
        %8038 = vmatpush1.msra.mxu0 %v1066
        %8039 = vmatprep.subr.mxu0 %v1051
        %8040 = vmatpush1.msra.mxu0 %v1050
        %8041 = vmatprep.subr.mxu0 %v1035
        %8042 = vmatpush1.msra.mxu0 %v1034
        %8043 = vmatprep.subr.mxu0 %v1019
        %8044 = vmatpush1.msra.mxu0 %v1018
        %8045 = vmatprep.subr.mxu0 %v1003
        %8046 = vmatpush1.msra.mxu0 %v1002
        %8047 = vmatprep.subr.mxu0 %v987
        %8048 = vmatpush1.msra.mxu0 %v986
        %8049 = vmatprep.subr.mxu0 %v971
        %8050 = vmatpush1.msra.mxu0 %v970
        %8051 = vmatprep.subr.mxu0 %v955
        %8052 = vmatpush1.msra.mxu0 %v954
        %8053 = vmatprep.subr.mxu0 %v939
        %8054 = vmatpush1.msra.mxu0 %v938
        %8055 = vmatprep.subr.mxu0 %v923
        %8056 = vmatpush1.msra.mxu0 %v922
        %8057 = vmatprep.subr.mxu0 %v907
        %8058 = vmatpush1.msra.mxu0 %v906
        %8059 = vmatprep.subr.mxu0 %v891
        %8060 = vmatpush1.msra.mxu0 %v890
        %8061 = vmatprep.subr.mxu0 %v1387
        %8062 = vmatpush2.msra.mxu0 %v1386
        %8063 = vmatprep.subr.mxu0 %v1371
        %8064 = vmatpush2.msra.mxu0 %v1370
        %8065 = vmatprep.subr.mxu0 %v1355
        %8066 = vmatpush2.msra.mxu0 %v1354
        %8067 = vmatprep.subr.mxu0 %v1339
        %8068 = vmatpush2.msra.mxu0 %v1338
        %8069 = vmatprep.subr.mxu0 %v1323
        %8070 = vmatpush2.msra.mxu0 %v1322
        %8071 = vmatprep.subr.mxu0 %v1307
        %8072 = vmatpush2.msra.mxu0 %v1306
        %8073 = vmatprep.subr.mxu0 %v1291
        %8074 = vmatpush2.msra.mxu0 %v1290
        %8075 = vmatprep.subr.mxu0 %v1275
        %8076 = vmatpush2.msra.mxu0 %v1274
        %8077 = vmatprep.subr.mxu0 %v1259
        %8078 = vmatpush2.msra.mxu0 %v1258
        %8079 = vmatprep.subr.mxu0 %v1243
        %8080 = vmatpush2.msra.mxu0 %v1242
        %8081 = vmatprep.subr.mxu0 %v1227
        %8082 = vmatpush2.msra.mxu0 %v1226
        %8083 = vmatprep.subr.mxu0 %v1211
        %8084 = vmatpush2.msra.mxu0 %v1210
        %8085 = vmatprep.subr.mxu0 %v1195
        %8086 = vmatpush2.msra.mxu0 %v1194
        %8087 = vmatprep.subr.mxu0 %v1179
        %8088 = vmatpush2.msra.mxu0 %v1178
        %8089 = vmatprep.subr.mxu0 %v1163
        %8090 = vmatpush2.msra.mxu0 %v1162
        %8091 = vmatprep.subr.mxu0 %v1147
        %8092 = vmatpush2.msra.mxu0 %v1146
        %8093 = vmatprep.mubr.f32.mxu0 %v4482
        %8094 = vmatmul.mubr.f32.gmra.mxu0 %v4480
        %v8095 = vpop.f32.mrf.mxu0
        %v8096 = vadd.f32 %v8025, %v8095
        %v8097 = vpop.f32.mrf.mxu0
        %v8098 = vadd.f32 %v8027, %v8097
        %8099 = vdwg.mxu0
        %8100 = vmatprep.subr.mxu0 %v1643
        %8101 = vmatpush1.msra.mxu0 %v1642
        %8102 = vmatprep.subr.mxu0 %v1627
        %8103 = vmatpush1.msra.mxu0 %v1626
        %8104 = vmatprep.subr.mxu0 %v1611
        %8105 = vmatpush1.msra.mxu0 %v1610
        %8106 = vmatprep.subr.mxu0 %v1595
        %8107 = vmatpush1.msra.mxu0 %v1594
        %8108 = vmatprep.subr.mxu0 %v1579
        %8109 = vmatpush1.msra.mxu0 %v1578
        %8110 = vmatprep.subr.mxu0 %v1563
        %8111 = vmatpush1.msra.mxu0 %v1562
        %8112 = vmatprep.subr.mxu0 %v1547
        %8113 = vmatpush1.msra.mxu0 %v1546
        %8114 = vmatprep.subr.mxu0 %v1531
        %8115 = vmatpush1.msra.mxu0 %v1530
        %8116 = vmatprep.subr.mxu0 %v1515
        %8117 = vmatpush1.msra.mxu0 %v1514
        %8118 = vmatprep.subr.mxu0 %v1499
        %8119 = vmatpush1.msra.mxu0 %v1498
        %8120 = vmatprep.subr.mxu0 %v1483
        %8121 = vmatpush1.msra.mxu0 %v1482
        %8122 = vmatprep.subr.mxu0 %v1467
        %8123 = vmatpush1.msra.mxu0 %v1466
        %8124 = vmatprep.subr.mxu0 %v1451
        %8125 = vmatpush1.msra.mxu0 %v1450
        %8126 = vmatprep.subr.mxu0 %v1435
        %8127 = vmatpush1.msra.mxu0 %v1434
        %8128 = vmatprep.subr.mxu0 %v1419
        %8129 = vmatpush1.msra.mxu0 %v1418
        %8130 = vmatprep.subr.mxu0 %v1403
        %8131 = vmatpush1.msra.mxu0 %v1402
        %8132 = vmatprep.subr.mxu0 %v1899
        %8133 = vmatpush2.msra.mxu0 %v1898
        %8134 = vmatprep.subr.mxu0 %v1883
        %8135 = vmatpush2.msra.mxu0 %v1882
        %8136 = vmatprep.subr.mxu0 %v1867
        %8137 = vmatpush2.msra.mxu0 %v1866
        %8138 = vmatprep.subr.mxu0 %v1851
        %8139 = vmatpush2.msra.mxu0 %v1850
        %8140 = vmatprep.subr.mxu0 %v1835
        %8141 = vmatpush2.msra.mxu0 %v1834
        %8142 = vmatprep.subr.mxu0 %v1819
        %8143 = vmatpush2.msra.mxu0 %v1818
        %8144 = vmatprep.subr.mxu0 %v1803
        %8145 = vmatpush2.msra.mxu0 %v1802
        %8146 = vmatprep.subr.mxu0 %v1787
        %8147 = vmatpush2.msra.mxu0 %v1786
        %8148 = vmatprep.subr.mxu0 %v1771
        %8149 = vmatpush2.msra.mxu0 %v1770
        %8150 = vmatprep.subr.mxu0 %v1755
        %8151 = vmatpush2.msra.mxu0 %v1754
        %8152 = vmatprep.subr.mxu0 %v1739
        %8153 = vmatpush2.msra.mxu0 %v1738
        %8154 = vmatprep.subr.mxu0 %v1723
        %8155 = vmatpush2.msra.mxu0 %v1722
        %8156 = vmatprep.subr.mxu0 %v1707
        %8157 = vmatpush2.msra.mxu0 %v1706
        %8158 = vmatprep.subr.mxu0 %v1691
        %8159 = vmatpush2.msra.mxu0 %v1690
        %8160 = vmatprep.subr.mxu0 %v1675
        %8161 = vmatpush2.msra.mxu0 %v1674
        %8162 = vmatprep.subr.mxu0 %v1659
        %8163 = vmatpush2.msra.mxu0 %v1658
        %8164 = vmatprep.mubr.f32.mxu0 %v4498
        %8165 = vmatmul.mubr.f32.gmra.mxu0 %v4490
        %v8166 = vpop.f32.mrf.mxu0
        %v8167 = vadd.f32 %v8096, %v8166
        %v8168 = vpop.f32.mrf.mxu0
        %v8169 = vadd.f32 %v8098, %v8168
        %8170 = vdwg.mxu0
        %8171 = vmatprep.subr.mxu0 %v2155
        %8172 = vmatpush1.msra.mxu0 %v2154
        %8173 = vmatprep.subr.mxu0 %v2139
        %8174 = vmatpush1.msra.mxu0 %v2138
        %8175 = vmatprep.subr.mxu0 %v2123
        %8176 = vmatpush1.msra.mxu0 %v2122
        %8177 = vmatprep.subr.mxu0 %v2107
        %8178 = vmatpush1.msra.mxu0 %v2106
        %8179 = vmatprep.subr.mxu0 %v2091
        %8180 = vmatpush1.msra.mxu0 %v2090
        %8181 = vmatprep.subr.mxu0 %v2075
        %8182 = vmatpush1.msra.mxu0 %v2074
        %8183 = vmatprep.subr.mxu0 %v2059
        %8184 = vmatpush1.msra.mxu0 %v2058
        %8185 = vmatprep.subr.mxu0 %v2043
        %8186 = vmatpush1.msra.mxu0 %v2042
        %8187 = vmatprep.subr.mxu0 %v2027
        %8188 = vmatpush1.msra.mxu0 %v2026
        %8189 = vmatprep.subr.mxu0 %v2011
        %8190 = vmatpush1.msra.mxu0 %v2010
        %8191 = vmatprep.subr.mxu0 %v1995
        %8192 = vmatpush1.msra.mxu0 %v1994
        %8193 = vmatprep.subr.mxu0 %v1979
        %8194 = vmatpush1.msra.mxu0 %v1978
        %8195 = vmatprep.subr.mxu0 %v1963
        %8196 = vmatpush1.msra.mxu0 %v1962
        %8197 = vmatprep.subr.mxu0 %v1947
        %8198 = vmatpush1.msra.mxu0 %v1946
        %8199 = vmatprep.subr.mxu0 %v1931
        %8200 = vmatpush1.msra.mxu0 %v1930
        %8201 = vmatprep.subr.mxu0 %v1915
        %8202 = vmatpush1.msra.mxu0 %v1914
        %8203 = vmatprep.subr.mxu0 %v2411
        %8204 = vmatpush2.msra.mxu0 %v2410
        %8205 = vmatprep.subr.mxu0 %v2395
        %8206 = vmatpush2.msra.mxu0 %v2394
        %8207 = vmatprep.subr.mxu0 %v2379
        %8208 = vmatpush2.msra.mxu0 %v2378
        %8209 = vmatprep.subr.mxu0 %v2363
        %8210 = vmatpush2.msra.mxu0 %v2362
        %8211 = vmatprep.subr.mxu0 %v2347
        %8212 = vmatpush2.msra.mxu0 %v2346
        %8213 = vmatprep.subr.mxu0 %v2331
        %8214 = vmatpush2.msra.mxu0 %v2330
        %8215 = vmatprep.subr.mxu0 %v2315
        %8216 = vmatpush2.msra.mxu0 %v2314
        %8217 = vmatprep.subr.mxu0 %v2299
        %8218 = vmatpush2.msra.mxu0 %v2298
        %8219 = vmatprep.subr.mxu0 %v2283
        %8220 = vmatpush2.msra.mxu0 %v2282
        %8221 = vmatprep.subr.mxu0 %v2267
        %8222 = vmatpush2.msra.mxu0 %v2266
        %8223 = vmatprep.subr.mxu0 %v2251
        %8224 = vmatpush2.msra.mxu0 %v2250
        %8225 = vmatprep.subr.mxu0 %v2235
        %8226 = vmatpush2.msra.mxu0 %v2234
        %8227 = vmatprep.subr.mxu0 %v2219
        %8228 = vmatpush2.msra.mxu0 %v2218
        %8229 = vmatprep.subr.mxu0 %v2203
        %8230 = vmatpush2.msra.mxu0 %v2202
        %8231 = vmatprep.subr.mxu0 %v2187
        %8232 = vmatpush2.msra.mxu0 %v2186
        %8233 = vmatprep.subr.mxu0 %v2171
        %8234 = vmatpush2.msra.mxu0 %v2170
        %8235 = vmatprep.mubr.f32.mxu0 %v4499
        %8236 = vmatmul.mubr.f32.gmra.mxu0 %v4497
        %v8237 = vpop.f32.mrf.mxu0
        %v8238 = vadd.f32 %v8167, %v8237
        %v8239 = vpop.f32.mrf.mxu0
        %v8240 = vadd.f32 %v8169, %v8239
        %8241 = vdwg.mxu0
        %8242 = vmatprep.subr.mxu0 %v2667
        %8243 = vmatpush1.msra.mxu0 %v2666
        %8244 = vmatprep.subr.mxu0 %v2651
        %8245 = vmatpush1.msra.mxu0 %v2650
        %8246 = vmatprep.subr.mxu0 %v2635
        %8247 = vmatpush1.msra.mxu0 %v2634
        %8248 = vmatprep.subr.mxu0 %v2619
        %8249 = vmatpush1.msra.mxu0 %v2618
        %8250 = vmatprep.subr.mxu0 %v2603
        %8251 = vmatpush1.msra.mxu0 %v2602
        %8252 = vmatprep.subr.mxu0 %v2587
        %8253 = vmatpush1.msra.mxu0 %v2586
        %8254 = vmatprep.subr.mxu0 %v2571
        %8255 = vmatpush1.msra.mxu0 %v2570
        %8256 = vmatprep.subr.mxu0 %v2555
        %8257 = vmatpush1.msra.mxu0 %v2554
        %8258 = vmatprep.subr.mxu0 %v2539
        %8259 = vmatpush1.msra.mxu0 %v2538
        %8260 = vmatprep.subr.mxu0 %v2523
        %8261 = vmatpush1.msra.mxu0 %v2522
        %8262 = vmatprep.subr.mxu0 %v2507
        %8263 = vmatpush1.msra.mxu0 %v2506
        %8264 = vmatprep.subr.mxu0 %v2491
        %8265 = vmatpush1.msra.mxu0 %v2490
        %8266 = vmatprep.subr.mxu0 %v2475
        %8267 = vmatpush1.msra.mxu0 %v2474
        %8268 = vmatprep.subr.mxu0 %v2459
        %8269 = vmatpush1.msra.mxu0 %v2458
        %8270 = vmatprep.subr.mxu0 %v2443
        %8271 = vmatpush1.msra.mxu0 %v2442
        %8272 = vmatprep.subr.mxu0 %v2427
        %8273 = vmatpush1.msra.mxu0 %v2426
        %8274 = vmatprep.subr.mxu0 %v2923
        %8275 = vmatpush2.msra.mxu0 %v2922
        %8276 = vmatprep.subr.mxu0 %v2907
        %8277 = vmatpush2.msra.mxu0 %v2906
        %8278 = vmatprep.subr.mxu0 %v2891
        %8279 = vmatpush2.msra.mxu0 %v2890
        %8280 = vmatprep.subr.mxu0 %v2875
        %8281 = vmatpush2.msra.mxu0 %v2874
        %8282 = vmatprep.subr.mxu0 %v2859
        %8283 = vmatpush2.msra.mxu0 %v2858
        %8284 = vmatprep.subr.mxu0 %v2843
        %8285 = vmatpush2.msra.mxu0 %v2842
        %8286 = vmatprep.subr.mxu0 %v2827
        %8287 = vmatpush2.msra.mxu0 %v2826
        %8288 = vmatprep.subr.mxu0 %v2811
        %8289 = vmatpush2.msra.mxu0 %v2810
        %8290 = vmatprep.subr.mxu0 %v2795
        %8291 = vmatpush2.msra.mxu0 %v2794
        %8292 = vmatprep.subr.mxu0 %v2779
        %8293 = vmatpush2.msra.mxu0 %v2778
        %8294 = vmatprep.subr.mxu0 %v2763
        %8295 = vmatpush2.msra.mxu0 %v2762
        %8296 = vmatprep.subr.mxu0 %v2747
        %8297 = vmatpush2.msra.mxu0 %v2746
        %8298 = vmatprep.subr.mxu0 %v2731
        %8299 = vmatpush2.msra.mxu0 %v2730
        %8300 = vmatprep.subr.mxu0 %v2715
        %8301 = vmatpush2.msra.mxu0 %v2714
        %8302 = vmatprep.subr.mxu0 %v2699
        %8303 = vmatpush2.msra.mxu0 %v2698
        %8304 = vmatprep.subr.mxu0 %v2683
        %8305 = vmatpush2.msra.mxu0 %v2682
        %8306 = vmatprep.mubr.f32.mxu0 %v4515
        %8307 = vmatmul.mubr.f32.gmra.mxu0 %v4507
        %v8308 = vpop.f32.mrf.mxu0
        %v8309 = vadd.f32 %v8238, %v8308
        %v8310 = vpop.f32.mrf.mxu0
        %v8311 = vadd.f32 %v8240, %v8310
        %8312 = vdwg.mxu0
        %8313 = vmatprep.subr.mxu0 %v3179
        %8314 = vmatpush1.msra.mxu0 %v3178
        %8315 = vmatprep.subr.mxu0 %v3163
        %8316 = vmatpush1.msra.mxu0 %v3162
        %8317 = vmatprep.subr.mxu0 %v3147
        %8318 = vmatpush1.msra.mxu0 %v3146
        %8319 = vmatprep.subr.mxu0 %v3131
        %8320 = vmatpush1.msra.mxu0 %v3130
        %8321 = vmatprep.subr.mxu0 %v3115
        %8322 = vmatpush1.msra.mxu0 %v3114
        %8323 = vmatprep.subr.mxu0 %v3099
        %8324 = vmatpush1.msra.mxu0 %v3098
        %8325 = vmatprep.subr.mxu0 %v3083
        %8326 = vmatpush1.msra.mxu0 %v3082
        %8327 = vmatprep.subr.mxu0 %v3067
        %8328 = vmatpush1.msra.mxu0 %v3066
        %8329 = vmatprep.subr.mxu0 %v3051
        %8330 = vmatpush1.msra.mxu0 %v3050
        %8331 = vmatprep.subr.mxu0 %v3035
        %8332 = vmatpush1.msra.mxu0 %v3034
        %8333 = vmatprep.subr.mxu0 %v3019
        %8334 = vmatpush1.msra.mxu0 %v3018
        %8335 = vmatprep.subr.mxu0 %v3003
        %8336 = vmatpush1.msra.mxu0 %v3002
        %8337 = vmatprep.subr.mxu0 %v2987
        %8338 = vmatpush1.msra.mxu0 %v2986
        %8339 = vmatprep.subr.mxu0 %v2971
        %8340 = vmatpush1.msra.mxu0 %v2970
        %8341 = vmatprep.subr.mxu0 %v2955
        %8342 = vmatpush1.msra.mxu0 %v2954
        %8343 = vmatprep.subr.mxu0 %v2939
        %8344 = vmatpush1.msra.mxu0 %v2938
        %8345 = vmatprep.subr.mxu0 %v3435
        %8346 = vmatpush2.msra.mxu0 %v3434
        %8347 = vmatprep.subr.mxu0 %v3419
        %8348 = vmatpush2.msra.mxu0 %v3418
        %8349 = vmatprep.subr.mxu0 %v3403
        %8350 = vmatpush2.msra.mxu0 %v3402
        %8351 = vmatprep.subr.mxu0 %v3387
        %8352 = vmatpush2.msra.mxu0 %v3386
        %8353 = vmatprep.subr.mxu0 %v3371
        %8354 = vmatpush2.msra.mxu0 %v3370
        %8355 = vmatprep.subr.mxu0 %v3355
        %8356 = vmatpush2.msra.mxu0 %v3354
        %8357 = vmatprep.subr.mxu0 %v3339
        %8358 = vmatpush2.msra.mxu0 %v3338
        %8359 = vmatprep.subr.mxu0 %v3323
        %8360 = vmatpush2.msra.mxu0 %v3322
        %8361 = vmatprep.subr.mxu0 %v3307
        %8362 = vmatpush2.msra.mxu0 %v3306
        %8363 = vmatprep.subr.mxu0 %v3291
        %8364 = vmatpush2.msra.mxu0 %v3290
        %8365 = vmatprep.subr.mxu0 %v3275
        %8366 = vmatpush2.msra.mxu0 %v3274
        %8367 = vmatprep.subr.mxu0 %v3259
        %8368 = vmatpush2.msra.mxu0 %v3258
        %8369 = vmatprep.subr.mxu0 %v3243
        %8370 = vmatpush2.msra.mxu0 %v3242
        %8371 = vmatprep.subr.mxu0 %v3227
        %8372 = vmatpush2.msra.mxu0 %v3226
        %8373 = vmatprep.subr.mxu0 %v3211
        %8374 = vmatpush2.msra.mxu0 %v3210
        %8375 = vmatprep.subr.mxu0 %v3195
        %8376 = vmatpush2.msra.mxu0 %v3194
        %8377 = vmatprep.mubr.f32.mxu0 %v4516
        %8378 = vmatmul.mubr.f32.gmra.mxu0 %v4514
        %v8379 = vpop.f32.mrf.mxu0
        %v8380 = vadd.f32 %v8309, %v8379
        %v8381 = vpop.f32.mrf.mxu0
        %v8382 = vadd.f32 %v8311, %v8381
        %8383 = vdwg.mxu0
        %8384 = vmatprep.subr.mxu0 %v3691
        %8385 = vmatpush1.msra.mxu0 %v3690
        %8386 = vmatprep.subr.mxu0 %v3675
        %8387 = vmatpush1.msra.mxu0 %v3674
        %8388 = vmatprep.subr.mxu0 %v3659
        %8389 = vmatpush1.msra.mxu0 %v3658
        %8390 = vmatprep.subr.mxu0 %v3643
        %8391 = vmatpush1.msra.mxu0 %v3642
        %8392 = vmatprep.subr.mxu0 %v3627
        %8393 = vmatpush1.msra.mxu0 %v3626
        %8394 = vmatprep.subr.mxu0 %v3611
        %8395 = vmatpush1.msra.mxu0 %v3610
        %8396 = vmatprep.subr.mxu0 %v3595
        %8397 = vmatpush1.msra.mxu0 %v3594
        %8398 = vmatprep.subr.mxu0 %v3579
        %8399 = vmatpush1.msra.mxu0 %v3578
        %8400 = vmatprep.subr.mxu0 %v3563
        %8401 = vmatpush1.msra.mxu0 %v3562
        %8402 = vmatprep.subr.mxu0 %v3547
        %8403 = vmatpush1.msra.mxu0 %v3546
        %8404 = vmatprep.subr.mxu0 %v3531
        %8405 = vmatpush1.msra.mxu0 %v3530
        %8406 = vmatprep.subr.mxu0 %v3515
        %8407 = vmatpush1.msra.mxu0 %v3514
        %8408 = vmatprep.subr.mxu0 %v3499
        %8409 = vmatpush1.msra.mxu0 %v3498
        %8410 = vmatprep.subr.mxu0 %v3483
        %8411 = vmatpush1.msra.mxu0 %v3482
        %8412 = vmatprep.subr.mxu0 %v3467
        %8413 = vmatpush1.msra.mxu0 %v3466
        %8414 = vmatprep.subr.mxu0 %v3451
        %8415 = vmatpush1.msra.mxu0 %v3450
        %8416 = vmatprep.subr.mxu0 %v3947
        %8417 = vmatpush2.msra.mxu0 %v3946
        %8418 = vmatprep.subr.mxu0 %v3931
        %8419 = vmatpush2.msra.mxu0 %v3930
        %8420 = vmatprep.subr.mxu0 %v3915
        %8421 = vmatpush2.msra.mxu0 %v3914
        %8422 = vmatprep.subr.mxu0 %v3899
        %8423 = vmatpush2.msra.mxu0 %v3898
        %8424 = vmatprep.subr.mxu0 %v3883
        %8425 = vmatpush2.msra.mxu0 %v3882
        %8426 = vmatprep.subr.mxu0 %v3867
        %8427 = vmatpush2.msra.mxu0 %v3866
        %8428 = vmatprep.subr.mxu0 %v3851
        %8429 = vmatpush2.msra.mxu0 %v3850
        %8430 = vmatprep.subr.mxu0 %v3835
        %8431 = vmatpush2.msra.mxu0 %v3834
        %8432 = vmatprep.subr.mxu0 %v3819
        %8433 = vmatpush2.msra.mxu0 %v3818
        %8434 = vmatprep.subr.mxu0 %v3803
        %8435 = vmatpush2.msra.mxu0 %v3802
        %8436 = vmatprep.subr.mxu0 %v3787
        %8437 = vmatpush2.msra.mxu0 %v3786
        %8438 = vmatprep.subr.mxu0 %v3771
        %8439 = vmatpush2.msra.mxu0 %v3770
        %8440 = vmatprep.subr.mxu0 %v3755
        %8441 = vmatpush2.msra.mxu0 %v3754
        %8442 = vmatprep.subr.mxu0 %v3739
        %8443 = vmatpush2.msra.mxu0 %v3738
        %8444 = vmatprep.subr.mxu0 %v3723
        %8445 = vmatpush2.msra.mxu0 %v3722
        %8446 = vmatprep.subr.mxu0 %v3707
        %8447 = vmatpush2.msra.mxu0 %v3706
        %8448 = vmatprep.mubr.f32.mxu0 %v4532
        %8449 = vmatmul.mubr.f32.gmra.mxu0 %v4524
        %v8450 = vpop.f32.mrf.mxu0
        %v8451 = vadd.f32 %v8380, %v8450
        %v8452 = vpop.f32.mrf.mxu0
        %v8453 = vadd.f32 %v8382, %v8452
        %8454 = vdwg.mxu0
        %8455 = vmatprep.subr.mxu0 %v4203
        %8456 = vmatpush1.msra.mxu0 %v4202
        %8457 = vmatprep.subr.mxu0 %v4187
        %8458 = vmatpush1.msra.mxu0 %v4186
        %8459 = vmatprep.subr.mxu0 %v4171
        %8460 = vmatpush1.msra.mxu0 %v4170
        %8461 = vmatprep.subr.mxu0 %v4155
        %8462 = vmatpush1.msra.mxu0 %v4154
        %8463 = vmatprep.subr.mxu0 %v4139
        %8464 = vmatpush1.msra.mxu0 %v4138
        %8465 = vmatprep.subr.mxu0 %v4123
        %8466 = vmatpush1.msra.mxu0 %v4122
        %8467 = vmatprep.subr.mxu0 %v4107
        %8468 = vmatpush1.msra.mxu0 %v4106
        %8469 = vmatprep.subr.mxu0 %v4091
        %8470 = vmatpush1.msra.mxu0 %v4090
        %8471 = vmatprep.subr.mxu0 %v4075
        %8472 = vmatpush1.msra.mxu0 %v4074
        %8473 = vmatprep.subr.mxu0 %v4059
        %8474 = vmatpush1.msra.mxu0 %v4058
        %8475 = vmatprep.subr.mxu0 %v4043
        %8476 = vmatpush1.msra.mxu0 %v4042
        %8477 = vmatprep.subr.mxu0 %v4027
        %8478 = vmatpush1.msra.mxu0 %v4026
        %8479 = vmatprep.subr.mxu0 %v4011
        %8480 = vmatpush1.msra.mxu0 %v4010
        %8481 = vmatprep.subr.mxu0 %v3995
        %8482 = vmatpush1.msra.mxu0 %v3994
        %8483 = vmatprep.subr.mxu0 %v3979
        %8484 = vmatpush1.msra.mxu0 %v3978
        %8485 = vmatprep.subr.mxu0 %v3963
        %8486 = vmatpush1.msra.mxu0 %v3962
        %8487 = vmatprep.subr.mxu0 %v4459
        %8488 = vmatpush2.msra.mxu0 %v4458
        %8489 = vmatprep.subr.mxu0 %v4443
        %8490 = vmatpush2.msra.mxu0 %v4442
        %8491 = vmatprep.subr.mxu0 %v4427
        %8492 = vmatpush2.msra.mxu0 %v4426
        %8493 = vmatprep.subr.mxu0 %v4411
        %8494 = vmatpush2.msra.mxu0 %v4410
        %8495 = vmatprep.subr.mxu0 %v4395
        %8496 = vmatpush2.msra.mxu0 %v4394
        %8497 = vmatprep.subr.mxu0 %v4379
        %8498 = vmatpush2.msra.mxu0 %v4378
        %8499 = vmatprep.subr.mxu0 %v4363
        %8500 = vmatpush2.msra.mxu0 %v4362
        %8501 = vmatprep.subr.mxu0 %v4347
        %8502 = vmatpush2.msra.mxu0 %v4346
        %8503 = vmatprep.subr.mxu0 %v4331
        %8504 = vmatpush2.msra.mxu0 %v4330
        %8505 = vmatprep.subr.mxu0 %v4315
        %8506 = vmatpush2.msra.mxu0 %v4314
        %8507 = vmatprep.subr.mxu0 %v4299
        %8508 = vmatpush2.msra.mxu0 %v4298
        %8509 = vmatprep.subr.mxu0 %v4283
        %8510 = vmatpush2.msra.mxu0 %v4282
        %8511 = vmatprep.subr.mxu0 %v4267
        %8512 = vmatpush2.msra.mxu0 %v4266
        %8513 = vmatprep.subr.mxu0 %v4251
        %8514 = vmatpush2.msra.mxu0 %v4250
        %8515 = vmatprep.subr.mxu0 %v4235
        %8516 = vmatpush2.msra.mxu0 %v4234
        %8517 = vmatprep.subr.mxu0 %v4219
        %8518 = vmatpush2.msra.mxu0 %v4218
        %8519 = vmatprep.mubr.f32.mxu0 %v4533
        %8520 = vmatmul.mubr.f32.gmra.mxu0 %v4531
        %v8521 = vpop.f32.mrf.mxu0
        %v8522 = vadd.f32 %v8451, %v8521
        %v8523 = vpop.f32.mrf.mxu0
        %v8524 = vadd.f32 %v8453, %v8523
        %8525 = vdwg.mxu0
        %8526 = vmatprep.subr.mxu0 %v621
        %8527 = vmatpush1.msra.mxu0 %v620
        %8528 = vmatprep.subr.mxu0 %v605
        %8529 = vmatpush1.msra.mxu0 %v604
        %8530 = vmatprep.subr.mxu0 %v589
        %8531 = vmatpush1.msra.mxu0 %v588
        %8532 = vmatprep.subr.mxu0 %v573
        %8533 = vmatpush1.msra.mxu0 %v572
        %8534 = vmatprep.subr.mxu0 %v557
        %8535 = vmatpush1.msra.mxu0 %v556
        %8536 = vmatprep.subr.mxu0 %v541
        %8537 = vmatpush1.msra.mxu0 %v540
        %8538 = vmatprep.subr.mxu0 %v525
        %8539 = vmatpush1.msra.mxu0 %v524
        %8540 = vmatprep.subr.mxu0 %v509
        %8541 = vmatpush1.msra.mxu0 %v508
        %8542 = vmatprep.subr.mxu0 %v493
        %8543 = vmatpush1.msra.mxu0 %v492
        %8544 = vmatprep.subr.mxu0 %v477
        %8545 = vmatpush1.msra.mxu0 %v476
        %8546 = vmatprep.subr.mxu0 %v461
        %8547 = vmatpush1.msra.mxu0 %v460
        %8548 = vmatprep.subr.mxu0 %v445
        %8549 = vmatpush1.msra.mxu0 %v444
        %8550 = vmatprep.subr.mxu0 %v429
        %8551 = vmatpush1.msra.mxu0 %v428
        %8552 = vmatprep.subr.mxu0 %v413
        %8553 = vmatpush1.msra.mxu0 %v412
        %8554 = vmatprep.subr.mxu0 %v397
        %8555 = vmatpush1.msra.mxu0 %v396
        %8556 = vmatprep.subr.mxu0 %v381
        %8557 = vmatpush1.msra.mxu0 %v380
        %8558 = vmatprep.subr.mxu0 %v877
        %8559 = vmatpush2.msra.mxu0 %v876
        %8560 = vmatprep.subr.mxu0 %v861
        %8561 = vmatpush2.msra.mxu0 %v860
        %8562 = vmatprep.subr.mxu0 %v845
        %8563 = vmatpush2.msra.mxu0 %v844
        %8564 = vmatprep.subr.mxu0 %v829
        %8565 = vmatpush2.msra.mxu0 %v828
        %8566 = vmatprep.subr.mxu0 %v813
        %8567 = vmatpush2.msra.mxu0 %v812
        %8568 = vmatprep.subr.mxu0 %v797
        %8569 = vmatpush2.msra.mxu0 %v796
        %8570 = vmatprep.subr.mxu0 %v781
        %8571 = vmatpush2.msra.mxu0 %v780
        %8572 = vmatprep.subr.mxu0 %v765
        %8573 = vmatpush2.msra.mxu0 %v764
        %8574 = vmatprep.subr.mxu0 %v749
        %8575 = vmatpush2.msra.mxu0 %v748
        %8576 = vmatprep.subr.mxu0 %v733
        %8577 = vmatpush2.msra.mxu0 %v732
        %8578 = vmatprep.subr.mxu0 %v717
        %8579 = vmatpush2.msra.mxu0 %v716
        %8580 = vmatprep.subr.mxu0 %v701
        %8581 = vmatpush2.msra.mxu0 %v700
        %8582 = vmatprep.subr.mxu0 %v685
        %8583 = vmatpush2.msra.mxu0 %v684
        %8584 = vmatprep.subr.mxu0 %v669
        %8585 = vmatpush2.msra.mxu0 %v668
        %8586 = vmatprep.subr.mxu0 %v653
        %8587 = vmatpush2.msra.mxu0 %v652
        %8588 = vmatprep.subr.mxu0 %v637
        %8589 = vmatpush2.msra.mxu0 %v636
        %8590 = vmatprep.mubr.f32.mxu0 %v4481
        %8591 = vmatmul.mubr.f32.gmra.mxu0 %v4473
        %v8592 = vpop.f32.mrf.mxu0
        %v8593 = vadd.f32 0.0, %v8592
        %v8594 = vpop.f32.mrf.mxu0
        %v8595 = vadd.f32 0.0, %v8594
        %8596 = vdwg.mxu0
        %8597 = vmatprep.subr.mxu0 %v1133
        %8598 = vmatpush1.msra.mxu0 %v1132
        %8599 = vmatprep.subr.mxu0 %v1117
        %8600 = vmatpush1.msra.mxu0 %v1116
        %8601 = vmatprep.subr.mxu0 %v1101
        %8602 = vmatpush1.msra.mxu0 %v1100
        %8603 = vmatprep.subr.mxu0 %v1085
        %8604 = vmatpush1.msra.mxu0 %v1084
        %8605 = vmatprep.subr.mxu0 %v1069
        %8606 = vmatpush1.msra.mxu0 %v1068
        %8607 = vmatprep.subr.mxu0 %v1053
        %8608 = vmatpush1.msra.mxu0 %v1052
        %8609 = vmatprep.subr.mxu0 %v1037
        %8610 = vmatpush1.msra.mxu0 %v1036
        %8611 = vmatprep.subr.mxu0 %v1021
        %8612 = vmatpush1.msra.mxu0 %v1020
        %8613 = vmatprep.subr.mxu0 %v1005
        %8614 = vmatpush1.msra.mxu0 %v1004
        %8615 = vmatprep.subr.mxu0 %v989
        %8616 = vmatpush1.msra.mxu0 %v988
        %8617 = vmatprep.subr.mxu0 %v973
        %8618 = vmatpush1.msra.mxu0 %v972
        %8619 = vmatprep.subr.mxu0 %v957
        %8620 = vmatpush1.msra.mxu0 %v956
        %8621 = vmatprep.subr.mxu0 %v941
        %8622 = vmatpush1.msra.mxu0 %v940
        %8623 = vmatprep.subr.mxu0 %v925
        %8624 = vmatpush1.msra.mxu0 %v924
        %8625 = vmatprep.subr.mxu0 %v909
        %8626 = vmatpush1.msra.mxu0 %v908
        %8627 = vmatprep.subr.mxu0 %v893
        %8628 = vmatpush1.msra.mxu0 %v892
        %8629 = vmatprep.subr.mxu0 %v1389
        %8630 = vmatpush2.msra.mxu0 %v1388
        %8631 = vmatprep.subr.mxu0 %v1373
        %8632 = vmatpush2.msra.mxu0 %v1372
        %8633 = vmatprep.subr.mxu0 %v1357
        %8634 = vmatpush2.msra.mxu0 %v1356
        %8635 = vmatprep.subr.mxu0 %v1341
        %8636 = vmatpush2.msra.mxu0 %v1340
        %8637 = vmatprep.subr.mxu0 %v1325
        %8638 = vmatpush2.msra.mxu0 %v1324
        %8639 = vmatprep.subr.mxu0 %v1309
        %8640 = vmatpush2.msra.mxu0 %v1308
        %8641 = vmatprep.subr.mxu0 %v1293
        %8642 = vmatpush2.msra.mxu0 %v1292
        %8643 = vmatprep.subr.mxu0 %v1277
        %8644 = vmatpush2.msra.mxu0 %v1276
        %8645 = vmatprep.subr.mxu0 %v1261
        %8646 = vmatpush2.msra.mxu0 %v1260
        %8647 = vmatprep.subr.mxu0 %v1245
        %8648 = vmatpush2.msra.mxu0 %v1244
        %8649 = vmatprep.subr.mxu0 %v1229
        %8650 = vmatpush2.msra.mxu0 %v1228
        %8651 = vmatprep.subr.mxu0 %v1213
        %8652 = vmatpush2.msra.mxu0 %v1212
        %8653 = vmatprep.subr.mxu0 %v1197
        %8654 = vmatpush2.msra.mxu0 %v1196
        %8655 = vmatprep.subr.mxu0 %v1181
        %8656 = vmatpush2.msra.mxu0 %v1180
        %8657 = vmatprep.subr.mxu0 %v1165
        %8658 = vmatpush2.msra.mxu0 %v1164
        %8659 = vmatprep.subr.mxu0 %v1149
        %8660 = vmatpush2.msra.mxu0 %v1148
        %8661 = vmatprep.mubr.f32.mxu0 %v4482
        %8662 = vmatmul.mubr.f32.gmra.mxu0 %v4480
        %v8663 = vpop.f32.mrf.mxu0
        %v8664 = vadd.f32 %v8593, %v8663
        %v8665 = vpop.f32.mrf.mxu0
        %v8666 = vadd.f32 %v8595, %v8665
        %8667 = vdwg.mxu0
        %8668 = vmatprep.subr.mxu0 %v1645
        %8669 = vmatpush1.msra.mxu0 %v1644
        %8670 = vmatprep.subr.mxu0 %v1629
        %8671 = vmatpush1.msra.mxu0 %v1628
        %8672 = vmatprep.subr.mxu0 %v1613
        %8673 = vmatpush1.msra.mxu0 %v1612
        %8674 = vmatprep.subr.mxu0 %v1597
        %8675 = vmatpush1.msra.mxu0 %v1596
        %8676 = vmatprep.subr.mxu0 %v1581
        %8677 = vmatpush1.msra.mxu0 %v1580
        %8678 = vmatprep.subr.mxu0 %v1565
        %8679 = vmatpush1.msra.mxu0 %v1564
        %8680 = vmatprep.subr.mxu0 %v1549
        %8681 = vmatpush1.msra.mxu0 %v1548
        %8682 = vmatprep.subr.mxu0 %v1533
        %8683 = vmatpush1.msra.mxu0 %v1532
        %8684 = vmatprep.subr.mxu0 %v1517
        %8685 = vmatpush1.msra.mxu0 %v1516
        %8686 = vmatprep.subr.mxu0 %v1501
        %8687 = vmatpush1.msra.mxu0 %v1500
        %8688 = vmatprep.subr.mxu0 %v1485
        %8689 = vmatpush1.msra.mxu0 %v1484
        %8690 = vmatprep.subr.mxu0 %v1469
        %8691 = vmatpush1.msra.mxu0 %v1468
        %8692 = vmatprep.subr.mxu0 %v1453
        %8693 = vmatpush1.msra.mxu0 %v1452
        %8694 = vmatprep.subr.mxu0 %v1437
        %8695 = vmatpush1.msra.mxu0 %v1436
        %8696 = vmatprep.subr.mxu0 %v1421
        %8697 = vmatpush1.msra.mxu0 %v1420
        %8698 = vmatprep.subr.mxu0 %v1405
        %8699 = vmatpush1.msra.mxu0 %v1404
        %8700 = vmatprep.subr.mxu0 %v1901
        %8701 = vmatpush2.msra.mxu0 %v1900
        %8702 = vmatprep.subr.mxu0 %v1885
        %8703 = vmatpush2.msra.mxu0 %v1884
        %8704 = vmatprep.subr.mxu0 %v1869
        %8705 = vmatpush2.msra.mxu0 %v1868
        %8706 = vmatprep.subr.mxu0 %v1853
        %8707 = vmatpush2.msra.mxu0 %v1852
        %8708 = vmatprep.subr.mxu0 %v1837
        %8709 = vmatpush2.msra.mxu0 %v1836
        %8710 = vmatprep.subr.mxu0 %v1821
        %8711 = vmatpush2.msra.mxu0 %v1820
        %8712 = vmatprep.subr.mxu0 %v1805
        %8713 = vmatpush2.msra.mxu0 %v1804
        %8714 = vmatprep.subr.mxu0 %v1789
        %8715 = vmatpush2.msra.mxu0 %v1788
        %8716 = vmatprep.subr.mxu0 %v1773
        %8717 = vmatpush2.msra.mxu0 %v1772
        %8718 = vmatprep.subr.mxu0 %v1757
        %8719 = vmatpush2.msra.mxu0 %v1756
        %8720 = vmatprep.subr.mxu0 %v1741
        %8721 = vmatpush2.msra.mxu0 %v1740
        %8722 = vmatprep.subr.mxu0 %v1725
        %8723 = vmatpush2.msra.mxu0 %v1724
        %8724 = vmatprep.subr.mxu0 %v1709
        %8725 = vmatpush2.msra.mxu0 %v1708
        %8726 = vmatprep.subr.mxu0 %v1693
        %8727 = vmatpush2.msra.mxu0 %v1692
        %8728 = vmatprep.subr.mxu0 %v1677
        %8729 = vmatpush2.msra.mxu0 %v1676
        %8730 = vmatprep.subr.mxu0 %v1661
        %8731 = vmatpush2.msra.mxu0 %v1660
        %8732 = vmatprep.mubr.f32.mxu0 %v4498
        %8733 = vmatmul.mubr.f32.gmra.mxu0 %v4490
        %v8734 = vpop.f32.mrf.mxu0
        %v8735 = vadd.f32 %v8664, %v8734
        %v8736 = vpop.f32.mrf.mxu0
        %v8737 = vadd.f32 %v8666, %v8736
        %8738 = vdwg.mxu0
        %8739 = vmatprep.subr.mxu0 %v2157
        %8740 = vmatpush1.msra.mxu0 %v2156
        %8741 = vmatprep.subr.mxu0 %v2141
        %8742 = vmatpush1.msra.mxu0 %v2140
        %8743 = vmatprep.subr.mxu0 %v2125
        %8744 = vmatpush1.msra.mxu0 %v2124
        %8745 = vmatprep.subr.mxu0 %v2109
        %8746 = vmatpush1.msra.mxu0 %v2108
        %8747 = vmatprep.subr.mxu0 %v2093
        %8748 = vmatpush1.msra.mxu0 %v2092
        %8749 = vmatprep.subr.mxu0 %v2077
        %8750 = vmatpush1.msra.mxu0 %v2076
        %8751 = vmatprep.subr.mxu0 %v2061
        %8752 = vmatpush1.msra.mxu0 %v2060
        %8753 = vmatprep.subr.mxu0 %v2045
        %8754 = vmatpush1.msra.mxu0 %v2044
        %8755 = vmatprep.subr.mxu0 %v2029
        %8756 = vmatpush1.msra.mxu0 %v2028
        %8757 = vmatprep.subr.mxu0 %v2013
        %8758 = vmatpush1.msra.mxu0 %v2012
        %8759 = vmatprep.subr.mxu0 %v1997
        %8760 = vmatpush1.msra.mxu0 %v1996
        %8761 = vmatprep.subr.mxu0 %v1981
        %8762 = vmatpush1.msra.mxu0 %v1980
        %8763 = vmatprep.subr.mxu0 %v1965
        %8764 = vmatpush1.msra.mxu0 %v1964
        %8765 = vmatprep.subr.mxu0 %v1949
        %8766 = vmatpush1.msra.mxu0 %v1948
        %8767 = vmatprep.subr.mxu0 %v1933
        %8768 = vmatpush1.msra.mxu0 %v1932
        %8769 = vmatprep.subr.mxu0 %v1917
        %8770 = vmatpush1.msra.mxu0 %v1916
        %8771 = vmatprep.subr.mxu0 %v2413
        %8772 = vmatpush2.msra.mxu0 %v2412
        %8773 = vmatprep.subr.mxu0 %v2397
        %8774 = vmatpush2.msra.mxu0 %v2396
        %8775 = vmatprep.subr.mxu0 %v2381
        %8776 = vmatpush2.msra.mxu0 %v2380
        %8777 = vmatprep.subr.mxu0 %v2365
        %8778 = vmatpush2.msra.mxu0 %v2364
        %8779 = vmatprep.subr.mxu0 %v2349
        %8780 = vmatpush2.msra.mxu0 %v2348
        %8781 = vmatprep.subr.mxu0 %v2333
        %8782 = vmatpush2.msra.mxu0 %v2332
        %8783 = vmatprep.subr.mxu0 %v2317
        %8784 = vmatpush2.msra.mxu0 %v2316
        %8785 = vmatprep.subr.mxu0 %v2301
        %8786 = vmatpush2.msra.mxu0 %v2300
        %8787 = vmatprep.subr.mxu0 %v2285
        %8788 = vmatpush2.msra.mxu0 %v2284
        %8789 = vmatprep.subr.mxu0 %v2269
        %8790 = vmatpush2.msra.mxu0 %v2268
        %8791 = vmatprep.subr.mxu0 %v2253
        %8792 = vmatpush2.msra.mxu0 %v2252
        %8793 = vmatprep.subr.mxu0 %v2237
        %8794 = vmatpush2.msra.mxu0 %v2236
        %8795 = vmatprep.subr.mxu0 %v2221
        %8796 = vmatpush2.msra.mxu0 %v2220
        %8797 = vmatprep.subr.mxu0 %v2205
        %8798 = vmatpush2.msra.mxu0 %v2204
        %8799 = vmatprep.subr.mxu0 %v2189
        %8800 = vmatpush2.msra.mxu0 %v2188
        %8801 = vmatprep.subr.mxu0 %v2173
        %8802 = vmatpush2.msra.mxu0 %v2172
        %8803 = vmatprep.mubr.f32.mxu0 %v4499
        %8804 = vmatmul.mubr.f32.gmra.mxu0 %v4497
        %v8805 = vpop.f32.mrf.mxu0
        %v8806 = vadd.f32 %v8735, %v8805
        %v8807 = vpop.f32.mrf.mxu0
        %v8808 = vadd.f32 %v8737, %v8807
        %8809 = vdwg.mxu0
        %8810 = vmatprep.subr.mxu0 %v2669
        %8811 = vmatpush1.msra.mxu0 %v2668
        %8812 = vmatprep.subr.mxu0 %v2653
        %8813 = vmatpush1.msra.mxu0 %v2652
        %8814 = vmatprep.subr.mxu0 %v2637
        %8815 = vmatpush1.msra.mxu0 %v2636
        %8816 = vmatprep.subr.mxu0 %v2621
        %8817 = vmatpush1.msra.mxu0 %v2620
        %8818 = vmatprep.subr.mxu0 %v2605
        %8819 = vmatpush1.msra.mxu0 %v2604
        %8820 = vmatprep.subr.mxu0 %v2589
        %8821 = vmatpush1.msra.mxu0 %v2588
        %8822 = vmatprep.subr.mxu0 %v2573
        %8823 = vmatpush1.msra.mxu0 %v2572
        %8824 = vmatprep.subr.mxu0 %v2557
        %8825 = vmatpush1.msra.mxu0 %v2556
        %8826 = vmatprep.subr.mxu0 %v2541
        %8827 = vmatpush1.msra.mxu0 %v2540
        %8828 = vmatprep.subr.mxu0 %v2525
        %8829 = vmatpush1.msra.mxu0 %v2524
        %8830 = vmatprep.subr.mxu0 %v2509
        %8831 = vmatpush1.msra.mxu0 %v2508
        %8832 = vmatprep.subr.mxu0 %v2493
        %8833 = vmatpush1.msra.mxu0 %v2492
        %8834 = vmatprep.subr.mxu0 %v2477
        %8835 = vmatpush1.msra.mxu0 %v2476
        %8836 = vmatprep.subr.mxu0 %v2461
        %8837 = vmatpush1.msra.mxu0 %v2460
        %8838 = vmatprep.subr.mxu0 %v2445
        %8839 = vmatpush1.msra.mxu0 %v2444
        %8840 = vmatprep.subr.mxu0 %v2429
        %8841 = vmatpush1.msra.mxu0 %v2428
        %8842 = vmatprep.subr.mxu0 %v2925
        %8843 = vmatpush2.msra.mxu0 %v2924
        %8844 = vmatprep.subr.mxu0 %v2909
        %8845 = vmatpush2.msra.mxu0 %v2908
        %8846 = vmatprep.subr.mxu0 %v2893
        %8847 = vmatpush2.msra.mxu0 %v2892
        %8848 = vmatprep.subr.mxu0 %v2877
        %8849 = vmatpush2.msra.mxu0 %v2876
        %8850 = vmatprep.subr.mxu0 %v2861
        %8851 = vmatpush2.msra.mxu0 %v2860
        %8852 = vmatprep.subr.mxu0 %v2845
        %8853 = vmatpush2.msra.mxu0 %v2844
        %8854 = vmatprep.subr.mxu0 %v2829
        %8855 = vmatpush2.msra.mxu0 %v2828
        %8856 = vmatprep.subr.mxu0 %v2813
        %8857 = vmatpush2.msra.mxu0 %v2812
        %8858 = vmatprep.subr.mxu0 %v2797
        %8859 = vmatpush2.msra.mxu0 %v2796
        %8860 = vmatprep.subr.mxu0 %v2781
        %8861 = vmatpush2.msra.mxu0 %v2780
        %8862 = vmatprep.subr.mxu0 %v2765
        %8863 = vmatpush2.msra.mxu0 %v2764
        %8864 = vmatprep.subr.mxu0 %v2749
        %8865 = vmatpush2.msra.mxu0 %v2748
        %8866 = vmatprep.subr.mxu0 %v2733
        %8867 = vmatpush2.msra.mxu0 %v2732
        %8868 = vmatprep.subr.mxu0 %v2717
        %8869 = vmatpush2.msra.mxu0 %v2716
        %8870 = vmatprep.subr.mxu0 %v2701
        %8871 = vmatpush2.msra.mxu0 %v2700
        %8872 = vmatprep.subr.mxu0 %v2685
        %8873 = vmatpush2.msra.mxu0 %v2684
        %8874 = vmatprep.mubr.f32.mxu0 %v4515
        %8875 = vmatmul.mubr.f32.gmra.mxu0 %v4507
        %v8876 = vpop.f32.mrf.mxu0
        %v8877 = vadd.f32 %v8806, %v8876
        %v8878 = vpop.f32.mrf.mxu0
        %v8879 = vadd.f32 %v8808, %v8878
        %8880 = vdwg.mxu0
        %8881 = vmatprep.subr.mxu0 %v3181
        %8882 = vmatpush1.msra.mxu0 %v3180
        %8883 = vmatprep.subr.mxu0 %v3165
        %8884 = vmatpush1.msra.mxu0 %v3164
        %8885 = vmatprep.subr.mxu0 %v3149
        %8886 = vmatpush1.msra.mxu0 %v3148
        %8887 = vmatprep.subr.mxu0 %v3133
        %8888 = vmatpush1.msra.mxu0 %v3132
        %8889 = vmatprep.subr.mxu0 %v3117
        %8890 = vmatpush1.msra.mxu0 %v3116
        %8891 = vmatprep.subr.mxu0 %v3101
        %8892 = vmatpush1.msra.mxu0 %v3100
        %8893 = vmatprep.subr.mxu0 %v3085
        %8894 = vmatpush1.msra.mxu0 %v3084
        %8895 = vmatprep.subr.mxu0 %v3069
        %8896 = vmatpush1.msra.mxu0 %v3068
        %8897 = vmatprep.subr.mxu0 %v3053
        %8898 = vmatpush1.msra.mxu0 %v3052
        %8899 = vmatprep.subr.mxu0 %v3037
        %8900 = vmatpush1.msra.mxu0 %v3036
        %8901 = vmatprep.subr.mxu0 %v3021
        %8902 = vmatpush1.msra.mxu0 %v3020
        %8903 = vmatprep.subr.mxu0 %v3005
        %8904 = vmatpush1.msra.mxu0 %v3004
        %8905 = vmatprep.subr.mxu0 %v2989
        %8906 = vmatpush1.msra.mxu0 %v2988
        %8907 = vmatprep.subr.mxu0 %v2973
        %8908 = vmatpush1.msra.mxu0 %v2972
        %8909 = vmatprep.subr.mxu0 %v2957
        %8910 = vmatpush1.msra.mxu0 %v2956
        %8911 = vmatprep.subr.mxu0 %v2941
        %8912 = vmatpush1.msra.mxu0 %v2940
        %8913 = vmatprep.subr.mxu0 %v3437
        %8914 = vmatpush2.msra.mxu0 %v3436
        %8915 = vmatprep.subr.mxu0 %v3421
        %8916 = vmatpush2.msra.mxu0 %v3420
        %8917 = vmatprep.subr.mxu0 %v3405
        %8918 = vmatpush2.msra.mxu0 %v3404
        %8919 = vmatprep.subr.mxu0 %v3389
        %8920 = vmatpush2.msra.mxu0 %v3388
        %8921 = vmatprep.subr.mxu0 %v3373
        %8922 = vmatpush2.msra.mxu0 %v3372
        %8923 = vmatprep.subr.mxu0 %v3357
        %8924 = vmatpush2.msra.mxu0 %v3356
        %8925 = vmatprep.subr.mxu0 %v3341
        %8926 = vmatpush2.msra.mxu0 %v3340
        %8927 = vmatprep.subr.mxu0 %v3325
        %8928 = vmatpush2.msra.mxu0 %v3324
        %8929 = vmatprep.subr.mxu0 %v3309
        %8930 = vmatpush2.msra.mxu0 %v3308
        %8931 = vmatprep.subr.mxu0 %v3293
        %8932 = vmatpush2.msra.mxu0 %v3292
        %8933 = vmatprep.subr.mxu0 %v3277
        %8934 = vmatpush2.msra.mxu0 %v3276
        %8935 = vmatprep.subr.mxu0 %v3261
        %8936 = vmatpush2.msra.mxu0 %v3260
        %8937 = vmatprep.subr.mxu0 %v3245
        %8938 = vmatpush2.msra.mxu0 %v3244
        %8939 = vmatprep.subr.mxu0 %v3229
        %8940 = vmatpush2.msra.mxu0 %v3228
        %8941 = vmatprep.subr.mxu0 %v3213
        %8942 = vmatpush2.msra.mxu0 %v3212
        %8943 = vmatprep.subr.mxu0 %v3197
        %8944 = vmatpush2.msra.mxu0 %v3196
        %8945 = vmatprep.mubr.f32.mxu0 %v4516
        %8946 = vmatmul.mubr.f32.gmra.mxu0 %v4514
        %v8947 = vpop.f32.mrf.mxu0
        %v8948 = vadd.f32 %v8877, %v8947
        %v8949 = vpop.f32.mrf.mxu0
        %v8950 = vadd.f32 %v8879, %v8949
        %8951 = vdwg.mxu0
        %8952 = vmatprep.subr.mxu0 %v3693
        %8953 = vmatpush1.msra.mxu0 %v3692
        %8954 = vmatprep.subr.mxu0 %v3677
        %8955 = vmatpush1.msra.mxu0 %v3676
        %8956 = vmatprep.subr.mxu0 %v3661
        %8957 = vmatpush1.msra.mxu0 %v3660
        %8958 = vmatprep.subr.mxu0 %v3645
        %8959 = vmatpush1.msra.mxu0 %v3644
        %8960 = vmatprep.subr.mxu0 %v3629
        %8961 = vmatpush1.msra.mxu0 %v3628
        %8962 = vmatprep.subr.mxu0 %v3613
        %8963 = vmatpush1.msra.mxu0 %v3612
        %8964 = vmatprep.subr.mxu0 %v3597
        %8965 = vmatpush1.msra.mxu0 %v3596
        %8966 = vmatprep.subr.mxu0 %v3581
        %8967 = vmatpush1.msra.mxu0 %v3580
        %8968 = vmatprep.subr.mxu0 %v3565
        %8969 = vmatpush1.msra.mxu0 %v3564
        %8970 = vmatprep.subr.mxu0 %v3549
        %8971 = vmatpush1.msra.mxu0 %v3548
        %8972 = vmatprep.subr.mxu0 %v3533
        %8973 = vmatpush1.msra.mxu0 %v3532
        %8974 = vmatprep.subr.mxu0 %v3517
        %8975 = vmatpush1.msra.mxu0 %v3516
        %8976 = vmatprep.subr.mxu0 %v3501
        %8977 = vmatpush1.msra.mxu0 %v3500
        %8978 = vmatprep.subr.mxu0 %v3485
        %8979 = vmatpush1.msra.mxu0 %v3484
        %8980 = vmatprep.subr.mxu0 %v3469
        %8981 = vmatpush1.msra.mxu0 %v3468
        %8982 = vmatprep.subr.mxu0 %v3453
        %8983 = vmatpush1.msra.mxu0 %v3452
        %8984 = vmatprep.subr.mxu0 %v3949
        %8985 = vmatpush2.msra.mxu0 %v3948
        %8986 = vmatprep.subr.mxu0 %v3933
        %8987 = vmatpush2.msra.mxu0 %v3932
        %8988 = vmatprep.subr.mxu0 %v3917
        %8989 = vmatpush2.msra.mxu0 %v3916
        %8990 = vmatprep.subr.mxu0 %v3901
        %8991 = vmatpush2.msra.mxu0 %v3900
        %8992 = vmatprep.subr.mxu0 %v3885
        %8993 = vmatpush2.msra.mxu0 %v3884
        %8994 = vmatprep.subr.mxu0 %v3869
        %8995 = vmatpush2.msra.mxu0 %v3868
        %8996 = vmatprep.subr.mxu0 %v3853
        %8997 = vmatpush2.msra.mxu0 %v3852
        %8998 = vmatprep.subr.mxu0 %v3837
        %8999 = vmatpush2.msra.mxu0 %v3836
        %9000 = vmatprep.subr.mxu0 %v3821
        %9001 = vmatpush2.msra.mxu0 %v3820
        %9002 = vmatprep.subr.mxu0 %v3805
        %9003 = vmatpush2.msra.mxu0 %v3804
        %9004 = vmatprep.subr.mxu0 %v3789
        %9005 = vmatpush2.msra.mxu0 %v3788
        %9006 = vmatprep.subr.mxu0 %v3773
        %9007 = vmatpush2.msra.mxu0 %v3772
        %9008 = vmatprep.subr.mxu0 %v3757
        %9009 = vmatpush2.msra.mxu0 %v3756
        %9010 = vmatprep.subr.mxu0 %v3741
        %9011 = vmatpush2.msra.mxu0 %v3740
        %9012 = vmatprep.subr.mxu0 %v3725
        %9013 = vmatpush2.msra.mxu0 %v3724
        %9014 = vmatprep.subr.mxu0 %v3709
        %9015 = vmatpush2.msra.mxu0 %v3708
        %9016 = vmatprep.mubr.f32.mxu0 %v4532
        %9017 = vmatmul.mubr.f32.gmra.mxu0 %v4524
        %v9018 = vpop.f32.mrf.mxu0
        %v9019 = vadd.f32 %v8948, %v9018
        %v9020 = vpop.f32.mrf.mxu0
        %v9021 = vadd.f32 %v8950, %v9020
        %9022 = vdwg.mxu0
        %9023 = vmatprep.subr.mxu0 %v4205
        %9024 = vmatpush1.msra.mxu0 %v4204
        %9025 = vmatprep.subr.mxu0 %v4189
        %9026 = vmatpush1.msra.mxu0 %v4188
        %9027 = vmatprep.subr.mxu0 %v4173
        %9028 = vmatpush1.msra.mxu0 %v4172
        %9029 = vmatprep.subr.mxu0 %v4157
        %9030 = vmatpush1.msra.mxu0 %v4156
        %9031 = vmatprep.subr.mxu0 %v4141
        %9032 = vmatpush1.msra.mxu0 %v4140
        %9033 = vmatprep.subr.mxu0 %v4125
        %9034 = vmatpush1.msra.mxu0 %v4124
        %9035 = vmatprep.subr.mxu0 %v4109
        %9036 = vmatpush1.msra.mxu0 %v4108
        %9037 = vmatprep.subr.mxu0 %v4093
        %9038 = vmatpush1.msra.mxu0 %v4092
        %9039 = vmatprep.subr.mxu0 %v4077
        %9040 = vmatpush1.msra.mxu0 %v4076
        %9041 = vmatprep.subr.mxu0 %v4061
        %9042 = vmatpush1.msra.mxu0 %v4060
        %9043 = vmatprep.subr.mxu0 %v4045
        %9044 = vmatpush1.msra.mxu0 %v4044
        %9045 = vmatprep.subr.mxu0 %v4029
        %9046 = vmatpush1.msra.mxu0 %v4028
        %9047 = vmatprep.subr.mxu0 %v4013
        %9048 = vmatpush1.msra.mxu0 %v4012
        %9049 = vmatprep.subr.mxu0 %v3997
        %9050 = vmatpush1.msra.mxu0 %v3996
        %9051 = vmatprep.subr.mxu0 %v3981
        %9052 = vmatpush1.msra.mxu0 %v3980
        %9053 = vmatprep.subr.mxu0 %v3965
        %9054 = vmatpush1.msra.mxu0 %v3964
        %9055 = vmatprep.subr.mxu0 %v4461
        %9056 = vmatpush2.msra.mxu0 %v4460
        %9057 = vmatprep.subr.mxu0 %v4445
        %9058 = vmatpush2.msra.mxu0 %v4444
        %9059 = vmatprep.subr.mxu0 %v4429
        %9060 = vmatpush2.msra.mxu0 %v4428
        %9061 = vmatprep.subr.mxu0 %v4413
        %9062 = vmatpush2.msra.mxu0 %v4412
        %9063 = vmatprep.subr.mxu0 %v4397
        %9064 = vmatpush2.msra.mxu0 %v4396
        %9065 = vmatprep.subr.mxu0 %v4381
        %9066 = vmatpush2.msra.mxu0 %v4380
        %9067 = vmatprep.subr.mxu0 %v4365
        %9068 = vmatpush2.msra.mxu0 %v4364
        %9069 = vmatprep.subr.mxu0 %v4349
        %9070 = vmatpush2.msra.mxu0 %v4348
        %9071 = vmatprep.subr.mxu0 %v4333
        %9072 = vmatpush2.msra.mxu0 %v4332
        %9073 = vmatprep.subr.mxu0 %v4317
        %9074 = vmatpush2.msra.mxu0 %v4316
        %9075 = vmatprep.subr.mxu0 %v4301
        %9076 = vmatpush2.msra.mxu0 %v4300
        %9077 = vmatprep.subr.mxu0 %v4285
        %9078 = vmatpush2.msra.mxu0 %v4284
        %9079 = vmatprep.subr.mxu0 %v4269
        %9080 = vmatpush2.msra.mxu0 %v4268
        %9081 = vmatprep.subr.mxu0 %v4253
        %9082 = vmatpush2.msra.mxu0 %v4252
        %9083 = vmatprep.subr.mxu0 %v4237
        %9084 = vmatpush2.msra.mxu0 %v4236
        %9085 = vmatprep.subr.mxu0 %v4221
        %9086 = vmatpush2.msra.mxu0 %v4220
        %9087 = vmatprep.mubr.f32.mxu0 %v4533
        %9088 = vmatmul.mubr.f32.gmra.mxu0 %v4531
        %v9089 = vpop.f32.mrf.mxu0
        %v9090 = vadd.f32 %v9019, %v9089
        %v9091 = vpop.f32.mrf.mxu0
        %v9092 = vadd.f32 %v9021, %v9091
        %9093 = vdwg.mxu0
        %v9110 = vcombine.low %v5114, %v5116
        %v9111 = vcombine.low %v5682, %v5684
        %v9113 = vunpack.c.l.s4 1983009808
        %v9114 = vunpack.c.0.s8 %v9113
        %v9115 = vlaneseq
        %v9116 = vshrl.u32 %v9115, 7
        %v9117 = vsub.s32 %v9114, %v9116
        %v9118 = vrot.slane %v9110, %v9117
        %v9120 = vunpack.c.l.s4 1983009808
        %v9121 = vunpack.c.0.s8 %v9120
        %v9122 = vlaneseq
        %v9123 = vshrl.u32 %v9122, 7
        %v9124 = vsub.s32 %v9121, %v9123
        %v9125 = vrot.slane %v9111, %v9124
        %v9126 = vcombine.low %v9118, %v9125
        %v9127 = vcombine.low %v6250, %v6252
        %v9128 = vcombine.low %v6818, %v6820
        %v9130 = vunpack.c.l.s4 1983009808
        %v9131 = vunpack.c.0.s8 %v9130
        %v9132 = vlaneseq
        %v9133 = vshrl.u32 %v9132, 7
        %v9134 = vsub.s32 %v9131, %v9133
        %v9135 = vrot.slane %v9127, %v9134
        %v9137 = vunpack.c.l.s4 1983009808
        %v9138 = vunpack.c.0.s8 %v9137
        %v9139 = vlaneseq
        %v9140 = vshrl.u32 %v9139, 7
        %v9141 = vsub.s32 %v9138, %v9140
        %v9142 = vrot.slane %v9128, %v9141
        %v9143 = vcombine.low %v9135, %v9142
        %v9144 = vcombine.low %v7386, %v7388
        %v9145 = vcombine.low %v7954, %v7956
        %v9147 = vunpack.c.l.s4 1983009808
        %v9148 = vunpack.c.0.s8 %v9147
        %v9149 = vlaneseq
        %v9150 = vshrl.u32 %v9149, 7
        %v9151 = vsub.s32 %v9148, %v9150
        %v9152 = vrot.slane %v9144, %v9151
        %v9154 = vunpack.c.l.s4 1983009808
        %v9155 = vunpack.c.0.s8 %v9154
        %v9156 = vlaneseq
        %v9157 = vshrl.u32 %v9156, 7
        %v9158 = vsub.s32 %v9155, %v9157
        %v9159 = vrot.slane %v9145, %v9158
        %v9160 = vcombine.low %v9152, %v9159
        %v9161 = vcombine.low %v8522, %v8524
        %v9162 = vcombine.low %v9090, %v9092
        %v9164 = vunpack.c.l.s4 1983009808
        %v9165 = vunpack.c.0.s8 %v9164
        %v9166 = vlaneseq
        %v9167 = vshrl.u32 %v9166, 7
        %v9168 = vsub.s32 %v9165, %v9167
        %v9169 = vrot.slane %v9161, %v9168
        %v9171 = vunpack.c.l.s4 1983009808
        %v9172 = vunpack.c.0.s8 %v9171
        %v9173 = vlaneseq
        %v9174 = vshrl.u32 %v9173, 7
        %v9175 = vsub.s32 %v9172, %v9174
        %v9176 = vrot.slane %v9162, %v9175
        %v9177 = vcombine.low %v9169, %v9176
        %v9182 = vadd.f32 %v358, %v9126
        %v9183 = vadd.f32 %v359, %v9143
        %v9184 = vadd.f32 %v360, %v9160
        %v9185 = vadd.f32 %v361, %v9177
        %9186 = vst [vmem:[%s343] sm:$0xff] %v9182
        %9187 = vst [vmem:[%s343 + $0x8] sm:$0xff] %v9183
        %9188 = vst [vmem:[%s343 + $0x10] sm:$0xff] %v9184
        %9189 = vst [vmem:[%s343 + $0x18] sm:$0xff] %v9185
        %p9190 = scmp.eq.s32.totalorder %s32, 4
        // Predicated region
        $region57: #{tpu_custom_call.1} parent=35 // pred_check
          %p9191 = pneg %p9190
        $region58: #{tpu_custom_call.1} parent=35 // pred_check_branch
          %9193 = sbr.rel (%p9191) target = $region60
        $region59: #{tpu_custom_call.1} parent=35 // pred_region
          %v9194 = vld [vmem:[%s343] sm:$0xff]
          %v9195 = vld [vmem:[%s343 + $0x8] sm:$0xff]
          %v9196 = vld [vmem:[%s343 + $0x10] sm:$0xff]
          %v9197 = vld [vmem:[%s343 + $0x18] sm:$0xff]
          %v9198 = vld [vmem:[%s295] sm:$0xff]
          %v9199 = vld [vmem:[%s295 + $0x8] sm:$0xff]
          %v9202 = vlaneseq
          %v9203 = vshrl.u32 %v9202, 7
          %v9204 = vsub.s32 0, %v9203
          %v9205 = vrot.slane %v9198, %v9204
          %v9206 = vlaneseq
          %v9207 = vshrl.u32 %v9206, 7
          %v9208 = vsub.s32 1, %v9207
          %v9209 = vrot.slane %v9198, %v9208
          %v9210 = vlaneseq
          %v9211 = vshrl.u32 %v9210, 7
          %v9212 = vsub.s32 2, %v9211
          %v9213 = vrot.slane %v9198, %v9212
          %v9214 = vlaneseq
          %v9215 = vshrl.u32 %v9214, 7
          %v9216 = vsub.s32 3, %v9215
          %v9217 = vrot.slane %v9198, %v9216
          %v9218 = vlaneseq
          %v9219 = vshrl.u32 %v9218, 7
          %v9220 = vsub.s32 4, %v9219
          %v9221 = vrot.slane %v9198, %v9220
          %v9222 = vlaneseq
          %v9223 = vshrl.u32 %v9222, 7
          %v9224 = vsub.s32 5, %v9223
          %v9225 = vrot.slane %v9198, %v9224
          %v9226 = vlaneseq
          %v9227 = vshrl.u32 %v9226, 7
          %v9228 = vsub.s32 6, %v9227
          %v9229 = vrot.slane %v9198, %v9228
          %v9230 = vlaneseq
          %v9231 = vshrl.u32 %v9230, 7
          %v9232 = vsub.s32 7, %v9231
          %v9233 = vrot.slane %v9198, %v9232
          %v9234 = vlaneseq
          %v9235 = vshrl.u32 %v9234, 7
          %v9236 = vsub.s32 0, %v9235
          %v9237 = vrot.slane %v9199, %v9236
          %v9238 = vlaneseq
          %v9239 = vshrl.u32 %v9238, 7
          %v9240 = vsub.s32 1, %v9239
          %v9241 = vrot.slane %v9199, %v9240
          %v9242 = vlaneseq
          %v9243 = vshrl.u32 %v9242, 7
          %v9244 = vsub.s32 2, %v9243
          %v9245 = vrot.slane %v9199, %v9244
          %v9246 = vlaneseq
          %v9247 = vshrl.u32 %v9246, 7
          %v9248 = vsub.s32 3, %v9247
          %v9249 = vrot.slane %v9199, %v9248
          %v9250 = vlaneseq
          %v9251 = vshrl.u32 %v9250, 7
          %v9252 = vsub.s32 4, %v9251
          %v9253 = vrot.slane %v9199, %v9252
          %v9254 = vlaneseq
          %v9255 = vshrl.u32 %v9254, 7
          %v9256 = vsub.s32 5, %v9255
          %v9257 = vrot.slane %v9199, %v9256
          %v9258 = vlaneseq
          %v9259 = vshrl.u32 %v9258, 7
          %v9260 = vsub.s32 6, %v9259
          %v9261 = vrot.slane %v9199, %v9260
          %v9262 = vlaneseq
          %v9263 = vshrl.u32 %v9262, 7
          %v9264 = vsub.s32 7, %v9263
          %v9265 = vrot.slane %v9199, %v9264
          %v9266 = vcombine.low %v9205, %v9209
          %v9267 = vcombine.low %v9213, %v9217
          %v9269 = vunpack.c.l.s4 1983009808
          %v9270 = vunpack.c.0.s8 %v9269
          %v9271 = vlaneseq
          %v9272 = vshrl.u32 %v9271, 7
          %v9273 = vsub.s32 %v9270, %v9272
          %v9274 = vrot.slane %v9266, %v9273
          %v9276 = vunpack.c.l.s4 1983009808
          %v9277 = vunpack.c.0.s8 %v9276
          %v9278 = vlaneseq
          %v9279 = vshrl.u32 %v9278, 7
          %v9280 = vsub.s32 %v9277, %v9279
          %v9281 = vrot.slane %v9267, %v9280
          %v9282 = vcombine.low %v9274, %v9281
          %v9283 = vcombine.low %v9221, %v9225
          %v9284 = vcombine.low %v9229, %v9233
          %v9286 = vunpack.c.l.s4 1983009808
          %v9287 = vunpack.c.0.s8 %v9286
          %v9288 = vlaneseq
          %v9289 = vshrl.u32 %v9288, 7
          %v9290 = vsub.s32 %v9287, %v9289
          %v9291 = vrot.slane %v9283, %v9290
          %v9293 = vunpack.c.l.s4 1983009808
          %v9294 = vunpack.c.0.s8 %v9293
          %v9295 = vlaneseq
          %v9296 = vshrl.u32 %v9295, 7
          %v9297 = vsub.s32 %v9294, %v9296
          %v9298 = vrot.slane %v9284, %v9297
          %v9299 = vcombine.low %v9291, %v9298
          %v9300 = vcombine.low %v9237, %v9241
          %v9301 = vcombine.low %v9245, %v9249
          %v9303 = vunpack.c.l.s4 1983009808
          %v9304 = vunpack.c.0.s8 %v9303
          %v9305 = vlaneseq
          %v9306 = vshrl.u32 %v9305, 7
          %v9307 = vsub.s32 %v9304, %v9306
          %v9308 = vrot.slane %v9300, %v9307
          %v9310 = vunpack.c.l.s4 1983009808
          %v9311 = vunpack.c.0.s8 %v9310
          %v9312 = vlaneseq
          %v9313 = vshrl.u32 %v9312, 7
          %v9314 = vsub.s32 %v9311, %v9313
          %v9315 = vrot.slane %v9301, %v9314
          %v9316 = vcombine.low %v9308, %v9315
          %v9317 = vcombine.low %v9253, %v9257
          %v9318 = vcombine.low %v9261, %v9265
          %v9320 = vunpack.c.l.s4 1983009808
          %v9321 = vunpack.c.0.s8 %v9320
          %v9322 = vlaneseq
          %v9323 = vshrl.u32 %v9322, 7
          %v9324 = vsub.s32 %v9321, %v9323
          %v9325 = vrot.slane %v9317, %v9324
          %v9327 = vunpack.c.l.s4 1983009808
          %v9328 = vunpack.c.0.s8 %v9327
          %v9329 = vlaneseq
          %v9330 = vshrl.u32 %v9329, 7
          %v9331 = vsub.s32 %v9328, %v9330
          %v9332 = vrot.slane %v9318, %v9331
          %v9333 = vcombine.low %v9325, %v9332
          %v9338 = vmul.f32 %v9194, %v9282
          %v9339 = vmul.f32 %v9195, %v9299
          %v9340 = vmul.f32 %v9196, %v9316
          %v9341 = vmul.f32 %v9197, %v9333
          %v9342 = vld [vmem:[%s304] sm:$0xff]
          %v9343 = vld [vmem:[%s304 + $0x8] sm:$0xff]
          %v9346 = vlaneseq
          %v9347 = vshrl.u32 %v9346, 7
          %v9348 = vsub.s32 0, %v9347
          %v9349 = vrot.slane %v9342, %v9348
          %v9350 = vlaneseq
          %v9351 = vshrl.u32 %v9350, 7
          %v9352 = vsub.s32 1, %v9351
          %v9353 = vrot.slane %v9342, %v9352
          %v9354 = vlaneseq
          %v9355 = vshrl.u32 %v9354, 7
          %v9356 = vsub.s32 2, %v9355
          %v9357 = vrot.slane %v9342, %v9356
          %v9358 = vlaneseq
          %v9359 = vshrl.u32 %v9358, 7
          %v9360 = vsub.s32 3, %v9359
          %v9361 = vrot.slane %v9342, %v9360
          %v9362 = vlaneseq
          %v9363 = vshrl.u32 %v9362, 7
          %v9364 = vsub.s32 4, %v9363
          %v9365 = vrot.slane %v9342, %v9364
          %v9366 = vlaneseq
          %v9367 = vshrl.u32 %v9366, 7
          %v9368 = vsub.s32 5, %v9367
          %v9369 = vrot.slane %v9342, %v9368
          %v9370 = vlaneseq
          %v9371 = vshrl.u32 %v9370, 7
          %v9372 = vsub.s32 6, %v9371
          %v9373 = vrot.slane %v9342, %v9372
          %v9374 = vlaneseq
          %v9375 = vshrl.u32 %v9374, 7
          %v9376 = vsub.s32 7, %v9375
          %v9377 = vrot.slane %v9342, %v9376
          %v9378 = vlaneseq
          %v9379 = vshrl.u32 %v9378, 7
          %v9380 = vsub.s32 0, %v9379
          %v9381 = vrot.slane %v9343, %v9380
          %v9382 = vlaneseq
          %v9383 = vshrl.u32 %v9382, 7
          %v9384 = vsub.s32 1, %v9383
          %v9385 = vrot.slane %v9343, %v9384
          %v9386 = vlaneseq
          %v9387 = vshrl.u32 %v9386, 7
          %v9388 = vsub.s32 2, %v9387
          %v9389 = vrot.slane %v9343, %v9388
          %v9390 = vlaneseq
          %v9391 = vshrl.u32 %v9390, 7
          %v9392 = vsub.s32 3, %v9391
          %v9393 = vrot.slane %v9343, %v9392
          %v9394 = vlaneseq
          %v9395 = vshrl.u32 %v9394, 7
          %v9396 = vsub.s32 4, %v9395
          %v9397 = vrot.slane %v9343, %v9396
          %v9398 = vlaneseq
          %v9399 = vshrl.u32 %v9398, 7
          %v9400 = vsub.s32 5, %v9399
          %v9401 = vrot.slane %v9343, %v9400
          %v9402 = vlaneseq
          %v9403 = vshrl.u32 %v9402, 7
          %v9404 = vsub.s32 6, %v9403
          %v9405 = vrot.slane %v9343, %v9404
          %v9406 = vlaneseq
          %v9407 = vshrl.u32 %v9406, 7
          %v9408 = vsub.s32 7, %v9407
          %v9409 = vrot.slane %v9343, %v9408
          %v9410 = vcombine.low %v9349, %v9353
          %v9411 = vcombine.low %v9357, %v9361
          %v9413 = vunpack.c.l.s4 1983009808
          %v9414 = vunpack.c.0.s8 %v9413
          %v9415 = vlaneseq
          %v9416 = vshrl.u32 %v9415, 7
          %v9417 = vsub.s32 %v9414, %v9416
          %v9418 = vrot.slane %v9410, %v9417
          %v9420 = vunpack.c.l.s4 1983009808
          %v9421 = vunpack.c.0.s8 %v9420
          %v9422 = vlaneseq
          %v9423 = vshrl.u32 %v9422, 7
          %v9424 = vsub.s32 %v9421, %v9423
          %v9425 = vrot.slane %v9411, %v9424
          %v9426 = vcombine.low %v9418, %v9425
          %v9427 = vcombine.low %v9365, %v9369
          %v9428 = vcombine.low %v9373, %v9377
          %v9430 = vunpack.c.l.s4 1983009808
          %v9431 = vunpack.c.0.s8 %v9430
          %v9432 = vlaneseq
          %v9433 = vshrl.u32 %v9432, 7
          %v9434 = vsub.s32 %v9431, %v9433
          %v9435 = vrot.slane %v9427, %v9434
          %v9437 = vunpack.c.l.s4 1983009808
          %v9438 = vunpack.c.0.s8 %v9437
          %v9439 = vlaneseq
          %v9440 = vshrl.u32 %v9439, 7
          %v9441 = vsub.s32 %v9438, %v9440
          %v9442 = vrot.slane %v9428, %v9441
          %v9443 = vcombine.low %v9435, %v9442
          %v9444 = vcombine.low %v9381, %v9385
          %v9445 = vcombine.low %v9389, %v9393
          %v9447 = vunpack.c.l.s4 1983009808
          %v9448 = vunpack.c.0.s8 %v9447
          %v9449 = vlaneseq
          %v9450 = vshrl.u32 %v9449, 7
          %v9451 = vsub.s32 %v9448, %v9450
          %v9452 = vrot.slane %v9444, %v9451
          %v9454 = vunpack.c.l.s4 1983009808
          %v9455 = vunpack.c.0.s8 %v9454
          %v9456 = vlaneseq
          %v9457 = vshrl.u32 %v9456, 7
          %v9458 = vsub.s32 %v9455, %v9457
          %v9459 = vrot.slane %v9445, %v9458
          %v9460 = vcombine.low %v9452, %v9459
          %v9461 = vcombine.low %v9397, %v9401
          %v9462 = vcombine.low %v9405, %v9409
          %v9464 = vunpack.c.l.s4 1983009808
          %v9465 = vunpack.c.0.s8 %v9464
          %v9466 = vlaneseq
          %v9467 = vshrl.u32 %v9466, 7
          %v9468 = vsub.s32 %v9465, %v9467
          %v9469 = vrot.slane %v9461, %v9468
          %v9471 = vunpack.c.l.s4 1983009808
          %v9472 = vunpack.c.0.s8 %v9471
          %v9473 = vlaneseq
          %v9474 = vshrl.u32 %v9473, 7
          %v9475 = vsub.s32 %v9472, %v9474
          %v9476 = vrot.slane %v9462, %v9475
          %v9477 = vcombine.low %v9469, %v9476
          %v9482 = vadd.f32 %v9338, %v9426
          %v9483 = vadd.f32 %v9339, %v9443
          %v9484 = vadd.f32 %v9340, %v9460
          %v9485 = vadd.f32 %v9341, %v9477
          %v9486 = vmax.f32 %v9482, 0.0
          %v9487 = vmax.f32 %v9483, 0.0
          %v9488 = vmax.f32 %v9484, 0.0
          %v9489 = vmax.f32 %v9485, 0.0
          %9490 = vst [vmem:[%s343] sm:$0xff] %v9486
          %9491 = vst [vmem:[%s343 + $0x8] sm:$0xff] %v9487
          %9492 = vst [vmem:[%s343 + $0x10] sm:$0xff] %v9488
          %9493 = vst [vmem:[%s343 + $0x18] sm:$0xff] %v9489
        $region60: #{tpu_custom_call.1} parent=35 // pred_fallthru
          _
        %s9494 = sand.u32 %s153, 1
        %s9495 = scalar_lea.sflag [#allocation4], %s9494
        %s9496 = sand.u32 %s153, 1
        %s9497 = smul.addr %s9496, 32
        %s9498 = scalar_lea.vmem [#allocation10], %s9497
        // Predicated region
        $region61: #{tpu_custom_call.1} parent=35 // pred_check
          %p9499 = pneg %p163
        $region62: #{tpu_custom_call.1} parent=35 // pred_check_branch
          %9501 = sbr.rel (%p9499) target = $region64
        $region63: #{tpu_custom_call.1} parent=35 // pred_region
          %s9502 = smul.u32 16, %s31
          %s9504 = ssub.s32 512, 512
          %9505 = vsyncadd %s9495, %s9504
          %s9506 = smul.addr %s9502, 32
          %s9507 = scalar_lea.hbm %s4, %s9506
          %s9509 = sshll.u32 %s9498, 4
          %s9510 = int_to_ptr.vmem [resolvable:$true] %s9509
          %9512 = dma.vmem_to_hbm [thread:$0]  %s9510, 512, %s9507, %s9495
        $region64: #{tpu_custom_call.1} parent=35 // pred_fallthru
          _
      $region36: #{tpu_custom_call.1} parent=5 // pred_fallthru
        _
      %p9513 = scmp.le.s32.totalorder 2, %s22
      // Predicated region
      $region65: #{tpu_custom_call.1} parent=5 // pred_check
        %p9514 = pneg %p9513
      $region66: #{tpu_custom_call.1} parent=5 // pred_check_branch
        %9516 = sbr.rel (%p9514) target = $region68
      $region67: #{tpu_custom_call.1} parent=5 // pred_region
        %s9517 = ssub.s32 %s22, 2
        // Predicated region
        $region69: #{tpu_custom_call.1} parent=67 // pred_check
          %p9518 = pneg %p169
        $region70: #{tpu_custom_call.1} parent=67 // pred_check_branch
          %9520 = sbr.rel (%p9518) target = $region72
        $region71: #{tpu_custom_call.1} parent=67 // pred_region
          %s9521 = sand.u32 %s154, 1
          %s9522 = scalar_lea.sflag [#allocation4], %s9521
          %s9523 = sand.u32 %s154, 1
          %s9524 = smul.addr %s9523, 32
          %s9525 = scalar_lea.vmem [#allocation10], %s9524
          %9526 = dma.done %s9522, 512
        $region72: #{tpu_custom_call.1} parent=67 // pred_fallthru
          _
      $region68: #{tpu_custom_call.1} parent=5 // pred_fallthru
        _
    $region6: #{tpu_custom_call.1} parent=1 // loop_footer
      %s26 = sadd.s32 1, %s22
    $region7: #{tpu_custom_call.1} parent=1 // loop_footer_branch
      %21 = sbr.rel target = $region3
    $region8: #{tpu_custom_call.1} parent=1 // loop_exit
      _
    %9527 = vsyncpa [#allocation3], 1
    %s9528 = scalar_lea.sflag [#allocation3], 1
    %9529 = vsyncpa %s9528, 1
    %9530 = vsyncpa [#allocation6], 1
    %s9531 = scalar_lea.sflag [#allocation6], 1
    %9532 = vsyncpa %s9531, 1
    %9533 = vsyncpa [#allocation9], 1
    %s9534 = scalar_lea.sflag [#allocation9], 1
    %9535 = vsyncpa %s9534, 1
    %9536 = vsyncpa [#allocation4], 1
    %s9537 = scalar_lea.sflag [#allocation4], 1
    %9538 = vsyncpa %s9537, 1

</llo_original>
